<compile_context>
chip_gen: v6e
topology: v6e:2x2x1
jax: 0.10.0
libtpu: 0.0.40
codegen_flags: <defaults>
</compile_context>

<pallas_src>
import jax
import jax.numpy as jnp
from jax import lax
from jax.experimental import pallas as pl
from jax.experimental.pallas import tpu as pltpu
import numpy as np

# Keep XLA reference, wrapper matmuls and in-kernel MXU matmuls all in true
# f32 so kernel-vs-reference differences are only addition-order rounding.
jax.config.update("jax_default_matmul_precision", "highest")

LANE = 128  # per-gate slab width (one vreg of lanes)
SUB = 8     # f32 sublane count


def _round_up(x, m):
    return (x + m - 1) // m * m


def _vmem_bytes_estimate(tc, bp, i, hp):
    """Rough per-call VMEM footprint (lane/sublane padded, f32)."""
    b = 4
    x_chunk = 2 * _round_up(tc * bp, SUB) * _round_up(i, LANE) * b  # dbl-buffered
    wih = _round_up(i, SUB) * 4 * hp * b
    whh = hp * 4 * hp * b
    bias = SUB * 4 * hp * b
    pre = _round_up(tc * bp, SUB) * 4 * hp * b
    state = 2 * bp * hp * b
    out = bp * hp * b
    return x_chunk + wih + whh + bias + pre + state + out


def _lstm_chunk_kernel(x_ref, wih_ref, whh_ref, b_ref, hout_ref,
                       h_sc, c_sc, pre_sc):
    # x_ref:   (TC*BP, I)     time-major x, batch padded to BP; rows
    #                         [t*BP, (t+1)*BP) belong to timestep t of the chunk.
    # wih_ref: (I, 4*HP)      input->gates weights, gate-slab padded columns.
    # whh_ref: (HP, 4*HP)     hidden->gates weights, padded rows & columns zero.
    # b_ref:   (1, 4*HP)      b_ih + b_hh, gate-slab padded.
    # hout_ref:(BP, HP)       final hidden state (written on the last chunk).
    # h_sc/c_sc:(BP, HP)      recurrent state carried across grid steps.
    # pre_sc:  (TC*BP, 4*HP)  per-chunk pre-gate scratch.
    t_chunk = pl.program_id(0)
    n_rows = x_ref.shape[0]
    hp4 = wih_ref.shape[1]
    HP = hp4 // 4
    BP = h_sc.shape[0]
    TC = n_rows // BP

    @pl.when(t_chunk == 0)
    def _init():
        h_sc[...] = jnp.zeros_like(h_sc)
        c_sc[...] = jnp.zeros_like(c_sc)

    # Fused input projection for the whole chunk: one well-shaped MXU matmul
    # (M = TC*BP); pre-gates never touch HBM.
    pre_sc[...] = (
        jnp.dot(x_ref[...], wih_ref[...], preferred_element_type=jnp.float32)
        + b_ref[...]
    )

    def step(t, carry):
        h, c = carry
        row0 = pl.multiple_of(t * BP, BP)  # sublane-aligned dynamic slice
        # Only the recurrent matmul is on the serial critical path; it streams
        # W_hh from VMEM each step (no hoisted weight value / vreg spills).
        gates = pre_sc[pl.ds(row0, BP), :] + jnp.dot(
            h, whh_ref[...], preferred_element_type=jnp.float32)
        # Gate slices start on 128-lane boundaries and are full vregs wide.
        i_g = jax.nn.sigmoid(gates[:, 0 * HP:1 * HP])
        f_g = jax.nn.sigmoid(gates[:, 1 * HP:2 * HP])
        g_g = jnp.tanh(gates[:, 2 * HP:3 * HP])
        o_g = jax.nn.sigmoid(gates[:, 3 * HP:4 * HP])
        c_new = f_g * c + i_g * g_g
        h_new = o_g * jnp.tanh(c_new)
        return h_new, c_new

    # Unroll bounded by the (small, static) chunk length, not total T.
    h_f, c_f = lax.fori_loop(0, TC, step, (h_sc[...], c_sc[...]), unroll=True)
    h_sc[...] = h_f
    c_sc[...] = c_f

    @pl.when(t_chunk == pl.num_programs(0) - 1)
    def _finalize():
        hout_ref[...] = h_f


def lstm_model_forward(x_btI, w_ih, w_hh, b_ih, b_hh, w_fc, b_fc,
                       *, t_chunk=None):
    """Forward pass matching LSTMModel: prediction = fc(hn[-1]).

    x_btI: (B, T, I) float32 (batch_first, like PyTorch).
    w_ih:  (4H, I), w_hh: (4H, H), b_ih/b_hh: (4H,)  [PyTorch LSTM layout]
    w_fc:  (O, H), b_fc: (O,)
    Returns: (B, O) float32
    """
    B, T, I = x_btI.shape
    H = w_hh.shape[1]
    f32 = jnp.float32
    HP = _round_up(H, LANE)          # per-gate slab width (>= 128 lanes)
    BP = _round_up(max(B, SUB), SUB)  # sublane-dense padded batch

    # Chunk selection: largest divisor of T within the requested cap and a
    # conservative VMEM budget (fits v5e's 16 MiB scoped default / v7x 64 MiB).
    budget = 8 * 1024 * 1024
    cap = T if t_chunk is None else min(t_chunk, T)
    tc = 1
    for cand in range(1, cap + 1):
        if T % cand == 0 and _vmem_bytes_estimate(cand, BP, I, HP) <= budget:
            tc = cand
    n_chunks = T // tc

    x = x_btI.astype(f32)
    # Time-major, batch padded to BP rows (padded rows are zero), flattened 2-D.
    x_tm = jnp.transpose(x, (1, 0, 2))                       # (T, B, I)
    x_p = jnp.zeros((T, BP, I), f32).at[:, :B, :].set(x_tm)  # (T, BP, I)
    x2d = x_p.reshape(T * BP, I)                             # (T*BP, I)

    def pad_gate_cols(w_r4h):
        # (rows, 4H) -> (rows, 4*HP): gate g occupies columns [g*HP, g*HP + H);
        # padded columns are exactly zero (correctness invariant).
        rows = w_r4h.shape[0]
        w4 = w_r4h.reshape(rows, 4, H)
        wp = jnp.zeros((rows, 4, HP), f32).at[:, :, :H].set(w4)
        return wp.reshape(rows, 4 * HP)

    wih_p = pad_gate_cols(jnp.transpose(w_ih).astype(f32))      # (I, 4*HP)
    whh_c = pad_gate_cols(jnp.transpose(w_hh).astype(f32))      # (H, 4*HP)
    whh_p = jnp.zeros((HP, 4 * HP), f32).at[:H, :].set(whh_c)   # rows padded
    b4 = (b_ih + b_hh).astype(f32).reshape(4, H)
    b_p = jnp.zeros((4, HP), f32).at[:, :H].set(b4).reshape(1, 4 * HP)

    vmem_limit = int(min(64 * 1024 * 1024,
                         max(4 * 1024 * 1024,
                             2 * _vmem_bytes_estimate(tc, BP, I, HP))))

    grid_spec = pltpu.PrefetchScalarGridSpec(
        num_scalar_prefetch=0,
        grid=(n_chunks,),
        in_specs=[
            pl.BlockSpec((tc * BP, I), lambda t: (t, 0)),    # x chunk (streamed)
            pl.BlockSpec((I, 4 * HP), lambda t: (0, 0)),     # W_ih   (resident)
            pl.BlockSpec((HP, 4 * HP), lambda t: (0, 0)),    # W_hh   (resident)
            pl.BlockSpec((1, 4 * HP), lambda t: (0, 0)),     # bias   (resident)
        ],
        out_specs=pl.BlockSpec((BP, HP), lambda t: (0, 0)),  # final hidden
        scratch_shapes=[
            pltpu.VMEM((BP, HP), f32),             # h carry
            pltpu.VMEM((BP, HP), f32),             # c carry
            pltpu.VMEM((tc * BP, 4 * HP), f32),    # per-chunk pre-gates
        ],
    )

    h_pad = pl.pallas_call(
        _lstm_chunk_kernel,
        out_shape=jax.ShapeDtypeStruct((BP, HP), f32),
        grid_spec=grid_spec,
        compiler_params=pltpu.CompilerParams(
            dimension_semantics=("arbitrary",),   # serial recurrence over time
            vmem_limit_bytes=vmem_limit,
        ),
    )(x2d, wih_p, whh_p, b_p)

    # Tiny FC epilogue in XLA on the valid (B, H) block (lane-dense kernel out).
    h_final = h_pad[:B, :H]
    return h_final @ jnp.transpose(w_fc).astype(f32) + b_fc.astype(f32)


def _reference_forward(x_btI, w_ih, w_hh, b_ih, b_hh, w_fc, b_fc):
    """Pure-JAX reference implementing PyTorch nn.LSTM + nn.Linear semantics."""
    B, T, I = x_btI.shape
    H = w_hh.shape[1]
    h = jnp.zeros((B, H), jnp.float32)
    c = jnp.zeros((B, H), jnp.float32)
    for t in range(T):
        x_t = x_btI[:, t, :]
        gates = x_t @ w_ih.T + b_ih + h @ w_hh.T + b_hh
        i_g = jax.nn.sigmoid(gates[:, 0:H])
        f_g = jax.nn.sigmoid(gates[:, H:2 * H])
        g_g = jnp.tanh(gates[:, 2 * H:3 * H])
        o_g = jax.nn.sigmoid(gates[:, 3 * H:4 * H])
        c = f_g * c + i_g * g_g
        h = o_g * jnp.tanh(c)
    return h @ w_fc.T + b_fc


if __name__ == "__main__":
    # Small shapes consistent with the module's forward.
    B, T = 2, 8
    input_size, hidden_size, output_size = 4, 32, 8

    key = jax.random.PRNGKey(0)
    keys = jax.random.split(key, 8)

    # Deterministic init (PyTorch-style uniform(-1/sqrt(H), 1/sqrt(H))).
    k = 1.0 / np.sqrt(hidden_size)
    w_ih = jax.random.uniform(keys[0], (4 * hidden_size, input_size),
                              jnp.float32, -k, k)
    w_hh = jax.random.uniform(keys[1], (4 * hidden_size, hidden_size),
                              jnp.float32, -k, k)
    b_ih = jax.random.uniform(keys[2], (4 * hidden_size,), jnp.float32, -k, k)
    b_hh = jax.random.uniform(keys[3], (4 * hidden_size,), jnp.float32, -k, k)
    w_fc = jax.random.uniform(keys[4], (output_size, hidden_size),
                              jnp.float32, -k, k)
    b_fc = jax.random.uniform(keys[5], (output_size,), jnp.float32, -k, k)

    x = jax.random.normal(keys[6], (B, T, input_size), jnp.float32)

    # t_chunk=4 -> grid of 2 time chunks, exercising the scratch-carried state.
    out = lstm_model_forward(x, w_ih, w_hh, b_ih, b_hh, w_fc, b_fc, t_chunk=4)
    out = jax.block_until_ready(out)

    ref = _reference_forward(x, w_ih, w_hh, b_ih, b_hh, w_fc, b_fc)
    np.testing.assert_allclose(np.asarray(out), np.asarray(ref),
                               rtol=1e-5, atol=1e-5)

    print("KERNEL_OK")
</pallas_src>

<mosaic_0001>
module attributes {stable_mosaic.version = 11 : i64} {
  func.func @_lstm_chunk_kernel(%arg0: i32, %arg1: memref<32x4xf32, #tpu.memory_space<vmem>>, %arg2: memref<4x512xf32, #tpu.memory_space<vmem>>, %arg3: memref<128x512xf32, #tpu.memory_space<vmem>>, %arg4: memref<1x512xf32, #tpu.memory_space<vmem>>, %arg5: memref<8x128xf32, #tpu.memory_space<vmem>>, %arg6: memref<8x128xf32, #tpu.memory_space<vmem>>, %arg7: memref<8x128xf32, #tpu.memory_space<vmem>>, %arg8: memref<32x512xf32, #tpu.memory_space<vmem>>) attributes {dimension_semantics = [#tpu.dimension_semantics<arbitrary>], iteration_bounds = array<i64: 2>, scalar_prefetch = 0 : i64, scratch_operands = 3 : i64, tpu.core_type = #tpu.core_type<tc>, window_params = [{transform_indices = @transform_0, window_bounds = array<i64: 32, 4>}, {pipeline_mode = #tpu.pipeline_mode<synchronous>, transform_indices = @transform_1, window_bounds = array<i64: 4, 512>}, {pipeline_mode = #tpu.pipeline_mode<synchronous>, transform_indices = @transform_2, window_bounds = array<i64: 128, 512>}, {pipeline_mode = #tpu.pipeline_mode<synchronous>, transform_indices = @transform_3, window_bounds = array<i64: 1, 512>}, {pipeline_mode = #tpu.pipeline_mode<synchronous>, transform_indices = @transform_4, window_bounds = array<i64: 8, 128>}]} {
    %c0_i32 = arith.constant 0 : i32
    %0 = arith.cmpi eq, %arg0, %c0_i32 : i32
    %1 = arith.extui %0 : i1 to i32
    %c0_i32_0 = arith.constant 0 : i32
    %2 = arith.cmpi ne, %1, %c0_i32_0 : i32
    scf.if %2 {
      %cst_50 = arith.constant 0.000000e+00 : f32
      %145 = vector.broadcast %cst_50 : f32 to vector<8x128xf32>
      %c0_51 = arith.constant 0 : index
      %c0_52 = arith.constant 0 : index
      %146 = vector.load %arg6[%c0_51, %c0_52] : memref<8x128xf32, #tpu.memory_space<vmem>>, vector<8x128xf32>
      tpu.vector_store %arg6[%c0_51, %c0_52], %145 {strides = array<i32>} : memref<8x128xf32, #tpu.memory_space<vmem>>, vector<8x128xf32>,
      %cst_53 = arith.constant 0.000000e+00 : f32
      %147 = vector.broadcast %cst_53 : f32 to vector<8x128xf32>
      %c0_54 = arith.constant 0 : index
      %c0_55 = arith.constant 0 : index
      %148 = vector.load %arg7[%c0_54, %c0_55] : memref<8x128xf32, #tpu.memory_space<vmem>>, vector<8x128xf32>
      tpu.vector_store %arg7[%c0_54, %c0_55], %147 {strides = array<i32>} : memref<8x128xf32, #tpu.memory_space<vmem>>, vector<8x128xf32>,
    } else {
    }
    %c0 = arith.constant 0 : index
    %c0_1 = arith.constant 0 : index
    %3 = vector.load %arg1[%c0, %c0_1] : memref<32x4xf32, #tpu.memory_space<vmem>>, vector<32x4xf32>
    %c0_2 = arith.constant 0 : index
    %c0_3 = arith.constant 0 : index
    %4 = vector.load %arg2[%c0_2, %c0_3] : memref<4x512xf32, #tpu.memory_space<vmem>>, vector<4x512xf32>
    %cst = arith.constant dense<0.000000e+00> : vector<32x512xf32>
    %5 = tpu.matmul %3, %4, %cst {dimension_numbers = #tpu.dot_dimension_numbers<[1], [0], [0], [1], [0, 0, 1, 1], [], []>, precision = #tpu.contract_precision<fp32>} : vector<32x4xf32>, vector<4x512xf32>, vector<32x512xf32> -> vector<32x512xf32>
    %c0_4 = arith.constant 0 : index
    %c0_5 = arith.constant 0 : index
    %6 = vector.load %arg4[%c0_4, %c0_5] : memref<1x512xf32, #tpu.memory_space<vmem>>, vector<1x512xf32>
    %7 = vector.broadcast %6 : vector<1x512xf32> to vector<32x512xf32>
    %8 = arith.addf %5, %7 : vector<32x512xf32>
    %c0_6 = arith.constant 0 : index
    %c0_7 = arith.constant 0 : index
    %9 = vector.load %arg8[%c0_6, %c0_7] : memref<32x512xf32, #tpu.memory_space<vmem>>, vector<32x512xf32>
    tpu.vector_store %arg8[%c0_6, %c0_7], %8 {strides = array<i32>} : memref<32x512xf32, #tpu.memory_space<vmem>>, vector<32x512xf32>,
    %c0_8 = arith.constant 0 : index
    %c0_9 = arith.constant 0 : index
    %10 = vector.load %arg6[%c0_8, %c0_9] : memref<8x128xf32, #tpu.memory_space<vmem>>, vector<8x128xf32>
    %c0_10 = arith.constant 0 : index
    %c0_11 = arith.constant 0 : index
    %11 = vector.load %arg7[%c0_10, %c0_11] : memref<8x128xf32, #tpu.memory_space<vmem>>, vector<8x128xf32>
    %c0_i32_12 = arith.constant 0 : i32
    %c8_i32 = arith.constant 8 : i32
    %12 = arith.muli %c0_i32_12, %c8_i32 : i32
    %13 = tpu.assume_multiple %12, 8 : i32
    %14 = arith.index_cast %13 : i32 to index
    %c0_13 = arith.constant 0 : index
    %15 = vector.load %arg8[%14, %c0_13] : memref<32x512xf32, #tpu.memory_space<vmem>>, vector<8x512xf32>
    %c0_14 = arith.constant 0 : index
    %c0_15 = arith.constant 0 : index
    %16 = vector.load %arg3[%c0_14, %c0_15] : memref<128x512xf32, #tpu.memory_space<vmem>>, vector<128x512xf32>
    %cst_16 = arith.constant dense<0.000000e+00> : vector<8x512xf32>
    %17 = tpu.matmul %10, %16, %cst_16 {dimension_numbers = #tpu.dot_dimension_numbers<[1], [0], [0], [1], [0, 0, 1, 1], [], []>, precision = #tpu.contract_precision<fp32>} : vector<8x128xf32>, vector<128x512xf32>, vector<8x512xf32> -> vector<8x512xf32>
    %18 = arith.addf %15, %17 : vector<8x512xf32>
    %19 = vector.extract_strided_slice %18 {offsets = [0, 0], sizes = [8, 128], strides = [1, 1]} : vector<8x512xf32> to vector<8x128xf32>
    %20 = arith.negf %19 : vector<8x128xf32>
    %21 = math.exp %20 : vector<8x128xf32>
    %cst_17 = arith.constant 1.000000e+00 : f32
    %22 = vector.broadcast %cst_17 : f32 to vector<8x128xf32>
    %23 = arith.addf %22, %21 : vector<8x128xf32>
    %24 = arith.divf %22, %23 : vector<8x128xf32>
    %25 = vector.extract_strided_slice %18 {offsets = [0, 128], sizes = [8, 128], strides = [1, 1]} : vector<8x512xf32> to vector<8x128xf32>
    %26 = arith.negf %25 : vector<8x128xf32>
    %27 = math.exp %26 : vector<8x128xf32>
    %cst_18 = arith.constant 1.000000e+00 : f32
    %28 = vector.broadcast %cst_18 : f32 to vector<8x128xf32>
    %29 = arith.addf %28, %27 : vector<8x128xf32>
    %30 = arith.divf %28, %29 : vector<8x128xf32>
    %31 = vector.extract_strided_slice %18 {offsets = [0, 256], sizes = [8, 128], strides = [1, 1]} : vector<8x512xf32> to vector<8x128xf32>
    %32 = math.tanh %31 : vector<8x128xf32>
    %33 = vector.extract_strided_slice %18 {offsets = [0, 384], sizes = [8, 128], strides = [1, 1]} : vector<8x512xf32> to vector<8x128xf32>
    %34 = arith.negf %33 : vector<8x128xf32>
    %35 = math.exp %34 : vector<8x128xf32>
    %cst_19 = arith.constant 1.000000e+00 : f32
    %36 = vector.broadcast %cst_19 : f32 to vector<8x128xf32>
    %37 = arith.addf %36, %35 : vector<8x128xf32>
    %38 = arith.divf %36, %37 : vector<8x128xf32>
    %39 = arith.mulf %30, %11 : vector<8x128xf32>
    %40 = arith.mulf %24, %32 : vector<8x128xf32>
    %41 = arith.addf %39, %40 : vector<8x128xf32>
    %42 = math.tanh %41 : vector<8x128xf32>
    %43 = arith.mulf %38, %42 : vector<8x128xf32>
    %c1_i32 = arith.constant 1 : i32
    %c8_i32_20 = arith.constant 8 : i32
    %44 = arith.muli %c1_i32, %c8_i32_20 : i32
    %45 = tpu.assume_multiple %44, 8 : i32
    %46 = arith.index_cast %45 : i32 to index
    %c0_21 = arith.constant 0 : index
    %47 = vector.load %arg8[%46, %c0_21] : memref<32x512xf32, #tpu.memory_space<vmem>>, vector<8x512xf32>
    %c0_22 = arith.constant 0 : index
    %c0_23 = arith.constant 0 : index
    %48 = vector.load %arg3[%c0_22, %c0_23] : memref<128x512xf32, #tpu.memory_space<vmem>>, vector<128x512xf32>
    %cst_24 = arith.constant dense<0.000000e+00> : vector<8x512xf32>
    %49 = tpu.matmul %43, %48, %cst_24 {dimension_numbers = #tpu.dot_dimension_numbers<[1], [0], [0], [1], [0, 0, 1, 1], [], []>, precision = #tpu.contract_precision<fp32>} : vector<8x128xf32>, vector<128x512xf32>, vector<8x512xf32> -> vector<8x512xf32>
    %50 = arith.addf %47, %49 : vector<8x512xf32>
    %51 = vector.extract_strided_slice %50 {offsets = [0, 0], sizes = [8, 128], strides = [1, 1]} : vector<8x512xf32> to vector<8x128xf32>
    %52 = arith.negf %51 : vector<8x128xf32>
    %53 = math.exp %52 : vector<8x128xf32>
    %cst_25 = arith.constant 1.000000e+00 : f32
    %54 = vector.broadcast %cst_25 : f32 to vector<8x128xf32>
    %55 = arith.addf %54, %53 : vector<8x128xf32>
    %56 = arith.divf %54, %55 : vector<8x128xf32>
    %57 = vector.extract_strided_slice %50 {offsets = [0, 128], sizes = [8, 128], strides = [1, 1]} : vector<8x512xf32> to vector<8x128xf32>
    %58 = arith.negf %57 : vector<8x128xf32>
    %59 = math.exp %58 : vector<8x128xf32>
    %cst_26 = arith.constant 1.000000e+00 : f32
    %60 = vector.broadcast %cst_26 : f32 to vector<8x128xf32>
    %61 = arith.addf %60, %59 : vector<8x128xf32>
    %62 = arith.divf %60, %61 : vector<8x128xf32>
    %63 = vector.extract_strided_slice %50 {offsets = [0, 256], sizes = [8, 128], strides = [1, 1]} : vector<8x512xf32> to vector<8x128xf32>
    %64 = math.tanh %63 : vector<8x128xf32>
    %65 = vector.extract_strided_slice %50 {offsets = [0, 384], sizes = [8, 128], strides = [1, 1]} : vector<8x512xf32> to vector<8x128xf32>
    %66 = arith.negf %65 : vector<8x128xf32>
    %67 = math.exp %66 : vector<8x128xf32>
    %cst_27 = arith.constant 1.000000e+00 : f32
    %68 = vector.broadcast %cst_27 : f32 to vector<8x128xf32>
    %69 = arith.addf %68, %67 : vector<8x128xf32>
    %70 = arith.divf %68, %69 : vector<8x128xf32>
    %71 = arith.mulf %62, %41 : vector<8x128xf32>
    %72 = arith.mulf %56, %64 : vector<8x128xf32>
    %73 = arith.addf %71, %72 : vector<8x128xf32>
    %74 = math.tanh %73 : vector<8x128xf32>
    %75 = arith.mulf %70, %74 : vector<8x128xf32>
    %c2_i32 = arith.constant 2 : i32
    %c8_i32_28 = arith.constant 8 : i32
    %76 = arith.muli %c2_i32, %c8_i32_28 : i32
    %77 = tpu.assume_multiple %76, 8 : i32
    %78 = arith.index_cast %77 : i32 to index
    %c0_29 = arith.constant 0 : index
    %79 = vector.load %arg8[%78, %c0_29] : memref<32x512xf32, #tpu.memory_space<vmem>>, vector<8x512xf32>
    %c0_30 = arith.constant 0 : index
    %c0_31 = arith.constant 0 : index
    %80 = vector.load %arg3[%c0_30, %c0_31] : memref<128x512xf32, #tpu.memory_space<vmem>>, vector<128x512xf32>
    %cst_32 = arith.constant dense<0.000000e+00> : vector<8x512xf32>
    %81 = tpu.matmul %75, %80, %cst_32 {dimension_numbers = #tpu.dot_dimension_numbers<[1], [0], [0], [1], [0, 0, 1, 1], [], []>, precision = #tpu.contract_precision<fp32>} : vector<8x128xf32>, vector<128x512xf32>, vector<8x512xf32> -> vector<8x512xf32>
    %82 = arith.addf %79, %81 : vector<8x512xf32>
    %83 = vector.extract_strided_slice %82 {offsets = [0, 0], sizes = [8, 128], strides = [1, 1]} : vector<8x512xf32> to vector<8x128xf32>
    %84 = arith.negf %83 : vector<8x128xf32>
    %85 = math.exp %84 : vector<8x128xf32>
    %cst_33 = arith.constant 1.000000e+00 : f32
    %86 = vector.broadcast %cst_33 : f32 to vector<8x128xf32>
    %87 = arith.addf %86, %85 : vector<8x128xf32>
    %88 = arith.divf %86, %87 : vector<8x128xf32>
    %89 = vector.extract_strided_slice %82 {offsets = [0, 128], sizes = [8, 128], strides = [1, 1]} : vector<8x512xf32> to vector<8x128xf32>
    %90 = arith.negf %89 : vector<8x128xf32>
    %91 = math.exp %90 : vector<8x128xf32>
    %cst_34 = arith.constant 1.000000e+00 : f32
    %92 = vector.broadcast %cst_34 : f32 to vector<8x128xf32>
    %93 = arith.addf %92, %91 : vector<8x128xf32>
    %94 = arith.divf %92, %93 : vector<8x128xf32>
    %95 = vector.extract_strided_slice %82 {offsets = [0, 256], sizes = [8, 128], strides = [1, 1]} : vector<8x512xf32> to vector<8x128xf32>
    %96 = math.tanh %95 : vector<8x128xf32>
    %97 = vector.extract_strided_slice %82 {offsets = [0, 384], sizes = [8, 128], strides = [1, 1]} : vector<8x512xf32> to vector<8x128xf32>
    %98 = arith.negf %97 : vector<8x128xf32>
    %99 = math.exp %98 : vector<8x128xf32>
    %cst_35 = arith.constant 1.000000e+00 : f32
    %100 = vector.broadcast %cst_35 : f32 to vector<8x128xf32>
    %101 = arith.addf %100, %99 : vector<8x128xf32>
    %102 = arith.divf %100, %101 : vector<8x128xf32>
    %103 = arith.mulf %94, %73 : vector<8x128xf32>
    %104 = arith.mulf %88, %96 : vector<8x128xf32>
    %105 = arith.addf %103, %104 : vector<8x128xf32>
    %106 = math.tanh %105 : vector<8x128xf32>
    %107 = arith.mulf %102, %106 : vector<8x128xf32>
    %c3_i32 = arith.constant 3 : i32
    %c8_i32_36 = arith.constant 8 : i32
    %108 = arith.muli %c3_i32, %c8_i32_36 : i32
    %109 = tpu.assume_multiple %108, 8 : i32
    %110 = arith.index_cast %109 : i32 to index
    %c0_37 = arith.constant 0 : index
    %111 = vector.load %arg8[%110, %c0_37] : memref<32x512xf32, #tpu.memory_space<vmem>>, vector<8x512xf32>
    %c0_38 = arith.constant 0 : index
    %c0_39 = arith.constant 0 : index
    %112 = vector.load %arg3[%c0_38, %c0_39] : memref<128x512xf32, #tpu.memory_space<vmem>>, vector<128x512xf32>
    %cst_40 = arith.constant dense<0.000000e+00> : vector<8x512xf32>
    %113 = tpu.matmul %107, %112, %cst_40 {dimension_numbers = #tpu.dot_dimension_numbers<[1], [0], [0], [1], [0, 0, 1, 1], [], []>, precision = #tpu.contract_precision<fp32>} : vector<8x128xf32>, vector<128x512xf32>, vector<8x512xf32> -> vector<8x512xf32>
    %114 = arith.addf %111, %113 : vector<8x512xf32>
    %115 = vector.extract_strided_slice %114 {offsets = [0, 0], sizes = [8, 128], strides = [1, 1]} : vector<8x512xf32> to vector<8x128xf32>
    %116 = arith.negf %115 : vector<8x128xf32>
    %117 = math.exp %116 : vector<8x128xf32>
    %cst_41 = arith.constant 1.000000e+00 : f32
    %118 = vector.broadcast %cst_41 : f32 to vector<8x128xf32>
    %119 = arith.addf %118, %117 : vector<8x128xf32>
    %120 = arith.divf %118, %119 : vector<8x128xf32>
    %121 = vector.extract_strided_slice %114 {offsets = [0, 128], sizes = [8, 128], strides = [1, 1]} : vector<8x512xf32> to vector<8x128xf32>
    %122 = arith.negf %121 : vector<8x128xf32>
    %123 = math.exp %122 : vector<8x128xf32>
    %cst_42 = arith.constant 1.000000e+00 : f32
    %124 = vector.broadcast %cst_42 : f32 to vector<8x128xf32>
    %125 = arith.addf %124, %123 : vector<8x128xf32>
    %126 = arith.divf %124, %125 : vector<8x128xf32>
    %127 = vector.extract_strided_slice %114 {offsets = [0, 256], sizes = [8, 128], strides = [1, 1]} : vector<8x512xf32> to vector<8x128xf32>
    %128 = math.tanh %127 : vector<8x128xf32>
    %129 = vector.extract_strided_slice %114 {offsets = [0, 384], sizes = [8, 128], strides = [1, 1]} : vector<8x512xf32> to vector<8x128xf32>
    %130 = arith.negf %129 : vector<8x128xf32>
    %131 = math.exp %130 : vector<8x128xf32>
    %cst_43 = arith.constant 1.000000e+00 : f32
    %132 = vector.broadcast %cst_43 : f32 to vector<8x128xf32>
    %133 = arith.addf %132, %131 : vector<8x128xf32>
    %134 = arith.divf %132, %133 : vector<8x128xf32>
    %135 = arith.mulf %126, %105 : vector<8x128xf32>
    %136 = arith.mulf %120, %128 : vector<8x128xf32>
    %137 = arith.addf %135, %136 : vector<8x128xf32>
    %138 = math.tanh %137 : vector<8x128xf32>
    %139 = arith.mulf %134, %138 : vector<8x128xf32>
    %c4_i32 = arith.constant 4 : i32
    %c0_44 = arith.constant 0 : index
    %c0_45 = arith.constant 0 : index
    %140 = vector.load %arg6[%c0_44, %c0_45] : memref<8x128xf32, #tpu.memory_space<vmem>>, vector<8x128xf32>
    tpu.vector_store %arg6[%c0_44, %c0_45], %139 {strides = array<i32>} : memref<8x128xf32, #tpu.memory_space<vmem>>, vector<8x128xf32>,
    %c0_46 = arith.constant 0 : index
    %c0_47 = arith.constant 0 : index
    %141 = vector.load %arg7[%c0_46, %c0_47] : memref<8x128xf32, #tpu.memory_space<vmem>>, vector<8x128xf32>
    tpu.vector_store %arg7[%c0_46, %c0_47], %137 {strides = array<i32>} : memref<8x128xf32, #tpu.memory_space<vmem>>, vector<8x128xf32>,
    %c1_i32_48 = arith.constant 1 : i32
    %142 = arith.cmpi eq, %arg0, %c1_i32_48 : i32
    %143 = arith.extui %142 : i1 to i32
    %c0_i32_49 = arith.constant 0 : i32
    %144 = arith.cmpi ne, %143, %c0_i32_49 : i32
    scf.if %144 {
      %c0_50 = arith.constant 0 : index
      %c0_51 = arith.constant 0 : index
      %145 = vector.load %arg5[%c0_50, %c0_51] : memref<8x128xf32, #tpu.memory_space<vmem>>, vector<8x128xf32>
      tpu.vector_store %arg5[%c0_50, %c0_51], %139 {strides = array<i32>} : memref<8x128xf32, #tpu.memory_space<vmem>>, vector<8x128xf32>,
    } else {
    }
    return
  }
  func.func @transform_0(%arg0: i32) -> (i32, i32) {
    %c0_i32 = arith.constant 0 : i32
    %c0_i32_0 = arith.constant 0 : i32
    return %arg0, %c0_i32 : i32, i32
  }
  func.func @transform_1(%arg0: i32) -> (i32, i32) {
    %c0_i32 = arith.constant 0 : i32
    %c0_i32_0 = arith.constant 0 : i32
    %c0_i32_1 = arith.constant 0 : i32
    return %c0_i32, %c0_i32_0 : i32, i32
  }
  func.func @transform_2(%arg0: i32) -> (i32, i32) {
    %c0_i32 = arith.constant 0 : i32
    %c0_i32_0 = arith.constant 0 : i32
    %c0_i32_1 = arith.constant 0 : i32
    return %c0_i32, %c0_i32_0 : i32, i32
  }
  func.func @transform_3(%arg0: i32) -> (i32, i32) {
    %c0_i32 = arith.constant 0 : i32
    %c0_i32_0 = arith.constant 0 : i32
    %c0_i32_1 = arith.constant 0 : i32
    return %c0_i32, %c0_i32_0 : i32, i32
  }
  func.func @transform_4(%arg0: i32) -> (i32, i32) {
    %c0_i32 = arith.constant 0 : i32
    %c0_i32_0 = arith.constant 0 : i32
    %c0_i32_1 = arith.constant 0 : i32
    return %c0_i32, %c0_i32_0 : i32, i32
  }
}

</mosaic_0001>

<llo_original>
// kernel: tpu_custom_call.1
$region0: #{tpu_custom_call.1}
  #allocation0 [shape = 'u32[]', space=smem, size = 0x4, offset = 0x4, fixed_abs, tag = 'smem constant byte address 0x4 - core index']
  #allocation1 [shape = 'u32[144,128]{1,0:T(1,128)}', space=vmem, size = 0x12000, scoped, tag = 'internal scratch']
  #allocation2 [shape = 'f32[8,128]{1,0:T(8,128)}', space=vmem, size = 0x1000, scoped, tag = 'scratch operand']
  #allocation3 [shape = 'f32[8,128]{1,0:T(8,128)}', space=vmem, size = 0x1000, scoped, tag = 'scratch operand']
  #allocation4 [shape = 'f32[32,512]{1,0:T(8,128)}', space=vmem, size = 0x10000, scoped, tag = 'scratch operand']
  %s0 = inlined_call_operand.vmem [shape: f32[64,4], index: 0, kind: input, shape index: {}]
  %s1 = inlined_call_operand.vmem [shape: f32[4,512], index: 1, kind: input, shape index: {}]
  %s2 = inlined_call_operand.hbm [shape: f32[128,512], index: 2, kind: input, shape index: {}]
  %s3 = inlined_call_operand.vmem [shape: f32[1,512], index: 3, kind: input, shape index: {}]
  %s4 = inlined_call_operand.hbm [shape: f32[8,128], index: 4, kind: output, shape index: {}]
  %s5 = sld [smem:[#allocation0]]
  $region61: #{tpu_custom_call.1} parent=0
    _
  %s7 = ssub.s32 1, %s5
  %s8 = scalar_select 0, %s7, %s5
  $region1: #{tpu_custom_call.1} parent=0
    #allocation5 [shape = 'u8[262144]{0}', space=vmem, size = 0x40000, scoped, tag = 'input window, operand 2, single buffered']
    #allocation6 [shape = 's32[2]{0}', space=sflag, size = 0x8, scoped, tag = 'scoped memory for tpu_custom_call.1']
    #allocation7 [shape = 's32[2]{0}', space=sflag, size = 0x8, scoped, tag = 'scoped memory for tpu_custom_call.1']
    #allocation8 [shape = 'u8[4096]{0}', space=vmem, size = 0x1000, scoped, tag = 'output window, operand 0, single buffered']
    %9 = vsyncpa [#allocation6], 0
    %10 = vsyncpa [#allocation7], 0
    loop: start=0, step=1, limit=4
    $region2: #{tpu_custom_call.1} parent=1 // loop_pre_header
      _
    $region3: #{tpu_custom_call.1} parent=1 // loop_header
      %s12 = sphi 0, %s16
      %p13 = scmp.ge.s32.totalorder %s12, 4
      %s22 = sphi 0, %s24
      %s25 = sphi 0, %s22
      %s26 = sphi 0, %s25
      %s42 = sphi 0, %s26
      %s46 = sphi 0, %s46
      %s48 = sphi 0, %s46
      %s49 = sphi 0, %s48
      %s63 = sphi 0, %s49
      %s67 = sphi 0, %s67
      %s69 = sphi 0, %s67
      %s70 = sphi 0, %s69
      %s84 = sphi 0, %s70
      %s88 = sphi 0, %s88
      %s90 = sphi 0, %s88
      %s91 = sphi 0, %s90
      %s105 = sphi 0, %s91
      %s109 = sphi 0, %s109
      %s111 = sphi 0, %s109
      %s112 = sphi 0, %s111
      %s126 = sphi 0, %s112
    $region4: #{tpu_custom_call.1} parent=1 // loop_header_branch
      %15 = sbr.rel (%p13) target = $region8
    $region5: #{tpu_custom_call.1} parent=1 // loop_body
      %s17 = ssub.s32 %s12, 1
      %s18 = ssub.s32 %s12, 2
      %s19 = sadd.s32 %s12, 1
      %s20 = ssub.s32 %s12, %s19
      %p21 = scmp.eq.s32.totalorder %s20, 0
      %s23 = sadd.s32 %s22, 1
      %s24 = scalar_select %p21, %s22, %s23
      %p27 = pneg %p21
      %p28 = scmp.eq.s32.totalorder %s12, 1
      %p29 = por %p27, %p28
      %p30 = scmp.ne.s32.totalorder %s22, %s25
      %p31 = scmp.eq.s32.totalorder %s12, 0
      %p32 = por %p30, %p31
      %p33 = scmp.ne.s32.totalorder %s22, %s25
      %p34 = scmp.eq.s32.totalorder %s17, 1
      %p35 = por %p33, %p34
      %p36 = scmp.ne.s32.totalorder %s25, %s26
      %p37 = scmp.eq.s32.totalorder %s17, 0
      %p38 = por %p36, %p37
      %p39 = scmp.ne.s32.totalorder %s25, %s26
      %p40 = scmp.eq.s32.totalorder %s18, 1
      %p41 = por %p39, %p40
      %p43 = scmp.ne.s32.totalorder %s26, %s42
      %p44 = scmp.eq.s32.totalorder %s18, 0
      %p45 = por %p43, %p44
      %s47 = sadd.s32 %s46, 1
      %p50 = scmp.eq.s32.totalorder %s12, 1
      %p51 = scmp.ne.s32.totalorder %s46, %s48
      %p52 = scmp.eq.s32.totalorder %s12, 0
      %p53 = por %p51, %p52
      %p54 = scmp.ne.s32.totalorder %s46, %s48
      %p55 = scmp.eq.s32.totalorder %s17, 1
      %p56 = por %p54, %p55
      %p57 = scmp.ne.s32.totalorder %s48, %s49
      %p58 = scmp.eq.s32.totalorder %s17, 0
      %p59 = por %p57, %p58
      %p60 = scmp.ne.s32.totalorder %s48, %s49
      %p61 = scmp.eq.s32.totalorder %s18, 1
      %p62 = por %p60, %p61
      %p64 = scmp.ne.s32.totalorder %s49, %s63
      %p65 = scmp.eq.s32.totalorder %s18, 0
      %p66 = por %p64, %p65
      %s68 = sadd.s32 %s67, 1
      %p71 = scmp.eq.s32.totalorder %s12, 1
      %p72 = scmp.ne.s32.totalorder %s67, %s69
      %p73 = scmp.eq.s32.totalorder %s12, 0
      %p74 = por %p72, %p73
      %p75 = scmp.ne.s32.totalorder %s67, %s69
      %p76 = scmp.eq.s32.totalorder %s17, 1
      %p77 = por %p75, %p76
      %p78 = scmp.ne.s32.totalorder %s69, %s70
      %p79 = scmp.eq.s32.totalorder %s17, 0
      %p80 = por %p78, %p79
      %p81 = scmp.ne.s32.totalorder %s69, %s70
      %p82 = scmp.eq.s32.totalorder %s18, 1
      %p83 = por %p81, %p82
      %p85 = scmp.ne.s32.totalorder %s70, %s84
      %p86 = scmp.eq.s32.totalorder %s18, 0
      %p87 = por %p85, %p86
      %s89 = sadd.s32 %s88, 1
      %p92 = scmp.eq.s32.totalorder %s12, 1
      %p93 = scmp.ne.s32.totalorder %s88, %s90
      %p94 = scmp.eq.s32.totalorder %s12, 0
      %p95 = por %p93, %p94
      %p96 = scmp.ne.s32.totalorder %s88, %s90
      %p97 = scmp.eq.s32.totalorder %s17, 1
      %p98 = por %p96, %p97
      %p99 = scmp.ne.s32.totalorder %s90, %s91
      %p100 = scmp.eq.s32.totalorder %s17, 0
      %p101 = por %p99, %p100
      %p102 = scmp.ne.s32.totalorder %s90, %s91
      %p103 = scmp.eq.s32.totalorder %s18, 1
      %p104 = por %p102, %p103
      %p106 = scmp.ne.s32.totalorder %s91, %s105
      %p107 = scmp.eq.s32.totalorder %s18, 0
      %p108 = por %p106, %p107
      %s110 = sadd.s32 %s109, 1
      %p113 = scmp.eq.s32.totalorder %s12, 1
      %p114 = scmp.ne.s32.totalorder %s109, %s111
      %p115 = scmp.eq.s32.totalorder %s12, 0
      %p116 = por %p114, %p115
      %p117 = scmp.ne.s32.totalorder %s109, %s111
      %p118 = scmp.eq.s32.totalorder %s17, 1
      %p119 = por %p117, %p118
      %p120 = scmp.ne.s32.totalorder %s111, %s112
      %p121 = scmp.eq.s32.totalorder %s17, 0
      %p122 = por %p120, %p121
      %p123 = scmp.ne.s32.totalorder %s111, %s112
      %p124 = scmp.eq.s32.totalorder %s18, 1
      %p125 = por %p123, %p124
      %p127 = scmp.ne.s32.totalorder %s112, %s126
      %p128 = scmp.eq.s32.totalorder %s18, 0
      %p129 = por %p127, %p128
      %p130 = scmp.le.s32.totalorder 1, %s12
      %p131 = scmp.lt.s32.totalorder %s12, 3
      %p132 = pnand %p130, %p131
      %p133 = pneg %p132
      // Predicated region
      $region9: #{tpu_custom_call.1} parent=5 // pred_check
        _
      $region10: #{tpu_custom_call.1} parent=5 // pred_check_branch
        %135 = sbr.rel (%p132) target = $region12
      $region11: #{tpu_custom_call.1} parent=5 // pred_region
        %s136 = ssub.s32 %s12, 1
        // Predicated region
        $region13: #{tpu_custom_call.1} parent=11 // pred_check
          %p137 = pneg %p59
        $region14: #{tpu_custom_call.1} parent=11 // pred_check_branch
          %139 = sbr.rel (%p137) target = $region16
        $region15: #{tpu_custom_call.1} parent=11 // pred_region
          _
        $region16: #{tpu_custom_call.1} parent=11 // pred_fallthru
          _
        // Predicated region
        $region17: #{tpu_custom_call.1} parent=11 // pred_check
          %p140 = pneg %p80
        $region18: #{tpu_custom_call.1} parent=11 // pred_check_branch
          %142 = sbr.rel (%p140) target = $region20
        $region19: #{tpu_custom_call.1} parent=11 // pred_region
          %s144 = ssub.s32 8192, 8192
          %145 = vsyncadd [#allocation6], %s144
          %s146 = sshll.u32 [#allocation5], 4
          %s147 = int_to_ptr.vmem [resolvable:$true] %s146
          %152 = dma.hbm_to_vmem [thread:$0]  %s2, 8192, %s147, [#allocation6], 512, 512, 32
        $region20: #{tpu_custom_call.1} parent=11 // pred_fallthru
          _
        // Predicated region
        $region21: #{tpu_custom_call.1} parent=11 // pred_check
          %p153 = pneg %p101
        $region22: #{tpu_custom_call.1} parent=11 // pred_check_branch
          %155 = sbr.rel (%p153) target = $region24
        $region23: #{tpu_custom_call.1} parent=11 // pred_region
          _
        $region24: #{tpu_custom_call.1} parent=11 // pred_fallthru
          _
      $region12: #{tpu_custom_call.1} parent=5 // pred_fallthru
        _
      %p156 = scmp.lt.s32.totalorder %s12, 2
      // Predicated region
      $region25: #{tpu_custom_call.1} parent=5 // pred_check
        %p157 = pneg %p156
      $region26: #{tpu_custom_call.1} parent=5 // pred_check_branch
        %159 = sbr.rel (%p157) target = $region28
      $region27: #{tpu_custom_call.1} parent=5 // pred_region
        // Predicated region
        $region29: #{tpu_custom_call.1} parent=27 // pred_check
          %p160 = pneg %p32
        $region30: #{tpu_custom_call.1} parent=27 // pred_check_branch
          %162 = sbr.rel (%p160) target = $region32
        $region31: #{tpu_custom_call.1} parent=27 // pred_region
          %s163 = smul.u32 4, %s12
          %p164 = scmp.lt.s32.totalorder %s163, 7
          %s165 = scalar_select %p164, %s163, 7
          %s166 = smul.addr %s165, 8
          %s167 = scalar_lea.vmem %s0, %s166
          %s168 = smul.u32 4, %s12
        $region32: #{tpu_custom_call.1} parent=27 // pred_fallthru
          _
      $region28: #{tpu_custom_call.1} parent=5 // pred_fallthru
        _
      %p169 = scmp.le.s32.totalorder 1, %s12
      %p170 = scmp.lt.s32.totalorder %s12, 3
      %p171 = pnand %p169, %p170
      %p172 = pneg %p171
      // Predicated region
      $region33: #{tpu_custom_call.1} parent=5 // pred_check
        _
      $region34: #{tpu_custom_call.1} parent=5 // pred_check_branch
        %174 = sbr.rel (%p171) target = $region36
      $region35: #{tpu_custom_call.1} parent=5 // pred_region
        %s175 = ssub.s32 %s12, 1
        // Predicated region
        $region37: #{tpu_custom_call.1} parent=35 // pred_check
          %p176 = pneg %p80
        $region38: #{tpu_custom_call.1} parent=35 // pred_check_branch
          %178 = sbr.rel (%p176) target = $region40
        $region39: #{tpu_custom_call.1} parent=35 // pred_region
          %179 = dma.done [#allocation6], 8192
        $region40: #{tpu_custom_call.1} parent=35 // pred_fallthru
          _
        %s180 = smul.u32 4, %s17
        %p181 = scmp.lt.s32.totalorder %s180, 7
        %s182 = scalar_select %p181, %s180, 7
        %s183 = smul.addr %s182, 8
        %s184 = scalar_lea.vmem %s0, %s183
        %p185 = pneg %p38
        %p186 = pneg %p35
        %p187 = pneg %p59
        %p188 = pneg %p56
        %p189 = pneg %p80
        %p190 = pneg %p77
        %p191 = pneg %p101
        %p192 = pneg %p98
        %p193 = pneg %p122
        %p194 = pneg %p119
        %s195 = smul.u32 4, %s17
        %p196 = scmp.lt.s32.totalorder %s195, 7
        %s197 = scalar_select %p196, %s195, 7
        %s198 = smul.addr %s197, 8
        %s199 = scalar_lea.vmem %s0, %s198
        %s200 = smul.u32 4, %s17
        %p201 = scmp.eq.s32.totalorder %s17, 0
        // Predicated region
        $region41: #{tpu_custom_call.1} parent=35 // pred_check
          %p202 = pneg %p201
        $region42: #{tpu_custom_call.1} parent=35 // pred_check_branch
          %204 = sbr.rel (%p202) target = $region44
        $region43: #{tpu_custom_call.1} parent=35 // pred_region
          %205 = vst [vmem:[#allocation2] sm:$0xff] 0.0
          %206 = vst [vmem:[#allocation3] sm:$0xff] 0.0
        $region44: #{tpu_custom_call.1} parent=35 // pred_fallthru
          _
        %v207 = vld [vmem:[%s199] sm:$0xff]
        %v208 = vld [vmem:[%s199 + $0x8] sm:$0xff]
        %v209 = vld [vmem:[%s199 + $0x10] sm:$0xff]
        %v210 = vld [vmem:[%s199 + $0x18] sm:$0xff]
        %v211 = vld [vmem:[%s1] sm:$0xff]
        %v212 = vld [vmem:[%s1 + $0x8] sm:$0xff]
        %v213 = vld [vmem:[%s3] sm:$0xf]
        %v215 = vlaneseq
        %v216 = vshrl.u32 %v215, 7
        %v217 = vsub.s32 0, %v216
        %v218 = vrot.slane %v213, %v217
        %v219 = vlaneseq
        %v220 = vshrl.u32 %v219, 7
        %v221 = vsub.s32 1, %v220
        %v222 = vrot.slane %v213, %v221
        %v223 = vlaneseq
        %v224 = vshrl.u32 %v223, 7
        %v225 = vsub.s32 2, %v224
        %v226 = vrot.slane %v213, %v225
        %v227 = vlaneseq
        %v228 = vshrl.u32 %v227, 7
        %v229 = vsub.s32 3, %v228
        %v230 = vrot.slane %v213, %v229
        %v237 = vcombine.high %v211, %v211
        %v238 = vcombine.high %v212, %v212
        %vm239 = vcmask 31744
        %v241 = vsel %vm239, %v207, 0
        %v244 = vsel %vm239, %v208, 0
        %v247 = vsel %vm239, %v209, 0
        %v250 = vsel %vm239, %v210, 0
        %vm252 = vcmask 1043456
        %v253 = vsel %vm252, %v211, 0
        %v255 = vsel %vm252, %v237, 0
        %v257 = vsel %vm252, %v212, 0
        %v259 = vsel %vm252, %v238, 0
        %261 = vmatprep.subr.mxu0 0.0
        %262 = vmatpush1.msra.mxu0 0.0
        %263 = vmatprep.subr.mxu0 0.0
        %264 = vmatpush1.msra.mxu0 0.0
        %265 = vmatprep.subr.mxu0 0.0
        %266 = vmatpush1.msra.mxu0 0.0
        %267 = vmatprep.subr.mxu0 0.0
        %268 = vmatpush1.msra.mxu0 0.0
        %269 = vmatprep.subr.mxu0 0.0
        %270 = vmatpush1.msra.mxu0 0.0
        %271 = vmatprep.subr.mxu0 0.0
        %272 = vmatpush1.msra.mxu0 0.0
        %273 = vmatprep.subr.mxu0 0.0
        %274 = vmatpush1.msra.mxu0 0.0
        %275 = vmatprep.subr.mxu0 0.0
        %276 = vmatpush1.msra.mxu0 0.0
        %277 = vmatprep.subr.mxu0 0.0
        %278 = vmatpush1.msra.mxu0 0.0
        %279 = vmatprep.subr.mxu0 0.0
        %280 = vmatpush1.msra.mxu0 0.0
        %281 = vmatprep.subr.mxu0 0.0
        %282 = vmatpush1.msra.mxu0 0.0
        %283 = vmatprep.subr.mxu0 0.0
        %284 = vmatpush1.msra.mxu0 0.0
        %285 = vmatprep.subr.mxu0 0.0
        %286 = vmatpush1.msra.mxu0 0.0
        %287 = vmatprep.subr.mxu0 0.0
        %288 = vmatpush1.msra.mxu0 0.0
        %289 = vmatprep.subr.mxu0 0.0
        %290 = vmatpush1.msra.mxu0 0.0
        %v291 = vand.u32 %v255, 4294901760
        %292 = vmatprep.subr.mxu0 %v291
        %v293 = vand.u32 %v253, 4294901760
        %294 = vmatpush1.msra.mxu0 %v293
        %295 = vmatprep.subr.mxu0 0.0
        %296 = vmatpush2.msra.mxu0 0.0
        %297 = vmatprep.subr.mxu0 0.0
        %298 = vmatpush2.msra.mxu0 0.0
        %299 = vmatprep.subr.mxu0 0.0
        %300 = vmatpush2.msra.mxu0 0.0
        %301 = vmatprep.subr.mxu0 0.0
        %302 = vmatpush2.msra.mxu0 0.0
        %303 = vmatprep.subr.mxu0 0.0
        %304 = vmatpush2.msra.mxu0 0.0
        %305 = vmatprep.subr.mxu0 0.0
        %306 = vmatpush2.msra.mxu0 0.0
        %307 = vmatprep.subr.mxu0 0.0
        %308 = vmatpush2.msra.mxu0 0.0
        %309 = vmatprep.subr.mxu0 0.0
        %310 = vmatpush2.msra.mxu0 0.0
        %311 = vmatprep.subr.mxu0 0.0
        %312 = vmatpush2.msra.mxu0 0.0
        %313 = vmatprep.subr.mxu0 0.0
        %314 = vmatpush2.msra.mxu0 0.0
        %315 = vmatprep.subr.mxu0 0.0
        %316 = vmatpush2.msra.mxu0 0.0
        %317 = vmatprep.subr.mxu0 0.0
        %318 = vmatpush2.msra.mxu0 0.0
        %319 = vmatprep.subr.mxu0 0.0
        %320 = vmatpush2.msra.mxu0 0.0
        %321 = vmatprep.subr.mxu0 0.0
        %322 = vmatpush2.msra.mxu0 0.0
        %323 = vmatprep.subr.mxu0 0.0
        %324 = vmatpush2.msra.mxu0 0.0
        %325 = vmatprep.subr.mxu0 0.0
        %326 = vmatpush2.msra.mxu0 0.0
        %327 = vmatprep.mubr.f32.mxu0 0.0
        %v328 = vand.u32 %v241, 4294901760
        %v329 = vsub.f32 %v241, %v328
        %v330 = vand.u32 %v329, 4294901760
        %v331 = vsub.f32 %v329, %v330
        %v332 = vand.u32 %v331, 4294901760
        %333 = vmatmul.mubr.f32.gmra.mxu0 %v332
        %v334 = vpop.f32.mrf.mxu0
        %v335 = vadd.f32 %v218, %v334
        %v336 = vpop.f32.mrf.mxu0
        %v337 = vadd.f32 %v222, %v336
        %338 = vmatprep.mubr.f32.mxu0 0.0
        %v339 = vand.u32 %v244, 4294901760
        %v340 = vsub.f32 %v244, %v339
        %v341 = vand.u32 %v340, 4294901760
        %v342 = vsub.f32 %v340, %v341
        %v343 = vand.u32 %v342, 4294901760
        %344 = vmatmul.mubr.f32.gmra.mxu0 %v343
        %v345 = vpop.f32.mrf.mxu0
        %v346 = vadd.f32 %v218, %v345
        %v347 = vpop.f32.mrf.mxu0
        %v348 = vadd.f32 %v222, %v347
        %349 = vmatprep.mubr.f32.mxu0 0.0
        %v350 = vand.u32 %v247, 4294901760
        %v351 = vsub.f32 %v247, %v350
        %v352 = vand.u32 %v351, 4294901760
        %v353 = vsub.f32 %v351, %v352
        %v354 = vand.u32 %v353, 4294901760
        %355 = vmatmul.mubr.f32.gmra.mxu0 %v354
        %v356 = vpop.f32.mrf.mxu0
        %v357 = vadd.f32 %v218, %v356
        %v358 = vpop.f32.mrf.mxu0
        %v359 = vadd.f32 %v222, %v358
        %360 = vmatprep.mubr.f32.mxu0 0.0
        %v361 = vand.u32 %v250, 4294901760
        %v362 = vsub.f32 %v250, %v361
        %v363 = vand.u32 %v362, 4294901760
        %v364 = vsub.f32 %v362, %v363
        %v365 = vand.u32 %v364, 4294901760
        %366 = vmatmul.mubr.f32.gmra.mxu0 %v365
        %v367 = vpop.f32.mrf.mxu0
        %v368 = vadd.f32 %v218, %v367
        %v369 = vpop.f32.mrf.mxu0
        %v370 = vadd.f32 %v222, %v369
        %371 = vdwg.mxu0
        %372 = vmatprep.subr.mxu0 0.0
        %373 = vmatpush1.msra.mxu0 0.0
        %374 = vmatprep.subr.mxu0 0.0
        %375 = vmatpush1.msra.mxu0 0.0
        %376 = vmatprep.subr.mxu0 0.0
        %377 = vmatpush1.msra.mxu0 0.0
        %378 = vmatprep.subr.mxu0 0.0
        %379 = vmatpush1.msra.mxu0 0.0
        %380 = vmatprep.subr.mxu0 0.0
        %381 = vmatpush1.msra.mxu0 0.0
        %382 = vmatprep.subr.mxu0 0.0
        %383 = vmatpush1.msra.mxu0 0.0
        %384 = vmatprep.subr.mxu0 0.0
        %385 = vmatpush1.msra.mxu0 0.0
        %386 = vmatprep.subr.mxu0 0.0
        %387 = vmatpush1.msra.mxu0 0.0
        %388 = vmatprep.subr.mxu0 0.0
        %389 = vmatpush1.msra.mxu0 0.0
        %390 = vmatprep.subr.mxu0 0.0
        %391 = vmatpush1.msra.mxu0 0.0
        %392 = vmatprep.subr.mxu0 0.0
        %393 = vmatpush1.msra.mxu0 0.0
        %394 = vmatprep.subr.mxu0 0.0
        %395 = vmatpush1.msra.mxu0 0.0
        %396 = vmatprep.subr.mxu0 0.0
        %397 = vmatpush1.msra.mxu0 0.0
        %398 = vmatprep.subr.mxu0 0.0
        %399 = vmatpush1.msra.mxu0 0.0
        %400 = vmatprep.subr.mxu0 0.0
        %401 = vmatpush1.msra.mxu0 0.0
        %v402 = vand.u32 %v255, 4294901760
        %v403 = vsub.f32 %v255, %v402
        %v404 = vand.u32 %v403, 4294901760
        %v405 = vsub.f32 %v403, %v404
        %v406 = vand.u32 %v405, 4294901760
        %407 = vmatprep.subr.mxu0 %v406
        %v408 = vand.u32 %v253, 4294901760
        %v409 = vsub.f32 %v253, %v408
        %v410 = vand.u32 %v409, 4294901760
        %v411 = vsub.f32 %v409, %v410
        %v412 = vand.u32 %v411, 4294901760
        %413 = vmatpush1.msra.mxu0 %v412
        %414 = vmatprep.subr.mxu0 0.0
        %415 = vmatpush2.msra.mxu0 0.0
        %416 = vmatprep.subr.mxu0 0.0
        %417 = vmatpush2.msra.mxu0 0.0
        %418 = vmatprep.subr.mxu0 0.0
        %419 = vmatpush2.msra.mxu0 0.0
        %420 = vmatprep.subr.mxu0 0.0
        %421 = vmatpush2.msra.mxu0 0.0
        %422 = vmatprep.subr.mxu0 0.0
        %423 = vmatpush2.msra.mxu0 0.0
        %424 = vmatprep.subr.mxu0 0.0
        %425 = vmatpush2.msra.mxu0 0.0
        %426 = vmatprep.subr.mxu0 0.0
        %427 = vmatpush2.msra.mxu0 0.0
        %428 = vmatprep.subr.mxu0 0.0
        %429 = vmatpush2.msra.mxu0 0.0
        %430 = vmatprep.subr.mxu0 0.0
        %431 = vmatpush2.msra.mxu0 0.0
        %432 = vmatprep.subr.mxu0 0.0
        %433 = vmatpush2.msra.mxu0 0.0
        %434 = vmatprep.subr.mxu0 0.0
        %435 = vmatpush2.msra.mxu0 0.0
        %436 = vmatprep.subr.mxu0 0.0
        %437 = vmatpush2.msra.mxu0 0.0
        %438 = vmatprep.subr.mxu0 0.0
        %439 = vmatpush2.msra.mxu0 0.0
        %440 = vmatprep.subr.mxu0 0.0
        %441 = vmatpush2.msra.mxu0 0.0
        %442 = vmatprep.subr.mxu0 0.0
        %443 = vmatpush2.msra.mxu0 0.0
        %444 = vmatprep.subr.mxu0 0.0
        %445 = vmatpush2.msra.mxu0 0.0
        %446 = vmatprep.mubr.f32.mxu0 0.0
        %v447 = vand.u32 %v241, 4294901760
        %448 = vmatmul.mubr.f32.gmra.mxu0 %v447
        %v449 = vpop.f32.mrf.mxu0
        %v450 = vadd.f32 %v335, %v449
        %v451 = vpop.f32.mrf.mxu0
        %v452 = vadd.f32 %v337, %v451
        %453 = vmatprep.mubr.f32.mxu0 0.0
        %v454 = vand.u32 %v244, 4294901760
        %455 = vmatmul.mubr.f32.gmra.mxu0 %v454
        %v456 = vpop.f32.mrf.mxu0
        %v457 = vadd.f32 %v346, %v456
        %v458 = vpop.f32.mrf.mxu0
        %v459 = vadd.f32 %v348, %v458
        %460 = vmatprep.mubr.f32.mxu0 0.0
        %v461 = vand.u32 %v247, 4294901760
        %462 = vmatmul.mubr.f32.gmra.mxu0 %v461
        %v463 = vpop.f32.mrf.mxu0
        %v464 = vadd.f32 %v357, %v463
        %v465 = vpop.f32.mrf.mxu0
        %v466 = vadd.f32 %v359, %v465
        %467 = vmatprep.mubr.f32.mxu0 0.0
        %v468 = vand.u32 %v250, 4294901760
        %469 = vmatmul.mubr.f32.gmra.mxu0 %v468
        %v470 = vpop.f32.mrf.mxu0
        %v471 = vadd.f32 %v368, %v470
        %v472 = vpop.f32.mrf.mxu0
        %v473 = vadd.f32 %v370, %v472
        %474 = vdwg.mxu0
        %475 = vmatprep.subr.mxu0 0.0
        %476 = vmatpush1.msra.mxu0 0.0
        %477 = vmatprep.subr.mxu0 0.0
        %478 = vmatpush1.msra.mxu0 0.0
        %479 = vmatprep.subr.mxu0 0.0
        %480 = vmatpush1.msra.mxu0 0.0
        %481 = vmatprep.subr.mxu0 0.0
        %482 = vmatpush1.msra.mxu0 0.0
        %483 = vmatprep.subr.mxu0 0.0
        %484 = vmatpush1.msra.mxu0 0.0
        %485 = vmatprep.subr.mxu0 0.0
        %486 = vmatpush1.msra.mxu0 0.0
        %487 = vmatprep.subr.mxu0 0.0
        %488 = vmatpush1.msra.mxu0 0.0
        %489 = vmatprep.subr.mxu0 0.0
        %490 = vmatpush1.msra.mxu0 0.0
        %491 = vmatprep.subr.mxu0 0.0
        %492 = vmatpush1.msra.mxu0 0.0
        %493 = vmatprep.subr.mxu0 0.0
        %494 = vmatpush1.msra.mxu0 0.0
        %495 = vmatprep.subr.mxu0 0.0
        %496 = vmatpush1.msra.mxu0 0.0
        %497 = vmatprep.subr.mxu0 0.0
        %498 = vmatpush1.msra.mxu0 0.0
        %499 = vmatprep.subr.mxu0 0.0
        %500 = vmatpush1.msra.mxu0 0.0
        %501 = vmatprep.subr.mxu0 0.0
        %502 = vmatpush1.msra.mxu0 0.0
        %503 = vmatprep.subr.mxu0 0.0
        %504 = vmatpush1.msra.mxu0 0.0
        %v505 = vand.u32 %v255, 4294901760
        %v506 = vsub.f32 %v255, %v505
        %507 = vmatprep.subr.mxu0 %v506
        %v508 = vand.u32 %v253, 4294901760
        %v509 = vsub.f32 %v253, %v508
        %510 = vmatpush1.msra.mxu0 %v509
        %511 = vmatprep.subr.mxu0 0.0
        %512 = vmatpush2.msra.mxu0 0.0
        %513 = vmatprep.subr.mxu0 0.0
        %514 = vmatpush2.msra.mxu0 0.0
        %515 = vmatprep.subr.mxu0 0.0
        %516 = vmatpush2.msra.mxu0 0.0
        %517 = vmatprep.subr.mxu0 0.0
        %518 = vmatpush2.msra.mxu0 0.0
        %519 = vmatprep.subr.mxu0 0.0
        %520 = vmatpush2.msra.mxu0 0.0
        %521 = vmatprep.subr.mxu0 0.0
        %522 = vmatpush2.msra.mxu0 0.0
        %523 = vmatprep.subr.mxu0 0.0
        %524 = vmatpush2.msra.mxu0 0.0
        %525 = vmatprep.subr.mxu0 0.0
        %526 = vmatpush2.msra.mxu0 0.0
        %527 = vmatprep.subr.mxu0 0.0
        %528 = vmatpush2.msra.mxu0 0.0
        %529 = vmatprep.subr.mxu0 0.0
        %530 = vmatpush2.msra.mxu0 0.0
        %531 = vmatprep.subr.mxu0 0.0
        %532 = vmatpush2.msra.mxu0 0.0
        %533 = vmatprep.subr.mxu0 0.0
        %534 = vmatpush2.msra.mxu0 0.0
        %535 = vmatprep.subr.mxu0 0.0
        %536 = vmatpush2.msra.mxu0 0.0
        %537 = vmatprep.subr.mxu0 0.0
        %538 = vmatpush2.msra.mxu0 0.0
        %539 = vmatprep.subr.mxu0 0.0
        %540 = vmatpush2.msra.mxu0 0.0
        %541 = vmatprep.subr.mxu0 0.0
        %542 = vmatpush2.msra.mxu0 0.0
        %543 = vmatprep.mubr.f32.mxu0 0.0
        %v544 = vand.u32 %v241, 4294901760
        %v545 = vsub.f32 %v241, %v544
        %546 = vmatmul.mubr.f32.gmra.mxu0 %v545
        %v547 = vpop.f32.mrf.mxu0
        %v548 = vadd.f32 %v450, %v547
        %v549 = vpop.f32.mrf.mxu0
        %v550 = vadd.f32 %v452, %v549
        %551 = vmatprep.mubr.f32.mxu0 0.0
        %v552 = vand.u32 %v244, 4294901760
        %v553 = vsub.f32 %v244, %v552
        %554 = vmatmul.mubr.f32.gmra.mxu0 %v553
        %v555 = vpop.f32.mrf.mxu0
        %v556 = vadd.f32 %v457, %v555
        %v557 = vpop.f32.mrf.mxu0
        %v558 = vadd.f32 %v459, %v557
        %559 = vmatprep.mubr.f32.mxu0 0.0
        %v560 = vand.u32 %v247, 4294901760
        %v561 = vsub.f32 %v247, %v560
        %562 = vmatmul.mubr.f32.gmra.mxu0 %v561
        %v563 = vpop.f32.mrf.mxu0
        %v564 = vadd.f32 %v464, %v563
        %v565 = vpop.f32.mrf.mxu0
        %v566 = vadd.f32 %v466, %v565
        %567 = vmatprep.mubr.f32.mxu0 0.0
        %v568 = vand.u32 %v250, 4294901760
        %v569 = vsub.f32 %v250, %v568
        %570 = vmatmul.mubr.f32.gmra.mxu0 %v569
        %v571 = vpop.f32.mrf.mxu0
        %v572 = vadd.f32 %v471, %v571
        %v573 = vpop.f32.mrf.mxu0
        %v574 = vadd.f32 %v473, %v573
        %575 = vdwg.mxu0
        %576 = vmatprep.subr.mxu0 0.0
        %577 = vmatpush1.msra.mxu0 0.0
        %578 = vmatprep.subr.mxu0 0.0
        %579 = vmatpush1.msra.mxu0 0.0
        %580 = vmatprep.subr.mxu0 0.0
        %581 = vmatpush1.msra.mxu0 0.0
        %582 = vmatprep.subr.mxu0 0.0
        %583 = vmatpush1.msra.mxu0 0.0
        %584 = vmatprep.subr.mxu0 0.0
        %585 = vmatpush1.msra.mxu0 0.0
        %586 = vmatprep.subr.mxu0 0.0
        %587 = vmatpush1.msra.mxu0 0.0
        %588 = vmatprep.subr.mxu0 0.0
        %589 = vmatpush1.msra.mxu0 0.0
        %590 = vmatprep.subr.mxu0 0.0
        %591 = vmatpush1.msra.mxu0 0.0
        %592 = vmatprep.subr.mxu0 0.0
        %593 = vmatpush1.msra.mxu0 0.0
        %594 = vmatprep.subr.mxu0 0.0
        %595 = vmatpush1.msra.mxu0 0.0
        %596 = vmatprep.subr.mxu0 0.0
        %597 = vmatpush1.msra.mxu0 0.0
        %598 = vmatprep.subr.mxu0 0.0
        %599 = vmatpush1.msra.mxu0 0.0
        %600 = vmatprep.subr.mxu0 0.0
        %601 = vmatpush1.msra.mxu0 0.0
        %602 = vmatprep.subr.mxu0 0.0
        %603 = vmatpush1.msra.mxu0 0.0
        %604 = vmatprep.subr.mxu0 0.0
        %605 = vmatpush1.msra.mxu0 0.0
        %v606 = vand.u32 %v255, 4294901760
        %607 = vmatprep.subr.mxu0 %v606
        %v608 = vand.u32 %v253, 4294901760
        %609 = vmatpush1.msra.mxu0 %v608
        %610 = vmatprep.subr.mxu0 0.0
        %611 = vmatpush2.msra.mxu0 0.0
        %612 = vmatprep.subr.mxu0 0.0
        %613 = vmatpush2.msra.mxu0 0.0
        %614 = vmatprep.subr.mxu0 0.0
        %615 = vmatpush2.msra.mxu0 0.0
        %616 = vmatprep.subr.mxu0 0.0
        %617 = vmatpush2.msra.mxu0 0.0
        %618 = vmatprep.subr.mxu0 0.0
        %619 = vmatpush2.msra.mxu0 0.0
        %620 = vmatprep.subr.mxu0 0.0
        %621 = vmatpush2.msra.mxu0 0.0
        %622 = vmatprep.subr.mxu0 0.0
        %623 = vmatpush2.msra.mxu0 0.0
        %624 = vmatprep.subr.mxu0 0.0
        %625 = vmatpush2.msra.mxu0 0.0
        %626 = vmatprep.subr.mxu0 0.0
        %627 = vmatpush2.msra.mxu0 0.0
        %628 = vmatprep.subr.mxu0 0.0
        %629 = vmatpush2.msra.mxu0 0.0
        %630 = vmatprep.subr.mxu0 0.0
        %631 = vmatpush2.msra.mxu0 0.0
        %632 = vmatprep.subr.mxu0 0.0
        %633 = vmatpush2.msra.mxu0 0.0
        %634 = vmatprep.subr.mxu0 0.0
        %635 = vmatpush2.msra.mxu0 0.0
        %636 = vmatprep.subr.mxu0 0.0
        %637 = vmatpush2.msra.mxu0 0.0
        %638 = vmatprep.subr.mxu0 0.0
        %639 = vmatpush2.msra.mxu0 0.0
        %640 = vmatprep.subr.mxu0 0.0
        %641 = vmatpush2.msra.mxu0 0.0
        %642 = vmatprep.mubr.f32.mxu0 0.0
        %v643 = vand.u32 %v241, 4294901760
        %v644 = vsub.f32 %v241, %v643
        %v645 = vand.u32 %v644, 4294901760
        %646 = vmatmul.mubr.f32.gmra.mxu0 %v645
        %v647 = vpop.f32.mrf.mxu0
        %v648 = vadd.f32 %v548, %v647
        %v649 = vpop.f32.mrf.mxu0
        %v650 = vadd.f32 %v550, %v649
        %651 = vmatprep.mubr.f32.mxu0 0.0
        %v652 = vand.u32 %v244, 4294901760
        %v653 = vsub.f32 %v244, %v652
        %v654 = vand.u32 %v653, 4294901760
        %655 = vmatmul.mubr.f32.gmra.mxu0 %v654
        %v656 = vpop.f32.mrf.mxu0
        %v657 = vadd.f32 %v556, %v656
        %v658 = vpop.f32.mrf.mxu0
        %v659 = vadd.f32 %v558, %v658
        %660 = vmatprep.mubr.f32.mxu0 0.0
        %v661 = vand.u32 %v247, 4294901760
        %v662 = vsub.f32 %v247, %v661
        %v663 = vand.u32 %v662, 4294901760
        %664 = vmatmul.mubr.f32.gmra.mxu0 %v663
        %v665 = vpop.f32.mrf.mxu0
        %v666 = vadd.f32 %v564, %v665
        %v667 = vpop.f32.mrf.mxu0
        %v668 = vadd.f32 %v566, %v667
        %669 = vmatprep.mubr.f32.mxu0 0.0
        %v670 = vand.u32 %v250, 4294901760
        %v671 = vsub.f32 %v250, %v670
        %v672 = vand.u32 %v671, 4294901760
        %673 = vmatmul.mubr.f32.gmra.mxu0 %v672
        %v674 = vpop.f32.mrf.mxu0
        %v675 = vadd.f32 %v572, %v674
        %v676 = vpop.f32.mrf.mxu0
        %v677 = vadd.f32 %v574, %v676
        %678 = vdwg.mxu0
        %679 = vmatprep.subr.mxu0 0.0
        %680 = vmatpush1.msra.mxu0 0.0
        %681 = vmatprep.subr.mxu0 0.0
        %682 = vmatpush1.msra.mxu0 0.0
        %683 = vmatprep.subr.mxu0 0.0
        %684 = vmatpush1.msra.mxu0 0.0
        %685 = vmatprep.subr.mxu0 0.0
        %686 = vmatpush1.msra.mxu0 0.0
        %687 = vmatprep.subr.mxu0 0.0
        %688 = vmatpush1.msra.mxu0 0.0
        %689 = vmatprep.subr.mxu0 0.0
        %690 = vmatpush1.msra.mxu0 0.0
        %691 = vmatprep.subr.mxu0 0.0
        %692 = vmatpush1.msra.mxu0 0.0
        %693 = vmatprep.subr.mxu0 0.0
        %694 = vmatpush1.msra.mxu0 0.0
        %695 = vmatprep.subr.mxu0 0.0
        %696 = vmatpush1.msra.mxu0 0.0
        %697 = vmatprep.subr.mxu0 0.0
        %698 = vmatpush1.msra.mxu0 0.0
        %699 = vmatprep.subr.mxu0 0.0
        %700 = vmatpush1.msra.mxu0 0.0
        %701 = vmatprep.subr.mxu0 0.0
        %702 = vmatpush1.msra.mxu0 0.0
        %703 = vmatprep.subr.mxu0 0.0
        %704 = vmatpush1.msra.mxu0 0.0
        %705 = vmatprep.subr.mxu0 0.0
        %706 = vmatpush1.msra.mxu0 0.0
        %707 = vmatprep.subr.mxu0 0.0
        %708 = vmatpush1.msra.mxu0 0.0
        %v709 = vand.u32 %v255, 4294901760
        %v710 = vsub.f32 %v255, %v709
        %v711 = vand.u32 %v710, 4294901760
        %712 = vmatprep.subr.mxu0 %v711
        %v713 = vand.u32 %v253, 4294901760
        %v714 = vsub.f32 %v253, %v713
        %v715 = vand.u32 %v714, 4294901760
        %716 = vmatpush1.msra.mxu0 %v715
        %717 = vmatprep.subr.mxu0 0.0
        %718 = vmatpush2.msra.mxu0 0.0
        %719 = vmatprep.subr.mxu0 0.0
        %720 = vmatpush2.msra.mxu0 0.0
        %721 = vmatprep.subr.mxu0 0.0
        %722 = vmatpush2.msra.mxu0 0.0
        %723 = vmatprep.subr.mxu0 0.0
        %724 = vmatpush2.msra.mxu0 0.0
        %725 = vmatprep.subr.mxu0 0.0
        %726 = vmatpush2.msra.mxu0 0.0
        %727 = vmatprep.subr.mxu0 0.0
        %728 = vmatpush2.msra.mxu0 0.0
        %729 = vmatprep.subr.mxu0 0.0
        %730 = vmatpush2.msra.mxu0 0.0
        %731 = vmatprep.subr.mxu0 0.0
        %732 = vmatpush2.msra.mxu0 0.0
        %733 = vmatprep.subr.mxu0 0.0
        %734 = vmatpush2.msra.mxu0 0.0
        %735 = vmatprep.subr.mxu0 0.0
        %736 = vmatpush2.msra.mxu0 0.0
        %737 = vmatprep.subr.mxu0 0.0
        %738 = vmatpush2.msra.mxu0 0.0
        %739 = vmatprep.subr.mxu0 0.0
        %740 = vmatpush2.msra.mxu0 0.0
        %741 = vmatprep.subr.mxu0 0.0
        %742 = vmatpush2.msra.mxu0 0.0
        %743 = vmatprep.subr.mxu0 0.0
        %744 = vmatpush2.msra.mxu0 0.0
        %745 = vmatprep.subr.mxu0 0.0
        %746 = vmatpush2.msra.mxu0 0.0
        %747 = vmatprep.subr.mxu0 0.0
        %748 = vmatpush2.msra.mxu0 0.0
        %749 = vmatprep.mubr.f32.mxu0 0.0
        %v750 = vand.u32 %v241, 4294901760
        %751 = vmatmul.mubr.f32.gmra.mxu0 %v750
        %v752 = vpop.f32.mrf.mxu0
        %v753 = vadd.f32 %v648, %v752
        %v754 = vpop.f32.mrf.mxu0
        %v755 = vadd.f32 %v650, %v754
        %756 = vmatprep.mubr.f32.mxu0 0.0
        %v757 = vand.u32 %v244, 4294901760
        %758 = vmatmul.mubr.f32.gmra.mxu0 %v757
        %v759 = vpop.f32.mrf.mxu0
        %v760 = vadd.f32 %v657, %v759
        %v761 = vpop.f32.mrf.mxu0
        %v762 = vadd.f32 %v659, %v761
        %763 = vmatprep.mubr.f32.mxu0 0.0
        %v764 = vand.u32 %v247, 4294901760
        %765 = vmatmul.mubr.f32.gmra.mxu0 %v764
        %v766 = vpop.f32.mrf.mxu0
        %v767 = vadd.f32 %v666, %v766
        %v768 = vpop.f32.mrf.mxu0
        %v769 = vadd.f32 %v668, %v768
        %770 = vmatprep.mubr.f32.mxu0 0.0
        %v771 = vand.u32 %v250, 4294901760
        %772 = vmatmul.mubr.f32.gmra.mxu0 %v771
        %v773 = vpop.f32.mrf.mxu0
        %v774 = vadd.f32 %v675, %v773
        %v775 = vpop.f32.mrf.mxu0
        %v776 = vadd.f32 %v677, %v775
        %777 = vdwg.mxu0
        %778 = vmatprep.subr.mxu0 0.0
        %779 = vmatpush1.msra.mxu0 0.0
        %780 = vmatprep.subr.mxu0 0.0
        %781 = vmatpush1.msra.mxu0 0.0
        %782 = vmatprep.subr.mxu0 0.0
        %783 = vmatpush1.msra.mxu0 0.0
        %784 = vmatprep.subr.mxu0 0.0
        %785 = vmatpush1.msra.mxu0 0.0
        %786 = vmatprep.subr.mxu0 0.0
        %787 = vmatpush1.msra.mxu0 0.0
        %788 = vmatprep.subr.mxu0 0.0
        %789 = vmatpush1.msra.mxu0 0.0
        %790 = vmatprep.subr.mxu0 0.0
        %791 = vmatpush1.msra.mxu0 0.0
        %792 = vmatprep.subr.mxu0 0.0
        %793 = vmatpush1.msra.mxu0 0.0
        %794 = vmatprep.subr.mxu0 0.0
        %795 = vmatpush1.msra.mxu0 0.0
        %796 = vmatprep.subr.mxu0 0.0
        %797 = vmatpush1.msra.mxu0 0.0
        %798 = vmatprep.subr.mxu0 0.0
        %799 = vmatpush1.msra.mxu0 0.0
        %800 = vmatprep.subr.mxu0 0.0
        %801 = vmatpush1.msra.mxu0 0.0
        %802 = vmatprep.subr.mxu0 0.0
        %803 = vmatpush1.msra.mxu0 0.0
        %804 = vmatprep.subr.mxu0 0.0
        %805 = vmatpush1.msra.mxu0 0.0
        %806 = vmatprep.subr.mxu0 0.0
        %807 = vmatpush1.msra.mxu0 0.0
        %v808 = vand.u32 %v255, 4294901760
        %809 = vmatprep.subr.mxu0 %v808
        %v810 = vand.u32 %v253, 4294901760
        %811 = vmatpush1.msra.mxu0 %v810
        %812 = vmatprep.subr.mxu0 0.0
        %813 = vmatpush2.msra.mxu0 0.0
        %814 = vmatprep.subr.mxu0 0.0
        %815 = vmatpush2.msra.mxu0 0.0
        %816 = vmatprep.subr.mxu0 0.0
        %817 = vmatpush2.msra.mxu0 0.0
        %818 = vmatprep.subr.mxu0 0.0
        %819 = vmatpush2.msra.mxu0 0.0
        %820 = vmatprep.subr.mxu0 0.0
        %821 = vmatpush2.msra.mxu0 0.0
        %822 = vmatprep.subr.mxu0 0.0
        %823 = vmatpush2.msra.mxu0 0.0
        %824 = vmatprep.subr.mxu0 0.0
        %825 = vmatpush2.msra.mxu0 0.0
        %826 = vmatprep.subr.mxu0 0.0
        %827 = vmatpush2.msra.mxu0 0.0
        %828 = vmatprep.subr.mxu0 0.0
        %829 = vmatpush2.msra.mxu0 0.0
        %830 = vmatprep.subr.mxu0 0.0
        %831 = vmatpush2.msra.mxu0 0.0
        %832 = vmatprep.subr.mxu0 0.0
        %833 = vmatpush2.msra.mxu0 0.0
        %834 = vmatprep.subr.mxu0 0.0
        %835 = vmatpush2.msra.mxu0 0.0
        %836 = vmatprep.subr.mxu0 0.0
        %837 = vmatpush2.msra.mxu0 0.0
        %838 = vmatprep.subr.mxu0 0.0
        %839 = vmatpush2.msra.mxu0 0.0
        %840 = vmatprep.subr.mxu0 0.0
        %841 = vmatpush2.msra.mxu0 0.0
        %842 = vmatprep.subr.mxu0 0.0
        %843 = vmatpush2.msra.mxu0 0.0
        %844 = vmatprep.mubr.f32.mxu0 0.0
        %v845 = vand.u32 %v241, 4294901760
        %846 = vmatmul.mubr.f32.gmra.mxu0 %v845
        %v847 = vpop.f32.mrf.mxu0
        %v848 = vadd.f32 %v753, %v847
        %v849 = vpop.f32.mrf.mxu0
        %v850 = vadd.f32 %v755, %v849
        %851 = vmatprep.mubr.f32.mxu0 0.0
        %v852 = vand.u32 %v244, 4294901760
        %853 = vmatmul.mubr.f32.gmra.mxu0 %v852
        %v854 = vpop.f32.mrf.mxu0
        %v855 = vadd.f32 %v760, %v854
        %v856 = vpop.f32.mrf.mxu0
        %v857 = vadd.f32 %v762, %v856
        %858 = vmatprep.mubr.f32.mxu0 0.0
        %v859 = vand.u32 %v247, 4294901760
        %860 = vmatmul.mubr.f32.gmra.mxu0 %v859
        %v861 = vpop.f32.mrf.mxu0
        %v862 = vadd.f32 %v767, %v861
        %v863 = vpop.f32.mrf.mxu0
        %v864 = vadd.f32 %v769, %v863
        %865 = vmatprep.mubr.f32.mxu0 0.0
        %v866 = vand.u32 %v250, 4294901760
        %867 = vmatmul.mubr.f32.gmra.mxu0 %v866
        %v868 = vpop.f32.mrf.mxu0
        %v869 = vadd.f32 %v774, %v868
        %v870 = vpop.f32.mrf.mxu0
        %v871 = vadd.f32 %v776, %v870
        %872 = vdwg.mxu0
        %873 = vmatprep.subr.mxu0 0.0
        %874 = vmatpush1.msra.mxu0 0.0
        %875 = vmatprep.subr.mxu0 0.0
        %876 = vmatpush1.msra.mxu0 0.0
        %877 = vmatprep.subr.mxu0 0.0
        %878 = vmatpush1.msra.mxu0 0.0
        %879 = vmatprep.subr.mxu0 0.0
        %880 = vmatpush1.msra.mxu0 0.0
        %881 = vmatprep.subr.mxu0 0.0
        %882 = vmatpush1.msra.mxu0 0.0
        %883 = vmatprep.subr.mxu0 0.0
        %884 = vmatpush1.msra.mxu0 0.0
        %885 = vmatprep.subr.mxu0 0.0
        %886 = vmatpush1.msra.mxu0 0.0
        %887 = vmatprep.subr.mxu0 0.0
        %888 = vmatpush1.msra.mxu0 0.0
        %889 = vmatprep.subr.mxu0 0.0
        %890 = vmatpush1.msra.mxu0 0.0
        %891 = vmatprep.subr.mxu0 0.0
        %892 = vmatpush1.msra.mxu0 0.0
        %893 = vmatprep.subr.mxu0 0.0
        %894 = vmatpush1.msra.mxu0 0.0
        %895 = vmatprep.subr.mxu0 0.0
        %896 = vmatpush1.msra.mxu0 0.0
        %897 = vmatprep.subr.mxu0 0.0
        %898 = vmatpush1.msra.mxu0 0.0
        %899 = vmatprep.subr.mxu0 0.0
        %900 = vmatpush1.msra.mxu0 0.0
        %901 = vmatprep.subr.mxu0 0.0
        %902 = vmatpush1.msra.mxu0 0.0
        %v903 = vand.u32 %v259, 4294901760
        %904 = vmatprep.subr.mxu0 %v903
        %v905 = vand.u32 %v257, 4294901760
        %906 = vmatpush1.msra.mxu0 %v905
        %907 = vmatprep.subr.mxu0 0.0
        %908 = vmatpush2.msra.mxu0 0.0
        %909 = vmatprep.subr.mxu0 0.0
        %910 = vmatpush2.msra.mxu0 0.0
        %911 = vmatprep.subr.mxu0 0.0
        %912 = vmatpush2.msra.mxu0 0.0
        %913 = vmatprep.subr.mxu0 0.0
        %914 = vmatpush2.msra.mxu0 0.0
        %915 = vmatprep.subr.mxu0 0.0
        %916 = vmatpush2.msra.mxu0 0.0
        %917 = vmatprep.subr.mxu0 0.0
        %918 = vmatpush2.msra.mxu0 0.0
        %919 = vmatprep.subr.mxu0 0.0
        %920 = vmatpush2.msra.mxu0 0.0
        %921 = vmatprep.subr.mxu0 0.0
        %922 = vmatpush2.msra.mxu0 0.0
        %923 = vmatprep.subr.mxu0 0.0
        %924 = vmatpush2.msra.mxu0 0.0
        %925 = vmatprep.subr.mxu0 0.0
        %926 = vmatpush2.msra.mxu0 0.0
        %927 = vmatprep.subr.mxu0 0.0
        %928 = vmatpush2.msra.mxu0 0.0
        %929 = vmatprep.subr.mxu0 0.0
        %930 = vmatpush2.msra.mxu0 0.0
        %931 = vmatprep.subr.mxu0 0.0
        %932 = vmatpush2.msra.mxu0 0.0
        %933 = vmatprep.subr.mxu0 0.0
        %934 = vmatpush2.msra.mxu0 0.0
        %935 = vmatprep.subr.mxu0 0.0
        %936 = vmatpush2.msra.mxu0 0.0
        %937 = vmatprep.subr.mxu0 0.0
        %938 = vmatpush2.msra.mxu0 0.0
        %939 = vmatprep.mubr.f32.mxu0 0.0
        %v940 = vand.u32 %v241, 4294901760
        %v941 = vsub.f32 %v241, %v940
        %v942 = vand.u32 %v941, 4294901760
        %v943 = vsub.f32 %v941, %v942
        %v944 = vand.u32 %v943, 4294901760
        %945 = vmatmul.mubr.f32.gmra.mxu0 %v944
        %v946 = vpop.f32.mrf.mxu0
        %v947 = vadd.f32 %v226, %v946
        %v948 = vpop.f32.mrf.mxu0
        %v949 = vadd.f32 %v230, %v948
        %950 = vmatprep.mubr.f32.mxu0 0.0
        %v951 = vand.u32 %v244, 4294901760
        %v952 = vsub.f32 %v244, %v951
        %v953 = vand.u32 %v952, 4294901760
        %v954 = vsub.f32 %v952, %v953
        %v955 = vand.u32 %v954, 4294901760
        %956 = vmatmul.mubr.f32.gmra.mxu0 %v955
        %v957 = vpop.f32.mrf.mxu0
        %v958 = vadd.f32 %v226, %v957
        %v959 = vpop.f32.mrf.mxu0
        %v960 = vadd.f32 %v230, %v959
        %961 = vmatprep.mubr.f32.mxu0 0.0
        %v962 = vand.u32 %v247, 4294901760
        %v963 = vsub.f32 %v247, %v962
        %v964 = vand.u32 %v963, 4294901760
        %v965 = vsub.f32 %v963, %v964
        %v966 = vand.u32 %v965, 4294901760
        %967 = vmatmul.mubr.f32.gmra.mxu0 %v966
        %v968 = vpop.f32.mrf.mxu0
        %v969 = vadd.f32 %v226, %v968
        %v970 = vpop.f32.mrf.mxu0
        %v971 = vadd.f32 %v230, %v970
        %972 = vmatprep.mubr.f32.mxu0 0.0
        %v973 = vand.u32 %v250, 4294901760
        %v974 = vsub.f32 %v250, %v973
        %v975 = vand.u32 %v974, 4294901760
        %v976 = vsub.f32 %v974, %v975
        %v977 = vand.u32 %v976, 4294901760
        %978 = vmatmul.mubr.f32.gmra.mxu0 %v977
        %v979 = vpop.f32.mrf.mxu0
        %v980 = vadd.f32 %v226, %v979
        %v981 = vpop.f32.mrf.mxu0
        %v982 = vadd.f32 %v230, %v981
        %983 = vdwg.mxu0
        %984 = vmatprep.subr.mxu0 0.0
        %985 = vmatpush1.msra.mxu0 0.0
        %986 = vmatprep.subr.mxu0 0.0
        %987 = vmatpush1.msra.mxu0 0.0
        %988 = vmatprep.subr.mxu0 0.0
        %989 = vmatpush1.msra.mxu0 0.0
        %990 = vmatprep.subr.mxu0 0.0
        %991 = vmatpush1.msra.mxu0 0.0
        %992 = vmatprep.subr.mxu0 0.0
        %993 = vmatpush1.msra.mxu0 0.0
        %994 = vmatprep.subr.mxu0 0.0
        %995 = vmatpush1.msra.mxu0 0.0
        %996 = vmatprep.subr.mxu0 0.0
        %997 = vmatpush1.msra.mxu0 0.0
        %998 = vmatprep.subr.mxu0 0.0
        %999 = vmatpush1.msra.mxu0 0.0
        %1000 = vmatprep.subr.mxu0 0.0
        %1001 = vmatpush1.msra.mxu0 0.0
        %1002 = vmatprep.subr.mxu0 0.0
        %1003 = vmatpush1.msra.mxu0 0.0
        %1004 = vmatprep.subr.mxu0 0.0
        %1005 = vmatpush1.msra.mxu0 0.0
        %1006 = vmatprep.subr.mxu0 0.0
        %1007 = vmatpush1.msra.mxu0 0.0
        %1008 = vmatprep.subr.mxu0 0.0
        %1009 = vmatpush1.msra.mxu0 0.0
        %1010 = vmatprep.subr.mxu0 0.0
        %1011 = vmatpush1.msra.mxu0 0.0
        %1012 = vmatprep.subr.mxu0 0.0
        %1013 = vmatpush1.msra.mxu0 0.0
        %v1014 = vand.u32 %v259, 4294901760
        %v1015 = vsub.f32 %v259, %v1014
        %v1016 = vand.u32 %v1015, 4294901760
        %v1017 = vsub.f32 %v1015, %v1016
        %v1018 = vand.u32 %v1017, 4294901760
        %1019 = vmatprep.subr.mxu0 %v1018
        %v1020 = vand.u32 %v257, 4294901760
        %v1021 = vsub.f32 %v257, %v1020
        %v1022 = vand.u32 %v1021, 4294901760
        %v1023 = vsub.f32 %v1021, %v1022
        %v1024 = vand.u32 %v1023, 4294901760
        %1025 = vmatpush1.msra.mxu0 %v1024
        %1026 = vmatprep.subr.mxu0 0.0
        %1027 = vmatpush2.msra.mxu0 0.0
        %1028 = vmatprep.subr.mxu0 0.0
        %1029 = vmatpush2.msra.mxu0 0.0
        %1030 = vmatprep.subr.mxu0 0.0
        %1031 = vmatpush2.msra.mxu0 0.0
        %1032 = vmatprep.subr.mxu0 0.0
        %1033 = vmatpush2.msra.mxu0 0.0
        %1034 = vmatprep.subr.mxu0 0.0
        %1035 = vmatpush2.msra.mxu0 0.0
        %1036 = vmatprep.subr.mxu0 0.0
        %1037 = vmatpush2.msra.mxu0 0.0
        %1038 = vmatprep.subr.mxu0 0.0
        %1039 = vmatpush2.msra.mxu0 0.0
        %1040 = vmatprep.subr.mxu0 0.0
        %1041 = vmatpush2.msra.mxu0 0.0
        %1042 = vmatprep.subr.mxu0 0.0
        %1043 = vmatpush2.msra.mxu0 0.0
        %1044 = vmatprep.subr.mxu0 0.0
        %1045 = vmatpush2.msra.mxu0 0.0
        %1046 = vmatprep.subr.mxu0 0.0
        %1047 = vmatpush2.msra.mxu0 0.0
        %1048 = vmatprep.subr.mxu0 0.0
        %1049 = vmatpush2.msra.mxu0 0.0
        %1050 = vmatprep.subr.mxu0 0.0
        %1051 = vmatpush2.msra.mxu0 0.0
        %1052 = vmatprep.subr.mxu0 0.0
        %1053 = vmatpush2.msra.mxu0 0.0
        %1054 = vmatprep.subr.mxu0 0.0
        %1055 = vmatpush2.msra.mxu0 0.0
        %1056 = vmatprep.subr.mxu0 0.0
        %1057 = vmatpush2.msra.mxu0 0.0
        %1058 = vmatprep.mubr.f32.mxu0 0.0
        %v1059 = vand.u32 %v241, 4294901760
        %1060 = vmatmul.mubr.f32.gmra.mxu0 %v1059
        %v1061 = vpop.f32.mrf.mxu0
        %v1062 = vadd.f32 %v947, %v1061
        %v1063 = vpop.f32.mrf.mxu0
        %v1064 = vadd.f32 %v949, %v1063
        %1065 = vmatprep.mubr.f32.mxu0 0.0
        %v1066 = vand.u32 %v244, 4294901760
        %1067 = vmatmul.mubr.f32.gmra.mxu0 %v1066
        %v1068 = vpop.f32.mrf.mxu0
        %v1069 = vadd.f32 %v958, %v1068
        %v1070 = vpop.f32.mrf.mxu0
        %v1071 = vadd.f32 %v960, %v1070
        %1072 = vmatprep.mubr.f32.mxu0 0.0
        %v1073 = vand.u32 %v247, 4294901760
        %1074 = vmatmul.mubr.f32.gmra.mxu0 %v1073
        %v1075 = vpop.f32.mrf.mxu0
        %v1076 = vadd.f32 %v969, %v1075
        %v1077 = vpop.f32.mrf.mxu0
        %v1078 = vadd.f32 %v971, %v1077
        %1079 = vmatprep.mubr.f32.mxu0 0.0
        %v1080 = vand.u32 %v250, 4294901760
        %1081 = vmatmul.mubr.f32.gmra.mxu0 %v1080
        %v1082 = vpop.f32.mrf.mxu0
        %v1083 = vadd.f32 %v980, %v1082
        %v1084 = vpop.f32.mrf.mxu0
        %v1085 = vadd.f32 %v982, %v1084
        %1086 = vdwg.mxu0
        %1087 = vmatprep.subr.mxu0 0.0
        %1088 = vmatpush1.msra.mxu0 0.0
        %1089 = vmatprep.subr.mxu0 0.0
        %1090 = vmatpush1.msra.mxu0 0.0
        %1091 = vmatprep.subr.mxu0 0.0
        %1092 = vmatpush1.msra.mxu0 0.0
        %1093 = vmatprep.subr.mxu0 0.0
        %1094 = vmatpush1.msra.mxu0 0.0
        %1095 = vmatprep.subr.mxu0 0.0
        %1096 = vmatpush1.msra.mxu0 0.0
        %1097 = vmatprep.subr.mxu0 0.0
        %1098 = vmatpush1.msra.mxu0 0.0
        %1099 = vmatprep.subr.mxu0 0.0
        %1100 = vmatpush1.msra.mxu0 0.0
        %1101 = vmatprep.subr.mxu0 0.0
        %1102 = vmatpush1.msra.mxu0 0.0
        %1103 = vmatprep.subr.mxu0 0.0
        %1104 = vmatpush1.msra.mxu0 0.0
        %1105 = vmatprep.subr.mxu0 0.0
        %1106 = vmatpush1.msra.mxu0 0.0
        %1107 = vmatprep.subr.mxu0 0.0
        %1108 = vmatpush1.msra.mxu0 0.0
        %1109 = vmatprep.subr.mxu0 0.0
        %1110 = vmatpush1.msra.mxu0 0.0
        %1111 = vmatprep.subr.mxu0 0.0
        %1112 = vmatpush1.msra.mxu0 0.0
        %1113 = vmatprep.subr.mxu0 0.0
        %1114 = vmatpush1.msra.mxu0 0.0
        %1115 = vmatprep.subr.mxu0 0.0
        %1116 = vmatpush1.msra.mxu0 0.0
        %v1117 = vand.u32 %v259, 4294901760
        %v1118 = vsub.f32 %v259, %v1117
        %1119 = vmatprep.subr.mxu0 %v1118
        %v1120 = vand.u32 %v257, 4294901760
        %v1121 = vsub.f32 %v257, %v1120
        %1122 = vmatpush1.msra.mxu0 %v1121
        %1123 = vmatprep.subr.mxu0 0.0
        %1124 = vmatpush2.msra.mxu0 0.0
        %1125 = vmatprep.subr.mxu0 0.0
        %1126 = vmatpush2.msra.mxu0 0.0
        %1127 = vmatprep.subr.mxu0 0.0
        %1128 = vmatpush2.msra.mxu0 0.0
        %1129 = vmatprep.subr.mxu0 0.0
        %1130 = vmatpush2.msra.mxu0 0.0
        %1131 = vmatprep.subr.mxu0 0.0
        %1132 = vmatpush2.msra.mxu0 0.0
        %1133 = vmatprep.subr.mxu0 0.0
        %1134 = vmatpush2.msra.mxu0 0.0
        %1135 = vmatprep.subr.mxu0 0.0
        %1136 = vmatpush2.msra.mxu0 0.0
        %1137 = vmatprep.subr.mxu0 0.0
        %1138 = vmatpush2.msra.mxu0 0.0
        %1139 = vmatprep.subr.mxu0 0.0
        %1140 = vmatpush2.msra.mxu0 0.0
        %1141 = vmatprep.subr.mxu0 0.0
        %1142 = vmatpush2.msra.mxu0 0.0
        %1143 = vmatprep.subr.mxu0 0.0
        %1144 = vmatpush2.msra.mxu0 0.0
        %1145 = vmatprep.subr.mxu0 0.0
        %1146 = vmatpush2.msra.mxu0 0.0
        %1147 = vmatprep.subr.mxu0 0.0
        %1148 = vmatpush2.msra.mxu0 0.0
        %1149 = vmatprep.subr.mxu0 0.0
        %1150 = vmatpush2.msra.mxu0 0.0
        %1151 = vmatprep.subr.mxu0 0.0
        %1152 = vmatpush2.msra.mxu0 0.0
        %1153 = vmatprep.subr.mxu0 0.0
        %1154 = vmatpush2.msra.mxu0 0.0
        %1155 = vmatprep.mubr.f32.mxu0 0.0
        %v1156 = vand.u32 %v241, 4294901760
        %v1157 = vsub.f32 %v241, %v1156
        %1158 = vmatmul.mubr.f32.gmra.mxu0 %v1157
        %v1159 = vpop.f32.mrf.mxu0
        %v1160 = vadd.f32 %v1062, %v1159
        %v1161 = vpop.f32.mrf.mxu0
        %v1162 = vadd.f32 %v1064, %v1161
        %1163 = vmatprep.mubr.f32.mxu0 0.0
        %v1164 = vand.u32 %v244, 4294901760
        %v1165 = vsub.f32 %v244, %v1164
        %1166 = vmatmul.mubr.f32.gmra.mxu0 %v1165
        %v1167 = vpop.f32.mrf.mxu0
        %v1168 = vadd.f32 %v1069, %v1167
        %v1169 = vpop.f32.mrf.mxu0
        %v1170 = vadd.f32 %v1071, %v1169
        %1171 = vmatprep.mubr.f32.mxu0 0.0
        %v1172 = vand.u32 %v247, 4294901760
        %v1173 = vsub.f32 %v247, %v1172
        %1174 = vmatmul.mubr.f32.gmra.mxu0 %v1173
        %v1175 = vpop.f32.mrf.mxu0
        %v1176 = vadd.f32 %v1076, %v1175
        %v1177 = vpop.f32.mrf.mxu0
        %v1178 = vadd.f32 %v1078, %v1177
        %1179 = vmatprep.mubr.f32.mxu0 0.0
        %v1180 = vand.u32 %v250, 4294901760
        %v1181 = vsub.f32 %v250, %v1180
        %1182 = vmatmul.mubr.f32.gmra.mxu0 %v1181
        %v1183 = vpop.f32.mrf.mxu0
        %v1184 = vadd.f32 %v1083, %v1183
        %v1185 = vpop.f32.mrf.mxu0
        %v1186 = vadd.f32 %v1085, %v1185
        %1187 = vdwg.mxu0
        %1188 = vmatprep.subr.mxu0 0.0
        %1189 = vmatpush1.msra.mxu0 0.0
        %1190 = vmatprep.subr.mxu0 0.0
        %1191 = vmatpush1.msra.mxu0 0.0
        %1192 = vmatprep.subr.mxu0 0.0
        %1193 = vmatpush1.msra.mxu0 0.0
        %1194 = vmatprep.subr.mxu0 0.0
        %1195 = vmatpush1.msra.mxu0 0.0
        %1196 = vmatprep.subr.mxu0 0.0
        %1197 = vmatpush1.msra.mxu0 0.0
        %1198 = vmatprep.subr.mxu0 0.0
        %1199 = vmatpush1.msra.mxu0 0.0
        %1200 = vmatprep.subr.mxu0 0.0
        %1201 = vmatpush1.msra.mxu0 0.0
        %1202 = vmatprep.subr.mxu0 0.0
        %1203 = vmatpush1.msra.mxu0 0.0
        %1204 = vmatprep.subr.mxu0 0.0
        %1205 = vmatpush1.msra.mxu0 0.0
        %1206 = vmatprep.subr.mxu0 0.0
        %1207 = vmatpush1.msra.mxu0 0.0
        %1208 = vmatprep.subr.mxu0 0.0
        %1209 = vmatpush1.msra.mxu0 0.0
        %1210 = vmatprep.subr.mxu0 0.0
        %1211 = vmatpush1.msra.mxu0 0.0
        %1212 = vmatprep.subr.mxu0 0.0
        %1213 = vmatpush1.msra.mxu0 0.0
        %1214 = vmatprep.subr.mxu0 0.0
        %1215 = vmatpush1.msra.mxu0 0.0
        %1216 = vmatprep.subr.mxu0 0.0
        %1217 = vmatpush1.msra.mxu0 0.0
        %v1218 = vand.u32 %v259, 4294901760
        %1219 = vmatprep.subr.mxu0 %v1218
        %v1220 = vand.u32 %v257, 4294901760
        %1221 = vmatpush1.msra.mxu0 %v1220
        %1222 = vmatprep.subr.mxu0 0.0
        %1223 = vmatpush2.msra.mxu0 0.0
        %1224 = vmatprep.subr.mxu0 0.0
        %1225 = vmatpush2.msra.mxu0 0.0
        %1226 = vmatprep.subr.mxu0 0.0
        %1227 = vmatpush2.msra.mxu0 0.0
        %1228 = vmatprep.subr.mxu0 0.0
        %1229 = vmatpush2.msra.mxu0 0.0
        %1230 = vmatprep.subr.mxu0 0.0
        %1231 = vmatpush2.msra.mxu0 0.0
        %1232 = vmatprep.subr.mxu0 0.0
        %1233 = vmatpush2.msra.mxu0 0.0
        %1234 = vmatprep.subr.mxu0 0.0
        %1235 = vmatpush2.msra.mxu0 0.0
        %1236 = vmatprep.subr.mxu0 0.0
        %1237 = vmatpush2.msra.mxu0 0.0
        %1238 = vmatprep.subr.mxu0 0.0
        %1239 = vmatpush2.msra.mxu0 0.0
        %1240 = vmatprep.subr.mxu0 0.0
        %1241 = vmatpush2.msra.mxu0 0.0
        %1242 = vmatprep.subr.mxu0 0.0
        %1243 = vmatpush2.msra.mxu0 0.0
        %1244 = vmatprep.subr.mxu0 0.0
        %1245 = vmatpush2.msra.mxu0 0.0
        %1246 = vmatprep.subr.mxu0 0.0
        %1247 = vmatpush2.msra.mxu0 0.0
        %1248 = vmatprep.subr.mxu0 0.0
        %1249 = vmatpush2.msra.mxu0 0.0
        %1250 = vmatprep.subr.mxu0 0.0
        %1251 = vmatpush2.msra.mxu0 0.0
        %1252 = vmatprep.subr.mxu0 0.0
        %1253 = vmatpush2.msra.mxu0 0.0
        %1254 = vmatprep.mubr.f32.mxu0 0.0
        %v1255 = vand.u32 %v241, 4294901760
        %v1256 = vsub.f32 %v241, %v1255
        %v1257 = vand.u32 %v1256, 4294901760
        %1258 = vmatmul.mubr.f32.gmra.mxu0 %v1257
        %v1259 = vpop.f32.mrf.mxu0
        %v1260 = vadd.f32 %v1160, %v1259
        %v1261 = vpop.f32.mrf.mxu0
        %v1262 = vadd.f32 %v1162, %v1261
        %1263 = vmatprep.mubr.f32.mxu0 0.0
        %v1264 = vand.u32 %v244, 4294901760
        %v1265 = vsub.f32 %v244, %v1264
        %v1266 = vand.u32 %v1265, 4294901760
        %1267 = vmatmul.mubr.f32.gmra.mxu0 %v1266
        %v1268 = vpop.f32.mrf.mxu0
        %v1269 = vadd.f32 %v1168, %v1268
        %v1270 = vpop.f32.mrf.mxu0
        %v1271 = vadd.f32 %v1170, %v1270
        %1272 = vmatprep.mubr.f32.mxu0 0.0
        %v1273 = vand.u32 %v247, 4294901760
        %v1274 = vsub.f32 %v247, %v1273
        %v1275 = vand.u32 %v1274, 4294901760
        %1276 = vmatmul.mubr.f32.gmra.mxu0 %v1275
        %v1277 = vpop.f32.mrf.mxu0
        %v1278 = vadd.f32 %v1176, %v1277
        %v1279 = vpop.f32.mrf.mxu0
        %v1280 = vadd.f32 %v1178, %v1279
        %1281 = vmatprep.mubr.f32.mxu0 0.0
        %v1282 = vand.u32 %v250, 4294901760
        %v1283 = vsub.f32 %v250, %v1282
        %v1284 = vand.u32 %v1283, 4294901760
        %1285 = vmatmul.mubr.f32.gmra.mxu0 %v1284
        %v1286 = vpop.f32.mrf.mxu0
        %v1287 = vadd.f32 %v1184, %v1286
        %v1288 = vpop.f32.mrf.mxu0
        %v1289 = vadd.f32 %v1186, %v1288
        %1290 = vdwg.mxu0
        %1291 = vmatprep.subr.mxu0 0.0
        %1292 = vmatpush1.msra.mxu0 0.0
        %1293 = vmatprep.subr.mxu0 0.0
        %1294 = vmatpush1.msra.mxu0 0.0
        %1295 = vmatprep.subr.mxu0 0.0
        %1296 = vmatpush1.msra.mxu0 0.0
        %1297 = vmatprep.subr.mxu0 0.0
        %1298 = vmatpush1.msra.mxu0 0.0
        %1299 = vmatprep.subr.mxu0 0.0
        %1300 = vmatpush1.msra.mxu0 0.0
        %1301 = vmatprep.subr.mxu0 0.0
        %1302 = vmatpush1.msra.mxu0 0.0
        %1303 = vmatprep.subr.mxu0 0.0
        %1304 = vmatpush1.msra.mxu0 0.0
        %1305 = vmatprep.subr.mxu0 0.0
        %1306 = vmatpush1.msra.mxu0 0.0
        %1307 = vmatprep.subr.mxu0 0.0
        %1308 = vmatpush1.msra.mxu0 0.0
        %1309 = vmatprep.subr.mxu0 0.0
        %1310 = vmatpush1.msra.mxu0 0.0
        %1311 = vmatprep.subr.mxu0 0.0
        %1312 = vmatpush1.msra.mxu0 0.0
        %1313 = vmatprep.subr.mxu0 0.0
        %1314 = vmatpush1.msra.mxu0 0.0
        %1315 = vmatprep.subr.mxu0 0.0
        %1316 = vmatpush1.msra.mxu0 0.0
        %1317 = vmatprep.subr.mxu0 0.0
        %1318 = vmatpush1.msra.mxu0 0.0
        %1319 = vmatprep.subr.mxu0 0.0
        %1320 = vmatpush1.msra.mxu0 0.0
        %v1321 = vand.u32 %v259, 4294901760
        %v1322 = vsub.f32 %v259, %v1321
        %v1323 = vand.u32 %v1322, 4294901760
        %1324 = vmatprep.subr.mxu0 %v1323
        %v1325 = vand.u32 %v257, 4294901760
        %v1326 = vsub.f32 %v257, %v1325
        %v1327 = vand.u32 %v1326, 4294901760
        %1328 = vmatpush1.msra.mxu0 %v1327
        %1329 = vmatprep.subr.mxu0 0.0
        %1330 = vmatpush2.msra.mxu0 0.0
        %1331 = vmatprep.subr.mxu0 0.0
        %1332 = vmatpush2.msra.mxu0 0.0
        %1333 = vmatprep.subr.mxu0 0.0
        %1334 = vmatpush2.msra.mxu0 0.0
        %1335 = vmatprep.subr.mxu0 0.0
        %1336 = vmatpush2.msra.mxu0 0.0
        %1337 = vmatprep.subr.mxu0 0.0
        %1338 = vmatpush2.msra.mxu0 0.0
        %1339 = vmatprep.subr.mxu0 0.0
        %1340 = vmatpush2.msra.mxu0 0.0
        %1341 = vmatprep.subr.mxu0 0.0
        %1342 = vmatpush2.msra.mxu0 0.0
        %1343 = vmatprep.subr.mxu0 0.0
        %1344 = vmatpush2.msra.mxu0 0.0
        %1345 = vmatprep.subr.mxu0 0.0
        %1346 = vmatpush2.msra.mxu0 0.0
        %1347 = vmatprep.subr.mxu0 0.0
        %1348 = vmatpush2.msra.mxu0 0.0
        %1349 = vmatprep.subr.mxu0 0.0
        %1350 = vmatpush2.msra.mxu0 0.0
        %1351 = vmatprep.subr.mxu0 0.0
        %1352 = vmatpush2.msra.mxu0 0.0
        %1353 = vmatprep.subr.mxu0 0.0
        %1354 = vmatpush2.msra.mxu0 0.0
        %1355 = vmatprep.subr.mxu0 0.0
        %1356 = vmatpush2.msra.mxu0 0.0
        %1357 = vmatprep.subr.mxu0 0.0
        %1358 = vmatpush2.msra.mxu0 0.0
        %1359 = vmatprep.subr.mxu0 0.0
        %1360 = vmatpush2.msra.mxu0 0.0
        %1361 = vmatprep.mubr.f32.mxu0 0.0
        %v1362 = vand.u32 %v241, 4294901760
        %1363 = vmatmul.mubr.f32.gmra.mxu0 %v1362
        %v1364 = vpop.f32.mrf.mxu0
        %v1365 = vadd.f32 %v1260, %v1364
        %v1366 = vpop.f32.mrf.mxu0
        %v1367 = vadd.f32 %v1262, %v1366
        %1368 = vmatprep.mubr.f32.mxu0 0.0
        %v1369 = vand.u32 %v244, 4294901760
        %1370 = vmatmul.mubr.f32.gmra.mxu0 %v1369
        %v1371 = vpop.f32.mrf.mxu0
        %v1372 = vadd.f32 %v1269, %v1371
        %v1373 = vpop.f32.mrf.mxu0
        %v1374 = vadd.f32 %v1271, %v1373
        %1375 = vmatprep.mubr.f32.mxu0 0.0
        %v1376 = vand.u32 %v247, 4294901760
        %1377 = vmatmul.mubr.f32.gmra.mxu0 %v1376
        %v1378 = vpop.f32.mrf.mxu0
        %v1379 = vadd.f32 %v1278, %v1378
        %v1380 = vpop.f32.mrf.mxu0
        %v1381 = vadd.f32 %v1280, %v1380
        %1382 = vmatprep.mubr.f32.mxu0 0.0
        %v1383 = vand.u32 %v250, 4294901760
        %1384 = vmatmul.mubr.f32.gmra.mxu0 %v1383
        %v1385 = vpop.f32.mrf.mxu0
        %v1386 = vadd.f32 %v1287, %v1385
        %v1387 = vpop.f32.mrf.mxu0
        %v1388 = vadd.f32 %v1289, %v1387
        %1389 = vdwg.mxu0
        %1390 = vmatprep.subr.mxu0 0.0
        %1391 = vmatpush1.msra.mxu0 0.0
        %1392 = vmatprep.subr.mxu0 0.0
        %1393 = vmatpush1.msra.mxu0 0.0
        %1394 = vmatprep.subr.mxu0 0.0
        %1395 = vmatpush1.msra.mxu0 0.0
        %1396 = vmatprep.subr.mxu0 0.0
        %1397 = vmatpush1.msra.mxu0 0.0
        %1398 = vmatprep.subr.mxu0 0.0
        %1399 = vmatpush1.msra.mxu0 0.0
        %1400 = vmatprep.subr.mxu0 0.0
        %1401 = vmatpush1.msra.mxu0 0.0
        %1402 = vmatprep.subr.mxu0 0.0
        %1403 = vmatpush1.msra.mxu0 0.0
        %1404 = vmatprep.subr.mxu0 0.0
        %1405 = vmatpush1.msra.mxu0 0.0
        %1406 = vmatprep.subr.mxu0 0.0
        %1407 = vmatpush1.msra.mxu0 0.0
        %1408 = vmatprep.subr.mxu0 0.0
        %1409 = vmatpush1.msra.mxu0 0.0
        %1410 = vmatprep.subr.mxu0 0.0
        %1411 = vmatpush1.msra.mxu0 0.0
        %1412 = vmatprep.subr.mxu0 0.0
        %1413 = vmatpush1.msra.mxu0 0.0
        %1414 = vmatprep.subr.mxu0 0.0
        %1415 = vmatpush1.msra.mxu0 0.0
        %1416 = vmatprep.subr.mxu0 0.0
        %1417 = vmatpush1.msra.mxu0 0.0
        %1418 = vmatprep.subr.mxu0 0.0
        %1419 = vmatpush1.msra.mxu0 0.0
        %v1420 = vand.u32 %v259, 4294901760
        %1421 = vmatprep.subr.mxu0 %v1420
        %v1422 = vand.u32 %v257, 4294901760
        %1423 = vmatpush1.msra.mxu0 %v1422
        %1424 = vmatprep.subr.mxu0 0.0
        %1425 = vmatpush2.msra.mxu0 0.0
        %1426 = vmatprep.subr.mxu0 0.0
        %1427 = vmatpush2.msra.mxu0 0.0
        %1428 = vmatprep.subr.mxu0 0.0
        %1429 = vmatpush2.msra.mxu0 0.0
        %1430 = vmatprep.subr.mxu0 0.0
        %1431 = vmatpush2.msra.mxu0 0.0
        %1432 = vmatprep.subr.mxu0 0.0
        %1433 = vmatpush2.msra.mxu0 0.0
        %1434 = vmatprep.subr.mxu0 0.0
        %1435 = vmatpush2.msra.mxu0 0.0
        %1436 = vmatprep.subr.mxu0 0.0
        %1437 = vmatpush2.msra.mxu0 0.0
        %1438 = vmatprep.subr.mxu0 0.0
        %1439 = vmatpush2.msra.mxu0 0.0
        %1440 = vmatprep.subr.mxu0 0.0
        %1441 = vmatpush2.msra.mxu0 0.0
        %1442 = vmatprep.subr.mxu0 0.0
        %1443 = vmatpush2.msra.mxu0 0.0
        %1444 = vmatprep.subr.mxu0 0.0
        %1445 = vmatpush2.msra.mxu0 0.0
        %1446 = vmatprep.subr.mxu0 0.0
        %1447 = vmatpush2.msra.mxu0 0.0
        %1448 = vmatprep.subr.mxu0 0.0
        %1449 = vmatpush2.msra.mxu0 0.0
        %1450 = vmatprep.subr.mxu0 0.0
        %1451 = vmatpush2.msra.mxu0 0.0
        %1452 = vmatprep.subr.mxu0 0.0
        %1453 = vmatpush2.msra.mxu0 0.0
        %1454 = vmatprep.subr.mxu0 0.0
        %1455 = vmatpush2.msra.mxu0 0.0
        %1456 = vmatprep.mubr.f32.mxu0 0.0
        %v1457 = vand.u32 %v241, 4294901760
        %1458 = vmatmul.mubr.f32.gmra.mxu0 %v1457
        %v1459 = vpop.f32.mrf.mxu0
        %v1460 = vadd.f32 %v1365, %v1459
        %v1461 = vpop.f32.mrf.mxu0
        %v1462 = vadd.f32 %v1367, %v1461
        %1463 = vmatprep.mubr.f32.mxu0 0.0
        %v1464 = vand.u32 %v244, 4294901760
        %1465 = vmatmul.mubr.f32.gmra.mxu0 %v1464
        %v1466 = vpop.f32.mrf.mxu0
        %v1467 = vadd.f32 %v1372, %v1466
        %v1468 = vpop.f32.mrf.mxu0
        %v1469 = vadd.f32 %v1374, %v1468
        %1470 = vmatprep.mubr.f32.mxu0 0.0
        %v1471 = vand.u32 %v247, 4294901760
        %1472 = vmatmul.mubr.f32.gmra.mxu0 %v1471
        %v1473 = vpop.f32.mrf.mxu0
        %v1474 = vadd.f32 %v1379, %v1473
        %v1475 = vpop.f32.mrf.mxu0
        %v1476 = vadd.f32 %v1381, %v1475
        %1477 = vmatprep.mubr.f32.mxu0 0.0
        %v1478 = vand.u32 %v250, 4294901760
        %1479 = vmatmul.mubr.f32.gmra.mxu0 %v1478
        %v1480 = vpop.f32.mrf.mxu0
        %v1481 = vadd.f32 %v1386, %v1480
        %v1482 = vpop.f32.mrf.mxu0
        %v1483 = vadd.f32 %v1388, %v1482
        %1484 = vdwg.mxu0
        %1485 = vst [vmem:[#allocation4] sm:$0xff] %v848
        %1486 = vst [vmem:[#allocation4 + $0x8] sm:$0xff] %v850
        %1487 = vst [vmem:[#allocation4 + $0x10] sm:$0xff] %v1460
        %1488 = vst [vmem:[#allocation4 + $0x18] sm:$0xff] %v1462
        %1489 = vst [vmem:[#allocation4 + $0x20] sm:$0xff] %v855
        %1490 = vst [vmem:[#allocation4 + $0x28] sm:$0xff] %v857
        %1491 = vst [vmem:[#allocation4 + $0x30] sm:$0xff] %v1467
        %1492 = vst [vmem:[#allocation4 + $0x38] sm:$0xff] %v1469
        %1493 = vst [vmem:[#allocation4 + $0x40] sm:$0xff] %v862
        %1494 = vst [vmem:[#allocation4 + $0x48] sm:$0xff] %v864
        %1495 = vst [vmem:[#allocation4 + $0x50] sm:$0xff] %v1474
        %1496 = vst [vmem:[#allocation4 + $0x58] sm:$0xff] %v1476
        %1497 = vst [vmem:[#allocation4 + $0x60] sm:$0xff] %v869
        %1498 = vst [vmem:[#allocation4 + $0x68] sm:$0xff] %v871
        %1499 = vst [vmem:[#allocation4 + $0x70] sm:$0xff] %v1481
        %1500 = vst [vmem:[#allocation4 + $0x78] sm:$0xff] %v1483
        %v1501 = vld [vmem:[#allocation2] sm:$0xff]
        %v1502 = vld [vmem:[#allocation3] sm:$0xff]
        %s1503 = smul.u32 0, 4
        %s1504 = smul.addr %s1503, 8
        %s1505 = scalar_lea.vmem [#allocation4], %s1504
        %v1506 = vld [vmem:[%s1505] sm:$0xff]
        %v1507 = vld [vmem:[%s1505 + $0x8] sm:$0xff]
        %v1508 = vld [vmem:[%s1505 + $0x10] sm:$0xff]
        %v1509 = vld [vmem:[%s1505 + $0x18] sm:$0xff]
        %v1510 = vld [vmem:[#allocation5] sm:$0xff]
        %v1511 = vld [vmem:[#allocation5 + $0x8] sm:$0xff]
        %v1512 = vld [vmem:[#allocation5 + $0x10] sm:$0xff]
        %v1513 = vld [vmem:[#allocation5 + $0x18] sm:$0xff]
        %v1514 = vld [vmem:[#allocation5 + $0x20] sm:$0xff]
        %v1515 = vld [vmem:[#allocation5 + $0x28] sm:$0xff]
        %v1516 = vld [vmem:[#allocation5 + $0x30] sm:$0xff]
        %v1517 = vld [vmem:[#allocation5 + $0x38] sm:$0xff]
        %v1518 = vld [vmem:[#allocation5 + $0x40] sm:$0xff]
        %v1519 = vld [vmem:[#allocation5 + $0x48] sm:$0xff]
        %v1520 = vld [vmem:[#allocation5 + $0x50] sm:$0xff]
        %v1521 = vld [vmem:[#allocation5 + $0x58] sm:$0xff]
        %v1522 = vld [vmem:[#allocation5 + $0x60] sm:$0xff]
        %v1523 = vld [vmem:[#allocation5 + $0x68] sm:$0xff]
        %v1524 = vld [vmem:[#allocation5 + $0x70] sm:$0xff]
        %v1525 = vld [vmem:[#allocation5 + $0x78] sm:$0xff]
        %v1526 = vld [vmem:[#allocation5 + $0x80] sm:$0xff]
        %v1527 = vld [vmem:[#allocation5 + $0x88] sm:$0xff]
        %v1528 = vld [vmem:[#allocation5 + $0x90] sm:$0xff]
        %v1529 = vld [vmem:[#allocation5 + $0x98] sm:$0xff]
        %v1530 = vld [vmem:[#allocation5 + $0xa0] sm:$0xff]
        %v1531 = vld [vmem:[#allocation5 + $0xa8] sm:$0xff]
        %v1532 = vld [vmem:[#allocation5 + $0xb0] sm:$0xff]
        %v1533 = vld [vmem:[#allocation5 + $0xb8] sm:$0xff]
        %v1534 = vld [vmem:[#allocation5 + $0xc0] sm:$0xff]
        %v1535 = vld [vmem:[#allocation5 + $0xc8] sm:$0xff]
        %v1536 = vld [vmem:[#allocation5 + $0xd0] sm:$0xff]
        %v1537 = vld [vmem:[#allocation5 + $0xd8] sm:$0xff]
        %v1538 = vld [vmem:[#allocation5 + $0xe0] sm:$0xff]
        %v1539 = vld [vmem:[#allocation5 + $0xe8] sm:$0xff]
        %v1540 = vld [vmem:[#allocation5 + $0xf0] sm:$0xff]
        %v1541 = vld [vmem:[#allocation5 + $0xf8] sm:$0xff]
        %v1542 = vld [vmem:[#allocation5 + $0x100] sm:$0xff]
        %v1543 = vld [vmem:[#allocation5 + $0x108] sm:$0xff]
        %v1544 = vld [vmem:[#allocation5 + $0x110] sm:$0xff]
        %v1545 = vld [vmem:[#allocation5 + $0x118] sm:$0xff]
        %v1546 = vld [vmem:[#allocation5 + $0x120] sm:$0xff]
        %v1547 = vld [vmem:[#allocation5 + $0x128] sm:$0xff]
        %v1548 = vld [vmem:[#allocation5 + $0x130] sm:$0xff]
        %v1549 = vld [vmem:[#allocation5 + $0x138] sm:$0xff]
        %v1550 = vld [vmem:[#allocation5 + $0x140] sm:$0xff]
        %v1551 = vld [vmem:[#allocation5 + $0x148] sm:$0xff]
        %v1552 = vld [vmem:[#allocation5 + $0x150] sm:$0xff]
        %v1553 = vld [vmem:[#allocation5 + $0x158] sm:$0xff]
        %v1554 = vld [vmem:[#allocation5 + $0x160] sm:$0xff]
        %v1555 = vld [vmem:[#allocation5 + $0x168] sm:$0xff]
        %v1556 = vld [vmem:[#allocation5 + $0x170] sm:$0xff]
        %v1557 = vld [vmem:[#allocation5 + $0x178] sm:$0xff]
        %v1558 = vld [vmem:[#allocation5 + $0x180] sm:$0xff]
        %v1559 = vld [vmem:[#allocation5 + $0x188] sm:$0xff]
        %v1560 = vld [vmem:[#allocation5 + $0x190] sm:$0xff]
        %v1561 = vld [vmem:[#allocation5 + $0x198] sm:$0xff]
        %v1562 = vld [vmem:[#allocation5 + $0x1a0] sm:$0xff]
        %v1563 = vld [vmem:[#allocation5 + $0x1a8] sm:$0xff]
        %v1564 = vld [vmem:[#allocation5 + $0x1b0] sm:$0xff]
        %v1565 = vld [vmem:[#allocation5 + $0x1b8] sm:$0xff]
        %v1566 = vld [vmem:[#allocation5 + $0x1c0] sm:$0xff]
        %v1567 = vld [vmem:[#allocation5 + $0x1c8] sm:$0xff]
        %v1568 = vld [vmem:[#allocation5 + $0x1d0] sm:$0xff]
        %v1569 = vld [vmem:[#allocation5 + $0x1d8] sm:$0xff]
        %v1570 = vld [vmem:[#allocation5 + $0x1e0] sm:$0xff]
        %v1571 = vld [vmem:[#allocation5 + $0x1e8] sm:$0xff]
        %v1572 = vld [vmem:[#allocation5 + $0x1f0] sm:$0xff]
        %v1573 = vld [vmem:[#allocation5 + $0x1f8] sm:$0xff]
        %v1574 = vand.u32 %v1571, 4294901760
        %1575 = vmatprep.subr.mxu0 %v1574
        %v1576 = vand.u32 %v1570, 4294901760
        %1577 = vmatpush1.msra.mxu0 %v1576
        %v1578 = vand.u32 %v1567, 4294901760
        %1579 = vmatprep.subr.mxu0 %v1578
        %v1580 = vand.u32 %v1566, 4294901760
        %1581 = vmatpush1.msra.mxu0 %v1580
        %v1582 = vand.u32 %v1563, 4294901760
        %1583 = vmatprep.subr.mxu0 %v1582
        %v1584 = vand.u32 %v1562, 4294901760
        %1585 = vmatpush1.msra.mxu0 %v1584
        %v1586 = vand.u32 %v1559, 4294901760
        %1587 = vmatprep.subr.mxu0 %v1586
        %v1588 = vand.u32 %v1558, 4294901760
        %1589 = vmatpush1.msra.mxu0 %v1588
        %v1590 = vand.u32 %v1555, 4294901760
        %1591 = vmatprep.subr.mxu0 %v1590
        %v1592 = vand.u32 %v1554, 4294901760
        %1593 = vmatpush1.msra.mxu0 %v1592
        %v1594 = vand.u32 %v1551, 4294901760
        %1595 = vmatprep.subr.mxu0 %v1594
        %v1596 = vand.u32 %v1550, 4294901760
        %1597 = vmatpush1.msra.mxu0 %v1596
        %v1598 = vand.u32 %v1547, 4294901760
        %1599 = vmatprep.subr.mxu0 %v1598
        %v1600 = vand.u32 %v1546, 4294901760
        %1601 = vmatpush1.msra.mxu0 %v1600
        %v1602 = vand.u32 %v1543, 4294901760
        %1603 = vmatprep.subr.mxu0 %v1602
        %v1604 = vand.u32 %v1542, 4294901760
        %1605 = vmatpush1.msra.mxu0 %v1604
        %v1606 = vand.u32 %v1539, 4294901760
        %1607 = vmatprep.subr.mxu0 %v1606
        %v1608 = vand.u32 %v1538, 4294901760
        %1609 = vmatpush1.msra.mxu0 %v1608
        %v1610 = vand.u32 %v1535, 4294901760
        %1611 = vmatprep.subr.mxu0 %v1610
        %v1612 = vand.u32 %v1534, 4294901760
        %1613 = vmatpush1.msra.mxu0 %v1612
        %v1614 = vand.u32 %v1531, 4294901760
        %1615 = vmatprep.subr.mxu0 %v1614
        %v1616 = vand.u32 %v1530, 4294901760
        %1617 = vmatpush1.msra.mxu0 %v1616
        %v1618 = vand.u32 %v1527, 4294901760
        %1619 = vmatprep.subr.mxu0 %v1618
        %v1620 = vand.u32 %v1526, 4294901760
        %1621 = vmatpush1.msra.mxu0 %v1620
        %v1622 = vand.u32 %v1523, 4294901760
        %1623 = vmatprep.subr.mxu0 %v1622
        %v1624 = vand.u32 %v1522, 4294901760
        %1625 = vmatpush1.msra.mxu0 %v1624
        %v1626 = vand.u32 %v1519, 4294901760
        %1627 = vmatprep.subr.mxu0 %v1626
        %v1628 = vand.u32 %v1518, 4294901760
        %1629 = vmatpush1.msra.mxu0 %v1628
        %v1630 = vand.u32 %v1515, 4294901760
        %1631 = vmatprep.subr.mxu0 %v1630
        %v1632 = vand.u32 %v1514, 4294901760
        %1633 = vmatpush1.msra.mxu0 %v1632
        %v1634 = vand.u32 %v1511, 4294901760
        %1635 = vmatprep.subr.mxu0 %v1634
        %v1636 = vand.u32 %v1510, 4294901760
        %1637 = vmatpush1.msra.mxu0 %v1636
        %1638 = vmatprep.subr.mxu0 0.0
        %1639 = vmatpush2.msra.mxu0 0.0
        %1640 = vmatprep.subr.mxu0 0.0
        %1641 = vmatpush2.msra.mxu0 0.0
        %1642 = vmatprep.subr.mxu0 0.0
        %1643 = vmatpush2.msra.mxu0 0.0
        %1644 = vmatprep.subr.mxu0 0.0
        %1645 = vmatpush2.msra.mxu0 0.0
        %1646 = vmatprep.subr.mxu0 0.0
        %1647 = vmatpush2.msra.mxu0 0.0
        %1648 = vmatprep.subr.mxu0 0.0
        %1649 = vmatpush2.msra.mxu0 0.0
        %1650 = vmatprep.subr.mxu0 0.0
        %1651 = vmatpush2.msra.mxu0 0.0
        %1652 = vmatprep.subr.mxu0 0.0
        %1653 = vmatpush2.msra.mxu0 0.0
        %1654 = vmatprep.subr.mxu0 0.0
        %1655 = vmatpush2.msra.mxu0 0.0
        %1656 = vmatprep.subr.mxu0 0.0
        %1657 = vmatpush2.msra.mxu0 0.0
        %1658 = vmatprep.subr.mxu0 0.0
        %1659 = vmatpush2.msra.mxu0 0.0
        %1660 = vmatprep.subr.mxu0 0.0
        %1661 = vmatpush2.msra.mxu0 0.0
        %1662 = vmatprep.subr.mxu0 0.0
        %1663 = vmatpush2.msra.mxu0 0.0
        %1664 = vmatprep.subr.mxu0 0.0
        %1665 = vmatpush2.msra.mxu0 0.0
        %1666 = vmatprep.subr.mxu0 0.0
        %1667 = vmatpush2.msra.mxu0 0.0
        %1668 = vmatprep.subr.mxu0 0.0
        %1669 = vmatpush2.msra.mxu0 0.0
        %1670 = vmatprep.mubr.f32.mxu0 0.0
        %v1671 = vand.u32 %v1501, 4294901760
        %v1672 = vsub.f32 %v1501, %v1671
        %v1673 = vand.u32 %v1672, 4294901760
        %v1674 = vsub.f32 %v1672, %v1673
        %v1675 = vand.u32 %v1674, 4294901760
        %1676 = vmatmul.mubr.f32.gmra.mxu0 %v1675
        %v1677 = vpop.f32.mrf.mxu0
        %v1678 = vadd.f32 0.0, %v1677
        %v1679 = vpop.f32.mrf.mxu0
        %v1680 = vadd.f32 0.0, %v1679
        %1681 = vdwg.mxu0
        %v1682 = vand.u32 %v1571, 4294901760
        %v1683 = vsub.f32 %v1571, %v1682
        %v1684 = vand.u32 %v1683, 4294901760
        %v1685 = vsub.f32 %v1683, %v1684
        %v1686 = vand.u32 %v1685, 4294901760
        %1687 = vmatprep.subr.mxu0 %v1686
        %v1688 = vand.u32 %v1570, 4294901760
        %v1689 = vsub.f32 %v1570, %v1688
        %v1690 = vand.u32 %v1689, 4294901760
        %v1691 = vsub.f32 %v1689, %v1690
        %v1692 = vand.u32 %v1691, 4294901760
        %1693 = vmatpush1.msra.mxu0 %v1692
        %v1694 = vand.u32 %v1567, 4294901760
        %v1695 = vsub.f32 %v1567, %v1694
        %v1696 = vand.u32 %v1695, 4294901760
        %v1697 = vsub.f32 %v1695, %v1696
        %v1698 = vand.u32 %v1697, 4294901760
        %1699 = vmatprep.subr.mxu0 %v1698
        %v1700 = vand.u32 %v1566, 4294901760
        %v1701 = vsub.f32 %v1566, %v1700
        %v1702 = vand.u32 %v1701, 4294901760
        %v1703 = vsub.f32 %v1701, %v1702
        %v1704 = vand.u32 %v1703, 4294901760
        %1705 = vmatpush1.msra.mxu0 %v1704
        %v1706 = vand.u32 %v1563, 4294901760
        %v1707 = vsub.f32 %v1563, %v1706
        %v1708 = vand.u32 %v1707, 4294901760
        %v1709 = vsub.f32 %v1707, %v1708
        %v1710 = vand.u32 %v1709, 4294901760
        %1711 = vmatprep.subr.mxu0 %v1710
        %v1712 = vand.u32 %v1562, 4294901760
        %v1713 = vsub.f32 %v1562, %v1712
        %v1714 = vand.u32 %v1713, 4294901760
        %v1715 = vsub.f32 %v1713, %v1714
        %v1716 = vand.u32 %v1715, 4294901760
        %1717 = vmatpush1.msra.mxu0 %v1716
        %v1718 = vand.u32 %v1559, 4294901760
        %v1719 = vsub.f32 %v1559, %v1718
        %v1720 = vand.u32 %v1719, 4294901760
        %v1721 = vsub.f32 %v1719, %v1720
        %v1722 = vand.u32 %v1721, 4294901760
        %1723 = vmatprep.subr.mxu0 %v1722
        %v1724 = vand.u32 %v1558, 4294901760
        %v1725 = vsub.f32 %v1558, %v1724
        %v1726 = vand.u32 %v1725, 4294901760
        %v1727 = vsub.f32 %v1725, %v1726
        %v1728 = vand.u32 %v1727, 4294901760
        %1729 = vmatpush1.msra.mxu0 %v1728
        %v1730 = vand.u32 %v1555, 4294901760
        %v1731 = vsub.f32 %v1555, %v1730
        %v1732 = vand.u32 %v1731, 4294901760
        %v1733 = vsub.f32 %v1731, %v1732
        %v1734 = vand.u32 %v1733, 4294901760
        %1735 = vmatprep.subr.mxu0 %v1734
        %v1736 = vand.u32 %v1554, 4294901760
        %v1737 = vsub.f32 %v1554, %v1736
        %v1738 = vand.u32 %v1737, 4294901760
        %v1739 = vsub.f32 %v1737, %v1738
        %v1740 = vand.u32 %v1739, 4294901760
        %1741 = vmatpush1.msra.mxu0 %v1740
        %v1742 = vand.u32 %v1551, 4294901760
        %v1743 = vsub.f32 %v1551, %v1742
        %v1744 = vand.u32 %v1743, 4294901760
        %v1745 = vsub.f32 %v1743, %v1744
        %v1746 = vand.u32 %v1745, 4294901760
        %1747 = vmatprep.subr.mxu0 %v1746
        %v1748 = vand.u32 %v1550, 4294901760
        %v1749 = vsub.f32 %v1550, %v1748
        %v1750 = vand.u32 %v1749, 4294901760
        %v1751 = vsub.f32 %v1749, %v1750
        %v1752 = vand.u32 %v1751, 4294901760
        %1753 = vmatpush1.msra.mxu0 %v1752
        %v1754 = vand.u32 %v1547, 4294901760
        %v1755 = vsub.f32 %v1547, %v1754
        %v1756 = vand.u32 %v1755, 4294901760
        %v1757 = vsub.f32 %v1755, %v1756
        %v1758 = vand.u32 %v1757, 4294901760
        %1759 = vmatprep.subr.mxu0 %v1758
        %v1760 = vand.u32 %v1546, 4294901760
        %v1761 = vsub.f32 %v1546, %v1760
        %v1762 = vand.u32 %v1761, 4294901760
        %v1763 = vsub.f32 %v1761, %v1762
        %v1764 = vand.u32 %v1763, 4294901760
        %1765 = vmatpush1.msra.mxu0 %v1764
        %v1766 = vand.u32 %v1543, 4294901760
        %v1767 = vsub.f32 %v1543, %v1766
        %v1768 = vand.u32 %v1767, 4294901760
        %v1769 = vsub.f32 %v1767, %v1768
        %v1770 = vand.u32 %v1769, 4294901760
        %1771 = vmatprep.subr.mxu0 %v1770
        %v1772 = vand.u32 %v1542, 4294901760
        %v1773 = vsub.f32 %v1542, %v1772
        %v1774 = vand.u32 %v1773, 4294901760
        %v1775 = vsub.f32 %v1773, %v1774
        %v1776 = vand.u32 %v1775, 4294901760
        %1777 = vmatpush1.msra.mxu0 %v1776
        %v1778 = vand.u32 %v1539, 4294901760
        %v1779 = vsub.f32 %v1539, %v1778
        %v1780 = vand.u32 %v1779, 4294901760
        %v1781 = vsub.f32 %v1779, %v1780
        %v1782 = vand.u32 %v1781, 4294901760
        %1783 = vmatprep.subr.mxu0 %v1782
        %v1784 = vand.u32 %v1538, 4294901760
        %v1785 = vsub.f32 %v1538, %v1784
        %v1786 = vand.u32 %v1785, 4294901760
        %v1787 = vsub.f32 %v1785, %v1786
        %v1788 = vand.u32 %v1787, 4294901760
        %1789 = vmatpush1.msra.mxu0 %v1788
        %v1790 = vand.u32 %v1535, 4294901760
        %v1791 = vsub.f32 %v1535, %v1790
        %v1792 = vand.u32 %v1791, 4294901760
        %v1793 = vsub.f32 %v1791, %v1792
        %v1794 = vand.u32 %v1793, 4294901760
        %1795 = vmatprep.subr.mxu0 %v1794
        %v1796 = vand.u32 %v1534, 4294901760
        %v1797 = vsub.f32 %v1534, %v1796
        %v1798 = vand.u32 %v1797, 4294901760
        %v1799 = vsub.f32 %v1797, %v1798
        %v1800 = vand.u32 %v1799, 4294901760
        %1801 = vmatpush1.msra.mxu0 %v1800
        %v1802 = vand.u32 %v1531, 4294901760
        %v1803 = vsub.f32 %v1531, %v1802
        %v1804 = vand.u32 %v1803, 4294901760
        %v1805 = vsub.f32 %v1803, %v1804
        %v1806 = vand.u32 %v1805, 4294901760
        %1807 = vmatprep.subr.mxu0 %v1806
        %v1808 = vand.u32 %v1530, 4294901760
        %v1809 = vsub.f32 %v1530, %v1808
        %v1810 = vand.u32 %v1809, 4294901760
        %v1811 = vsub.f32 %v1809, %v1810
        %v1812 = vand.u32 %v1811, 4294901760
        %1813 = vmatpush1.msra.mxu0 %v1812
        %v1814 = vand.u32 %v1527, 4294901760
        %v1815 = vsub.f32 %v1527, %v1814
        %v1816 = vand.u32 %v1815, 4294901760
        %v1817 = vsub.f32 %v1815, %v1816
        %v1818 = vand.u32 %v1817, 4294901760
        %1819 = vmatprep.subr.mxu0 %v1818
        %v1820 = vand.u32 %v1526, 4294901760
        %v1821 = vsub.f32 %v1526, %v1820
        %v1822 = vand.u32 %v1821, 4294901760
        %v1823 = vsub.f32 %v1821, %v1822
        %v1824 = vand.u32 %v1823, 4294901760
        %1825 = vmatpush1.msra.mxu0 %v1824
        %v1826 = vand.u32 %v1523, 4294901760
        %v1827 = vsub.f32 %v1523, %v1826
        %v1828 = vand.u32 %v1827, 4294901760
        %v1829 = vsub.f32 %v1827, %v1828
        %v1830 = vand.u32 %v1829, 4294901760
        %1831 = vmatprep.subr.mxu0 %v1830
        %v1832 = vand.u32 %v1522, 4294901760
        %v1833 = vsub.f32 %v1522, %v1832
        %v1834 = vand.u32 %v1833, 4294901760
        %v1835 = vsub.f32 %v1833, %v1834
        %v1836 = vand.u32 %v1835, 4294901760
        %1837 = vmatpush1.msra.mxu0 %v1836
        %v1838 = vand.u32 %v1519, 4294901760
        %v1839 = vsub.f32 %v1519, %v1838
        %v1840 = vand.u32 %v1839, 4294901760
        %v1841 = vsub.f32 %v1839, %v1840
        %v1842 = vand.u32 %v1841, 4294901760
        %1843 = vmatprep.subr.mxu0 %v1842
        %v1844 = vand.u32 %v1518, 4294901760
        %v1845 = vsub.f32 %v1518, %v1844
        %v1846 = vand.u32 %v1845, 4294901760
        %v1847 = vsub.f32 %v1845, %v1846
        %v1848 = vand.u32 %v1847, 4294901760
        %1849 = vmatpush1.msra.mxu0 %v1848
        %v1850 = vand.u32 %v1515, 4294901760
        %v1851 = vsub.f32 %v1515, %v1850
        %v1852 = vand.u32 %v1851, 4294901760
        %v1853 = vsub.f32 %v1851, %v1852
        %v1854 = vand.u32 %v1853, 4294901760
        %1855 = vmatprep.subr.mxu0 %v1854
        %v1856 = vand.u32 %v1514, 4294901760
        %v1857 = vsub.f32 %v1514, %v1856
        %v1858 = vand.u32 %v1857, 4294901760
        %v1859 = vsub.f32 %v1857, %v1858
        %v1860 = vand.u32 %v1859, 4294901760
        %1861 = vmatpush1.msra.mxu0 %v1860
        %v1862 = vand.u32 %v1511, 4294901760
        %v1863 = vsub.f32 %v1511, %v1862
        %v1864 = vand.u32 %v1863, 4294901760
        %v1865 = vsub.f32 %v1863, %v1864
        %v1866 = vand.u32 %v1865, 4294901760
        %1867 = vmatprep.subr.mxu0 %v1866
        %v1868 = vand.u32 %v1510, 4294901760
        %v1869 = vsub.f32 %v1510, %v1868
        %v1870 = vand.u32 %v1869, 4294901760
        %v1871 = vsub.f32 %v1869, %v1870
        %v1872 = vand.u32 %v1871, 4294901760
        %1873 = vmatpush1.msra.mxu0 %v1872
        %1874 = vmatprep.subr.mxu0 0.0
        %1875 = vmatpush2.msra.mxu0 0.0
        %1876 = vmatprep.subr.mxu0 0.0
        %1877 = vmatpush2.msra.mxu0 0.0
        %1878 = vmatprep.subr.mxu0 0.0
        %1879 = vmatpush2.msra.mxu0 0.0
        %1880 = vmatprep.subr.mxu0 0.0
        %1881 = vmatpush2.msra.mxu0 0.0
        %1882 = vmatprep.subr.mxu0 0.0
        %1883 = vmatpush2.msra.mxu0 0.0
        %1884 = vmatprep.subr.mxu0 0.0
        %1885 = vmatpush2.msra.mxu0 0.0
        %1886 = vmatprep.subr.mxu0 0.0
        %1887 = vmatpush2.msra.mxu0 0.0
        %1888 = vmatprep.subr.mxu0 0.0
        %1889 = vmatpush2.msra.mxu0 0.0
        %1890 = vmatprep.subr.mxu0 0.0
        %1891 = vmatpush2.msra.mxu0 0.0
        %1892 = vmatprep.subr.mxu0 0.0
        %1893 = vmatpush2.msra.mxu0 0.0
        %1894 = vmatprep.subr.mxu0 0.0
        %1895 = vmatpush2.msra.mxu0 0.0
        %1896 = vmatprep.subr.mxu0 0.0
        %1897 = vmatpush2.msra.mxu0 0.0
        %1898 = vmatprep.subr.mxu0 0.0
        %1899 = vmatpush2.msra.mxu0 0.0
        %1900 = vmatprep.subr.mxu0 0.0
        %1901 = vmatpush2.msra.mxu0 0.0
        %1902 = vmatprep.subr.mxu0 0.0
        %1903 = vmatpush2.msra.mxu0 0.0
        %1904 = vmatprep.subr.mxu0 0.0
        %1905 = vmatpush2.msra.mxu0 0.0
        %1906 = vmatprep.mubr.f32.mxu0 0.0
        %v1907 = vand.u32 %v1501, 4294901760
        %1908 = vmatmul.mubr.f32.gmra.mxu0 %v1907
        %v1909 = vpop.f32.mrf.mxu0
        %v1910 = vadd.f32 %v1678, %v1909
        %v1911 = vpop.f32.mrf.mxu0
        %v1912 = vadd.f32 %v1680, %v1911
        %1913 = vdwg.mxu0
        %v1914 = vand.u32 %v1571, 4294901760
        %v1915 = vsub.f32 %v1571, %v1914
        %1916 = vmatprep.subr.mxu0 %v1915
        %v1917 = vand.u32 %v1570, 4294901760
        %v1918 = vsub.f32 %v1570, %v1917
        %1919 = vmatpush1.msra.mxu0 %v1918
        %v1920 = vand.u32 %v1567, 4294901760
        %v1921 = vsub.f32 %v1567, %v1920
        %1922 = vmatprep.subr.mxu0 %v1921
        %v1923 = vand.u32 %v1566, 4294901760
        %v1924 = vsub.f32 %v1566, %v1923
        %1925 = vmatpush1.msra.mxu0 %v1924
        %v1926 = vand.u32 %v1563, 4294901760
        %v1927 = vsub.f32 %v1563, %v1926
        %1928 = vmatprep.subr.mxu0 %v1927
        %v1929 = vand.u32 %v1562, 4294901760
        %v1930 = vsub.f32 %v1562, %v1929
        %1931 = vmatpush1.msra.mxu0 %v1930
        %v1932 = vand.u32 %v1559, 4294901760
        %v1933 = vsub.f32 %v1559, %v1932
        %1934 = vmatprep.subr.mxu0 %v1933
        %v1935 = vand.u32 %v1558, 4294901760
        %v1936 = vsub.f32 %v1558, %v1935
        %1937 = vmatpush1.msra.mxu0 %v1936
        %v1938 = vand.u32 %v1555, 4294901760
        %v1939 = vsub.f32 %v1555, %v1938
        %1940 = vmatprep.subr.mxu0 %v1939
        %v1941 = vand.u32 %v1554, 4294901760
        %v1942 = vsub.f32 %v1554, %v1941
        %1943 = vmatpush1.msra.mxu0 %v1942
        %v1944 = vand.u32 %v1551, 4294901760
        %v1945 = vsub.f32 %v1551, %v1944
        %1946 = vmatprep.subr.mxu0 %v1945
        %v1947 = vand.u32 %v1550, 4294901760
        %v1948 = vsub.f32 %v1550, %v1947
        %1949 = vmatpush1.msra.mxu0 %v1948
        %v1950 = vand.u32 %v1547, 4294901760
        %v1951 = vsub.f32 %v1547, %v1950
        %1952 = vmatprep.subr.mxu0 %v1951
        %v1953 = vand.u32 %v1546, 4294901760
        %v1954 = vsub.f32 %v1546, %v1953
        %1955 = vmatpush1.msra.mxu0 %v1954
        %v1956 = vand.u32 %v1543, 4294901760
        %v1957 = vsub.f32 %v1543, %v1956
        %1958 = vmatprep.subr.mxu0 %v1957
        %v1959 = vand.u32 %v1542, 4294901760
        %v1960 = vsub.f32 %v1542, %v1959
        %1961 = vmatpush1.msra.mxu0 %v1960
        %v1962 = vand.u32 %v1539, 4294901760
        %v1963 = vsub.f32 %v1539, %v1962
        %1964 = vmatprep.subr.mxu0 %v1963
        %v1965 = vand.u32 %v1538, 4294901760
        %v1966 = vsub.f32 %v1538, %v1965
        %1967 = vmatpush1.msra.mxu0 %v1966
        %v1968 = vand.u32 %v1535, 4294901760
        %v1969 = vsub.f32 %v1535, %v1968
        %1970 = vmatprep.subr.mxu0 %v1969
        %v1971 = vand.u32 %v1534, 4294901760
        %v1972 = vsub.f32 %v1534, %v1971
        %1973 = vmatpush1.msra.mxu0 %v1972
        %v1974 = vand.u32 %v1531, 4294901760
        %v1975 = vsub.f32 %v1531, %v1974
        %1976 = vmatprep.subr.mxu0 %v1975
        %v1977 = vand.u32 %v1530, 4294901760
        %v1978 = vsub.f32 %v1530, %v1977
        %1979 = vmatpush1.msra.mxu0 %v1978
        %v1980 = vand.u32 %v1527, 4294901760
        %v1981 = vsub.f32 %v1527, %v1980
        %1982 = vmatprep.subr.mxu0 %v1981
        %v1983 = vand.u32 %v1526, 4294901760
        %v1984 = vsub.f32 %v1526, %v1983
        %1985 = vmatpush1.msra.mxu0 %v1984
        %v1986 = vand.u32 %v1523, 4294901760
        %v1987 = vsub.f32 %v1523, %v1986
        %1988 = vmatprep.subr.mxu0 %v1987
        %v1989 = vand.u32 %v1522, 4294901760
        %v1990 = vsub.f32 %v1522, %v1989
        %1991 = vmatpush1.msra.mxu0 %v1990
        %v1992 = vand.u32 %v1519, 4294901760
        %v1993 = vsub.f32 %v1519, %v1992
        %1994 = vmatprep.subr.mxu0 %v1993
        %v1995 = vand.u32 %v1518, 4294901760
        %v1996 = vsub.f32 %v1518, %v1995
        %1997 = vmatpush1.msra.mxu0 %v1996
        %v1998 = vand.u32 %v1515, 4294901760
        %v1999 = vsub.f32 %v1515, %v1998
        %2000 = vmatprep.subr.mxu0 %v1999
        %v2001 = vand.u32 %v1514, 4294901760
        %v2002 = vsub.f32 %v1514, %v2001
        %2003 = vmatpush1.msra.mxu0 %v2002
        %v2004 = vand.u32 %v1511, 4294901760
        %v2005 = vsub.f32 %v1511, %v2004
        %2006 = vmatprep.subr.mxu0 %v2005
        %v2007 = vand.u32 %v1510, 4294901760
        %v2008 = vsub.f32 %v1510, %v2007
        %2009 = vmatpush1.msra.mxu0 %v2008
        %2010 = vmatprep.subr.mxu0 0.0
        %2011 = vmatpush2.msra.mxu0 0.0
        %2012 = vmatprep.subr.mxu0 0.0
        %2013 = vmatpush2.msra.mxu0 0.0
        %2014 = vmatprep.subr.mxu0 0.0
        %2015 = vmatpush2.msra.mxu0 0.0
        %2016 = vmatprep.subr.mxu0 0.0
        %2017 = vmatpush2.msra.mxu0 0.0
        %2018 = vmatprep.subr.mxu0 0.0
        %2019 = vmatpush2.msra.mxu0 0.0
        %2020 = vmatprep.subr.mxu0 0.0
        %2021 = vmatpush2.msra.mxu0 0.0
        %2022 = vmatprep.subr.mxu0 0.0
        %2023 = vmatpush2.msra.mxu0 0.0
        %2024 = vmatprep.subr.mxu0 0.0
        %2025 = vmatpush2.msra.mxu0 0.0
        %2026 = vmatprep.subr.mxu0 0.0
        %2027 = vmatpush2.msra.mxu0 0.0
        %2028 = vmatprep.subr.mxu0 0.0
        %2029 = vmatpush2.msra.mxu0 0.0
        %2030 = vmatprep.subr.mxu0 0.0
        %2031 = vmatpush2.msra.mxu0 0.0
        %2032 = vmatprep.subr.mxu0 0.0
        %2033 = vmatpush2.msra.mxu0 0.0
        %2034 = vmatprep.subr.mxu0 0.0
        %2035 = vmatpush2.msra.mxu0 0.0
        %2036 = vmatprep.subr.mxu0 0.0
        %2037 = vmatpush2.msra.mxu0 0.0
        %2038 = vmatprep.subr.mxu0 0.0
        %2039 = vmatpush2.msra.mxu0 0.0
        %2040 = vmatprep.subr.mxu0 0.0
        %2041 = vmatpush2.msra.mxu0 0.0
        %2042 = vmatprep.mubr.f32.mxu0 0.0
        %v2043 = vand.u32 %v1501, 4294901760
        %v2044 = vsub.f32 %v1501, %v2043
        %2045 = vmatmul.mubr.f32.gmra.mxu0 %v2044
        %v2046 = vpop.f32.mrf.mxu0
        %v2047 = vadd.f32 %v1910, %v2046
        %v2048 = vpop.f32.mrf.mxu0
        %v2049 = vadd.f32 %v1912, %v2048
        %2050 = vdwg.mxu0
        %v2051 = vand.u32 %v1571, 4294901760
        %2052 = vmatprep.subr.mxu0 %v2051
        %v2053 = vand.u32 %v1570, 4294901760
        %2054 = vmatpush1.msra.mxu0 %v2053
        %v2055 = vand.u32 %v1567, 4294901760
        %2056 = vmatprep.subr.mxu0 %v2055
        %v2057 = vand.u32 %v1566, 4294901760
        %2058 = vmatpush1.msra.mxu0 %v2057
        %v2059 = vand.u32 %v1563, 4294901760
        %2060 = vmatprep.subr.mxu0 %v2059
        %v2061 = vand.u32 %v1562, 4294901760
        %2062 = vmatpush1.msra.mxu0 %v2061
        %v2063 = vand.u32 %v1559, 4294901760
        %2064 = vmatprep.subr.mxu0 %v2063
        %v2065 = vand.u32 %v1558, 4294901760
        %2066 = vmatpush1.msra.mxu0 %v2065
        %v2067 = vand.u32 %v1555, 4294901760
        %2068 = vmatprep.subr.mxu0 %v2067
        %v2069 = vand.u32 %v1554, 4294901760
        %2070 = vmatpush1.msra.mxu0 %v2069
        %v2071 = vand.u32 %v1551, 4294901760
        %2072 = vmatprep.subr.mxu0 %v2071
        %v2073 = vand.u32 %v1550, 4294901760
        %2074 = vmatpush1.msra.mxu0 %v2073
        %v2075 = vand.u32 %v1547, 4294901760
        %2076 = vmatprep.subr.mxu0 %v2075
        %v2077 = vand.u32 %v1546, 4294901760
        %2078 = vmatpush1.msra.mxu0 %v2077
        %v2079 = vand.u32 %v1543, 4294901760
        %2080 = vmatprep.subr.mxu0 %v2079
        %v2081 = vand.u32 %v1542, 4294901760
        %2082 = vmatpush1.msra.mxu0 %v2081
        %v2083 = vand.u32 %v1539, 4294901760
        %2084 = vmatprep.subr.mxu0 %v2083
        %v2085 = vand.u32 %v1538, 4294901760
        %2086 = vmatpush1.msra.mxu0 %v2085
        %v2087 = vand.u32 %v1535, 4294901760
        %2088 = vmatprep.subr.mxu0 %v2087
        %v2089 = vand.u32 %v1534, 4294901760
        %2090 = vmatpush1.msra.mxu0 %v2089
        %v2091 = vand.u32 %v1531, 4294901760
        %2092 = vmatprep.subr.mxu0 %v2091
        %v2093 = vand.u32 %v1530, 4294901760
        %2094 = vmatpush1.msra.mxu0 %v2093
        %v2095 = vand.u32 %v1527, 4294901760
        %2096 = vmatprep.subr.mxu0 %v2095
        %v2097 = vand.u32 %v1526, 4294901760
        %2098 = vmatpush1.msra.mxu0 %v2097
        %v2099 = vand.u32 %v1523, 4294901760
        %2100 = vmatprep.subr.mxu0 %v2099
        %v2101 = vand.u32 %v1522, 4294901760
        %2102 = vmatpush1.msra.mxu0 %v2101
        %v2103 = vand.u32 %v1519, 4294901760
        %2104 = vmatprep.subr.mxu0 %v2103
        %v2105 = vand.u32 %v1518, 4294901760
        %2106 = vmatpush1.msra.mxu0 %v2105
        %v2107 = vand.u32 %v1515, 4294901760
        %2108 = vmatprep.subr.mxu0 %v2107
        %v2109 = vand.u32 %v1514, 4294901760
        %2110 = vmatpush1.msra.mxu0 %v2109
        %v2111 = vand.u32 %v1511, 4294901760
        %2112 = vmatprep.subr.mxu0 %v2111
        %v2113 = vand.u32 %v1510, 4294901760
        %2114 = vmatpush1.msra.mxu0 %v2113
        %2115 = vmatprep.subr.mxu0 0.0
        %2116 = vmatpush2.msra.mxu0 0.0
        %2117 = vmatprep.subr.mxu0 0.0
        %2118 = vmatpush2.msra.mxu0 0.0
        %2119 = vmatprep.subr.mxu0 0.0
        %2120 = vmatpush2.msra.mxu0 0.0
        %2121 = vmatprep.subr.mxu0 0.0
        %2122 = vmatpush2.msra.mxu0 0.0
        %2123 = vmatprep.subr.mxu0 0.0
        %2124 = vmatpush2.msra.mxu0 0.0
        %2125 = vmatprep.subr.mxu0 0.0
        %2126 = vmatpush2.msra.mxu0 0.0
        %2127 = vmatprep.subr.mxu0 0.0
        %2128 = vmatpush2.msra.mxu0 0.0
        %2129 = vmatprep.subr.mxu0 0.0
        %2130 = vmatpush2.msra.mxu0 0.0
        %2131 = vmatprep.subr.mxu0 0.0
        %2132 = vmatpush2.msra.mxu0 0.0
        %2133 = vmatprep.subr.mxu0 0.0
        %2134 = vmatpush2.msra.mxu0 0.0
        %2135 = vmatprep.subr.mxu0 0.0
        %2136 = vmatpush2.msra.mxu0 0.0
        %2137 = vmatprep.subr.mxu0 0.0
        %2138 = vmatpush2.msra.mxu0 0.0
        %2139 = vmatprep.subr.mxu0 0.0
        %2140 = vmatpush2.msra.mxu0 0.0
        %2141 = vmatprep.subr.mxu0 0.0
        %2142 = vmatpush2.msra.mxu0 0.0
        %2143 = vmatprep.subr.mxu0 0.0
        %2144 = vmatpush2.msra.mxu0 0.0
        %2145 = vmatprep.subr.mxu0 0.0
        %2146 = vmatpush2.msra.mxu0 0.0
        %2147 = vmatprep.mubr.f32.mxu0 0.0
        %v2148 = vand.u32 %v1501, 4294901760
        %v2149 = vsub.f32 %v1501, %v2148
        %v2150 = vand.u32 %v2149, 4294901760
        %2151 = vmatmul.mubr.f32.gmra.mxu0 %v2150
        %v2152 = vpop.f32.mrf.mxu0
        %v2153 = vadd.f32 %v2047, %v2152
        %v2154 = vpop.f32.mrf.mxu0
        %v2155 = vadd.f32 %v2049, %v2154
        %2156 = vdwg.mxu0
        %v2157 = vand.u32 %v1571, 4294901760
        %v2158 = vsub.f32 %v1571, %v2157
        %v2159 = vand.u32 %v2158, 4294901760
        %2160 = vmatprep.subr.mxu0 %v2159
        %v2161 = vand.u32 %v1570, 4294901760
        %v2162 = vsub.f32 %v1570, %v2161
        %v2163 = vand.u32 %v2162, 4294901760
        %2164 = vmatpush1.msra.mxu0 %v2163
        %v2165 = vand.u32 %v1567, 4294901760
        %v2166 = vsub.f32 %v1567, %v2165
        %v2167 = vand.u32 %v2166, 4294901760
        %2168 = vmatprep.subr.mxu0 %v2167
        %v2169 = vand.u32 %v1566, 4294901760
        %v2170 = vsub.f32 %v1566, %v2169
        %v2171 = vand.u32 %v2170, 4294901760
        %2172 = vmatpush1.msra.mxu0 %v2171
        %v2173 = vand.u32 %v1563, 4294901760
        %v2174 = vsub.f32 %v1563, %v2173
        %v2175 = vand.u32 %v2174, 4294901760
        %2176 = vmatprep.subr.mxu0 %v2175
        %v2177 = vand.u32 %v1562, 4294901760
        %v2178 = vsub.f32 %v1562, %v2177
        %v2179 = vand.u32 %v2178, 4294901760
        %2180 = vmatpush1.msra.mxu0 %v2179
        %v2181 = vand.u32 %v1559, 4294901760
        %v2182 = vsub.f32 %v1559, %v2181
        %v2183 = vand.u32 %v2182, 4294901760
        %2184 = vmatprep.subr.mxu0 %v2183
        %v2185 = vand.u32 %v1558, 4294901760
        %v2186 = vsub.f32 %v1558, %v2185
        %v2187 = vand.u32 %v2186, 4294901760
        %2188 = vmatpush1.msra.mxu0 %v2187
        %v2189 = vand.u32 %v1555, 4294901760
        %v2190 = vsub.f32 %v1555, %v2189
        %v2191 = vand.u32 %v2190, 4294901760
        %2192 = vmatprep.subr.mxu0 %v2191
        %v2193 = vand.u32 %v1554, 4294901760
        %v2194 = vsub.f32 %v1554, %v2193
        %v2195 = vand.u32 %v2194, 4294901760
        %2196 = vmatpush1.msra.mxu0 %v2195
        %v2197 = vand.u32 %v1551, 4294901760
        %v2198 = vsub.f32 %v1551, %v2197
        %v2199 = vand.u32 %v2198, 4294901760
        %2200 = vmatprep.subr.mxu0 %v2199
        %v2201 = vand.u32 %v1550, 4294901760
        %v2202 = vsub.f32 %v1550, %v2201
        %v2203 = vand.u32 %v2202, 4294901760
        %2204 = vmatpush1.msra.mxu0 %v2203
        %v2205 = vand.u32 %v1547, 4294901760
        %v2206 = vsub.f32 %v1547, %v2205
        %v2207 = vand.u32 %v2206, 4294901760
        %2208 = vmatprep.subr.mxu0 %v2207
        %v2209 = vand.u32 %v1546, 4294901760
        %v2210 = vsub.f32 %v1546, %v2209
        %v2211 = vand.u32 %v2210, 4294901760
        %2212 = vmatpush1.msra.mxu0 %v2211
        %v2213 = vand.u32 %v1543, 4294901760
        %v2214 = vsub.f32 %v1543, %v2213
        %v2215 = vand.u32 %v2214, 4294901760
        %2216 = vmatprep.subr.mxu0 %v2215
        %v2217 = vand.u32 %v1542, 4294901760
        %v2218 = vsub.f32 %v1542, %v2217
        %v2219 = vand.u32 %v2218, 4294901760
        %2220 = vmatpush1.msra.mxu0 %v2219
        %v2221 = vand.u32 %v1539, 4294901760
        %v2222 = vsub.f32 %v1539, %v2221
        %v2223 = vand.u32 %v2222, 4294901760
        %2224 = vmatprep.subr.mxu0 %v2223
        %v2225 = vand.u32 %v1538, 4294901760
        %v2226 = vsub.f32 %v1538, %v2225
        %v2227 = vand.u32 %v2226, 4294901760
        %2228 = vmatpush1.msra.mxu0 %v2227
        %v2229 = vand.u32 %v1535, 4294901760
        %v2230 = vsub.f32 %v1535, %v2229
        %v2231 = vand.u32 %v2230, 4294901760
        %2232 = vmatprep.subr.mxu0 %v2231
        %v2233 = vand.u32 %v1534, 4294901760
        %v2234 = vsub.f32 %v1534, %v2233
        %v2235 = vand.u32 %v2234, 4294901760
        %2236 = vmatpush1.msra.mxu0 %v2235
        %v2237 = vand.u32 %v1531, 4294901760
        %v2238 = vsub.f32 %v1531, %v2237
        %v2239 = vand.u32 %v2238, 4294901760
        %2240 = vmatprep.subr.mxu0 %v2239
        %v2241 = vand.u32 %v1530, 4294901760
        %v2242 = vsub.f32 %v1530, %v2241
        %v2243 = vand.u32 %v2242, 4294901760
        %2244 = vmatpush1.msra.mxu0 %v2243
        %v2245 = vand.u32 %v1527, 4294901760
        %v2246 = vsub.f32 %v1527, %v2245
        %v2247 = vand.u32 %v2246, 4294901760
        %2248 = vmatprep.subr.mxu0 %v2247
        %v2249 = vand.u32 %v1526, 4294901760
        %v2250 = vsub.f32 %v1526, %v2249
        %v2251 = vand.u32 %v2250, 4294901760
        %2252 = vmatpush1.msra.mxu0 %v2251
        %v2253 = vand.u32 %v1523, 4294901760
        %v2254 = vsub.f32 %v1523, %v2253
        %v2255 = vand.u32 %v2254, 4294901760
        %2256 = vmatprep.subr.mxu0 %v2255
        %v2257 = vand.u32 %v1522, 4294901760
        %v2258 = vsub.f32 %v1522, %v2257
        %v2259 = vand.u32 %v2258, 4294901760
        %2260 = vmatpush1.msra.mxu0 %v2259
        %v2261 = vand.u32 %v1519, 4294901760
        %v2262 = vsub.f32 %v1519, %v2261
        %v2263 = vand.u32 %v2262, 4294901760
        %2264 = vmatprep.subr.mxu0 %v2263
        %v2265 = vand.u32 %v1518, 4294901760
        %v2266 = vsub.f32 %v1518, %v2265
        %v2267 = vand.u32 %v2266, 4294901760
        %2268 = vmatpush1.msra.mxu0 %v2267
        %v2269 = vand.u32 %v1515, 4294901760
        %v2270 = vsub.f32 %v1515, %v2269
        %v2271 = vand.u32 %v2270, 4294901760
        %2272 = vmatprep.subr.mxu0 %v2271
        %v2273 = vand.u32 %v1514, 4294901760
        %v2274 = vsub.f32 %v1514, %v2273
        %v2275 = vand.u32 %v2274, 4294901760
        %2276 = vmatpush1.msra.mxu0 %v2275
        %v2277 = vand.u32 %v1511, 4294901760
        %v2278 = vsub.f32 %v1511, %v2277
        %v2279 = vand.u32 %v2278, 4294901760
        %2280 = vmatprep.subr.mxu0 %v2279
        %v2281 = vand.u32 %v1510, 4294901760
        %v2282 = vsub.f32 %v1510, %v2281
        %v2283 = vand.u32 %v2282, 4294901760
        %2284 = vmatpush1.msra.mxu0 %v2283
        %2285 = vmatprep.subr.mxu0 0.0
        %2286 = vmatpush2.msra.mxu0 0.0
        %2287 = vmatprep.subr.mxu0 0.0
        %2288 = vmatpush2.msra.mxu0 0.0
        %2289 = vmatprep.subr.mxu0 0.0
        %2290 = vmatpush2.msra.mxu0 0.0
        %2291 = vmatprep.subr.mxu0 0.0
        %2292 = vmatpush2.msra.mxu0 0.0
        %2293 = vmatprep.subr.mxu0 0.0
        %2294 = vmatpush2.msra.mxu0 0.0
        %2295 = vmatprep.subr.mxu0 0.0
        %2296 = vmatpush2.msra.mxu0 0.0
        %2297 = vmatprep.subr.mxu0 0.0
        %2298 = vmatpush2.msra.mxu0 0.0
        %2299 = vmatprep.subr.mxu0 0.0
        %2300 = vmatpush2.msra.mxu0 0.0
        %2301 = vmatprep.subr.mxu0 0.0
        %2302 = vmatpush2.msra.mxu0 0.0
        %2303 = vmatprep.subr.mxu0 0.0
        %2304 = vmatpush2.msra.mxu0 0.0
        %2305 = vmatprep.subr.mxu0 0.0
        %2306 = vmatpush2.msra.mxu0 0.0
        %2307 = vmatprep.subr.mxu0 0.0
        %2308 = vmatpush2.msra.mxu0 0.0
        %2309 = vmatprep.subr.mxu0 0.0
        %2310 = vmatpush2.msra.mxu0 0.0
        %2311 = vmatprep.subr.mxu0 0.0
        %2312 = vmatpush2.msra.mxu0 0.0
        %2313 = vmatprep.subr.mxu0 0.0
        %2314 = vmatpush2.msra.mxu0 0.0
        %2315 = vmatprep.subr.mxu0 0.0
        %2316 = vmatpush2.msra.mxu0 0.0
        %2317 = vmatprep.mubr.f32.mxu0 0.0
        %v2318 = vand.u32 %v1501, 4294901760
        %2319 = vmatmul.mubr.f32.gmra.mxu0 %v2318
        %v2320 = vpop.f32.mrf.mxu0
        %v2321 = vadd.f32 %v2153, %v2320
        %v2322 = vpop.f32.mrf.mxu0
        %v2323 = vadd.f32 %v2155, %v2322
        %2324 = vdwg.mxu0
        %v2325 = vand.u32 %v1571, 4294901760
        %2326 = vmatprep.subr.mxu0 %v2325
        %v2327 = vand.u32 %v1570, 4294901760
        %2328 = vmatpush1.msra.mxu0 %v2327
        %v2329 = vand.u32 %v1567, 4294901760
        %2330 = vmatprep.subr.mxu0 %v2329
        %v2331 = vand.u32 %v1566, 4294901760
        %2332 = vmatpush1.msra.mxu0 %v2331
        %v2333 = vand.u32 %v1563, 4294901760
        %2334 = vmatprep.subr.mxu0 %v2333
        %v2335 = vand.u32 %v1562, 4294901760
        %2336 = vmatpush1.msra.mxu0 %v2335
        %v2337 = vand.u32 %v1559, 4294901760
        %2338 = vmatprep.subr.mxu0 %v2337
        %v2339 = vand.u32 %v1558, 4294901760
        %2340 = vmatpush1.msra.mxu0 %v2339
        %v2341 = vand.u32 %v1555, 4294901760
        %2342 = vmatprep.subr.mxu0 %v2341
        %v2343 = vand.u32 %v1554, 4294901760
        %2344 = vmatpush1.msra.mxu0 %v2343
        %v2345 = vand.u32 %v1551, 4294901760
        %2346 = vmatprep.subr.mxu0 %v2345
        %v2347 = vand.u32 %v1550, 4294901760
        %2348 = vmatpush1.msra.mxu0 %v2347
        %v2349 = vand.u32 %v1547, 4294901760
        %2350 = vmatprep.subr.mxu0 %v2349
        %v2351 = vand.u32 %v1546, 4294901760
        %2352 = vmatpush1.msra.mxu0 %v2351
        %v2353 = vand.u32 %v1543, 4294901760
        %2354 = vmatprep.subr.mxu0 %v2353
        %v2355 = vand.u32 %v1542, 4294901760
        %2356 = vmatpush1.msra.mxu0 %v2355
        %v2357 = vand.u32 %v1539, 4294901760
        %2358 = vmatprep.subr.mxu0 %v2357
        %v2359 = vand.u32 %v1538, 4294901760
        %2360 = vmatpush1.msra.mxu0 %v2359
        %v2361 = vand.u32 %v1535, 4294901760
        %2362 = vmatprep.subr.mxu0 %v2361
        %v2363 = vand.u32 %v1534, 4294901760
        %2364 = vmatpush1.msra.mxu0 %v2363
        %v2365 = vand.u32 %v1531, 4294901760
        %2366 = vmatprep.subr.mxu0 %v2365
        %v2367 = vand.u32 %v1530, 4294901760
        %2368 = vmatpush1.msra.mxu0 %v2367
        %v2369 = vand.u32 %v1527, 4294901760
        %2370 = vmatprep.subr.mxu0 %v2369
        %v2371 = vand.u32 %v1526, 4294901760
        %2372 = vmatpush1.msra.mxu0 %v2371
        %v2373 = vand.u32 %v1523, 4294901760
        %2374 = vmatprep.subr.mxu0 %v2373
        %v2375 = vand.u32 %v1522, 4294901760
        %2376 = vmatpush1.msra.mxu0 %v2375
        %v2377 = vand.u32 %v1519, 4294901760
        %2378 = vmatprep.subr.mxu0 %v2377
        %v2379 = vand.u32 %v1518, 4294901760
        %2380 = vmatpush1.msra.mxu0 %v2379
        %v2381 = vand.u32 %v1515, 4294901760
        %2382 = vmatprep.subr.mxu0 %v2381
        %v2383 = vand.u32 %v1514, 4294901760
        %2384 = vmatpush1.msra.mxu0 %v2383
        %v2385 = vand.u32 %v1511, 4294901760
        %2386 = vmatprep.subr.mxu0 %v2385
        %v2387 = vand.u32 %v1510, 4294901760
        %2388 = vmatpush1.msra.mxu0 %v2387
        %2389 = vmatprep.subr.mxu0 0.0
        %2390 = vmatpush2.msra.mxu0 0.0
        %2391 = vmatprep.subr.mxu0 0.0
        %2392 = vmatpush2.msra.mxu0 0.0
        %2393 = vmatprep.subr.mxu0 0.0
        %2394 = vmatpush2.msra.mxu0 0.0
        %2395 = vmatprep.subr.mxu0 0.0
        %2396 = vmatpush2.msra.mxu0 0.0
        %2397 = vmatprep.subr.mxu0 0.0
        %2398 = vmatpush2.msra.mxu0 0.0
        %2399 = vmatprep.subr.mxu0 0.0
        %2400 = vmatpush2.msra.mxu0 0.0
        %2401 = vmatprep.subr.mxu0 0.0
        %2402 = vmatpush2.msra.mxu0 0.0
        %2403 = vmatprep.subr.mxu0 0.0
        %2404 = vmatpush2.msra.mxu0 0.0
        %2405 = vmatprep.subr.mxu0 0.0
        %2406 = vmatpush2.msra.mxu0 0.0
        %2407 = vmatprep.subr.mxu0 0.0
        %2408 = vmatpush2.msra.mxu0 0.0
        %2409 = vmatprep.subr.mxu0 0.0
        %2410 = vmatpush2.msra.mxu0 0.0
        %2411 = vmatprep.subr.mxu0 0.0
        %2412 = vmatpush2.msra.mxu0 0.0
        %2413 = vmatprep.subr.mxu0 0.0
        %2414 = vmatpush2.msra.mxu0 0.0
        %2415 = vmatprep.subr.mxu0 0.0
        %2416 = vmatpush2.msra.mxu0 0.0
        %2417 = vmatprep.subr.mxu0 0.0
        %2418 = vmatpush2.msra.mxu0 0.0
        %2419 = vmatprep.subr.mxu0 0.0
        %2420 = vmatpush2.msra.mxu0 0.0
        %2421 = vmatprep.mubr.f32.mxu0 0.0
        %v2422 = vand.u32 %v1501, 4294901760
        %2423 = vmatmul.mubr.f32.gmra.mxu0 %v2422
        %v2424 = vpop.f32.mrf.mxu0
        %v2425 = vadd.f32 %v2321, %v2424
        %v2426 = vpop.f32.mrf.mxu0
        %v2427 = vadd.f32 %v2323, %v2426
        %2428 = vdwg.mxu0
        %v2429 = vand.u32 %v1573, 4294901760
        %2430 = vmatprep.subr.mxu0 %v2429
        %v2431 = vand.u32 %v1572, 4294901760
        %2432 = vmatpush1.msra.mxu0 %v2431
        %v2433 = vand.u32 %v1569, 4294901760
        %2434 = vmatprep.subr.mxu0 %v2433
        %v2435 = vand.u32 %v1568, 4294901760
        %2436 = vmatpush1.msra.mxu0 %v2435
        %v2437 = vand.u32 %v1565, 4294901760
        %2438 = vmatprep.subr.mxu0 %v2437
        %v2439 = vand.u32 %v1564, 4294901760
        %2440 = vmatpush1.msra.mxu0 %v2439
        %v2441 = vand.u32 %v1561, 4294901760
        %2442 = vmatprep.subr.mxu0 %v2441
        %v2443 = vand.u32 %v1560, 4294901760
        %2444 = vmatpush1.msra.mxu0 %v2443
        %v2445 = vand.u32 %v1557, 4294901760
        %2446 = vmatprep.subr.mxu0 %v2445
        %v2447 = vand.u32 %v1556, 4294901760
        %2448 = vmatpush1.msra.mxu0 %v2447
        %v2449 = vand.u32 %v1553, 4294901760
        %2450 = vmatprep.subr.mxu0 %v2449
        %v2451 = vand.u32 %v1552, 4294901760
        %2452 = vmatpush1.msra.mxu0 %v2451
        %v2453 = vand.u32 %v1549, 4294901760
        %2454 = vmatprep.subr.mxu0 %v2453
        %v2455 = vand.u32 %v1548, 4294901760
        %2456 = vmatpush1.msra.mxu0 %v2455
        %v2457 = vand.u32 %v1545, 4294901760
        %2458 = vmatprep.subr.mxu0 %v2457
        %v2459 = vand.u32 %v1544, 4294901760
        %2460 = vmatpush1.msra.mxu0 %v2459
        %v2461 = vand.u32 %v1541, 4294901760
        %2462 = vmatprep.subr.mxu0 %v2461
        %v2463 = vand.u32 %v1540, 4294901760
        %2464 = vmatpush1.msra.mxu0 %v2463
        %v2465 = vand.u32 %v1537, 4294901760
        %2466 = vmatprep.subr.mxu0 %v2465
        %v2467 = vand.u32 %v1536, 4294901760
        %2468 = vmatpush1.msra.mxu0 %v2467
        %v2469 = vand.u32 %v1533, 4294901760
        %2470 = vmatprep.subr.mxu0 %v2469
        %v2471 = vand.u32 %v1532, 4294901760
        %2472 = vmatpush1.msra.mxu0 %v2471
        %v2473 = vand.u32 %v1529, 4294901760
        %2474 = vmatprep.subr.mxu0 %v2473
        %v2475 = vand.u32 %v1528, 4294901760
        %2476 = vmatpush1.msra.mxu0 %v2475
        %v2477 = vand.u32 %v1525, 4294901760
        %2478 = vmatprep.subr.mxu0 %v2477
        %v2479 = vand.u32 %v1524, 4294901760
        %2480 = vmatpush1.msra.mxu0 %v2479
        %v2481 = vand.u32 %v1521, 4294901760
        %2482 = vmatprep.subr.mxu0 %v2481
        %v2483 = vand.u32 %v1520, 4294901760
        %2484 = vmatpush1.msra.mxu0 %v2483
        %v2485 = vand.u32 %v1517, 4294901760
        %2486 = vmatprep.subr.mxu0 %v2485
        %v2487 = vand.u32 %v1516, 4294901760
        %2488 = vmatpush1.msra.mxu0 %v2487
        %v2489 = vand.u32 %v1513, 4294901760
        %2490 = vmatprep.subr.mxu0 %v2489
        %v2491 = vand.u32 %v1512, 4294901760
        %2492 = vmatpush1.msra.mxu0 %v2491
        %2493 = vmatprep.subr.mxu0 0.0
        %2494 = vmatpush2.msra.mxu0 0.0
        %2495 = vmatprep.subr.mxu0 0.0
        %2496 = vmatpush2.msra.mxu0 0.0
        %2497 = vmatprep.subr.mxu0 0.0
        %2498 = vmatpush2.msra.mxu0 0.0
        %2499 = vmatprep.subr.mxu0 0.0
        %2500 = vmatpush2.msra.mxu0 0.0
        %2501 = vmatprep.subr.mxu0 0.0
        %2502 = vmatpush2.msra.mxu0 0.0
        %2503 = vmatprep.subr.mxu0 0.0
        %2504 = vmatpush2.msra.mxu0 0.0
        %2505 = vmatprep.subr.mxu0 0.0
        %2506 = vmatpush2.msra.mxu0 0.0
        %2507 = vmatprep.subr.mxu0 0.0
        %2508 = vmatpush2.msra.mxu0 0.0
        %2509 = vmatprep.subr.mxu0 0.0
        %2510 = vmatpush2.msra.mxu0 0.0
        %2511 = vmatprep.subr.mxu0 0.0
        %2512 = vmatpush2.msra.mxu0 0.0
        %2513 = vmatprep.subr.mxu0 0.0
        %2514 = vmatpush2.msra.mxu0 0.0
        %2515 = vmatprep.subr.mxu0 0.0
        %2516 = vmatpush2.msra.mxu0 0.0
        %2517 = vmatprep.subr.mxu0 0.0
        %2518 = vmatpush2.msra.mxu0 0.0
        %2519 = vmatprep.subr.mxu0 0.0
        %2520 = vmatpush2.msra.mxu0 0.0
        %2521 = vmatprep.subr.mxu0 0.0
        %2522 = vmatpush2.msra.mxu0 0.0
        %2523 = vmatprep.subr.mxu0 0.0
        %2524 = vmatpush2.msra.mxu0 0.0
        %2525 = vmatprep.mubr.f32.mxu0 0.0
        %v2526 = vand.u32 %v1501, 4294901760
        %v2527 = vsub.f32 %v1501, %v2526
        %v2528 = vand.u32 %v2527, 4294901760
        %v2529 = vsub.f32 %v2527, %v2528
        %v2530 = vand.u32 %v2529, 4294901760
        %2531 = vmatmul.mubr.f32.gmra.mxu0 %v2530
        %v2532 = vpop.f32.mrf.mxu0
        %v2533 = vadd.f32 0.0, %v2532
        %v2534 = vpop.f32.mrf.mxu0
        %v2535 = vadd.f32 0.0, %v2534
        %2536 = vdwg.mxu0
        %v2537 = vand.u32 %v1573, 4294901760
        %v2538 = vsub.f32 %v1573, %v2537
        %v2539 = vand.u32 %v2538, 4294901760
        %v2540 = vsub.f32 %v2538, %v2539
        %v2541 = vand.u32 %v2540, 4294901760
        %2542 = vmatprep.subr.mxu0 %v2541
        %v2543 = vand.u32 %v1572, 4294901760
        %v2544 = vsub.f32 %v1572, %v2543
        %v2545 = vand.u32 %v2544, 4294901760
        %v2546 = vsub.f32 %v2544, %v2545
        %v2547 = vand.u32 %v2546, 4294901760
        %2548 = vmatpush1.msra.mxu0 %v2547
        %v2549 = vand.u32 %v1569, 4294901760
        %v2550 = vsub.f32 %v1569, %v2549
        %v2551 = vand.u32 %v2550, 4294901760
        %v2552 = vsub.f32 %v2550, %v2551
        %v2553 = vand.u32 %v2552, 4294901760
        %2554 = vmatprep.subr.mxu0 %v2553
        %v2555 = vand.u32 %v1568, 4294901760
        %v2556 = vsub.f32 %v1568, %v2555
        %v2557 = vand.u32 %v2556, 4294901760
        %v2558 = vsub.f32 %v2556, %v2557
        %v2559 = vand.u32 %v2558, 4294901760
        %2560 = vmatpush1.msra.mxu0 %v2559
        %v2561 = vand.u32 %v1565, 4294901760
        %v2562 = vsub.f32 %v1565, %v2561
        %v2563 = vand.u32 %v2562, 4294901760
        %v2564 = vsub.f32 %v2562, %v2563
        %v2565 = vand.u32 %v2564, 4294901760
        %2566 = vmatprep.subr.mxu0 %v2565
        %v2567 = vand.u32 %v1564, 4294901760
        %v2568 = vsub.f32 %v1564, %v2567
        %v2569 = vand.u32 %v2568, 4294901760
        %v2570 = vsub.f32 %v2568, %v2569
        %v2571 = vand.u32 %v2570, 4294901760
        %2572 = vmatpush1.msra.mxu0 %v2571
        %v2573 = vand.u32 %v1561, 4294901760
        %v2574 = vsub.f32 %v1561, %v2573
        %v2575 = vand.u32 %v2574, 4294901760
        %v2576 = vsub.f32 %v2574, %v2575
        %v2577 = vand.u32 %v2576, 4294901760
        %2578 = vmatprep.subr.mxu0 %v2577
        %v2579 = vand.u32 %v1560, 4294901760
        %v2580 = vsub.f32 %v1560, %v2579
        %v2581 = vand.u32 %v2580, 4294901760
        %v2582 = vsub.f32 %v2580, %v2581
        %v2583 = vand.u32 %v2582, 4294901760
        %2584 = vmatpush1.msra.mxu0 %v2583
        %v2585 = vand.u32 %v1557, 4294901760
        %v2586 = vsub.f32 %v1557, %v2585
        %v2587 = vand.u32 %v2586, 4294901760
        %v2588 = vsub.f32 %v2586, %v2587
        %v2589 = vand.u32 %v2588, 4294901760
        %2590 = vmatprep.subr.mxu0 %v2589
        %v2591 = vand.u32 %v1556, 4294901760
        %v2592 = vsub.f32 %v1556, %v2591
        %v2593 = vand.u32 %v2592, 4294901760
        %v2594 = vsub.f32 %v2592, %v2593
        %v2595 = vand.u32 %v2594, 4294901760
        %2596 = vmatpush1.msra.mxu0 %v2595
        %v2597 = vand.u32 %v1553, 4294901760
        %v2598 = vsub.f32 %v1553, %v2597
        %v2599 = vand.u32 %v2598, 4294901760
        %v2600 = vsub.f32 %v2598, %v2599
        %v2601 = vand.u32 %v2600, 4294901760
        %2602 = vmatprep.subr.mxu0 %v2601
        %v2603 = vand.u32 %v1552, 4294901760
        %v2604 = vsub.f32 %v1552, %v2603
        %v2605 = vand.u32 %v2604, 4294901760
        %v2606 = vsub.f32 %v2604, %v2605
        %v2607 = vand.u32 %v2606, 4294901760
        %2608 = vmatpush1.msra.mxu0 %v2607
        %v2609 = vand.u32 %v1549, 4294901760
        %v2610 = vsub.f32 %v1549, %v2609
        %v2611 = vand.u32 %v2610, 4294901760
        %v2612 = vsub.f32 %v2610, %v2611
        %v2613 = vand.u32 %v2612, 4294901760
        %2614 = vmatprep.subr.mxu0 %v2613
        %v2615 = vand.u32 %v1548, 4294901760
        %v2616 = vsub.f32 %v1548, %v2615
        %v2617 = vand.u32 %v2616, 4294901760
        %v2618 = vsub.f32 %v2616, %v2617
        %v2619 = vand.u32 %v2618, 4294901760
        %2620 = vmatpush1.msra.mxu0 %v2619
        %v2621 = vand.u32 %v1545, 4294901760
        %v2622 = vsub.f32 %v1545, %v2621
        %v2623 = vand.u32 %v2622, 4294901760
        %v2624 = vsub.f32 %v2622, %v2623
        %v2625 = vand.u32 %v2624, 4294901760
        %2626 = vmatprep.subr.mxu0 %v2625
        %v2627 = vand.u32 %v1544, 4294901760
        %v2628 = vsub.f32 %v1544, %v2627
        %v2629 = vand.u32 %v2628, 4294901760
        %v2630 = vsub.f32 %v2628, %v2629
        %v2631 = vand.u32 %v2630, 4294901760
        %2632 = vmatpush1.msra.mxu0 %v2631
        %v2633 = vand.u32 %v1541, 4294901760
        %v2634 = vsub.f32 %v1541, %v2633
        %v2635 = vand.u32 %v2634, 4294901760
        %v2636 = vsub.f32 %v2634, %v2635
        %v2637 = vand.u32 %v2636, 4294901760
        %2638 = vmatprep.subr.mxu0 %v2637
        %v2639 = vand.u32 %v1540, 4294901760
        %v2640 = vsub.f32 %v1540, %v2639
        %v2641 = vand.u32 %v2640, 4294901760
        %v2642 = vsub.f32 %v2640, %v2641
        %v2643 = vand.u32 %v2642, 4294901760
        %2644 = vmatpush1.msra.mxu0 %v2643
        %v2645 = vand.u32 %v1537, 4294901760
        %v2646 = vsub.f32 %v1537, %v2645
        %v2647 = vand.u32 %v2646, 4294901760
        %v2648 = vsub.f32 %v2646, %v2647
        %v2649 = vand.u32 %v2648, 4294901760
        %2650 = vmatprep.subr.mxu0 %v2649
        %v2651 = vand.u32 %v1536, 4294901760
        %v2652 = vsub.f32 %v1536, %v2651
        %v2653 = vand.u32 %v2652, 4294901760
        %v2654 = vsub.f32 %v2652, %v2653
        %v2655 = vand.u32 %v2654, 4294901760
        %2656 = vmatpush1.msra.mxu0 %v2655
        %v2657 = vand.u32 %v1533, 4294901760
        %v2658 = vsub.f32 %v1533, %v2657
        %v2659 = vand.u32 %v2658, 4294901760
        %v2660 = vsub.f32 %v2658, %v2659
        %v2661 = vand.u32 %v2660, 4294901760
        %2662 = vmatprep.subr.mxu0 %v2661
        %v2663 = vand.u32 %v1532, 4294901760
        %v2664 = vsub.f32 %v1532, %v2663
        %v2665 = vand.u32 %v2664, 4294901760
        %v2666 = vsub.f32 %v2664, %v2665
        %v2667 = vand.u32 %v2666, 4294901760
        %2668 = vmatpush1.msra.mxu0 %v2667
        %v2669 = vand.u32 %v1529, 4294901760
        %v2670 = vsub.f32 %v1529, %v2669
        %v2671 = vand.u32 %v2670, 4294901760
        %v2672 = vsub.f32 %v2670, %v2671
        %v2673 = vand.u32 %v2672, 4294901760
        %2674 = vmatprep.subr.mxu0 %v2673
        %v2675 = vand.u32 %v1528, 4294901760
        %v2676 = vsub.f32 %v1528, %v2675
        %v2677 = vand.u32 %v2676, 4294901760
        %v2678 = vsub.f32 %v2676, %v2677
        %v2679 = vand.u32 %v2678, 4294901760
        %2680 = vmatpush1.msra.mxu0 %v2679
        %v2681 = vand.u32 %v1525, 4294901760
        %v2682 = vsub.f32 %v1525, %v2681
        %v2683 = vand.u32 %v2682, 4294901760
        %v2684 = vsub.f32 %v2682, %v2683
        %v2685 = vand.u32 %v2684, 4294901760
        %2686 = vmatprep.subr.mxu0 %v2685
        %v2687 = vand.u32 %v1524, 4294901760
        %v2688 = vsub.f32 %v1524, %v2687
        %v2689 = vand.u32 %v2688, 4294901760
        %v2690 = vsub.f32 %v2688, %v2689
        %v2691 = vand.u32 %v2690, 4294901760
        %2692 = vmatpush1.msra.mxu0 %v2691
        %v2693 = vand.u32 %v1521, 4294901760
        %v2694 = vsub.f32 %v1521, %v2693
        %v2695 = vand.u32 %v2694, 4294901760
        %v2696 = vsub.f32 %v2694, %v2695
        %v2697 = vand.u32 %v2696, 4294901760
        %2698 = vmatprep.subr.mxu0 %v2697
        %v2699 = vand.u32 %v1520, 4294901760
        %v2700 = vsub.f32 %v1520, %v2699
        %v2701 = vand.u32 %v2700, 4294901760
        %v2702 = vsub.f32 %v2700, %v2701
        %v2703 = vand.u32 %v2702, 4294901760
        %2704 = vmatpush1.msra.mxu0 %v2703
        %v2705 = vand.u32 %v1517, 4294901760
        %v2706 = vsub.f32 %v1517, %v2705
        %v2707 = vand.u32 %v2706, 4294901760
        %v2708 = vsub.f32 %v2706, %v2707
        %v2709 = vand.u32 %v2708, 4294901760
        %2710 = vmatprep.subr.mxu0 %v2709
        %v2711 = vand.u32 %v1516, 4294901760
        %v2712 = vsub.f32 %v1516, %v2711
        %v2713 = vand.u32 %v2712, 4294901760
        %v2714 = vsub.f32 %v2712, %v2713
        %v2715 = vand.u32 %v2714, 4294901760
        %2716 = vmatpush1.msra.mxu0 %v2715
        %v2717 = vand.u32 %v1513, 4294901760
        %v2718 = vsub.f32 %v1513, %v2717
        %v2719 = vand.u32 %v2718, 4294901760
        %v2720 = vsub.f32 %v2718, %v2719
        %v2721 = vand.u32 %v2720, 4294901760
        %2722 = vmatprep.subr.mxu0 %v2721
        %v2723 = vand.u32 %v1512, 4294901760
        %v2724 = vsub.f32 %v1512, %v2723
        %v2725 = vand.u32 %v2724, 4294901760
        %v2726 = vsub.f32 %v2724, %v2725
        %v2727 = vand.u32 %v2726, 4294901760
        %2728 = vmatpush1.msra.mxu0 %v2727
        %2729 = vmatprep.subr.mxu0 0.0
        %2730 = vmatpush2.msra.mxu0 0.0
        %2731 = vmatprep.subr.mxu0 0.0
        %2732 = vmatpush2.msra.mxu0 0.0
        %2733 = vmatprep.subr.mxu0 0.0
        %2734 = vmatpush2.msra.mxu0 0.0
        %2735 = vmatprep.subr.mxu0 0.0
        %2736 = vmatpush2.msra.mxu0 0.0
        %2737 = vmatprep.subr.mxu0 0.0
        %2738 = vmatpush2.msra.mxu0 0.0
        %2739 = vmatprep.subr.mxu0 0.0
        %2740 = vmatpush2.msra.mxu0 0.0
        %2741 = vmatprep.subr.mxu0 0.0
        %2742 = vmatpush2.msra.mxu0 0.0
        %2743 = vmatprep.subr.mxu0 0.0
        %2744 = vmatpush2.msra.mxu0 0.0
        %2745 = vmatprep.subr.mxu0 0.0
        %2746 = vmatpush2.msra.mxu0 0.0
        %2747 = vmatprep.subr.mxu0 0.0
        %2748 = vmatpush2.msra.mxu0 0.0
        %2749 = vmatprep.subr.mxu0 0.0
        %2750 = vmatpush2.msra.mxu0 0.0
        %2751 = vmatprep.subr.mxu0 0.0
        %2752 = vmatpush2.msra.mxu0 0.0
        %2753 = vmatprep.subr.mxu0 0.0
        %2754 = vmatpush2.msra.mxu0 0.0
        %2755 = vmatprep.subr.mxu0 0.0
        %2756 = vmatpush2.msra.mxu0 0.0
        %2757 = vmatprep.subr.mxu0 0.0
        %2758 = vmatpush2.msra.mxu0 0.0
        %2759 = vmatprep.subr.mxu0 0.0
        %2760 = vmatpush2.msra.mxu0 0.0
        %2761 = vmatprep.mubr.f32.mxu0 0.0
        %v2762 = vand.u32 %v1501, 4294901760
        %2763 = vmatmul.mubr.f32.gmra.mxu0 %v2762
        %v2764 = vpop.f32.mrf.mxu0
        %v2765 = vadd.f32 %v2533, %v2764
        %v2766 = vpop.f32.mrf.mxu0
        %v2767 = vadd.f32 %v2535, %v2766
        %2768 = vdwg.mxu0
        %v2769 = vand.u32 %v1573, 4294901760
        %v2770 = vsub.f32 %v1573, %v2769
        %2771 = vmatprep.subr.mxu0 %v2770
        %v2772 = vand.u32 %v1572, 4294901760
        %v2773 = vsub.f32 %v1572, %v2772
        %2774 = vmatpush1.msra.mxu0 %v2773
        %v2775 = vand.u32 %v1569, 4294901760
        %v2776 = vsub.f32 %v1569, %v2775
        %2777 = vmatprep.subr.mxu0 %v2776
        %v2778 = vand.u32 %v1568, 4294901760
        %v2779 = vsub.f32 %v1568, %v2778
        %2780 = vmatpush1.msra.mxu0 %v2779
        %v2781 = vand.u32 %v1565, 4294901760
        %v2782 = vsub.f32 %v1565, %v2781
        %2783 = vmatprep.subr.mxu0 %v2782
        %v2784 = vand.u32 %v1564, 4294901760
        %v2785 = vsub.f32 %v1564, %v2784
        %2786 = vmatpush1.msra.mxu0 %v2785
        %v2787 = vand.u32 %v1561, 4294901760
        %v2788 = vsub.f32 %v1561, %v2787
        %2789 = vmatprep.subr.mxu0 %v2788
        %v2790 = vand.u32 %v1560, 4294901760
        %v2791 = vsub.f32 %v1560, %v2790
        %2792 = vmatpush1.msra.mxu0 %v2791
        %v2793 = vand.u32 %v1557, 4294901760
        %v2794 = vsub.f32 %v1557, %v2793
        %2795 = vmatprep.subr.mxu0 %v2794
        %v2796 = vand.u32 %v1556, 4294901760
        %v2797 = vsub.f32 %v1556, %v2796
        %2798 = vmatpush1.msra.mxu0 %v2797
        %v2799 = vand.u32 %v1553, 4294901760
        %v2800 = vsub.f32 %v1553, %v2799
        %2801 = vmatprep.subr.mxu0 %v2800
        %v2802 = vand.u32 %v1552, 4294901760
        %v2803 = vsub.f32 %v1552, %v2802
        %2804 = vmatpush1.msra.mxu0 %v2803
        %v2805 = vand.u32 %v1549, 4294901760
        %v2806 = vsub.f32 %v1549, %v2805
        %2807 = vmatprep.subr.mxu0 %v2806
        %v2808 = vand.u32 %v1548, 4294901760
        %v2809 = vsub.f32 %v1548, %v2808
        %2810 = vmatpush1.msra.mxu0 %v2809
        %v2811 = vand.u32 %v1545, 4294901760
        %v2812 = vsub.f32 %v1545, %v2811
        %2813 = vmatprep.subr.mxu0 %v2812
        %v2814 = vand.u32 %v1544, 4294901760
        %v2815 = vsub.f32 %v1544, %v2814
        %2816 = vmatpush1.msra.mxu0 %v2815
        %v2817 = vand.u32 %v1541, 4294901760
        %v2818 = vsub.f32 %v1541, %v2817
        %2819 = vmatprep.subr.mxu0 %v2818
        %v2820 = vand.u32 %v1540, 4294901760
        %v2821 = vsub.f32 %v1540, %v2820
        %2822 = vmatpush1.msra.mxu0 %v2821
        %v2823 = vand.u32 %v1537, 4294901760
        %v2824 = vsub.f32 %v1537, %v2823
        %2825 = vmatprep.subr.mxu0 %v2824
        %v2826 = vand.u32 %v1536, 4294901760
        %v2827 = vsub.f32 %v1536, %v2826
        %2828 = vmatpush1.msra.mxu0 %v2827
        %v2829 = vand.u32 %v1533, 4294901760
        %v2830 = vsub.f32 %v1533, %v2829
        %2831 = vmatprep.subr.mxu0 %v2830
        %v2832 = vand.u32 %v1532, 4294901760
        %v2833 = vsub.f32 %v1532, %v2832
        %2834 = vmatpush1.msra.mxu0 %v2833
        %v2835 = vand.u32 %v1529, 4294901760
        %v2836 = vsub.f32 %v1529, %v2835
        %2837 = vmatprep.subr.mxu0 %v2836
        %v2838 = vand.u32 %v1528, 4294901760
        %v2839 = vsub.f32 %v1528, %v2838
        %2840 = vmatpush1.msra.mxu0 %v2839
        %v2841 = vand.u32 %v1525, 4294901760
        %v2842 = vsub.f32 %v1525, %v2841
        %2843 = vmatprep.subr.mxu0 %v2842
        %v2844 = vand.u32 %v1524, 4294901760
        %v2845 = vsub.f32 %v1524, %v2844
        %2846 = vmatpush1.msra.mxu0 %v2845
        %v2847 = vand.u32 %v1521, 4294901760
        %v2848 = vsub.f32 %v1521, %v2847
        %2849 = vmatprep.subr.mxu0 %v2848
        %v2850 = vand.u32 %v1520, 4294901760
        %v2851 = vsub.f32 %v1520, %v2850
        %2852 = vmatpush1.msra.mxu0 %v2851
        %v2853 = vand.u32 %v1517, 4294901760
        %v2854 = vsub.f32 %v1517, %v2853
        %2855 = vmatprep.subr.mxu0 %v2854
        %v2856 = vand.u32 %v1516, 4294901760
        %v2857 = vsub.f32 %v1516, %v2856
        %2858 = vmatpush1.msra.mxu0 %v2857
        %v2859 = vand.u32 %v1513, 4294901760
        %v2860 = vsub.f32 %v1513, %v2859
        %2861 = vmatprep.subr.mxu0 %v2860
        %v2862 = vand.u32 %v1512, 4294901760
        %v2863 = vsub.f32 %v1512, %v2862
        %2864 = vmatpush1.msra.mxu0 %v2863
        %2865 = vmatprep.subr.mxu0 0.0
        %2866 = vmatpush2.msra.mxu0 0.0
        %2867 = vmatprep.subr.mxu0 0.0
        %2868 = vmatpush2.msra.mxu0 0.0
        %2869 = vmatprep.subr.mxu0 0.0
        %2870 = vmatpush2.msra.mxu0 0.0
        %2871 = vmatprep.subr.mxu0 0.0
        %2872 = vmatpush2.msra.mxu0 0.0
        %2873 = vmatprep.subr.mxu0 0.0
        %2874 = vmatpush2.msra.mxu0 0.0
        %2875 = vmatprep.subr.mxu0 0.0
        %2876 = vmatpush2.msra.mxu0 0.0
        %2877 = vmatprep.subr.mxu0 0.0
        %2878 = vmatpush2.msra.mxu0 0.0
        %2879 = vmatprep.subr.mxu0 0.0
        %2880 = vmatpush2.msra.mxu0 0.0
        %2881 = vmatprep.subr.mxu0 0.0
        %2882 = vmatpush2.msra.mxu0 0.0
        %2883 = vmatprep.subr.mxu0 0.0
        %2884 = vmatpush2.msra.mxu0 0.0
        %2885 = vmatprep.subr.mxu0 0.0
        %2886 = vmatpush2.msra.mxu0 0.0
        %2887 = vmatprep.subr.mxu0 0.0
        %2888 = vmatpush2.msra.mxu0 0.0
        %2889 = vmatprep.subr.mxu0 0.0
        %2890 = vmatpush2.msra.mxu0 0.0
        %2891 = vmatprep.subr.mxu0 0.0
        %2892 = vmatpush2.msra.mxu0 0.0
        %2893 = vmatprep.subr.mxu0 0.0
        %2894 = vmatpush2.msra.mxu0 0.0
        %2895 = vmatprep.subr.mxu0 0.0
        %2896 = vmatpush2.msra.mxu0 0.0
        %2897 = vmatprep.mubr.f32.mxu0 0.0
        %v2898 = vand.u32 %v1501, 4294901760
        %v2899 = vsub.f32 %v1501, %v2898
        %2900 = vmatmul.mubr.f32.gmra.mxu0 %v2899
        %v2901 = vpop.f32.mrf.mxu0
        %v2902 = vadd.f32 %v2765, %v2901
        %v2903 = vpop.f32.mrf.mxu0
        %v2904 = vadd.f32 %v2767, %v2903
        %2905 = vdwg.mxu0
        %v2906 = vand.u32 %v1573, 4294901760
        %2907 = vmatprep.subr.mxu0 %v2906
        %v2908 = vand.u32 %v1572, 4294901760
        %2909 = vmatpush1.msra.mxu0 %v2908
        %v2910 = vand.u32 %v1569, 4294901760
        %2911 = vmatprep.subr.mxu0 %v2910
        %v2912 = vand.u32 %v1568, 4294901760
        %2913 = vmatpush1.msra.mxu0 %v2912
        %v2914 = vand.u32 %v1565, 4294901760
        %2915 = vmatprep.subr.mxu0 %v2914
        %v2916 = vand.u32 %v1564, 4294901760
        %2917 = vmatpush1.msra.mxu0 %v2916
        %v2918 = vand.u32 %v1561, 4294901760
        %2919 = vmatprep.subr.mxu0 %v2918
        %v2920 = vand.u32 %v1560, 4294901760
        %2921 = vmatpush1.msra.mxu0 %v2920
        %v2922 = vand.u32 %v1557, 4294901760
        %2923 = vmatprep.subr.mxu0 %v2922
        %v2924 = vand.u32 %v1556, 4294901760
        %2925 = vmatpush1.msra.mxu0 %v2924
        %v2926 = vand.u32 %v1553, 4294901760
        %2927 = vmatprep.subr.mxu0 %v2926
        %v2928 = vand.u32 %v1552, 4294901760
        %2929 = vmatpush1.msra.mxu0 %v2928
        %v2930 = vand.u32 %v1549, 4294901760
        %2931 = vmatprep.subr.mxu0 %v2930
        %v2932 = vand.u32 %v1548, 4294901760
        %2933 = vmatpush1.msra.mxu0 %v2932
        %v2934 = vand.u32 %v1545, 4294901760
        %2935 = vmatprep.subr.mxu0 %v2934
        %v2936 = vand.u32 %v1544, 4294901760
        %2937 = vmatpush1.msra.mxu0 %v2936
        %v2938 = vand.u32 %v1541, 4294901760
        %2939 = vmatprep.subr.mxu0 %v2938
        %v2940 = vand.u32 %v1540, 4294901760
        %2941 = vmatpush1.msra.mxu0 %v2940
        %v2942 = vand.u32 %v1537, 4294901760
        %2943 = vmatprep.subr.mxu0 %v2942
        %v2944 = vand.u32 %v1536, 4294901760
        %2945 = vmatpush1.msra.mxu0 %v2944
        %v2946 = vand.u32 %v1533, 4294901760
        %2947 = vmatprep.subr.mxu0 %v2946
        %v2948 = vand.u32 %v1532, 4294901760
        %2949 = vmatpush1.msra.mxu0 %v2948
        %v2950 = vand.u32 %v1529, 4294901760
        %2951 = vmatprep.subr.mxu0 %v2950
        %v2952 = vand.u32 %v1528, 4294901760
        %2953 = vmatpush1.msra.mxu0 %v2952
        %v2954 = vand.u32 %v1525, 4294901760
        %2955 = vmatprep.subr.mxu0 %v2954
        %v2956 = vand.u32 %v1524, 4294901760
        %2957 = vmatpush1.msra.mxu0 %v2956
        %v2958 = vand.u32 %v1521, 4294901760
        %2959 = vmatprep.subr.mxu0 %v2958
        %v2960 = vand.u32 %v1520, 4294901760
        %2961 = vmatpush1.msra.mxu0 %v2960
        %v2962 = vand.u32 %v1517, 4294901760
        %2963 = vmatprep.subr.mxu0 %v2962
        %v2964 = vand.u32 %v1516, 4294901760
        %2965 = vmatpush1.msra.mxu0 %v2964
        %v2966 = vand.u32 %v1513, 4294901760
        %2967 = vmatprep.subr.mxu0 %v2966
        %v2968 = vand.u32 %v1512, 4294901760
        %2969 = vmatpush1.msra.mxu0 %v2968
        %2970 = vmatprep.subr.mxu0 0.0
        %2971 = vmatpush2.msra.mxu0 0.0
        %2972 = vmatprep.subr.mxu0 0.0
        %2973 = vmatpush2.msra.mxu0 0.0
        %2974 = vmatprep.subr.mxu0 0.0
        %2975 = vmatpush2.msra.mxu0 0.0
        %2976 = vmatprep.subr.mxu0 0.0
        %2977 = vmatpush2.msra.mxu0 0.0
        %2978 = vmatprep.subr.mxu0 0.0
        %2979 = vmatpush2.msra.mxu0 0.0
        %2980 = vmatprep.subr.mxu0 0.0
        %2981 = vmatpush2.msra.mxu0 0.0
        %2982 = vmatprep.subr.mxu0 0.0
        %2983 = vmatpush2.msra.mxu0 0.0
        %2984 = vmatprep.subr.mxu0 0.0
        %2985 = vmatpush2.msra.mxu0 0.0
        %2986 = vmatprep.subr.mxu0 0.0
        %2987 = vmatpush2.msra.mxu0 0.0
        %2988 = vmatprep.subr.mxu0 0.0
        %2989 = vmatpush2.msra.mxu0 0.0
        %2990 = vmatprep.subr.mxu0 0.0
        %2991 = vmatpush2.msra.mxu0 0.0
        %2992 = vmatprep.subr.mxu0 0.0
        %2993 = vmatpush2.msra.mxu0 0.0
        %2994 = vmatprep.subr.mxu0 0.0
        %2995 = vmatpush2.msra.mxu0 0.0
        %2996 = vmatprep.subr.mxu0 0.0
        %2997 = vmatpush2.msra.mxu0 0.0
        %2998 = vmatprep.subr.mxu0 0.0
        %2999 = vmatpush2.msra.mxu0 0.0
        %3000 = vmatprep.subr.mxu0 0.0
        %3001 = vmatpush2.msra.mxu0 0.0
        %3002 = vmatprep.mubr.f32.mxu0 0.0
        %v3003 = vand.u32 %v1501, 4294901760
        %v3004 = vsub.f32 %v1501, %v3003
        %v3005 = vand.u32 %v3004, 4294901760
        %3006 = vmatmul.mubr.f32.gmra.mxu0 %v3005
        %v3007 = vpop.f32.mrf.mxu0
        %v3008 = vadd.f32 %v2902, %v3007
        %v3009 = vpop.f32.mrf.mxu0
        %v3010 = vadd.f32 %v2904, %v3009
        %3011 = vdwg.mxu0
        %v3012 = vand.u32 %v1573, 4294901760
        %v3013 = vsub.f32 %v1573, %v3012
        %v3014 = vand.u32 %v3013, 4294901760
        %3015 = vmatprep.subr.mxu0 %v3014
        %v3016 = vand.u32 %v1572, 4294901760
        %v3017 = vsub.f32 %v1572, %v3016
        %v3018 = vand.u32 %v3017, 4294901760
        %3019 = vmatpush1.msra.mxu0 %v3018
        %v3020 = vand.u32 %v1569, 4294901760
        %v3021 = vsub.f32 %v1569, %v3020
        %v3022 = vand.u32 %v3021, 4294901760
        %3023 = vmatprep.subr.mxu0 %v3022
        %v3024 = vand.u32 %v1568, 4294901760
        %v3025 = vsub.f32 %v1568, %v3024
        %v3026 = vand.u32 %v3025, 4294901760
        %3027 = vmatpush1.msra.mxu0 %v3026
        %v3028 = vand.u32 %v1565, 4294901760
        %v3029 = vsub.f32 %v1565, %v3028
        %v3030 = vand.u32 %v3029, 4294901760
        %3031 = vmatprep.subr.mxu0 %v3030
        %v3032 = vand.u32 %v1564, 4294901760
        %v3033 = vsub.f32 %v1564, %v3032
        %v3034 = vand.u32 %v3033, 4294901760
        %3035 = vmatpush1.msra.mxu0 %v3034
        %v3036 = vand.u32 %v1561, 4294901760
        %v3037 = vsub.f32 %v1561, %v3036
        %v3038 = vand.u32 %v3037, 4294901760
        %3039 = vmatprep.subr.mxu0 %v3038
        %v3040 = vand.u32 %v1560, 4294901760
        %v3041 = vsub.f32 %v1560, %v3040
        %v3042 = vand.u32 %v3041, 4294901760
        %3043 = vmatpush1.msra.mxu0 %v3042
        %v3044 = vand.u32 %v1557, 4294901760
        %v3045 = vsub.f32 %v1557, %v3044
        %v3046 = vand.u32 %v3045, 4294901760
        %3047 = vmatprep.subr.mxu0 %v3046
        %v3048 = vand.u32 %v1556, 4294901760
        %v3049 = vsub.f32 %v1556, %v3048
        %v3050 = vand.u32 %v3049, 4294901760
        %3051 = vmatpush1.msra.mxu0 %v3050
        %v3052 = vand.u32 %v1553, 4294901760
        %v3053 = vsub.f32 %v1553, %v3052
        %v3054 = vand.u32 %v3053, 4294901760
        %3055 = vmatprep.subr.mxu0 %v3054
        %v3056 = vand.u32 %v1552, 4294901760
        %v3057 = vsub.f32 %v1552, %v3056
        %v3058 = vand.u32 %v3057, 4294901760
        %3059 = vmatpush1.msra.mxu0 %v3058
        %v3060 = vand.u32 %v1549, 4294901760
        %v3061 = vsub.f32 %v1549, %v3060
        %v3062 = vand.u32 %v3061, 4294901760
        %3063 = vmatprep.subr.mxu0 %v3062
        %v3064 = vand.u32 %v1548, 4294901760
        %v3065 = vsub.f32 %v1548, %v3064
        %v3066 = vand.u32 %v3065, 4294901760
        %3067 = vmatpush1.msra.mxu0 %v3066
        %v3068 = vand.u32 %v1545, 4294901760
        %v3069 = vsub.f32 %v1545, %v3068
        %v3070 = vand.u32 %v3069, 4294901760
        %3071 = vmatprep.subr.mxu0 %v3070
        %v3072 = vand.u32 %v1544, 4294901760
        %v3073 = vsub.f32 %v1544, %v3072
        %v3074 = vand.u32 %v3073, 4294901760
        %3075 = vmatpush1.msra.mxu0 %v3074
        %v3076 = vand.u32 %v1541, 4294901760
        %v3077 = vsub.f32 %v1541, %v3076
        %v3078 = vand.u32 %v3077, 4294901760
        %3079 = vmatprep.subr.mxu0 %v3078
        %v3080 = vand.u32 %v1540, 4294901760
        %v3081 = vsub.f32 %v1540, %v3080
        %v3082 = vand.u32 %v3081, 4294901760
        %3083 = vmatpush1.msra.mxu0 %v3082
        %v3084 = vand.u32 %v1537, 4294901760
        %v3085 = vsub.f32 %v1537, %v3084
        %v3086 = vand.u32 %v3085, 4294901760
        %3087 = vmatprep.subr.mxu0 %v3086
        %v3088 = vand.u32 %v1536, 4294901760
        %v3089 = vsub.f32 %v1536, %v3088
        %v3090 = vand.u32 %v3089, 4294901760
        %3091 = vmatpush1.msra.mxu0 %v3090
        %v3092 = vand.u32 %v1533, 4294901760
        %v3093 = vsub.f32 %v1533, %v3092
        %v3094 = vand.u32 %v3093, 4294901760
        %3095 = vmatprep.subr.mxu0 %v3094
        %v3096 = vand.u32 %v1532, 4294901760
        %v3097 = vsub.f32 %v1532, %v3096
        %v3098 = vand.u32 %v3097, 4294901760
        %3099 = vmatpush1.msra.mxu0 %v3098
        %v3100 = vand.u32 %v1529, 4294901760
        %v3101 = vsub.f32 %v1529, %v3100
        %v3102 = vand.u32 %v3101, 4294901760
        %3103 = vmatprep.subr.mxu0 %v3102
        %v3104 = vand.u32 %v1528, 4294901760
        %v3105 = vsub.f32 %v1528, %v3104
        %v3106 = vand.u32 %v3105, 4294901760
        %3107 = vmatpush1.msra.mxu0 %v3106
        %v3108 = vand.u32 %v1525, 4294901760
        %v3109 = vsub.f32 %v1525, %v3108
        %v3110 = vand.u32 %v3109, 4294901760
        %3111 = vmatprep.subr.mxu0 %v3110
        %v3112 = vand.u32 %v1524, 4294901760
        %v3113 = vsub.f32 %v1524, %v3112
        %v3114 = vand.u32 %v3113, 4294901760
        %3115 = vmatpush1.msra.mxu0 %v3114
        %v3116 = vand.u32 %v1521, 4294901760
        %v3117 = vsub.f32 %v1521, %v3116
        %v3118 = vand.u32 %v3117, 4294901760
        %3119 = vmatprep.subr.mxu0 %v3118
        %v3120 = vand.u32 %v1520, 4294901760
        %v3121 = vsub.f32 %v1520, %v3120
        %v3122 = vand.u32 %v3121, 4294901760
        %3123 = vmatpush1.msra.mxu0 %v3122
        %v3124 = vand.u32 %v1517, 4294901760
        %v3125 = vsub.f32 %v1517, %v3124
        %v3126 = vand.u32 %v3125, 4294901760
        %3127 = vmatprep.subr.mxu0 %v3126
        %v3128 = vand.u32 %v1516, 4294901760
        %v3129 = vsub.f32 %v1516, %v3128
        %v3130 = vand.u32 %v3129, 4294901760
        %3131 = vmatpush1.msra.mxu0 %v3130
        %v3132 = vand.u32 %v1513, 4294901760
        %v3133 = vsub.f32 %v1513, %v3132
        %v3134 = vand.u32 %v3133, 4294901760
        %3135 = vmatprep.subr.mxu0 %v3134
        %v3136 = vand.u32 %v1512, 4294901760
        %v3137 = vsub.f32 %v1512, %v3136
        %v3138 = vand.u32 %v3137, 4294901760
        %3139 = vmatpush1.msra.mxu0 %v3138
        %3140 = vmatprep.subr.mxu0 0.0
        %3141 = vmatpush2.msra.mxu0 0.0
        %3142 = vmatprep.subr.mxu0 0.0
        %3143 = vmatpush2.msra.mxu0 0.0
        %3144 = vmatprep.subr.mxu0 0.0
        %3145 = vmatpush2.msra.mxu0 0.0
        %3146 = vmatprep.subr.mxu0 0.0
        %3147 = vmatpush2.msra.mxu0 0.0
        %3148 = vmatprep.subr.mxu0 0.0
        %3149 = vmatpush2.msra.mxu0 0.0
        %3150 = vmatprep.subr.mxu0 0.0
        %3151 = vmatpush2.msra.mxu0 0.0
        %3152 = vmatprep.subr.mxu0 0.0
        %3153 = vmatpush2.msra.mxu0 0.0
        %3154 = vmatprep.subr.mxu0 0.0
        %3155 = vmatpush2.msra.mxu0 0.0
        %3156 = vmatprep.subr.mxu0 0.0
        %3157 = vmatpush2.msra.mxu0 0.0
        %3158 = vmatprep.subr.mxu0 0.0
        %3159 = vmatpush2.msra.mxu0 0.0
        %3160 = vmatprep.subr.mxu0 0.0
        %3161 = vmatpush2.msra.mxu0 0.0
        %3162 = vmatprep.subr.mxu0 0.0
        %3163 = vmatpush2.msra.mxu0 0.0
        %3164 = vmatprep.subr.mxu0 0.0
        %3165 = vmatpush2.msra.mxu0 0.0
        %3166 = vmatprep.subr.mxu0 0.0
        %3167 = vmatpush2.msra.mxu0 0.0
        %3168 = vmatprep.subr.mxu0 0.0
        %3169 = vmatpush2.msra.mxu0 0.0
        %3170 = vmatprep.subr.mxu0 0.0
        %3171 = vmatpush2.msra.mxu0 0.0
        %3172 = vmatprep.mubr.f32.mxu0 0.0
        %v3173 = vand.u32 %v1501, 4294901760
        %3174 = vmatmul.mubr.f32.gmra.mxu0 %v3173
        %v3175 = vpop.f32.mrf.mxu0
        %v3176 = vadd.f32 %v3008, %v3175
        %v3177 = vpop.f32.mrf.mxu0
        %v3178 = vadd.f32 %v3010, %v3177
        %3179 = vdwg.mxu0
        %v3180 = vand.u32 %v1573, 4294901760
        %3181 = vmatprep.subr.mxu0 %v3180
        %v3182 = vand.u32 %v1572, 4294901760
        %3183 = vmatpush1.msra.mxu0 %v3182
        %v3184 = vand.u32 %v1569, 4294901760
        %3185 = vmatprep.subr.mxu0 %v3184
        %v3186 = vand.u32 %v1568, 4294901760
        %3187 = vmatpush1.msra.mxu0 %v3186
        %v3188 = vand.u32 %v1565, 4294901760
        %3189 = vmatprep.subr.mxu0 %v3188
        %v3190 = vand.u32 %v1564, 4294901760
        %3191 = vmatpush1.msra.mxu0 %v3190
        %v3192 = vand.u32 %v1561, 4294901760
        %3193 = vmatprep.subr.mxu0 %v3192
        %v3194 = vand.u32 %v1560, 4294901760
        %3195 = vmatpush1.msra.mxu0 %v3194
        %v3196 = vand.u32 %v1557, 4294901760
        %3197 = vmatprep.subr.mxu0 %v3196
        %v3198 = vand.u32 %v1556, 4294901760
        %3199 = vmatpush1.msra.mxu0 %v3198
        %v3200 = vand.u32 %v1553, 4294901760
        %3201 = vmatprep.subr.mxu0 %v3200
        %v3202 = vand.u32 %v1552, 4294901760
        %3203 = vmatpush1.msra.mxu0 %v3202
        %v3204 = vand.u32 %v1549, 4294901760
        %3205 = vmatprep.subr.mxu0 %v3204
        %v3206 = vand.u32 %v1548, 4294901760
        %3207 = vmatpush1.msra.mxu0 %v3206
        %v3208 = vand.u32 %v1545, 4294901760
        %3209 = vmatprep.subr.mxu0 %v3208
        %v3210 = vand.u32 %v1544, 4294901760
        %3211 = vmatpush1.msra.mxu0 %v3210
        %v3212 = vand.u32 %v1541, 4294901760
        %3213 = vmatprep.subr.mxu0 %v3212
        %v3214 = vand.u32 %v1540, 4294901760
        %3215 = vmatpush1.msra.mxu0 %v3214
        %v3216 = vand.u32 %v1537, 4294901760
        %3217 = vmatprep.subr.mxu0 %v3216
        %v3218 = vand.u32 %v1536, 4294901760
        %3219 = vmatpush1.msra.mxu0 %v3218
        %v3220 = vand.u32 %v1533, 4294901760
        %3221 = vmatprep.subr.mxu0 %v3220
        %v3222 = vand.u32 %v1532, 4294901760
        %3223 = vmatpush1.msra.mxu0 %v3222
        %v3224 = vand.u32 %v1529, 4294901760
        %3225 = vmatprep.subr.mxu0 %v3224
        %v3226 = vand.u32 %v1528, 4294901760
        %3227 = vmatpush1.msra.mxu0 %v3226
        %v3228 = vand.u32 %v1525, 4294901760
        %3229 = vmatprep.subr.mxu0 %v3228
        %v3230 = vand.u32 %v1524, 4294901760
        %3231 = vmatpush1.msra.mxu0 %v3230
        %v3232 = vand.u32 %v1521, 4294901760
        %3233 = vmatprep.subr.mxu0 %v3232
        %v3234 = vand.u32 %v1520, 4294901760
        %3235 = vmatpush1.msra.mxu0 %v3234
        %v3236 = vand.u32 %v1517, 4294901760
        %3237 = vmatprep.subr.mxu0 %v3236
        %v3238 = vand.u32 %v1516, 4294901760
        %3239 = vmatpush1.msra.mxu0 %v3238
        %v3240 = vand.u32 %v1513, 4294901760
        %3241 = vmatprep.subr.mxu0 %v3240
        %v3242 = vand.u32 %v1512, 4294901760
        %3243 = vmatpush1.msra.mxu0 %v3242
        %3244 = vmatprep.subr.mxu0 0.0
        %3245 = vmatpush2.msra.mxu0 0.0
        %3246 = vmatprep.subr.mxu0 0.0
        %3247 = vmatpush2.msra.mxu0 0.0
        %3248 = vmatprep.subr.mxu0 0.0
        %3249 = vmatpush2.msra.mxu0 0.0
        %3250 = vmatprep.subr.mxu0 0.0
        %3251 = vmatpush2.msra.mxu0 0.0
        %3252 = vmatprep.subr.mxu0 0.0
        %3253 = vmatpush2.msra.mxu0 0.0
        %3254 = vmatprep.subr.mxu0 0.0
        %3255 = vmatpush2.msra.mxu0 0.0
        %3256 = vmatprep.subr.mxu0 0.0
        %3257 = vmatpush2.msra.mxu0 0.0
        %3258 = vmatprep.subr.mxu0 0.0
        %3259 = vmatpush2.msra.mxu0 0.0
        %3260 = vmatprep.subr.mxu0 0.0
        %3261 = vmatpush2.msra.mxu0 0.0
        %3262 = vmatprep.subr.mxu0 0.0
        %3263 = vmatpush2.msra.mxu0 0.0
        %3264 = vmatprep.subr.mxu0 0.0
        %3265 = vmatpush2.msra.mxu0 0.0
        %3266 = vmatprep.subr.mxu0 0.0
        %3267 = vmatpush2.msra.mxu0 0.0
        %3268 = vmatprep.subr.mxu0 0.0
        %3269 = vmatpush2.msra.mxu0 0.0
        %3270 = vmatprep.subr.mxu0 0.0
        %3271 = vmatpush2.msra.mxu0 0.0
        %3272 = vmatprep.subr.mxu0 0.0
        %3273 = vmatpush2.msra.mxu0 0.0
        %3274 = vmatprep.subr.mxu0 0.0
        %3275 = vmatpush2.msra.mxu0 0.0
        %3276 = vmatprep.mubr.f32.mxu0 0.0
        %v3277 = vand.u32 %v1501, 4294901760
        %3278 = vmatmul.mubr.f32.gmra.mxu0 %v3277
        %v3279 = vpop.f32.mrf.mxu0
        %v3280 = vadd.f32 %v3176, %v3279
        %v3281 = vpop.f32.mrf.mxu0
        %v3282 = vadd.f32 %v3178, %v3281
        %3283 = vdwg.mxu0
        %v3284 = vadd.f32 %v1506, %v2425
        %v3285 = vadd.f32 %v1507, %v2427
        %v3286 = vadd.f32 %v1508, %v3280
        %v3287 = vadd.f32 %v1509, %v3282
        %v3288 = vxor.u32 %v3284, 2147483648
        %v3289 = vmul.f32 %v3288, 1.442695
        %v3290 = vpow.pop %v3289
        %v3291 = vadd.f32 %v3290, 1.0
        %v3292 = vrcp.pop %v3291
        %v3293 = vmul.f32 1.0, %v3292
        %v3294 = vxor.u32 %v3285, 2147483648
        %v3295 = vmul.f32 %v3294, 1.442695
        %v3296 = vpow.pop %v3295
        %v3297 = vadd.f32 %v3296, 1.0
        %v3298 = vrcp.pop %v3297
        %v3299 = vmul.f32 1.0, %v3298
        %v3300 = vtanh.pop %v3286
        %v3301 = vxor.u32 %v3287, 2147483648
        %v3302 = vmul.f32 %v3301, 1.442695
        %v3303 = vpow.pop %v3302
        %v3304 = vadd.f32 %v3303, 1.0
        %v3305 = vrcp.pop %v3304
        %v3306 = vmul.f32 1.0, %v3305
        %v3307 = vmul.f32 %v3299, %v1502
        %v3308 = vmul.f32 %v3293, %v3300
        %v3309 = vadd.f32 %v3307, %v3308
        %v3310 = vtanh.pop %v3309
        %v3311 = vmul.f32 %v3306, %v3310
        %s3312 = smul.u32 1, 4
        %s3313 = smul.addr %s3312, 8
        %s3314 = scalar_lea.vmem [#allocation4], %s3313
        %v3315 = vld [vmem:[%s3314] sm:$0xff]
        %v3316 = vld [vmem:[%s3314 + $0x8] sm:$0xff]
        %v3317 = vld [vmem:[%s3314 + $0x10] sm:$0xff]
        %v3318 = vld [vmem:[%s3314 + $0x18] sm:$0xff]
        %v3319 = vand.u32 %v1571, 4294901760
        %3320 = vmatprep.subr.mxu0 %v3319
        %v3321 = vand.u32 %v1570, 4294901760
        %3322 = vmatpush1.msra.mxu0 %v3321
        %v3323 = vand.u32 %v1567, 4294901760
        %3324 = vmatprep.subr.mxu0 %v3323
        %v3325 = vand.u32 %v1566, 4294901760
        %3326 = vmatpush1.msra.mxu0 %v3325
        %v3327 = vand.u32 %v1563, 4294901760
        %3328 = vmatprep.subr.mxu0 %v3327
        %v3329 = vand.u32 %v1562, 4294901760
        %3330 = vmatpush1.msra.mxu0 %v3329
        %v3331 = vand.u32 %v1559, 4294901760
        %3332 = vmatprep.subr.mxu0 %v3331
        %v3333 = vand.u32 %v1558, 4294901760
        %3334 = vmatpush1.msra.mxu0 %v3333
        %v3335 = vand.u32 %v1555, 4294901760
        %3336 = vmatprep.subr.mxu0 %v3335
        %v3337 = vand.u32 %v1554, 4294901760
        %3338 = vmatpush1.msra.mxu0 %v3337
        %v3339 = vand.u32 %v1551, 4294901760
        %3340 = vmatprep.subr.mxu0 %v3339
        %v3341 = vand.u32 %v1550, 4294901760
        %3342 = vmatpush1.msra.mxu0 %v3341
        %v3343 = vand.u32 %v1547, 4294901760
        %3344 = vmatprep.subr.mxu0 %v3343
        %v3345 = vand.u32 %v1546, 4294901760
        %3346 = vmatpush1.msra.mxu0 %v3345
        %v3347 = vand.u32 %v1543, 4294901760
        %3348 = vmatprep.subr.mxu0 %v3347
        %v3349 = vand.u32 %v1542, 4294901760
        %3350 = vmatpush1.msra.mxu0 %v3349
        %v3351 = vand.u32 %v1539, 4294901760
        %3352 = vmatprep.subr.mxu0 %v3351
        %v3353 = vand.u32 %v1538, 4294901760
        %3354 = vmatpush1.msra.mxu0 %v3353
        %v3355 = vand.u32 %v1535, 4294901760
        %3356 = vmatprep.subr.mxu0 %v3355
        %v3357 = vand.u32 %v1534, 4294901760
        %3358 = vmatpush1.msra.mxu0 %v3357
        %v3359 = vand.u32 %v1531, 4294901760
        %3360 = vmatprep.subr.mxu0 %v3359
        %v3361 = vand.u32 %v1530, 4294901760
        %3362 = vmatpush1.msra.mxu0 %v3361
        %v3363 = vand.u32 %v1527, 4294901760
        %3364 = vmatprep.subr.mxu0 %v3363
        %v3365 = vand.u32 %v1526, 4294901760
        %3366 = vmatpush1.msra.mxu0 %v3365
        %v3367 = vand.u32 %v1523, 4294901760
        %3368 = vmatprep.subr.mxu0 %v3367
        %v3369 = vand.u32 %v1522, 4294901760
        %3370 = vmatpush1.msra.mxu0 %v3369
        %v3371 = vand.u32 %v1519, 4294901760
        %3372 = vmatprep.subr.mxu0 %v3371
        %v3373 = vand.u32 %v1518, 4294901760
        %3374 = vmatpush1.msra.mxu0 %v3373
        %v3375 = vand.u32 %v1515, 4294901760
        %3376 = vmatprep.subr.mxu0 %v3375
        %v3377 = vand.u32 %v1514, 4294901760
        %3378 = vmatpush1.msra.mxu0 %v3377
        %v3379 = vand.u32 %v1511, 4294901760
        %3380 = vmatprep.subr.mxu0 %v3379
        %v3381 = vand.u32 %v1510, 4294901760
        %3382 = vmatpush1.msra.mxu0 %v3381
        %3383 = vmatprep.subr.mxu0 0.0
        %3384 = vmatpush2.msra.mxu0 0.0
        %3385 = vmatprep.subr.mxu0 0.0
        %3386 = vmatpush2.msra.mxu0 0.0
        %3387 = vmatprep.subr.mxu0 0.0
        %3388 = vmatpush2.msra.mxu0 0.0
        %3389 = vmatprep.subr.mxu0 0.0
        %3390 = vmatpush2.msra.mxu0 0.0
        %3391 = vmatprep.subr.mxu0 0.0
        %3392 = vmatpush2.msra.mxu0 0.0
        %3393 = vmatprep.subr.mxu0 0.0
        %3394 = vmatpush2.msra.mxu0 0.0
        %3395 = vmatprep.subr.mxu0 0.0
        %3396 = vmatpush2.msra.mxu0 0.0
        %3397 = vmatprep.subr.mxu0 0.0
        %3398 = vmatpush2.msra.mxu0 0.0
        %3399 = vmatprep.subr.mxu0 0.0
        %3400 = vmatpush2.msra.mxu0 0.0
        %3401 = vmatprep.subr.mxu0 0.0
        %3402 = vmatpush2.msra.mxu0 0.0
        %3403 = vmatprep.subr.mxu0 0.0
        %3404 = vmatpush2.msra.mxu0 0.0
        %3405 = vmatprep.subr.mxu0 0.0
        %3406 = vmatpush2.msra.mxu0 0.0
        %3407 = vmatprep.subr.mxu0 0.0
        %3408 = vmatpush2.msra.mxu0 0.0
        %3409 = vmatprep.subr.mxu0 0.0
        %3410 = vmatpush2.msra.mxu0 0.0
        %3411 = vmatprep.subr.mxu0 0.0
        %3412 = vmatpush2.msra.mxu0 0.0
        %3413 = vmatprep.subr.mxu0 0.0
        %3414 = vmatpush2.msra.mxu0 0.0
        %3415 = vmatprep.mubr.f32.mxu0 0.0
        %v3416 = vand.u32 %v3311, 4294901760
        %v3417 = vsub.f32 %v3311, %v3416
        %v3418 = vand.u32 %v3417, 4294901760
        %v3419 = vsub.f32 %v3417, %v3418
        %v3420 = vand.u32 %v3419, 4294901760
        %3421 = vmatmul.mubr.f32.gmra.mxu0 %v3420
        %v3422 = vpop.f32.mrf.mxu0
        %v3423 = vadd.f32 0.0, %v3422
        %v3424 = vpop.f32.mrf.mxu0
        %v3425 = vadd.f32 0.0, %v3424
        %3426 = vdwg.mxu0
        %v3427 = vand.u32 %v1571, 4294901760
        %v3428 = vsub.f32 %v1571, %v3427
        %v3429 = vand.u32 %v3428, 4294901760
        %v3430 = vsub.f32 %v3428, %v3429
        %v3431 = vand.u32 %v3430, 4294901760
        %3432 = vmatprep.subr.mxu0 %v3431
        %v3433 = vand.u32 %v1570, 4294901760
        %v3434 = vsub.f32 %v1570, %v3433
        %v3435 = vand.u32 %v3434, 4294901760
        %v3436 = vsub.f32 %v3434, %v3435
        %v3437 = vand.u32 %v3436, 4294901760
        %3438 = vmatpush1.msra.mxu0 %v3437
        %v3439 = vand.u32 %v1567, 4294901760
        %v3440 = vsub.f32 %v1567, %v3439
        %v3441 = vand.u32 %v3440, 4294901760
        %v3442 = vsub.f32 %v3440, %v3441
        %v3443 = vand.u32 %v3442, 4294901760
        %3444 = vmatprep.subr.mxu0 %v3443
        %v3445 = vand.u32 %v1566, 4294901760
        %v3446 = vsub.f32 %v1566, %v3445
        %v3447 = vand.u32 %v3446, 4294901760
        %v3448 = vsub.f32 %v3446, %v3447
        %v3449 = vand.u32 %v3448, 4294901760
        %3450 = vmatpush1.msra.mxu0 %v3449
        %v3451 = vand.u32 %v1563, 4294901760
        %v3452 = vsub.f32 %v1563, %v3451
        %v3453 = vand.u32 %v3452, 4294901760
        %v3454 = vsub.f32 %v3452, %v3453
        %v3455 = vand.u32 %v3454, 4294901760
        %3456 = vmatprep.subr.mxu0 %v3455
        %v3457 = vand.u32 %v1562, 4294901760
        %v3458 = vsub.f32 %v1562, %v3457
        %v3459 = vand.u32 %v3458, 4294901760
        %v3460 = vsub.f32 %v3458, %v3459
        %v3461 = vand.u32 %v3460, 4294901760
        %3462 = vmatpush1.msra.mxu0 %v3461
        %v3463 = vand.u32 %v1559, 4294901760
        %v3464 = vsub.f32 %v1559, %v3463
        %v3465 = vand.u32 %v3464, 4294901760
        %v3466 = vsub.f32 %v3464, %v3465
        %v3467 = vand.u32 %v3466, 4294901760
        %3468 = vmatprep.subr.mxu0 %v3467
        %v3469 = vand.u32 %v1558, 4294901760
        %v3470 = vsub.f32 %v1558, %v3469
        %v3471 = vand.u32 %v3470, 4294901760
        %v3472 = vsub.f32 %v3470, %v3471
        %v3473 = vand.u32 %v3472, 4294901760
        %3474 = vmatpush1.msra.mxu0 %v3473
        %v3475 = vand.u32 %v1555, 4294901760
        %v3476 = vsub.f32 %v1555, %v3475
        %v3477 = vand.u32 %v3476, 4294901760
        %v3478 = vsub.f32 %v3476, %v3477
        %v3479 = vand.u32 %v3478, 4294901760
        %3480 = vmatprep.subr.mxu0 %v3479
        %v3481 = vand.u32 %v1554, 4294901760
        %v3482 = vsub.f32 %v1554, %v3481
        %v3483 = vand.u32 %v3482, 4294901760
        %v3484 = vsub.f32 %v3482, %v3483
        %v3485 = vand.u32 %v3484, 4294901760
        %3486 = vmatpush1.msra.mxu0 %v3485
        %v3487 = vand.u32 %v1551, 4294901760
        %v3488 = vsub.f32 %v1551, %v3487
        %v3489 = vand.u32 %v3488, 4294901760
        %v3490 = vsub.f32 %v3488, %v3489
        %v3491 = vand.u32 %v3490, 4294901760
        %3492 = vmatprep.subr.mxu0 %v3491
        %v3493 = vand.u32 %v1550, 4294901760
        %v3494 = vsub.f32 %v1550, %v3493
        %v3495 = vand.u32 %v3494, 4294901760
        %v3496 = vsub.f32 %v3494, %v3495
        %v3497 = vand.u32 %v3496, 4294901760
        %3498 = vmatpush1.msra.mxu0 %v3497
        %v3499 = vand.u32 %v1547, 4294901760
        %v3500 = vsub.f32 %v1547, %v3499
        %v3501 = vand.u32 %v3500, 4294901760
        %v3502 = vsub.f32 %v3500, %v3501
        %v3503 = vand.u32 %v3502, 4294901760
        %3504 = vmatprep.subr.mxu0 %v3503
        %v3505 = vand.u32 %v1546, 4294901760
        %v3506 = vsub.f32 %v1546, %v3505
        %v3507 = vand.u32 %v3506, 4294901760
        %v3508 = vsub.f32 %v3506, %v3507
        %v3509 = vand.u32 %v3508, 4294901760
        %3510 = vmatpush1.msra.mxu0 %v3509
        %v3511 = vand.u32 %v1543, 4294901760
        %v3512 = vsub.f32 %v1543, %v3511
        %v3513 = vand.u32 %v3512, 4294901760
        %v3514 = vsub.f32 %v3512, %v3513
        %v3515 = vand.u32 %v3514, 4294901760
        %3516 = vmatprep.subr.mxu0 %v3515
        %v3517 = vand.u32 %v1542, 4294901760
        %v3518 = vsub.f32 %v1542, %v3517
        %v3519 = vand.u32 %v3518, 4294901760
        %v3520 = vsub.f32 %v3518, %v3519
        %v3521 = vand.u32 %v3520, 4294901760
        %3522 = vmatpush1.msra.mxu0 %v3521
        %v3523 = vand.u32 %v1539, 4294901760
        %v3524 = vsub.f32 %v1539, %v3523
        %v3525 = vand.u32 %v3524, 4294901760
        %v3526 = vsub.f32 %v3524, %v3525
        %v3527 = vand.u32 %v3526, 4294901760
        %3528 = vmatprep.subr.mxu0 %v3527
        %v3529 = vand.u32 %v1538, 4294901760
        %v3530 = vsub.f32 %v1538, %v3529
        %v3531 = vand.u32 %v3530, 4294901760
        %v3532 = vsub.f32 %v3530, %v3531
        %v3533 = vand.u32 %v3532, 4294901760
        %3534 = vmatpush1.msra.mxu0 %v3533
        %v3535 = vand.u32 %v1535, 4294901760
        %v3536 = vsub.f32 %v1535, %v3535
        %v3537 = vand.u32 %v3536, 4294901760
        %v3538 = vsub.f32 %v3536, %v3537
        %v3539 = vand.u32 %v3538, 4294901760
        %3540 = vmatprep.subr.mxu0 %v3539
        %v3541 = vand.u32 %v1534, 4294901760
        %v3542 = vsub.f32 %v1534, %v3541
        %v3543 = vand.u32 %v3542, 4294901760
        %v3544 = vsub.f32 %v3542, %v3543
        %v3545 = vand.u32 %v3544, 4294901760
        %3546 = vmatpush1.msra.mxu0 %v3545
        %v3547 = vand.u32 %v1531, 4294901760
        %v3548 = vsub.f32 %v1531, %v3547
        %v3549 = vand.u32 %v3548, 4294901760
        %v3550 = vsub.f32 %v3548, %v3549
        %v3551 = vand.u32 %v3550, 4294901760
        %3552 = vmatprep.subr.mxu0 %v3551
        %v3553 = vand.u32 %v1530, 4294901760
        %v3554 = vsub.f32 %v1530, %v3553
        %v3555 = vand.u32 %v3554, 4294901760
        %v3556 = vsub.f32 %v3554, %v3555
        %v3557 = vand.u32 %v3556, 4294901760
        %3558 = vmatpush1.msra.mxu0 %v3557
        %v3559 = vand.u32 %v1527, 4294901760
        %v3560 = vsub.f32 %v1527, %v3559
        %v3561 = vand.u32 %v3560, 4294901760
        %v3562 = vsub.f32 %v3560, %v3561
        %v3563 = vand.u32 %v3562, 4294901760
        %3564 = vmatprep.subr.mxu0 %v3563
        %v3565 = vand.u32 %v1526, 4294901760
        %v3566 = vsub.f32 %v1526, %v3565
        %v3567 = vand.u32 %v3566, 4294901760
        %v3568 = vsub.f32 %v3566, %v3567
        %v3569 = vand.u32 %v3568, 4294901760
        %3570 = vmatpush1.msra.mxu0 %v3569
        %v3571 = vand.u32 %v1523, 4294901760
        %v3572 = vsub.f32 %v1523, %v3571
        %v3573 = vand.u32 %v3572, 4294901760
        %v3574 = vsub.f32 %v3572, %v3573
        %v3575 = vand.u32 %v3574, 4294901760
        %3576 = vmatprep.subr.mxu0 %v3575
        %v3577 = vand.u32 %v1522, 4294901760
        %v3578 = vsub.f32 %v1522, %v3577
        %v3579 = vand.u32 %v3578, 4294901760
        %v3580 = vsub.f32 %v3578, %v3579
        %v3581 = vand.u32 %v3580, 4294901760
        %3582 = vmatpush1.msra.mxu0 %v3581
        %v3583 = vand.u32 %v1519, 4294901760
        %v3584 = vsub.f32 %v1519, %v3583
        %v3585 = vand.u32 %v3584, 4294901760
        %v3586 = vsub.f32 %v3584, %v3585
        %v3587 = vand.u32 %v3586, 4294901760
        %3588 = vmatprep.subr.mxu0 %v3587
        %v3589 = vand.u32 %v1518, 4294901760
        %v3590 = vsub.f32 %v1518, %v3589
        %v3591 = vand.u32 %v3590, 4294901760
        %v3592 = vsub.f32 %v3590, %v3591
        %v3593 = vand.u32 %v3592, 4294901760
        %3594 = vmatpush1.msra.mxu0 %v3593
        %v3595 = vand.u32 %v1515, 4294901760
        %v3596 = vsub.f32 %v1515, %v3595
        %v3597 = vand.u32 %v3596, 4294901760
        %v3598 = vsub.f32 %v3596, %v3597
        %v3599 = vand.u32 %v3598, 4294901760
        %3600 = vmatprep.subr.mxu0 %v3599
        %v3601 = vand.u32 %v1514, 4294901760
        %v3602 = vsub.f32 %v1514, %v3601
        %v3603 = vand.u32 %v3602, 4294901760
        %v3604 = vsub.f32 %v3602, %v3603
        %v3605 = vand.u32 %v3604, 4294901760
        %3606 = vmatpush1.msra.mxu0 %v3605
        %v3607 = vand.u32 %v1511, 4294901760
        %v3608 = vsub.f32 %v1511, %v3607
        %v3609 = vand.u32 %v3608, 4294901760
        %v3610 = vsub.f32 %v3608, %v3609
        %v3611 = vand.u32 %v3610, 4294901760
        %3612 = vmatprep.subr.mxu0 %v3611
        %v3613 = vand.u32 %v1510, 4294901760
        %v3614 = vsub.f32 %v1510, %v3613
        %v3615 = vand.u32 %v3614, 4294901760
        %v3616 = vsub.f32 %v3614, %v3615
        %v3617 = vand.u32 %v3616, 4294901760
        %3618 = vmatpush1.msra.mxu0 %v3617
        %3619 = vmatprep.subr.mxu0 0.0
        %3620 = vmatpush2.msra.mxu0 0.0
        %3621 = vmatprep.subr.mxu0 0.0
        %3622 = vmatpush2.msra.mxu0 0.0
        %3623 = vmatprep.subr.mxu0 0.0
        %3624 = vmatpush2.msra.mxu0 0.0
        %3625 = vmatprep.subr.mxu0 0.0
        %3626 = vmatpush2.msra.mxu0 0.0
        %3627 = vmatprep.subr.mxu0 0.0
        %3628 = vmatpush2.msra.mxu0 0.0
        %3629 = vmatprep.subr.mxu0 0.0
        %3630 = vmatpush2.msra.mxu0 0.0
        %3631 = vmatprep.subr.mxu0 0.0
        %3632 = vmatpush2.msra.mxu0 0.0
        %3633 = vmatprep.subr.mxu0 0.0
        %3634 = vmatpush2.msra.mxu0 0.0
        %3635 = vmatprep.subr.mxu0 0.0
        %3636 = vmatpush2.msra.mxu0 0.0
        %3637 = vmatprep.subr.mxu0 0.0
        %3638 = vmatpush2.msra.mxu0 0.0
        %3639 = vmatprep.subr.mxu0 0.0
        %3640 = vmatpush2.msra.mxu0 0.0
        %3641 = vmatprep.subr.mxu0 0.0
        %3642 = vmatpush2.msra.mxu0 0.0
        %3643 = vmatprep.subr.mxu0 0.0
        %3644 = vmatpush2.msra.mxu0 0.0
        %3645 = vmatprep.subr.mxu0 0.0
        %3646 = vmatpush2.msra.mxu0 0.0
        %3647 = vmatprep.subr.mxu0 0.0
        %3648 = vmatpush2.msra.mxu0 0.0
        %3649 = vmatprep.subr.mxu0 0.0
        %3650 = vmatpush2.msra.mxu0 0.0
        %3651 = vmatprep.mubr.f32.mxu0 0.0
        %v3652 = vand.u32 %v3311, 4294901760
        %3653 = vmatmul.mubr.f32.gmra.mxu0 %v3652
        %v3654 = vpop.f32.mrf.mxu0
        %v3655 = vadd.f32 %v3423, %v3654
        %v3656 = vpop.f32.mrf.mxu0
        %v3657 = vadd.f32 %v3425, %v3656
        %3658 = vdwg.mxu0
        %v3659 = vand.u32 %v1571, 4294901760
        %v3660 = vsub.f32 %v1571, %v3659
        %3661 = vmatprep.subr.mxu0 %v3660
        %v3662 = vand.u32 %v1570, 4294901760
        %v3663 = vsub.f32 %v1570, %v3662
        %3664 = vmatpush1.msra.mxu0 %v3663
        %v3665 = vand.u32 %v1567, 4294901760
        %v3666 = vsub.f32 %v1567, %v3665
        %3667 = vmatprep.subr.mxu0 %v3666
        %v3668 = vand.u32 %v1566, 4294901760
        %v3669 = vsub.f32 %v1566, %v3668
        %3670 = vmatpush1.msra.mxu0 %v3669
        %v3671 = vand.u32 %v1563, 4294901760
        %v3672 = vsub.f32 %v1563, %v3671
        %3673 = vmatprep.subr.mxu0 %v3672
        %v3674 = vand.u32 %v1562, 4294901760
        %v3675 = vsub.f32 %v1562, %v3674
        %3676 = vmatpush1.msra.mxu0 %v3675
        %v3677 = vand.u32 %v1559, 4294901760
        %v3678 = vsub.f32 %v1559, %v3677
        %3679 = vmatprep.subr.mxu0 %v3678
        %v3680 = vand.u32 %v1558, 4294901760
        %v3681 = vsub.f32 %v1558, %v3680
        %3682 = vmatpush1.msra.mxu0 %v3681
        %v3683 = vand.u32 %v1555, 4294901760
        %v3684 = vsub.f32 %v1555, %v3683
        %3685 = vmatprep.subr.mxu0 %v3684
        %v3686 = vand.u32 %v1554, 4294901760
        %v3687 = vsub.f32 %v1554, %v3686
        %3688 = vmatpush1.msra.mxu0 %v3687
        %v3689 = vand.u32 %v1551, 4294901760
        %v3690 = vsub.f32 %v1551, %v3689
        %3691 = vmatprep.subr.mxu0 %v3690
        %v3692 = vand.u32 %v1550, 4294901760
        %v3693 = vsub.f32 %v1550, %v3692
        %3694 = vmatpush1.msra.mxu0 %v3693
        %v3695 = vand.u32 %v1547, 4294901760
        %v3696 = vsub.f32 %v1547, %v3695
        %3697 = vmatprep.subr.mxu0 %v3696
        %v3698 = vand.u32 %v1546, 4294901760
        %v3699 = vsub.f32 %v1546, %v3698
        %3700 = vmatpush1.msra.mxu0 %v3699
        %v3701 = vand.u32 %v1543, 4294901760
        %v3702 = vsub.f32 %v1543, %v3701
        %3703 = vmatprep.subr.mxu0 %v3702
        %v3704 = vand.u32 %v1542, 4294901760
        %v3705 = vsub.f32 %v1542, %v3704
        %3706 = vmatpush1.msra.mxu0 %v3705
        %v3707 = vand.u32 %v1539, 4294901760
        %v3708 = vsub.f32 %v1539, %v3707
        %3709 = vmatprep.subr.mxu0 %v3708
        %v3710 = vand.u32 %v1538, 4294901760
        %v3711 = vsub.f32 %v1538, %v3710
        %3712 = vmatpush1.msra.mxu0 %v3711
        %v3713 = vand.u32 %v1535, 4294901760
        %v3714 = vsub.f32 %v1535, %v3713
        %3715 = vmatprep.subr.mxu0 %v3714
        %v3716 = vand.u32 %v1534, 4294901760
        %v3717 = vsub.f32 %v1534, %v3716
        %3718 = vmatpush1.msra.mxu0 %v3717
        %v3719 = vand.u32 %v1531, 4294901760
        %v3720 = vsub.f32 %v1531, %v3719
        %3721 = vmatprep.subr.mxu0 %v3720
        %v3722 = vand.u32 %v1530, 4294901760
        %v3723 = vsub.f32 %v1530, %v3722
        %3724 = vmatpush1.msra.mxu0 %v3723
        %v3725 = vand.u32 %v1527, 4294901760
        %v3726 = vsub.f32 %v1527, %v3725
        %3727 = vmatprep.subr.mxu0 %v3726
        %v3728 = vand.u32 %v1526, 4294901760
        %v3729 = vsub.f32 %v1526, %v3728
        %3730 = vmatpush1.msra.mxu0 %v3729
        %v3731 = vand.u32 %v1523, 4294901760
        %v3732 = vsub.f32 %v1523, %v3731
        %3733 = vmatprep.subr.mxu0 %v3732
        %v3734 = vand.u32 %v1522, 4294901760
        %v3735 = vsub.f32 %v1522, %v3734
        %3736 = vmatpush1.msra.mxu0 %v3735
        %v3737 = vand.u32 %v1519, 4294901760
        %v3738 = vsub.f32 %v1519, %v3737
        %3739 = vmatprep.subr.mxu0 %v3738
        %v3740 = vand.u32 %v1518, 4294901760
        %v3741 = vsub.f32 %v1518, %v3740
        %3742 = vmatpush1.msra.mxu0 %v3741
        %v3743 = vand.u32 %v1515, 4294901760
        %v3744 = vsub.f32 %v1515, %v3743
        %3745 = vmatprep.subr.mxu0 %v3744
        %v3746 = vand.u32 %v1514, 4294901760
        %v3747 = vsub.f32 %v1514, %v3746
        %3748 = vmatpush1.msra.mxu0 %v3747
        %v3749 = vand.u32 %v1511, 4294901760
        %v3750 = vsub.f32 %v1511, %v3749
        %3751 = vmatprep.subr.mxu0 %v3750
        %v3752 = vand.u32 %v1510, 4294901760
        %v3753 = vsub.f32 %v1510, %v3752
        %3754 = vmatpush1.msra.mxu0 %v3753
        %3755 = vmatprep.subr.mxu0 0.0
        %3756 = vmatpush2.msra.mxu0 0.0
        %3757 = vmatprep.subr.mxu0 0.0
        %3758 = vmatpush2.msra.mxu0 0.0
        %3759 = vmatprep.subr.mxu0 0.0
        %3760 = vmatpush2.msra.mxu0 0.0
        %3761 = vmatprep.subr.mxu0 0.0
        %3762 = vmatpush2.msra.mxu0 0.0
        %3763 = vmatprep.subr.mxu0 0.0
        %3764 = vmatpush2.msra.mxu0 0.0
        %3765 = vmatprep.subr.mxu0 0.0
        %3766 = vmatpush2.msra.mxu0 0.0
        %3767 = vmatprep.subr.mxu0 0.0
        %3768 = vmatpush2.msra.mxu0 0.0
        %3769 = vmatprep.subr.mxu0 0.0
        %3770 = vmatpush2.msra.mxu0 0.0
        %3771 = vmatprep.subr.mxu0 0.0
        %3772 = vmatpush2.msra.mxu0 0.0
        %3773 = vmatprep.subr.mxu0 0.0
        %3774 = vmatpush2.msra.mxu0 0.0
        %3775 = vmatprep.subr.mxu0 0.0
        %3776 = vmatpush2.msra.mxu0 0.0
        %3777 = vmatprep.subr.mxu0 0.0
        %3778 = vmatpush2.msra.mxu0 0.0
        %3779 = vmatprep.subr.mxu0 0.0
        %3780 = vmatpush2.msra.mxu0 0.0
        %3781 = vmatprep.subr.mxu0 0.0
        %3782 = vmatpush2.msra.mxu0 0.0
        %3783 = vmatprep.subr.mxu0 0.0
        %3784 = vmatpush2.msra.mxu0 0.0
        %3785 = vmatprep.subr.mxu0 0.0
        %3786 = vmatpush2.msra.mxu0 0.0
        %3787 = vmatprep.mubr.f32.mxu0 0.0
        %v3788 = vand.u32 %v3311, 4294901760
        %v3789 = vsub.f32 %v3311, %v3788
        %3790 = vmatmul.mubr.f32.gmra.mxu0 %v3789
        %v3791 = vpop.f32.mrf.mxu0
        %v3792 = vadd.f32 %v3655, %v3791
        %v3793 = vpop.f32.mrf.mxu0
        %v3794 = vadd.f32 %v3657, %v3793
        %3795 = vdwg.mxu0
        %v3796 = vand.u32 %v1571, 4294901760
        %3797 = vmatprep.subr.mxu0 %v3796
        %v3798 = vand.u32 %v1570, 4294901760
        %3799 = vmatpush1.msra.mxu0 %v3798
        %v3800 = vand.u32 %v1567, 4294901760
        %3801 = vmatprep.subr.mxu0 %v3800
        %v3802 = vand.u32 %v1566, 4294901760
        %3803 = vmatpush1.msra.mxu0 %v3802
        %v3804 = vand.u32 %v1563, 4294901760
        %3805 = vmatprep.subr.mxu0 %v3804
        %v3806 = vand.u32 %v1562, 4294901760
        %3807 = vmatpush1.msra.mxu0 %v3806
        %v3808 = vand.u32 %v1559, 4294901760
        %3809 = vmatprep.subr.mxu0 %v3808
        %v3810 = vand.u32 %v1558, 4294901760
        %3811 = vmatpush1.msra.mxu0 %v3810
        %v3812 = vand.u32 %v1555, 4294901760
        %3813 = vmatprep.subr.mxu0 %v3812
        %v3814 = vand.u32 %v1554, 4294901760
        %3815 = vmatpush1.msra.mxu0 %v3814
        %v3816 = vand.u32 %v1551, 4294901760
        %3817 = vmatprep.subr.mxu0 %v3816
        %v3818 = vand.u32 %v1550, 4294901760
        %3819 = vmatpush1.msra.mxu0 %v3818
        %v3820 = vand.u32 %v1547, 4294901760
        %3821 = vmatprep.subr.mxu0 %v3820
        %v3822 = vand.u32 %v1546, 4294901760
        %3823 = vmatpush1.msra.mxu0 %v3822
        %v3824 = vand.u32 %v1543, 4294901760
        %3825 = vmatprep.subr.mxu0 %v3824
        %v3826 = vand.u32 %v1542, 4294901760
        %3827 = vmatpush1.msra.mxu0 %v3826
        %v3828 = vand.u32 %v1539, 4294901760
        %3829 = vmatprep.subr.mxu0 %v3828
        %v3830 = vand.u32 %v1538, 4294901760
        %3831 = vmatpush1.msra.mxu0 %v3830
        %v3832 = vand.u32 %v1535, 4294901760
        %3833 = vmatprep.subr.mxu0 %v3832
        %v3834 = vand.u32 %v1534, 4294901760
        %3835 = vmatpush1.msra.mxu0 %v3834
        %v3836 = vand.u32 %v1531, 4294901760
        %3837 = vmatprep.subr.mxu0 %v3836
        %v3838 = vand.u32 %v1530, 4294901760
        %3839 = vmatpush1.msra.mxu0 %v3838
        %v3840 = vand.u32 %v1527, 4294901760
        %3841 = vmatprep.subr.mxu0 %v3840
        %v3842 = vand.u32 %v1526, 4294901760
        %3843 = vmatpush1.msra.mxu0 %v3842
        %v3844 = vand.u32 %v1523, 4294901760
        %3845 = vmatprep.subr.mxu0 %v3844
        %v3846 = vand.u32 %v1522, 4294901760
        %3847 = vmatpush1.msra.mxu0 %v3846
        %v3848 = vand.u32 %v1519, 4294901760
        %3849 = vmatprep.subr.mxu0 %v3848
        %v3850 = vand.u32 %v1518, 4294901760
        %3851 = vmatpush1.msra.mxu0 %v3850
        %v3852 = vand.u32 %v1515, 4294901760
        %3853 = vmatprep.subr.mxu0 %v3852
        %v3854 = vand.u32 %v1514, 4294901760
        %3855 = vmatpush1.msra.mxu0 %v3854
        %v3856 = vand.u32 %v1511, 4294901760
        %3857 = vmatprep.subr.mxu0 %v3856
        %v3858 = vand.u32 %v1510, 4294901760
        %3859 = vmatpush1.msra.mxu0 %v3858
        %3860 = vmatprep.subr.mxu0 0.0
        %3861 = vmatpush2.msra.mxu0 0.0
        %3862 = vmatprep.subr.mxu0 0.0
        %3863 = vmatpush2.msra.mxu0 0.0
        %3864 = vmatprep.subr.mxu0 0.0
        %3865 = vmatpush2.msra.mxu0 0.0
        %3866 = vmatprep.subr.mxu0 0.0
        %3867 = vmatpush2.msra.mxu0 0.0
        %3868 = vmatprep.subr.mxu0 0.0
        %3869 = vmatpush2.msra.mxu0 0.0
        %3870 = vmatprep.subr.mxu0 0.0
        %3871 = vmatpush2.msra.mxu0 0.0
        %3872 = vmatprep.subr.mxu0 0.0
        %3873 = vmatpush2.msra.mxu0 0.0
        %3874 = vmatprep.subr.mxu0 0.0
        %3875 = vmatpush2.msra.mxu0 0.0
        %3876 = vmatprep.subr.mxu0 0.0
        %3877 = vmatpush2.msra.mxu0 0.0
        %3878 = vmatprep.subr.mxu0 0.0
        %3879 = vmatpush2.msra.mxu0 0.0
        %3880 = vmatprep.subr.mxu0 0.0
        %3881 = vmatpush2.msra.mxu0 0.0
        %3882 = vmatprep.subr.mxu0 0.0
        %3883 = vmatpush2.msra.mxu0 0.0
        %3884 = vmatprep.subr.mxu0 0.0
        %3885 = vmatpush2.msra.mxu0 0.0
        %3886 = vmatprep.subr.mxu0 0.0
        %3887 = vmatpush2.msra.mxu0 0.0
        %3888 = vmatprep.subr.mxu0 0.0
        %3889 = vmatpush2.msra.mxu0 0.0
        %3890 = vmatprep.subr.mxu0 0.0
        %3891 = vmatpush2.msra.mxu0 0.0
        %3892 = vmatprep.mubr.f32.mxu0 0.0
        %v3893 = vand.u32 %v3311, 4294901760
        %v3894 = vsub.f32 %v3311, %v3893
        %v3895 = vand.u32 %v3894, 4294901760
        %3896 = vmatmul.mubr.f32.gmra.mxu0 %v3895
        %v3897 = vpop.f32.mrf.mxu0
        %v3898 = vadd.f32 %v3792, %v3897
        %v3899 = vpop.f32.mrf.mxu0
        %v3900 = vadd.f32 %v3794, %v3899
        %3901 = vdwg.mxu0
        %v3902 = vand.u32 %v1571, 4294901760
        %v3903 = vsub.f32 %v1571, %v3902
        %v3904 = vand.u32 %v3903, 4294901760
        %3905 = vmatprep.subr.mxu0 %v3904
        %v3906 = vand.u32 %v1570, 4294901760
        %v3907 = vsub.f32 %v1570, %v3906
        %v3908 = vand.u32 %v3907, 4294901760
        %3909 = vmatpush1.msra.mxu0 %v3908
        %v3910 = vand.u32 %v1567, 4294901760
        %v3911 = vsub.f32 %v1567, %v3910
        %v3912 = vand.u32 %v3911, 4294901760
        %3913 = vmatprep.subr.mxu0 %v3912
        %v3914 = vand.u32 %v1566, 4294901760
        %v3915 = vsub.f32 %v1566, %v3914
        %v3916 = vand.u32 %v3915, 4294901760
        %3917 = vmatpush1.msra.mxu0 %v3916
        %v3918 = vand.u32 %v1563, 4294901760
        %v3919 = vsub.f32 %v1563, %v3918
        %v3920 = vand.u32 %v3919, 4294901760
        %3921 = vmatprep.subr.mxu0 %v3920
        %v3922 = vand.u32 %v1562, 4294901760
        %v3923 = vsub.f32 %v1562, %v3922
        %v3924 = vand.u32 %v3923, 4294901760
        %3925 = vmatpush1.msra.mxu0 %v3924
        %v3926 = vand.u32 %v1559, 4294901760
        %v3927 = vsub.f32 %v1559, %v3926
        %v3928 = vand.u32 %v3927, 4294901760
        %3929 = vmatprep.subr.mxu0 %v3928
        %v3930 = vand.u32 %v1558, 4294901760
        %v3931 = vsub.f32 %v1558, %v3930
        %v3932 = vand.u32 %v3931, 4294901760
        %3933 = vmatpush1.msra.mxu0 %v3932
        %v3934 = vand.u32 %v1555, 4294901760
        %v3935 = vsub.f32 %v1555, %v3934
        %v3936 = vand.u32 %v3935, 4294901760
        %3937 = vmatprep.subr.mxu0 %v3936
        %v3938 = vand.u32 %v1554, 4294901760
        %v3939 = vsub.f32 %v1554, %v3938
        %v3940 = vand.u32 %v3939, 4294901760
        %3941 = vmatpush1.msra.mxu0 %v3940
        %v3942 = vand.u32 %v1551, 4294901760
        %v3943 = vsub.f32 %v1551, %v3942
        %v3944 = vand.u32 %v3943, 4294901760
        %3945 = vmatprep.subr.mxu0 %v3944
        %v3946 = vand.u32 %v1550, 4294901760
        %v3947 = vsub.f32 %v1550, %v3946
        %v3948 = vand.u32 %v3947, 4294901760
        %3949 = vmatpush1.msra.mxu0 %v3948
        %v3950 = vand.u32 %v1547, 4294901760
        %v3951 = vsub.f32 %v1547, %v3950
        %v3952 = vand.u32 %v3951, 4294901760
        %3953 = vmatprep.subr.mxu0 %v3952
        %v3954 = vand.u32 %v1546, 4294901760
        %v3955 = vsub.f32 %v1546, %v3954
        %v3956 = vand.u32 %v3955, 4294901760
        %3957 = vmatpush1.msra.mxu0 %v3956
        %v3958 = vand.u32 %v1543, 4294901760
        %v3959 = vsub.f32 %v1543, %v3958
        %v3960 = vand.u32 %v3959, 4294901760
        %3961 = vmatprep.subr.mxu0 %v3960
        %v3962 = vand.u32 %v1542, 4294901760
        %v3963 = vsub.f32 %v1542, %v3962
        %v3964 = vand.u32 %v3963, 4294901760
        %3965 = vmatpush1.msra.mxu0 %v3964
        %v3966 = vand.u32 %v1539, 4294901760
        %v3967 = vsub.f32 %v1539, %v3966
        %v3968 = vand.u32 %v3967, 4294901760
        %3969 = vmatprep.subr.mxu0 %v3968
        %v3970 = vand.u32 %v1538, 4294901760
        %v3971 = vsub.f32 %v1538, %v3970
        %v3972 = vand.u32 %v3971, 4294901760
        %3973 = vmatpush1.msra.mxu0 %v3972
        %v3974 = vand.u32 %v1535, 4294901760
        %v3975 = vsub.f32 %v1535, %v3974
        %v3976 = vand.u32 %v3975, 4294901760
        %3977 = vmatprep.subr.mxu0 %v3976
        %v3978 = vand.u32 %v1534, 4294901760
        %v3979 = vsub.f32 %v1534, %v3978
        %v3980 = vand.u32 %v3979, 4294901760
        %3981 = vmatpush1.msra.mxu0 %v3980
        %v3982 = vand.u32 %v1531, 4294901760
        %v3983 = vsub.f32 %v1531, %v3982
        %v3984 = vand.u32 %v3983, 4294901760
        %3985 = vmatprep.subr.mxu0 %v3984
        %v3986 = vand.u32 %v1530, 4294901760
        %v3987 = vsub.f32 %v1530, %v3986
        %v3988 = vand.u32 %v3987, 4294901760
        %3989 = vmatpush1.msra.mxu0 %v3988
        %v3990 = vand.u32 %v1527, 4294901760
        %v3991 = vsub.f32 %v1527, %v3990
        %v3992 = vand.u32 %v3991, 4294901760
        %3993 = vmatprep.subr.mxu0 %v3992
        %v3994 = vand.u32 %v1526, 4294901760
        %v3995 = vsub.f32 %v1526, %v3994
        %v3996 = vand.u32 %v3995, 4294901760
        %3997 = vmatpush1.msra.mxu0 %v3996
        %v3998 = vand.u32 %v1523, 4294901760
        %v3999 = vsub.f32 %v1523, %v3998
        %v4000 = vand.u32 %v3999, 4294901760
        %4001 = vmatprep.subr.mxu0 %v4000
        %v4002 = vand.u32 %v1522, 4294901760
        %v4003 = vsub.f32 %v1522, %v4002
        %v4004 = vand.u32 %v4003, 4294901760
        %4005 = vmatpush1.msra.mxu0 %v4004
        %v4006 = vand.u32 %v1519, 4294901760
        %v4007 = vsub.f32 %v1519, %v4006
        %v4008 = vand.u32 %v4007, 4294901760
        %4009 = vmatprep.subr.mxu0 %v4008
        %v4010 = vand.u32 %v1518, 4294901760
        %v4011 = vsub.f32 %v1518, %v4010
        %v4012 = vand.u32 %v4011, 4294901760
        %4013 = vmatpush1.msra.mxu0 %v4012
        %v4014 = vand.u32 %v1515, 4294901760
        %v4015 = vsub.f32 %v1515, %v4014
        %v4016 = vand.u32 %v4015, 4294901760
        %4017 = vmatprep.subr.mxu0 %v4016
        %v4018 = vand.u32 %v1514, 4294901760
        %v4019 = vsub.f32 %v1514, %v4018
        %v4020 = vand.u32 %v4019, 4294901760
        %4021 = vmatpush1.msra.mxu0 %v4020
        %v4022 = vand.u32 %v1511, 4294901760
        %v4023 = vsub.f32 %v1511, %v4022
        %v4024 = vand.u32 %v4023, 4294901760
        %4025 = vmatprep.subr.mxu0 %v4024
        %v4026 = vand.u32 %v1510, 4294901760
        %v4027 = vsub.f32 %v1510, %v4026
        %v4028 = vand.u32 %v4027, 4294901760
        %4029 = vmatpush1.msra.mxu0 %v4028
        %4030 = vmatprep.subr.mxu0 0.0
        %4031 = vmatpush2.msra.mxu0 0.0
        %4032 = vmatprep.subr.mxu0 0.0
        %4033 = vmatpush2.msra.mxu0 0.0
        %4034 = vmatprep.subr.mxu0 0.0
        %4035 = vmatpush2.msra.mxu0 0.0
        %4036 = vmatprep.subr.mxu0 0.0
        %4037 = vmatpush2.msra.mxu0 0.0
        %4038 = vmatprep.subr.mxu0 0.0
        %4039 = vmatpush2.msra.mxu0 0.0
        %4040 = vmatprep.subr.mxu0 0.0
        %4041 = vmatpush2.msra.mxu0 0.0
        %4042 = vmatprep.subr.mxu0 0.0
        %4043 = vmatpush2.msra.mxu0 0.0
        %4044 = vmatprep.subr.mxu0 0.0
        %4045 = vmatpush2.msra.mxu0 0.0
        %4046 = vmatprep.subr.mxu0 0.0
        %4047 = vmatpush2.msra.mxu0 0.0
        %4048 = vmatprep.subr.mxu0 0.0
        %4049 = vmatpush2.msra.mxu0 0.0
        %4050 = vmatprep.subr.mxu0 0.0
        %4051 = vmatpush2.msra.mxu0 0.0
        %4052 = vmatprep.subr.mxu0 0.0
        %4053 = vmatpush2.msra.mxu0 0.0
        %4054 = vmatprep.subr.mxu0 0.0
        %4055 = vmatpush2.msra.mxu0 0.0
        %4056 = vmatprep.subr.mxu0 0.0
        %4057 = vmatpush2.msra.mxu0 0.0
        %4058 = vmatprep.subr.mxu0 0.0
        %4059 = vmatpush2.msra.mxu0 0.0
        %4060 = vmatprep.subr.mxu0 0.0
        %4061 = vmatpush2.msra.mxu0 0.0
        %4062 = vmatprep.mubr.f32.mxu0 0.0
        %v4063 = vand.u32 %v3311, 4294901760
        %4064 = vmatmul.mubr.f32.gmra.mxu0 %v4063
        %v4065 = vpop.f32.mrf.mxu0
        %v4066 = vadd.f32 %v3898, %v4065
        %v4067 = vpop.f32.mrf.mxu0
        %v4068 = vadd.f32 %v3900, %v4067
        %4069 = vdwg.mxu0
        %v4070 = vand.u32 %v1571, 4294901760
        %4071 = vmatprep.subr.mxu0 %v4070
        %v4072 = vand.u32 %v1570, 4294901760
        %4073 = vmatpush1.msra.mxu0 %v4072
        %v4074 = vand.u32 %v1567, 4294901760
        %4075 = vmatprep.subr.mxu0 %v4074
        %v4076 = vand.u32 %v1566, 4294901760
        %4077 = vmatpush1.msra.mxu0 %v4076
        %v4078 = vand.u32 %v1563, 4294901760
        %4079 = vmatprep.subr.mxu0 %v4078
        %v4080 = vand.u32 %v1562, 4294901760
        %4081 = vmatpush1.msra.mxu0 %v4080
        %v4082 = vand.u32 %v1559, 4294901760
        %4083 = vmatprep.subr.mxu0 %v4082
        %v4084 = vand.u32 %v1558, 4294901760
        %4085 = vmatpush1.msra.mxu0 %v4084
        %v4086 = vand.u32 %v1555, 4294901760
        %4087 = vmatprep.subr.mxu0 %v4086
        %v4088 = vand.u32 %v1554, 4294901760
        %4089 = vmatpush1.msra.mxu0 %v4088
        %v4090 = vand.u32 %v1551, 4294901760
        %4091 = vmatprep.subr.mxu0 %v4090
        %v4092 = vand.u32 %v1550, 4294901760
        %4093 = vmatpush1.msra.mxu0 %v4092
        %v4094 = vand.u32 %v1547, 4294901760
        %4095 = vmatprep.subr.mxu0 %v4094
        %v4096 = vand.u32 %v1546, 4294901760
        %4097 = vmatpush1.msra.mxu0 %v4096
        %v4098 = vand.u32 %v1543, 4294901760
        %4099 = vmatprep.subr.mxu0 %v4098
        %v4100 = vand.u32 %v1542, 4294901760
        %4101 = vmatpush1.msra.mxu0 %v4100
        %v4102 = vand.u32 %v1539, 4294901760
        %4103 = vmatprep.subr.mxu0 %v4102
        %v4104 = vand.u32 %v1538, 4294901760
        %4105 = vmatpush1.msra.mxu0 %v4104
        %v4106 = vand.u32 %v1535, 4294901760
        %4107 = vmatprep.subr.mxu0 %v4106
        %v4108 = vand.u32 %v1534, 4294901760
        %4109 = vmatpush1.msra.mxu0 %v4108
        %v4110 = vand.u32 %v1531, 4294901760
        %4111 = vmatprep.subr.mxu0 %v4110
        %v4112 = vand.u32 %v1530, 4294901760
        %4113 = vmatpush1.msra.mxu0 %v4112
        %v4114 = vand.u32 %v1527, 4294901760
        %4115 = vmatprep.subr.mxu0 %v4114
        %v4116 = vand.u32 %v1526, 4294901760
        %4117 = vmatpush1.msra.mxu0 %v4116
        %v4118 = vand.u32 %v1523, 4294901760
        %4119 = vmatprep.subr.mxu0 %v4118
        %v4120 = vand.u32 %v1522, 4294901760
        %4121 = vmatpush1.msra.mxu0 %v4120
        %v4122 = vand.u32 %v1519, 4294901760
        %4123 = vmatprep.subr.mxu0 %v4122
        %v4124 = vand.u32 %v1518, 4294901760
        %4125 = vmatpush1.msra.mxu0 %v4124
        %v4126 = vand.u32 %v1515, 4294901760
        %4127 = vmatprep.subr.mxu0 %v4126
        %v4128 = vand.u32 %v1514, 4294901760
        %4129 = vmatpush1.msra.mxu0 %v4128
        %v4130 = vand.u32 %v1511, 4294901760
        %4131 = vmatprep.subr.mxu0 %v4130
        %v4132 = vand.u32 %v1510, 4294901760
        %4133 = vmatpush1.msra.mxu0 %v4132
        %4134 = vmatprep.subr.mxu0 0.0
        %4135 = vmatpush2.msra.mxu0 0.0
        %4136 = vmatprep.subr.mxu0 0.0
        %4137 = vmatpush2.msra.mxu0 0.0
        %4138 = vmatprep.subr.mxu0 0.0
        %4139 = vmatpush2.msra.mxu0 0.0
        %4140 = vmatprep.subr.mxu0 0.0
        %4141 = vmatpush2.msra.mxu0 0.0
        %4142 = vmatprep.subr.mxu0 0.0
        %4143 = vmatpush2.msra.mxu0 0.0
        %4144 = vmatprep.subr.mxu0 0.0
        %4145 = vmatpush2.msra.mxu0 0.0
        %4146 = vmatprep.subr.mxu0 0.0
        %4147 = vmatpush2.msra.mxu0 0.0
        %4148 = vmatprep.subr.mxu0 0.0
        %4149 = vmatpush2.msra.mxu0 0.0
        %4150 = vmatprep.subr.mxu0 0.0
        %4151 = vmatpush2.msra.mxu0 0.0
        %4152 = vmatprep.subr.mxu0 0.0
        %4153 = vmatpush2.msra.mxu0 0.0
        %4154 = vmatprep.subr.mxu0 0.0
        %4155 = vmatpush2.msra.mxu0 0.0
        %4156 = vmatprep.subr.mxu0 0.0
        %4157 = vmatpush2.msra.mxu0 0.0
        %4158 = vmatprep.subr.mxu0 0.0
        %4159 = vmatpush2.msra.mxu0 0.0
        %4160 = vmatprep.subr.mxu0 0.0
        %4161 = vmatpush2.msra.mxu0 0.0
        %4162 = vmatprep.subr.mxu0 0.0
        %4163 = vmatpush2.msra.mxu0 0.0
        %4164 = vmatprep.subr.mxu0 0.0
        %4165 = vmatpush2.msra.mxu0 0.0
        %4166 = vmatprep.mubr.f32.mxu0 0.0
        %v4167 = vand.u32 %v3311, 4294901760
        %4168 = vmatmul.mubr.f32.gmra.mxu0 %v4167
        %v4169 = vpop.f32.mrf.mxu0
        %v4170 = vadd.f32 %v4066, %v4169
        %v4171 = vpop.f32.mrf.mxu0
        %v4172 = vadd.f32 %v4068, %v4171
        %4173 = vdwg.mxu0
        %v4174 = vand.u32 %v1573, 4294901760
        %4175 = vmatprep.subr.mxu0 %v4174
        %v4176 = vand.u32 %v1572, 4294901760
        %4177 = vmatpush1.msra.mxu0 %v4176
        %v4178 = vand.u32 %v1569, 4294901760
        %4179 = vmatprep.subr.mxu0 %v4178
        %v4180 = vand.u32 %v1568, 4294901760
        %4181 = vmatpush1.msra.mxu0 %v4180
        %v4182 = vand.u32 %v1565, 4294901760
        %4183 = vmatprep.subr.mxu0 %v4182
        %v4184 = vand.u32 %v1564, 4294901760
        %4185 = vmatpush1.msra.mxu0 %v4184
        %v4186 = vand.u32 %v1561, 4294901760
        %4187 = vmatprep.subr.mxu0 %v4186
        %v4188 = vand.u32 %v1560, 4294901760
        %4189 = vmatpush1.msra.mxu0 %v4188
        %v4190 = vand.u32 %v1557, 4294901760
        %4191 = vmatprep.subr.mxu0 %v4190
        %v4192 = vand.u32 %v1556, 4294901760
        %4193 = vmatpush1.msra.mxu0 %v4192
        %v4194 = vand.u32 %v1553, 4294901760
        %4195 = vmatprep.subr.mxu0 %v4194
        %v4196 = vand.u32 %v1552, 4294901760
        %4197 = vmatpush1.msra.mxu0 %v4196
        %v4198 = vand.u32 %v1549, 4294901760
        %4199 = vmatprep.subr.mxu0 %v4198
        %v4200 = vand.u32 %v1548, 4294901760
        %4201 = vmatpush1.msra.mxu0 %v4200
        %v4202 = vand.u32 %v1545, 4294901760
        %4203 = vmatprep.subr.mxu0 %v4202
        %v4204 = vand.u32 %v1544, 4294901760
        %4205 = vmatpush1.msra.mxu0 %v4204
        %v4206 = vand.u32 %v1541, 4294901760
        %4207 = vmatprep.subr.mxu0 %v4206
        %v4208 = vand.u32 %v1540, 4294901760
        %4209 = vmatpush1.msra.mxu0 %v4208
        %v4210 = vand.u32 %v1537, 4294901760
        %4211 = vmatprep.subr.mxu0 %v4210
        %v4212 = vand.u32 %v1536, 4294901760
        %4213 = vmatpush1.msra.mxu0 %v4212
        %v4214 = vand.u32 %v1533, 4294901760
        %4215 = vmatprep.subr.mxu0 %v4214
        %v4216 = vand.u32 %v1532, 4294901760
        %4217 = vmatpush1.msra.mxu0 %v4216
        %v4218 = vand.u32 %v1529, 4294901760
        %4219 = vmatprep.subr.mxu0 %v4218
        %v4220 = vand.u32 %v1528, 4294901760
        %4221 = vmatpush1.msra.mxu0 %v4220
        %v4222 = vand.u32 %v1525, 4294901760
        %4223 = vmatprep.subr.mxu0 %v4222
        %v4224 = vand.u32 %v1524, 4294901760
        %4225 = vmatpush1.msra.mxu0 %v4224
        %v4226 = vand.u32 %v1521, 4294901760
        %4227 = vmatprep.subr.mxu0 %v4226
        %v4228 = vand.u32 %v1520, 4294901760
        %4229 = vmatpush1.msra.mxu0 %v4228
        %v4230 = vand.u32 %v1517, 4294901760
        %4231 = vmatprep.subr.mxu0 %v4230
        %v4232 = vand.u32 %v1516, 4294901760
        %4233 = vmatpush1.msra.mxu0 %v4232
        %v4234 = vand.u32 %v1513, 4294901760
        %4235 = vmatprep.subr.mxu0 %v4234
        %v4236 = vand.u32 %v1512, 4294901760
        %4237 = vmatpush1.msra.mxu0 %v4236
        %4238 = vmatprep.subr.mxu0 0.0
        %4239 = vmatpush2.msra.mxu0 0.0
        %4240 = vmatprep.subr.mxu0 0.0
        %4241 = vmatpush2.msra.mxu0 0.0
        %4242 = vmatprep.subr.mxu0 0.0
        %4243 = vmatpush2.msra.mxu0 0.0
        %4244 = vmatprep.subr.mxu0 0.0
        %4245 = vmatpush2.msra.mxu0 0.0
        %4246 = vmatprep.subr.mxu0 0.0
        %4247 = vmatpush2.msra.mxu0 0.0
        %4248 = vmatprep.subr.mxu0 0.0
        %4249 = vmatpush2.msra.mxu0 0.0
        %4250 = vmatprep.subr.mxu0 0.0
        %4251 = vmatpush2.msra.mxu0 0.0
        %4252 = vmatprep.subr.mxu0 0.0
        %4253 = vmatpush2.msra.mxu0 0.0
        %4254 = vmatprep.subr.mxu0 0.0
        %4255 = vmatpush2.msra.mxu0 0.0
        %4256 = vmatprep.subr.mxu0 0.0
        %4257 = vmatpush2.msra.mxu0 0.0
        %4258 = vmatprep.subr.mxu0 0.0
        %4259 = vmatpush2.msra.mxu0 0.0
        %4260 = vmatprep.subr.mxu0 0.0
        %4261 = vmatpush2.msra.mxu0 0.0
        %4262 = vmatprep.subr.mxu0 0.0
        %4263 = vmatpush2.msra.mxu0 0.0
        %4264 = vmatprep.subr.mxu0 0.0
        %4265 = vmatpush2.msra.mxu0 0.0
        %4266 = vmatprep.subr.mxu0 0.0
        %4267 = vmatpush2.msra.mxu0 0.0
        %4268 = vmatprep.subr.mxu0 0.0
        %4269 = vmatpush2.msra.mxu0 0.0
        %4270 = vmatprep.mubr.f32.mxu0 0.0
        %v4271 = vand.u32 %v3311, 4294901760
        %v4272 = vsub.f32 %v3311, %v4271
        %v4273 = vand.u32 %v4272, 4294901760
        %v4274 = vsub.f32 %v4272, %v4273
        %v4275 = vand.u32 %v4274, 4294901760
        %4276 = vmatmul.mubr.f32.gmra.mxu0 %v4275
        %v4277 = vpop.f32.mrf.mxu0
        %v4278 = vadd.f32 0.0, %v4277
        %v4279 = vpop.f32.mrf.mxu0
        %v4280 = vadd.f32 0.0, %v4279
        %4281 = vdwg.mxu0
        %v4282 = vand.u32 %v1573, 4294901760
        %v4283 = vsub.f32 %v1573, %v4282
        %v4284 = vand.u32 %v4283, 4294901760
        %v4285 = vsub.f32 %v4283, %v4284
        %v4286 = vand.u32 %v4285, 4294901760
        %4287 = vmatprep.subr.mxu0 %v4286
        %v4288 = vand.u32 %v1572, 4294901760
        %v4289 = vsub.f32 %v1572, %v4288
        %v4290 = vand.u32 %v4289, 4294901760
        %v4291 = vsub.f32 %v4289, %v4290
        %v4292 = vand.u32 %v4291, 4294901760
        %4293 = vmatpush1.msra.mxu0 %v4292
        %v4294 = vand.u32 %v1569, 4294901760
        %v4295 = vsub.f32 %v1569, %v4294
        %v4296 = vand.u32 %v4295, 4294901760
        %v4297 = vsub.f32 %v4295, %v4296
        %v4298 = vand.u32 %v4297, 4294901760
        %4299 = vmatprep.subr.mxu0 %v4298
        %v4300 = vand.u32 %v1568, 4294901760
        %v4301 = vsub.f32 %v1568, %v4300
        %v4302 = vand.u32 %v4301, 4294901760
        %v4303 = vsub.f32 %v4301, %v4302
        %v4304 = vand.u32 %v4303, 4294901760
        %4305 = vmatpush1.msra.mxu0 %v4304
        %v4306 = vand.u32 %v1565, 4294901760
        %v4307 = vsub.f32 %v1565, %v4306
        %v4308 = vand.u32 %v4307, 4294901760
        %v4309 = vsub.f32 %v4307, %v4308
        %v4310 = vand.u32 %v4309, 4294901760
        %4311 = vmatprep.subr.mxu0 %v4310
        %v4312 = vand.u32 %v1564, 4294901760
        %v4313 = vsub.f32 %v1564, %v4312
        %v4314 = vand.u32 %v4313, 4294901760
        %v4315 = vsub.f32 %v4313, %v4314
        %v4316 = vand.u32 %v4315, 4294901760
        %4317 = vmatpush1.msra.mxu0 %v4316
        %v4318 = vand.u32 %v1561, 4294901760
        %v4319 = vsub.f32 %v1561, %v4318
        %v4320 = vand.u32 %v4319, 4294901760
        %v4321 = vsub.f32 %v4319, %v4320
        %v4322 = vand.u32 %v4321, 4294901760
        %4323 = vmatprep.subr.mxu0 %v4322
        %v4324 = vand.u32 %v1560, 4294901760
        %v4325 = vsub.f32 %v1560, %v4324
        %v4326 = vand.u32 %v4325, 4294901760
        %v4327 = vsub.f32 %v4325, %v4326
        %v4328 = vand.u32 %v4327, 4294901760
        %4329 = vmatpush1.msra.mxu0 %v4328
        %v4330 = vand.u32 %v1557, 4294901760
        %v4331 = vsub.f32 %v1557, %v4330
        %v4332 = vand.u32 %v4331, 4294901760
        %v4333 = vsub.f32 %v4331, %v4332
        %v4334 = vand.u32 %v4333, 4294901760
        %4335 = vmatprep.subr.mxu0 %v4334
        %v4336 = vand.u32 %v1556, 4294901760
        %v4337 = vsub.f32 %v1556, %v4336
        %v4338 = vand.u32 %v4337, 4294901760
        %v4339 = vsub.f32 %v4337, %v4338
        %v4340 = vand.u32 %v4339, 4294901760
        %4341 = vmatpush1.msra.mxu0 %v4340
        %v4342 = vand.u32 %v1553, 4294901760
        %v4343 = vsub.f32 %v1553, %v4342
        %v4344 = vand.u32 %v4343, 4294901760
        %v4345 = vsub.f32 %v4343, %v4344
        %v4346 = vand.u32 %v4345, 4294901760
        %4347 = vmatprep.subr.mxu0 %v4346
        %v4348 = vand.u32 %v1552, 4294901760
        %v4349 = vsub.f32 %v1552, %v4348
        %v4350 = vand.u32 %v4349, 4294901760
        %v4351 = vsub.f32 %v4349, %v4350
        %v4352 = vand.u32 %v4351, 4294901760
        %4353 = vmatpush1.msra.mxu0 %v4352
        %v4354 = vand.u32 %v1549, 4294901760
        %v4355 = vsub.f32 %v1549, %v4354
        %v4356 = vand.u32 %v4355, 4294901760
        %v4357 = vsub.f32 %v4355, %v4356
        %v4358 = vand.u32 %v4357, 4294901760
        %4359 = vmatprep.subr.mxu0 %v4358
        %v4360 = vand.u32 %v1548, 4294901760
        %v4361 = vsub.f32 %v1548, %v4360
        %v4362 = vand.u32 %v4361, 4294901760
        %v4363 = vsub.f32 %v4361, %v4362
        %v4364 = vand.u32 %v4363, 4294901760
        %4365 = vmatpush1.msra.mxu0 %v4364
        %v4366 = vand.u32 %v1545, 4294901760
        %v4367 = vsub.f32 %v1545, %v4366
        %v4368 = vand.u32 %v4367, 4294901760
        %v4369 = vsub.f32 %v4367, %v4368
        %v4370 = vand.u32 %v4369, 4294901760
        %4371 = vmatprep.subr.mxu0 %v4370
        %v4372 = vand.u32 %v1544, 4294901760
        %v4373 = vsub.f32 %v1544, %v4372
        %v4374 = vand.u32 %v4373, 4294901760
        %v4375 = vsub.f32 %v4373, %v4374
        %v4376 = vand.u32 %v4375, 4294901760
        %4377 = vmatpush1.msra.mxu0 %v4376
        %v4378 = vand.u32 %v1541, 4294901760
        %v4379 = vsub.f32 %v1541, %v4378
        %v4380 = vand.u32 %v4379, 4294901760
        %v4381 = vsub.f32 %v4379, %v4380
        %v4382 = vand.u32 %v4381, 4294901760
        %4383 = vmatprep.subr.mxu0 %v4382
        %v4384 = vand.u32 %v1540, 4294901760
        %v4385 = vsub.f32 %v1540, %v4384
        %v4386 = vand.u32 %v4385, 4294901760
        %v4387 = vsub.f32 %v4385, %v4386
        %v4388 = vand.u32 %v4387, 4294901760
        %4389 = vmatpush1.msra.mxu0 %v4388
        %v4390 = vand.u32 %v1537, 4294901760
        %v4391 = vsub.f32 %v1537, %v4390
        %v4392 = vand.u32 %v4391, 4294901760
        %v4393 = vsub.f32 %v4391, %v4392
        %v4394 = vand.u32 %v4393, 4294901760
        %4395 = vmatprep.subr.mxu0 %v4394
        %v4396 = vand.u32 %v1536, 4294901760
        %v4397 = vsub.f32 %v1536, %v4396
        %v4398 = vand.u32 %v4397, 4294901760
        %v4399 = vsub.f32 %v4397, %v4398
        %v4400 = vand.u32 %v4399, 4294901760
        %4401 = vmatpush1.msra.mxu0 %v4400
        %v4402 = vand.u32 %v1533, 4294901760
        %v4403 = vsub.f32 %v1533, %v4402
        %v4404 = vand.u32 %v4403, 4294901760
        %v4405 = vsub.f32 %v4403, %v4404
        %v4406 = vand.u32 %v4405, 4294901760
        %4407 = vmatprep.subr.mxu0 %v4406
        %v4408 = vand.u32 %v1532, 4294901760
        %v4409 = vsub.f32 %v1532, %v4408
        %v4410 = vand.u32 %v4409, 4294901760
        %v4411 = vsub.f32 %v4409, %v4410
        %v4412 = vand.u32 %v4411, 4294901760
        %4413 = vmatpush1.msra.mxu0 %v4412
        %v4414 = vand.u32 %v1529, 4294901760
        %v4415 = vsub.f32 %v1529, %v4414
        %v4416 = vand.u32 %v4415, 4294901760
        %v4417 = vsub.f32 %v4415, %v4416
        %v4418 = vand.u32 %v4417, 4294901760
        %4419 = vmatprep.subr.mxu0 %v4418
        %v4420 = vand.u32 %v1528, 4294901760
        %v4421 = vsub.f32 %v1528, %v4420
        %v4422 = vand.u32 %v4421, 4294901760
        %v4423 = vsub.f32 %v4421, %v4422
        %v4424 = vand.u32 %v4423, 4294901760
        %4425 = vmatpush1.msra.mxu0 %v4424
        %v4426 = vand.u32 %v1525, 4294901760
        %v4427 = vsub.f32 %v1525, %v4426
        %v4428 = vand.u32 %v4427, 4294901760
        %v4429 = vsub.f32 %v4427, %v4428
        %v4430 = vand.u32 %v4429, 4294901760
        %4431 = vmatprep.subr.mxu0 %v4430
        %v4432 = vand.u32 %v1524, 4294901760
        %v4433 = vsub.f32 %v1524, %v4432
        %v4434 = vand.u32 %v4433, 4294901760
        %v4435 = vsub.f32 %v4433, %v4434
        %v4436 = vand.u32 %v4435, 4294901760
        %4437 = vmatpush1.msra.mxu0 %v4436
        %v4438 = vand.u32 %v1521, 4294901760
        %v4439 = vsub.f32 %v1521, %v4438
        %v4440 = vand.u32 %v4439, 4294901760
        %v4441 = vsub.f32 %v4439, %v4440
        %v4442 = vand.u32 %v4441, 4294901760
        %4443 = vmatprep.subr.mxu0 %v4442
        %v4444 = vand.u32 %v1520, 4294901760
        %v4445 = vsub.f32 %v1520, %v4444
        %v4446 = vand.u32 %v4445, 4294901760
        %v4447 = vsub.f32 %v4445, %v4446
        %v4448 = vand.u32 %v4447, 4294901760
        %4449 = vmatpush1.msra.mxu0 %v4448
        %v4450 = vand.u32 %v1517, 4294901760
        %v4451 = vsub.f32 %v1517, %v4450
        %v4452 = vand.u32 %v4451, 4294901760
        %v4453 = vsub.f32 %v4451, %v4452
        %v4454 = vand.u32 %v4453, 4294901760
        %4455 = vmatprep.subr.mxu0 %v4454
        %v4456 = vand.u32 %v1516, 4294901760
        %v4457 = vsub.f32 %v1516, %v4456
        %v4458 = vand.u32 %v4457, 4294901760
        %v4459 = vsub.f32 %v4457, %v4458
        %v4460 = vand.u32 %v4459, 4294901760
        %4461 = vmatpush1.msra.mxu0 %v4460
        %v4462 = vand.u32 %v1513, 4294901760
        %v4463 = vsub.f32 %v1513, %v4462
        %v4464 = vand.u32 %v4463, 4294901760
        %v4465 = vsub.f32 %v4463, %v4464
        %v4466 = vand.u32 %v4465, 4294901760
        %4467 = vmatprep.subr.mxu0 %v4466
        %v4468 = vand.u32 %v1512, 4294901760
        %v4469 = vsub.f32 %v1512, %v4468
        %v4470 = vand.u32 %v4469, 4294901760
        %v4471 = vsub.f32 %v4469, %v4470
        %v4472 = vand.u32 %v4471, 4294901760
        %4473 = vmatpush1.msra.mxu0 %v4472
        %4474 = vmatprep.subr.mxu0 0.0
        %4475 = vmatpush2.msra.mxu0 0.0
        %4476 = vmatprep.subr.mxu0 0.0
        %4477 = vmatpush2.msra.mxu0 0.0
        %4478 = vmatprep.subr.mxu0 0.0
        %4479 = vmatpush2.msra.mxu0 0.0
        %4480 = vmatprep.subr.mxu0 0.0
        %4481 = vmatpush2.msra.mxu0 0.0
        %4482 = vmatprep.subr.mxu0 0.0
        %4483 = vmatpush2.msra.mxu0 0.0
        %4484 = vmatprep.subr.mxu0 0.0
        %4485 = vmatpush2.msra.mxu0 0.0
        %4486 = vmatprep.subr.mxu0 0.0
        %4487 = vmatpush2.msra.mxu0 0.0
        %4488 = vmatprep.subr.mxu0 0.0
        %4489 = vmatpush2.msra.mxu0 0.0
        %4490 = vmatprep.subr.mxu0 0.0
        %4491 = vmatpush2.msra.mxu0 0.0
        %4492 = vmatprep.subr.mxu0 0.0
        %4493 = vmatpush2.msra.mxu0 0.0
        %4494 = vmatprep.subr.mxu0 0.0
        %4495 = vmatpush2.msra.mxu0 0.0
        %4496 = vmatprep.subr.mxu0 0.0
        %4497 = vmatpush2.msra.mxu0 0.0
        %4498 = vmatprep.subr.mxu0 0.0
        %4499 = vmatpush2.msra.mxu0 0.0
        %4500 = vmatprep.subr.mxu0 0.0
        %4501 = vmatpush2.msra.mxu0 0.0
        %4502 = vmatprep.subr.mxu0 0.0
        %4503 = vmatpush2.msra.mxu0 0.0
        %4504 = vmatprep.subr.mxu0 0.0
        %4505 = vmatpush2.msra.mxu0 0.0
        %4506 = vmatprep.mubr.f32.mxu0 0.0
        %v4507 = vand.u32 %v3311, 4294901760
        %4508 = vmatmul.mubr.f32.gmra.mxu0 %v4507
        %v4509 = vpop.f32.mrf.mxu0
        %v4510 = vadd.f32 %v4278, %v4509
        %v4511 = vpop.f32.mrf.mxu0
        %v4512 = vadd.f32 %v4280, %v4511
        %4513 = vdwg.mxu0
        %v4514 = vand.u32 %v1573, 4294901760
        %v4515 = vsub.f32 %v1573, %v4514
        %4516 = vmatprep.subr.mxu0 %v4515
        %v4517 = vand.u32 %v1572, 4294901760
        %v4518 = vsub.f32 %v1572, %v4517
        %4519 = vmatpush1.msra.mxu0 %v4518
        %v4520 = vand.u32 %v1569, 4294901760
        %v4521 = vsub.f32 %v1569, %v4520
        %4522 = vmatprep.subr.mxu0 %v4521
        %v4523 = vand.u32 %v1568, 4294901760
        %v4524 = vsub.f32 %v1568, %v4523
        %4525 = vmatpush1.msra.mxu0 %v4524
        %v4526 = vand.u32 %v1565, 4294901760
        %v4527 = vsub.f32 %v1565, %v4526
        %4528 = vmatprep.subr.mxu0 %v4527
        %v4529 = vand.u32 %v1564, 4294901760
        %v4530 = vsub.f32 %v1564, %v4529
        %4531 = vmatpush1.msra.mxu0 %v4530
        %v4532 = vand.u32 %v1561, 4294901760
        %v4533 = vsub.f32 %v1561, %v4532
        %4534 = vmatprep.subr.mxu0 %v4533
        %v4535 = vand.u32 %v1560, 4294901760
        %v4536 = vsub.f32 %v1560, %v4535
        %4537 = vmatpush1.msra.mxu0 %v4536
        %v4538 = vand.u32 %v1557, 4294901760
        %v4539 = vsub.f32 %v1557, %v4538
        %4540 = vmatprep.subr.mxu0 %v4539
        %v4541 = vand.u32 %v1556, 4294901760
        %v4542 = vsub.f32 %v1556, %v4541
        %4543 = vmatpush1.msra.mxu0 %v4542
        %v4544 = vand.u32 %v1553, 4294901760
        %v4545 = vsub.f32 %v1553, %v4544
        %4546 = vmatprep.subr.mxu0 %v4545
        %v4547 = vand.u32 %v1552, 4294901760
        %v4548 = vsub.f32 %v1552, %v4547
        %4549 = vmatpush1.msra.mxu0 %v4548
        %v4550 = vand.u32 %v1549, 4294901760
        %v4551 = vsub.f32 %v1549, %v4550
        %4552 = vmatprep.subr.mxu0 %v4551
        %v4553 = vand.u32 %v1548, 4294901760
        %v4554 = vsub.f32 %v1548, %v4553
        %4555 = vmatpush1.msra.mxu0 %v4554
        %v4556 = vand.u32 %v1545, 4294901760
        %v4557 = vsub.f32 %v1545, %v4556
        %4558 = vmatprep.subr.mxu0 %v4557
        %v4559 = vand.u32 %v1544, 4294901760
        %v4560 = vsub.f32 %v1544, %v4559
        %4561 = vmatpush1.msra.mxu0 %v4560
        %v4562 = vand.u32 %v1541, 4294901760
        %v4563 = vsub.f32 %v1541, %v4562
        %4564 = vmatprep.subr.mxu0 %v4563
        %v4565 = vand.u32 %v1540, 4294901760
        %v4566 = vsub.f32 %v1540, %v4565
        %4567 = vmatpush1.msra.mxu0 %v4566
        %v4568 = vand.u32 %v1537, 4294901760
        %v4569 = vsub.f32 %v1537, %v4568
        %4570 = vmatprep.subr.mxu0 %v4569
        %v4571 = vand.u32 %v1536, 4294901760
        %v4572 = vsub.f32 %v1536, %v4571
        %4573 = vmatpush1.msra.mxu0 %v4572
        %v4574 = vand.u32 %v1533, 4294901760
        %v4575 = vsub.f32 %v1533, %v4574
        %4576 = vmatprep.subr.mxu0 %v4575
        %v4577 = vand.u32 %v1532, 4294901760
        %v4578 = vsub.f32 %v1532, %v4577
        %4579 = vmatpush1.msra.mxu0 %v4578
        %v4580 = vand.u32 %v1529, 4294901760
        %v4581 = vsub.f32 %v1529, %v4580
        %4582 = vmatprep.subr.mxu0 %v4581
        %v4583 = vand.u32 %v1528, 4294901760
        %v4584 = vsub.f32 %v1528, %v4583
        %4585 = vmatpush1.msra.mxu0 %v4584
        %v4586 = vand.u32 %v1525, 4294901760
        %v4587 = vsub.f32 %v1525, %v4586
        %4588 = vmatprep.subr.mxu0 %v4587
        %v4589 = vand.u32 %v1524, 4294901760
        %v4590 = vsub.f32 %v1524, %v4589
        %4591 = vmatpush1.msra.mxu0 %v4590
        %v4592 = vand.u32 %v1521, 4294901760
        %v4593 = vsub.f32 %v1521, %v4592
        %4594 = vmatprep.subr.mxu0 %v4593
        %v4595 = vand.u32 %v1520, 4294901760
        %v4596 = vsub.f32 %v1520, %v4595
        %4597 = vmatpush1.msra.mxu0 %v4596
        %v4598 = vand.u32 %v1517, 4294901760
        %v4599 = vsub.f32 %v1517, %v4598
        %4600 = vmatprep.subr.mxu0 %v4599
        %v4601 = vand.u32 %v1516, 4294901760
        %v4602 = vsub.f32 %v1516, %v4601
        %4603 = vmatpush1.msra.mxu0 %v4602
        %v4604 = vand.u32 %v1513, 4294901760
        %v4605 = vsub.f32 %v1513, %v4604
        %4606 = vmatprep.subr.mxu0 %v4605
        %v4607 = vand.u32 %v1512, 4294901760
        %v4608 = vsub.f32 %v1512, %v4607
        %4609 = vmatpush1.msra.mxu0 %v4608
        %4610 = vmatprep.subr.mxu0 0.0
        %4611 = vmatpush2.msra.mxu0 0.0
        %4612 = vmatprep.subr.mxu0 0.0
        %4613 = vmatpush2.msra.mxu0 0.0
        %4614 = vmatprep.subr.mxu0 0.0
        %4615 = vmatpush2.msra.mxu0 0.0
        %4616 = vmatprep.subr.mxu0 0.0
        %4617 = vmatpush2.msra.mxu0 0.0
        %4618 = vmatprep.subr.mxu0 0.0
        %4619 = vmatpush2.msra.mxu0 0.0
        %4620 = vmatprep.subr.mxu0 0.0
        %4621 = vmatpush2.msra.mxu0 0.0
        %4622 = vmatprep.subr.mxu0 0.0
        %4623 = vmatpush2.msra.mxu0 0.0
        %4624 = vmatprep.subr.mxu0 0.0
        %4625 = vmatpush2.msra.mxu0 0.0
        %4626 = vmatprep.subr.mxu0 0.0
        %4627 = vmatpush2.msra.mxu0 0.0
        %4628 = vmatprep.subr.mxu0 0.0
        %4629 = vmatpush2.msra.mxu0 0.0
        %4630 = vmatprep.subr.mxu0 0.0
        %4631 = vmatpush2.msra.mxu0 0.0
        %4632 = vmatprep.subr.mxu0 0.0
        %4633 = vmatpush2.msra.mxu0 0.0
        %4634 = vmatprep.subr.mxu0 0.0
        %4635 = vmatpush2.msra.mxu0 0.0
        %4636 = vmatprep.subr.mxu0 0.0
        %4637 = vmatpush2.msra.mxu0 0.0
        %4638 = vmatprep.subr.mxu0 0.0
        %4639 = vmatpush2.msra.mxu0 0.0
        %4640 = vmatprep.subr.mxu0 0.0
        %4641 = vmatpush2.msra.mxu0 0.0
        %4642 = vmatprep.mubr.f32.mxu0 0.0
        %v4643 = vand.u32 %v3311, 4294901760
        %v4644 = vsub.f32 %v3311, %v4643
        %4645 = vmatmul.mubr.f32.gmra.mxu0 %v4644
        %v4646 = vpop.f32.mrf.mxu0
        %v4647 = vadd.f32 %v4510, %v4646
        %v4648 = vpop.f32.mrf.mxu0
        %v4649 = vadd.f32 %v4512, %v4648
        %4650 = vdwg.mxu0
        %v4651 = vand.u32 %v1573, 4294901760
        %4652 = vmatprep.subr.mxu0 %v4651
        %v4653 = vand.u32 %v1572, 4294901760
        %4654 = vmatpush1.msra.mxu0 %v4653
        %v4655 = vand.u32 %v1569, 4294901760
        %4656 = vmatprep.subr.mxu0 %v4655
        %v4657 = vand.u32 %v1568, 4294901760
        %4658 = vmatpush1.msra.mxu0 %v4657
        %v4659 = vand.u32 %v1565, 4294901760
        %4660 = vmatprep.subr.mxu0 %v4659
        %v4661 = vand.u32 %v1564, 4294901760
        %4662 = vmatpush1.msra.mxu0 %v4661
        %v4663 = vand.u32 %v1561, 4294901760
        %4664 = vmatprep.subr.mxu0 %v4663
        %v4665 = vand.u32 %v1560, 4294901760
        %4666 = vmatpush1.msra.mxu0 %v4665
        %v4667 = vand.u32 %v1557, 4294901760
        %4668 = vmatprep.subr.mxu0 %v4667
        %v4669 = vand.u32 %v1556, 4294901760
        %4670 = vmatpush1.msra.mxu0 %v4669
        %v4671 = vand.u32 %v1553, 4294901760
        %4672 = vmatprep.subr.mxu0 %v4671
        %v4673 = vand.u32 %v1552, 4294901760
        %4674 = vmatpush1.msra.mxu0 %v4673
        %v4675 = vand.u32 %v1549, 4294901760
        %4676 = vmatprep.subr.mxu0 %v4675
        %v4677 = vand.u32 %v1548, 4294901760
        %4678 = vmatpush1.msra.mxu0 %v4677
        %v4679 = vand.u32 %v1545, 4294901760
        %4680 = vmatprep.subr.mxu0 %v4679
        %v4681 = vand.u32 %v1544, 4294901760
        %4682 = vmatpush1.msra.mxu0 %v4681
        %v4683 = vand.u32 %v1541, 4294901760
        %4684 = vmatprep.subr.mxu0 %v4683
        %v4685 = vand.u32 %v1540, 4294901760
        %4686 = vmatpush1.msra.mxu0 %v4685
        %v4687 = vand.u32 %v1537, 4294901760
        %4688 = vmatprep.subr.mxu0 %v4687
        %v4689 = vand.u32 %v1536, 4294901760
        %4690 = vmatpush1.msra.mxu0 %v4689
        %v4691 = vand.u32 %v1533, 4294901760
        %4692 = vmatprep.subr.mxu0 %v4691
        %v4693 = vand.u32 %v1532, 4294901760
        %4694 = vmatpush1.msra.mxu0 %v4693
        %v4695 = vand.u32 %v1529, 4294901760
        %4696 = vmatprep.subr.mxu0 %v4695
        %v4697 = vand.u32 %v1528, 4294901760
        %4698 = vmatpush1.msra.mxu0 %v4697
        %v4699 = vand.u32 %v1525, 4294901760
        %4700 = vmatprep.subr.mxu0 %v4699
        %v4701 = vand.u32 %v1524, 4294901760
        %4702 = vmatpush1.msra.mxu0 %v4701
        %v4703 = vand.u32 %v1521, 4294901760
        %4704 = vmatprep.subr.mxu0 %v4703
        %v4705 = vand.u32 %v1520, 4294901760
        %4706 = vmatpush1.msra.mxu0 %v4705
        %v4707 = vand.u32 %v1517, 4294901760
        %4708 = vmatprep.subr.mxu0 %v4707
        %v4709 = vand.u32 %v1516, 4294901760
        %4710 = vmatpush1.msra.mxu0 %v4709
        %v4711 = vand.u32 %v1513, 4294901760
        %4712 = vmatprep.subr.mxu0 %v4711
        %v4713 = vand.u32 %v1512, 4294901760
        %4714 = vmatpush1.msra.mxu0 %v4713
        %4715 = vmatprep.subr.mxu0 0.0
        %4716 = vmatpush2.msra.mxu0 0.0
        %4717 = vmatprep.subr.mxu0 0.0
        %4718 = vmatpush2.msra.mxu0 0.0
        %4719 = vmatprep.subr.mxu0 0.0
        %4720 = vmatpush2.msra.mxu0 0.0
        %4721 = vmatprep.subr.mxu0 0.0
        %4722 = vmatpush2.msra.mxu0 0.0
        %4723 = vmatprep.subr.mxu0 0.0
        %4724 = vmatpush2.msra.mxu0 0.0
        %4725 = vmatprep.subr.mxu0 0.0
        %4726 = vmatpush2.msra.mxu0 0.0
        %4727 = vmatprep.subr.mxu0 0.0
        %4728 = vmatpush2.msra.mxu0 0.0
        %4729 = vmatprep.subr.mxu0 0.0
        %4730 = vmatpush2.msra.mxu0 0.0
        %4731 = vmatprep.subr.mxu0 0.0
        %4732 = vmatpush2.msra.mxu0 0.0
        %4733 = vmatprep.subr.mxu0 0.0
        %4734 = vmatpush2.msra.mxu0 0.0
        %4735 = vmatprep.subr.mxu0 0.0
        %4736 = vmatpush2.msra.mxu0 0.0
        %4737 = vmatprep.subr.mxu0 0.0
        %4738 = vmatpush2.msra.mxu0 0.0
        %4739 = vmatprep.subr.mxu0 0.0
        %4740 = vmatpush2.msra.mxu0 0.0
        %4741 = vmatprep.subr.mxu0 0.0
        %4742 = vmatpush2.msra.mxu0 0.0
        %4743 = vmatprep.subr.mxu0 0.0
        %4744 = vmatpush2.msra.mxu0 0.0
        %4745 = vmatprep.subr.mxu0 0.0
        %4746 = vmatpush2.msra.mxu0 0.0
        %4747 = vmatprep.mubr.f32.mxu0 0.0
        %v4748 = vand.u32 %v3311, 4294901760
        %v4749 = vsub.f32 %v3311, %v4748
        %v4750 = vand.u32 %v4749, 4294901760
        %4751 = vmatmul.mubr.f32.gmra.mxu0 %v4750
        %v4752 = vpop.f32.mrf.mxu0
        %v4753 = vadd.f32 %v4647, %v4752
        %v4754 = vpop.f32.mrf.mxu0
        %v4755 = vadd.f32 %v4649, %v4754
        %4756 = vdwg.mxu0
        %v4757 = vand.u32 %v1573, 4294901760
        %v4758 = vsub.f32 %v1573, %v4757
        %v4759 = vand.u32 %v4758, 4294901760
        %4760 = vmatprep.subr.mxu0 %v4759
        %v4761 = vand.u32 %v1572, 4294901760
        %v4762 = vsub.f32 %v1572, %v4761
        %v4763 = vand.u32 %v4762, 4294901760
        %4764 = vmatpush1.msra.mxu0 %v4763
        %v4765 = vand.u32 %v1569, 4294901760
        %v4766 = vsub.f32 %v1569, %v4765
        %v4767 = vand.u32 %v4766, 4294901760
        %4768 = vmatprep.subr.mxu0 %v4767
        %v4769 = vand.u32 %v1568, 4294901760
        %v4770 = vsub.f32 %v1568, %v4769
        %v4771 = vand.u32 %v4770, 4294901760
        %4772 = vmatpush1.msra.mxu0 %v4771
        %v4773 = vand.u32 %v1565, 4294901760
        %v4774 = vsub.f32 %v1565, %v4773
        %v4775 = vand.u32 %v4774, 4294901760
        %4776 = vmatprep.subr.mxu0 %v4775
        %v4777 = vand.u32 %v1564, 4294901760
        %v4778 = vsub.f32 %v1564, %v4777
        %v4779 = vand.u32 %v4778, 4294901760
        %4780 = vmatpush1.msra.mxu0 %v4779
        %v4781 = vand.u32 %v1561, 4294901760
        %v4782 = vsub.f32 %v1561, %v4781
        %v4783 = vand.u32 %v4782, 4294901760
        %4784 = vmatprep.subr.mxu0 %v4783
        %v4785 = vand.u32 %v1560, 4294901760
        %v4786 = vsub.f32 %v1560, %v4785
        %v4787 = vand.u32 %v4786, 4294901760
        %4788 = vmatpush1.msra.mxu0 %v4787
        %v4789 = vand.u32 %v1557, 4294901760
        %v4790 = vsub.f32 %v1557, %v4789
        %v4791 = vand.u32 %v4790, 4294901760
        %4792 = vmatprep.subr.mxu0 %v4791
        %v4793 = vand.u32 %v1556, 4294901760
        %v4794 = vsub.f32 %v1556, %v4793
        %v4795 = vand.u32 %v4794, 4294901760
        %4796 = vmatpush1.msra.mxu0 %v4795
        %v4797 = vand.u32 %v1553, 4294901760
        %v4798 = vsub.f32 %v1553, %v4797
        %v4799 = vand.u32 %v4798, 4294901760
        %4800 = vmatprep.subr.mxu0 %v4799
        %v4801 = vand.u32 %v1552, 4294901760
        %v4802 = vsub.f32 %v1552, %v4801
        %v4803 = vand.u32 %v4802, 4294901760
        %4804 = vmatpush1.msra.mxu0 %v4803
        %v4805 = vand.u32 %v1549, 4294901760
        %v4806 = vsub.f32 %v1549, %v4805
        %v4807 = vand.u32 %v4806, 4294901760
        %4808 = vmatprep.subr.mxu0 %v4807
        %v4809 = vand.u32 %v1548, 4294901760
        %v4810 = vsub.f32 %v1548, %v4809
        %v4811 = vand.u32 %v4810, 4294901760
        %4812 = vmatpush1.msra.mxu0 %v4811
        %v4813 = vand.u32 %v1545, 4294901760
        %v4814 = vsub.f32 %v1545, %v4813
        %v4815 = vand.u32 %v4814, 4294901760
        %4816 = vmatprep.subr.mxu0 %v4815
        %v4817 = vand.u32 %v1544, 4294901760
        %v4818 = vsub.f32 %v1544, %v4817
        %v4819 = vand.u32 %v4818, 4294901760
        %4820 = vmatpush1.msra.mxu0 %v4819
        %v4821 = vand.u32 %v1541, 4294901760
        %v4822 = vsub.f32 %v1541, %v4821
        %v4823 = vand.u32 %v4822, 4294901760
        %4824 = vmatprep.subr.mxu0 %v4823
        %v4825 = vand.u32 %v1540, 4294901760
        %v4826 = vsub.f32 %v1540, %v4825
        %v4827 = vand.u32 %v4826, 4294901760
        %4828 = vmatpush1.msra.mxu0 %v4827
        %v4829 = vand.u32 %v1537, 4294901760
        %v4830 = vsub.f32 %v1537, %v4829
        %v4831 = vand.u32 %v4830, 4294901760
        %4832 = vmatprep.subr.mxu0 %v4831
        %v4833 = vand.u32 %v1536, 4294901760
        %v4834 = vsub.f32 %v1536, %v4833
        %v4835 = vand.u32 %v4834, 4294901760
        %4836 = vmatpush1.msra.mxu0 %v4835
        %v4837 = vand.u32 %v1533, 4294901760
        %v4838 = vsub.f32 %v1533, %v4837
        %v4839 = vand.u32 %v4838, 4294901760
        %4840 = vmatprep.subr.mxu0 %v4839
        %v4841 = vand.u32 %v1532, 4294901760
        %v4842 = vsub.f32 %v1532, %v4841
        %v4843 = vand.u32 %v4842, 4294901760
        %4844 = vmatpush1.msra.mxu0 %v4843
        %v4845 = vand.u32 %v1529, 4294901760
        %v4846 = vsub.f32 %v1529, %v4845
        %v4847 = vand.u32 %v4846, 4294901760
        %4848 = vmatprep.subr.mxu0 %v4847
        %v4849 = vand.u32 %v1528, 4294901760
        %v4850 = vsub.f32 %v1528, %v4849
        %v4851 = vand.u32 %v4850, 4294901760
        %4852 = vmatpush1.msra.mxu0 %v4851
        %v4853 = vand.u32 %v1525, 4294901760
        %v4854 = vsub.f32 %v1525, %v4853
        %v4855 = vand.u32 %v4854, 4294901760
        %4856 = vmatprep.subr.mxu0 %v4855
        %v4857 = vand.u32 %v1524, 4294901760
        %v4858 = vsub.f32 %v1524, %v4857
        %v4859 = vand.u32 %v4858, 4294901760
        %4860 = vmatpush1.msra.mxu0 %v4859
        %v4861 = vand.u32 %v1521, 4294901760
        %v4862 = vsub.f32 %v1521, %v4861
        %v4863 = vand.u32 %v4862, 4294901760
        %4864 = vmatprep.subr.mxu0 %v4863
        %v4865 = vand.u32 %v1520, 4294901760
        %v4866 = vsub.f32 %v1520, %v4865
        %v4867 = vand.u32 %v4866, 4294901760
        %4868 = vmatpush1.msra.mxu0 %v4867
        %v4869 = vand.u32 %v1517, 4294901760
        %v4870 = vsub.f32 %v1517, %v4869
        %v4871 = vand.u32 %v4870, 4294901760
        %4872 = vmatprep.subr.mxu0 %v4871
        %v4873 = vand.u32 %v1516, 4294901760
        %v4874 = vsub.f32 %v1516, %v4873
        %v4875 = vand.u32 %v4874, 4294901760
        %4876 = vmatpush1.msra.mxu0 %v4875
        %v4877 = vand.u32 %v1513, 4294901760
        %v4878 = vsub.f32 %v1513, %v4877
        %v4879 = vand.u32 %v4878, 4294901760
        %4880 = vmatprep.subr.mxu0 %v4879
        %v4881 = vand.u32 %v1512, 4294901760
        %v4882 = vsub.f32 %v1512, %v4881
        %v4883 = vand.u32 %v4882, 4294901760
        %4884 = vmatpush1.msra.mxu0 %v4883
        %4885 = vmatprep.subr.mxu0 0.0
        %4886 = vmatpush2.msra.mxu0 0.0
        %4887 = vmatprep.subr.mxu0 0.0
        %4888 = vmatpush2.msra.mxu0 0.0
        %4889 = vmatprep.subr.mxu0 0.0
        %4890 = vmatpush2.msra.mxu0 0.0
        %4891 = vmatprep.subr.mxu0 0.0
        %4892 = vmatpush2.msra.mxu0 0.0
        %4893 = vmatprep.subr.mxu0 0.0
        %4894 = vmatpush2.msra.mxu0 0.0
        %4895 = vmatprep.subr.mxu0 0.0
        %4896 = vmatpush2.msra.mxu0 0.0
        %4897 = vmatprep.subr.mxu0 0.0
        %4898 = vmatpush2.msra.mxu0 0.0
        %4899 = vmatprep.subr.mxu0 0.0
        %4900 = vmatpush2.msra.mxu0 0.0
        %4901 = vmatprep.subr.mxu0 0.0
        %4902 = vmatpush2.msra.mxu0 0.0
        %4903 = vmatprep.subr.mxu0 0.0
        %4904 = vmatpush2.msra.mxu0 0.0
        %4905 = vmatprep.subr.mxu0 0.0
        %4906 = vmatpush2.msra.mxu0 0.0
        %4907 = vmatprep.subr.mxu0 0.0
        %4908 = vmatpush2.msra.mxu0 0.0
        %4909 = vmatprep.subr.mxu0 0.0
        %4910 = vmatpush2.msra.mxu0 0.0
        %4911 = vmatprep.subr.mxu0 0.0
        %4912 = vmatpush2.msra.mxu0 0.0
        %4913 = vmatprep.subr.mxu0 0.0
        %4914 = vmatpush2.msra.mxu0 0.0
        %4915 = vmatprep.subr.mxu0 0.0
        %4916 = vmatpush2.msra.mxu0 0.0
        %4917 = vmatprep.mubr.f32.mxu0 0.0
        %v4918 = vand.u32 %v3311, 4294901760
        %4919 = vmatmul.mubr.f32.gmra.mxu0 %v4918
        %v4920 = vpop.f32.mrf.mxu0
        %v4921 = vadd.f32 %v4753, %v4920
        %v4922 = vpop.f32.mrf.mxu0
        %v4923 = vadd.f32 %v4755, %v4922
        %4924 = vdwg.mxu0
        %v4925 = vand.u32 %v1573, 4294901760
        %4926 = vmatprep.subr.mxu0 %v4925
        %v4927 = vand.u32 %v1572, 4294901760
        %4928 = vmatpush1.msra.mxu0 %v4927
        %v4929 = vand.u32 %v1569, 4294901760
        %4930 = vmatprep.subr.mxu0 %v4929
        %v4931 = vand.u32 %v1568, 4294901760
        %4932 = vmatpush1.msra.mxu0 %v4931
        %v4933 = vand.u32 %v1565, 4294901760
        %4934 = vmatprep.subr.mxu0 %v4933
        %v4935 = vand.u32 %v1564, 4294901760
        %4936 = vmatpush1.msra.mxu0 %v4935
        %v4937 = vand.u32 %v1561, 4294901760
        %4938 = vmatprep.subr.mxu0 %v4937
        %v4939 = vand.u32 %v1560, 4294901760
        %4940 = vmatpush1.msra.mxu0 %v4939
        %v4941 = vand.u32 %v1557, 4294901760
        %4942 = vmatprep.subr.mxu0 %v4941
        %v4943 = vand.u32 %v1556, 4294901760
        %4944 = vmatpush1.msra.mxu0 %v4943
        %v4945 = vand.u32 %v1553, 4294901760
        %4946 = vmatprep.subr.mxu0 %v4945
        %v4947 = vand.u32 %v1552, 4294901760
        %4948 = vmatpush1.msra.mxu0 %v4947
        %v4949 = vand.u32 %v1549, 4294901760
        %4950 = vmatprep.subr.mxu0 %v4949
        %v4951 = vand.u32 %v1548, 4294901760
        %4952 = vmatpush1.msra.mxu0 %v4951
        %v4953 = vand.u32 %v1545, 4294901760
        %4954 = vmatprep.subr.mxu0 %v4953
        %v4955 = vand.u32 %v1544, 4294901760
        %4956 = vmatpush1.msra.mxu0 %v4955
        %v4957 = vand.u32 %v1541, 4294901760
        %4958 = vmatprep.subr.mxu0 %v4957
        %v4959 = vand.u32 %v1540, 4294901760
        %4960 = vmatpush1.msra.mxu0 %v4959
        %v4961 = vand.u32 %v1537, 4294901760
        %4962 = vmatprep.subr.mxu0 %v4961
        %v4963 = vand.u32 %v1536, 4294901760
        %4964 = vmatpush1.msra.mxu0 %v4963
        %v4965 = vand.u32 %v1533, 4294901760
        %4966 = vmatprep.subr.mxu0 %v4965
        %v4967 = vand.u32 %v1532, 4294901760
        %4968 = vmatpush1.msra.mxu0 %v4967
        %v4969 = vand.u32 %v1529, 4294901760
        %4970 = vmatprep.subr.mxu0 %v4969
        %v4971 = vand.u32 %v1528, 4294901760
        %4972 = vmatpush1.msra.mxu0 %v4971
        %v4973 = vand.u32 %v1525, 4294901760
        %4974 = vmatprep.subr.mxu0 %v4973
        %v4975 = vand.u32 %v1524, 4294901760
        %4976 = vmatpush1.msra.mxu0 %v4975
        %v4977 = vand.u32 %v1521, 4294901760
        %4978 = vmatprep.subr.mxu0 %v4977
        %v4979 = vand.u32 %v1520, 4294901760
        %4980 = vmatpush1.msra.mxu0 %v4979
        %v4981 = vand.u32 %v1517, 4294901760
        %4982 = vmatprep.subr.mxu0 %v4981
        %v4983 = vand.u32 %v1516, 4294901760
        %4984 = vmatpush1.msra.mxu0 %v4983
        %v4985 = vand.u32 %v1513, 4294901760
        %4986 = vmatprep.subr.mxu0 %v4985
        %v4987 = vand.u32 %v1512, 4294901760
        %4988 = vmatpush1.msra.mxu0 %v4987
        %4989 = vmatprep.subr.mxu0 0.0
        %4990 = vmatpush2.msra.mxu0 0.0
        %4991 = vmatprep.subr.mxu0 0.0
        %4992 = vmatpush2.msra.mxu0 0.0
        %4993 = vmatprep.subr.mxu0 0.0
        %4994 = vmatpush2.msra.mxu0 0.0
        %4995 = vmatprep.subr.mxu0 0.0
        %4996 = vmatpush2.msra.mxu0 0.0
        %4997 = vmatprep.subr.mxu0 0.0
        %4998 = vmatpush2.msra.mxu0 0.0
        %4999 = vmatprep.subr.mxu0 0.0
        %5000 = vmatpush2.msra.mxu0 0.0
        %5001 = vmatprep.subr.mxu0 0.0
        %5002 = vmatpush2.msra.mxu0 0.0
        %5003 = vmatprep.subr.mxu0 0.0
        %5004 = vmatpush2.msra.mxu0 0.0
        %5005 = vmatprep.subr.mxu0 0.0
        %5006 = vmatpush2.msra.mxu0 0.0
        %5007 = vmatprep.subr.mxu0 0.0
        %5008 = vmatpush2.msra.mxu0 0.0
        %5009 = vmatprep.subr.mxu0 0.0
        %5010 = vmatpush2.msra.mxu0 0.0
        %5011 = vmatprep.subr.mxu0 0.0
        %5012 = vmatpush2.msra.mxu0 0.0
        %5013 = vmatprep.subr.mxu0 0.0
        %5014 = vmatpush2.msra.mxu0 0.0
        %5015 = vmatprep.subr.mxu0 0.0
        %5016 = vmatpush2.msra.mxu0 0.0
        %5017 = vmatprep.subr.mxu0 0.0
        %5018 = vmatpush2.msra.mxu0 0.0
        %5019 = vmatprep.subr.mxu0 0.0
        %5020 = vmatpush2.msra.mxu0 0.0
        %5021 = vmatprep.mubr.f32.mxu0 0.0
        %v5022 = vand.u32 %v3311, 4294901760
        %5023 = vmatmul.mubr.f32.gmra.mxu0 %v5022
        %v5024 = vpop.f32.mrf.mxu0
        %v5025 = vadd.f32 %v4921, %v5024
        %v5026 = vpop.f32.mrf.mxu0
        %v5027 = vadd.f32 %v4923, %v5026
        %5028 = vdwg.mxu0
        %v5029 = vadd.f32 %v3315, %v4170
        %v5030 = vadd.f32 %v3316, %v4172
        %v5031 = vadd.f32 %v3317, %v5025
        %v5032 = vadd.f32 %v3318, %v5027
        %v5033 = vxor.u32 %v5029, 2147483648
        %v5034 = vmul.f32 %v5033, 1.442695
        %v5035 = vpow.pop %v5034
        %v5036 = vadd.f32 %v5035, 1.0
        %v5037 = vrcp.pop %v5036
        %v5038 = vmul.f32 1.0, %v5037
        %v5039 = vxor.u32 %v5030, 2147483648
        %v5040 = vmul.f32 %v5039, 1.442695
        %v5041 = vpow.pop %v5040
        %v5042 = vadd.f32 %v5041, 1.0
        %v5043 = vrcp.pop %v5042
        %v5044 = vmul.f32 1.0, %v5043
        %v5045 = vtanh.pop %v5031
        %v5046 = vxor.u32 %v5032, 2147483648
        %v5047 = vmul.f32 %v5046, 1.442695
        %v5048 = vpow.pop %v5047
        %v5049 = vadd.f32 %v5048, 1.0
        %v5050 = vrcp.pop %v5049
        %v5051 = vmul.f32 1.0, %v5050
        %v5052 = vmul.f32 %v5044, %v3309
        %v5053 = vmul.f32 %v5038, %v5045
        %v5054 = vadd.f32 %v5052, %v5053
        %v5055 = vtanh.pop %v5054
        %v5056 = vmul.f32 %v5051, %v5055
        %s5057 = smul.u32 2, 4
        %s5058 = smul.addr %s5057, 8
        %s5059 = scalar_lea.vmem [#allocation4], %s5058
        %v5060 = vld [vmem:[%s5059] sm:$0xff]
        %v5061 = vld [vmem:[%s5059 + $0x8] sm:$0xff]
        %v5062 = vld [vmem:[%s5059 + $0x10] sm:$0xff]
        %v5063 = vld [vmem:[%s5059 + $0x18] sm:$0xff]
        %v5064 = vand.u32 %v1571, 4294901760
        %5065 = vmatprep.subr.mxu0 %v5064
        %v5066 = vand.u32 %v1570, 4294901760
        %5067 = vmatpush1.msra.mxu0 %v5066
        %v5068 = vand.u32 %v1567, 4294901760
        %5069 = vmatprep.subr.mxu0 %v5068
        %v5070 = vand.u32 %v1566, 4294901760
        %5071 = vmatpush1.msra.mxu0 %v5070
        %v5072 = vand.u32 %v1563, 4294901760
        %5073 = vmatprep.subr.mxu0 %v5072
        %v5074 = vand.u32 %v1562, 4294901760
        %5075 = vmatpush1.msra.mxu0 %v5074
        %v5076 = vand.u32 %v1559, 4294901760
        %5077 = vmatprep.subr.mxu0 %v5076
        %v5078 = vand.u32 %v1558, 4294901760
        %5079 = vmatpush1.msra.mxu0 %v5078
        %v5080 = vand.u32 %v1555, 4294901760
        %5081 = vmatprep.subr.mxu0 %v5080
        %v5082 = vand.u32 %v1554, 4294901760
        %5083 = vmatpush1.msra.mxu0 %v5082
        %v5084 = vand.u32 %v1551, 4294901760
        %5085 = vmatprep.subr.mxu0 %v5084
        %v5086 = vand.u32 %v1550, 4294901760
        %5087 = vmatpush1.msra.mxu0 %v5086
        %v5088 = vand.u32 %v1547, 4294901760
        %5089 = vmatprep.subr.mxu0 %v5088
        %v5090 = vand.u32 %v1546, 4294901760
        %5091 = vmatpush1.msra.mxu0 %v5090
        %v5092 = vand.u32 %v1543, 4294901760
        %5093 = vmatprep.subr.mxu0 %v5092
        %v5094 = vand.u32 %v1542, 4294901760
        %5095 = vmatpush1.msra.mxu0 %v5094
        %v5096 = vand.u32 %v1539, 4294901760
        %5097 = vmatprep.subr.mxu0 %v5096
        %v5098 = vand.u32 %v1538, 4294901760
        %5099 = vmatpush1.msra.mxu0 %v5098
        %v5100 = vand.u32 %v1535, 4294901760
        %5101 = vmatprep.subr.mxu0 %v5100
        %v5102 = vand.u32 %v1534, 4294901760
        %5103 = vmatpush1.msra.mxu0 %v5102
        %v5104 = vand.u32 %v1531, 4294901760
        %5105 = vmatprep.subr.mxu0 %v5104
        %v5106 = vand.u32 %v1530, 4294901760
        %5107 = vmatpush1.msra.mxu0 %v5106
        %v5108 = vand.u32 %v1527, 4294901760
        %5109 = vmatprep.subr.mxu0 %v5108
        %v5110 = vand.u32 %v1526, 4294901760
        %5111 = vmatpush1.msra.mxu0 %v5110
        %v5112 = vand.u32 %v1523, 4294901760
        %5113 = vmatprep.subr.mxu0 %v5112
        %v5114 = vand.u32 %v1522, 4294901760
        %5115 = vmatpush1.msra.mxu0 %v5114
        %v5116 = vand.u32 %v1519, 4294901760
        %5117 = vmatprep.subr.mxu0 %v5116
        %v5118 = vand.u32 %v1518, 4294901760
        %5119 = vmatpush1.msra.mxu0 %v5118
        %v5120 = vand.u32 %v1515, 4294901760
        %5121 = vmatprep.subr.mxu0 %v5120
        %v5122 = vand.u32 %v1514, 4294901760
        %5123 = vmatpush1.msra.mxu0 %v5122
        %v5124 = vand.u32 %v1511, 4294901760
        %5125 = vmatprep.subr.mxu0 %v5124
        %v5126 = vand.u32 %v1510, 4294901760
        %5127 = vmatpush1.msra.mxu0 %v5126
        %5128 = vmatprep.subr.mxu0 0.0
        %5129 = vmatpush2.msra.mxu0 0.0
        %5130 = vmatprep.subr.mxu0 0.0
        %5131 = vmatpush2.msra.mxu0 0.0
        %5132 = vmatprep.subr.mxu0 0.0
        %5133 = vmatpush2.msra.mxu0 0.0
        %5134 = vmatprep.subr.mxu0 0.0
        %5135 = vmatpush2.msra.mxu0 0.0
        %5136 = vmatprep.subr.mxu0 0.0
        %5137 = vmatpush2.msra.mxu0 0.0
        %5138 = vmatprep.subr.mxu0 0.0
        %5139 = vmatpush2.msra.mxu0 0.0
        %5140 = vmatprep.subr.mxu0 0.0
        %5141 = vmatpush2.msra.mxu0 0.0
        %5142 = vmatprep.subr.mxu0 0.0
        %5143 = vmatpush2.msra.mxu0 0.0
        %5144 = vmatprep.subr.mxu0 0.0
        %5145 = vmatpush2.msra.mxu0 0.0
        %5146 = vmatprep.subr.mxu0 0.0
        %5147 = vmatpush2.msra.mxu0 0.0
        %5148 = vmatprep.subr.mxu0 0.0
        %5149 = vmatpush2.msra.mxu0 0.0
        %5150 = vmatprep.subr.mxu0 0.0
        %5151 = vmatpush2.msra.mxu0 0.0
        %5152 = vmatprep.subr.mxu0 0.0
        %5153 = vmatpush2.msra.mxu0 0.0
        %5154 = vmatprep.subr.mxu0 0.0
        %5155 = vmatpush2.msra.mxu0 0.0
        %5156 = vmatprep.subr.mxu0 0.0
        %5157 = vmatpush2.msra.mxu0 0.0
        %5158 = vmatprep.subr.mxu0 0.0
        %5159 = vmatpush2.msra.mxu0 0.0
        %5160 = vmatprep.mubr.f32.mxu0 0.0
        %v5161 = vand.u32 %v5056, 4294901760
        %v5162 = vsub.f32 %v5056, %v5161
        %v5163 = vand.u32 %v5162, 4294901760
        %v5164 = vsub.f32 %v5162, %v5163
        %v5165 = vand.u32 %v5164, 4294901760
        %5166 = vmatmul.mubr.f32.gmra.mxu0 %v5165
        %v5167 = vpop.f32.mrf.mxu0
        %v5168 = vadd.f32 0.0, %v5167
        %v5169 = vpop.f32.mrf.mxu0
        %v5170 = vadd.f32 0.0, %v5169
        %5171 = vdwg.mxu0
        %v5172 = vand.u32 %v1571, 4294901760
        %v5173 = vsub.f32 %v1571, %v5172
        %v5174 = vand.u32 %v5173, 4294901760
        %v5175 = vsub.f32 %v5173, %v5174
        %v5176 = vand.u32 %v5175, 4294901760
        %5177 = vmatprep.subr.mxu0 %v5176
        %v5178 = vand.u32 %v1570, 4294901760
        %v5179 = vsub.f32 %v1570, %v5178
        %v5180 = vand.u32 %v5179, 4294901760
        %v5181 = vsub.f32 %v5179, %v5180
        %v5182 = vand.u32 %v5181, 4294901760
        %5183 = vmatpush1.msra.mxu0 %v5182
        %v5184 = vand.u32 %v1567, 4294901760
        %v5185 = vsub.f32 %v1567, %v5184
        %v5186 = vand.u32 %v5185, 4294901760
        %v5187 = vsub.f32 %v5185, %v5186
        %v5188 = vand.u32 %v5187, 4294901760
        %5189 = vmatprep.subr.mxu0 %v5188
        %v5190 = vand.u32 %v1566, 4294901760
        %v5191 = vsub.f32 %v1566, %v5190
        %v5192 = vand.u32 %v5191, 4294901760
        %v5193 = vsub.f32 %v5191, %v5192
        %v5194 = vand.u32 %v5193, 4294901760
        %5195 = vmatpush1.msra.mxu0 %v5194
        %v5196 = vand.u32 %v1563, 4294901760
        %v5197 = vsub.f32 %v1563, %v5196
        %v5198 = vand.u32 %v5197, 4294901760
        %v5199 = vsub.f32 %v5197, %v5198
        %v5200 = vand.u32 %v5199, 4294901760
        %5201 = vmatprep.subr.mxu0 %v5200
        %v5202 = vand.u32 %v1562, 4294901760
        %v5203 = vsub.f32 %v1562, %v5202
        %v5204 = vand.u32 %v5203, 4294901760
        %v5205 = vsub.f32 %v5203, %v5204
        %v5206 = vand.u32 %v5205, 4294901760
        %5207 = vmatpush1.msra.mxu0 %v5206
        %v5208 = vand.u32 %v1559, 4294901760
        %v5209 = vsub.f32 %v1559, %v5208
        %v5210 = vand.u32 %v5209, 4294901760
        %v5211 = vsub.f32 %v5209, %v5210
        %v5212 = vand.u32 %v5211, 4294901760
        %5213 = vmatprep.subr.mxu0 %v5212
        %v5214 = vand.u32 %v1558, 4294901760
        %v5215 = vsub.f32 %v1558, %v5214
        %v5216 = vand.u32 %v5215, 4294901760
        %v5217 = vsub.f32 %v5215, %v5216
        %v5218 = vand.u32 %v5217, 4294901760
        %5219 = vmatpush1.msra.mxu0 %v5218
        %v5220 = vand.u32 %v1555, 4294901760
        %v5221 = vsub.f32 %v1555, %v5220
        %v5222 = vand.u32 %v5221, 4294901760
        %v5223 = vsub.f32 %v5221, %v5222
        %v5224 = vand.u32 %v5223, 4294901760
        %5225 = vmatprep.subr.mxu0 %v5224
        %v5226 = vand.u32 %v1554, 4294901760
        %v5227 = vsub.f32 %v1554, %v5226
        %v5228 = vand.u32 %v5227, 4294901760
        %v5229 = vsub.f32 %v5227, %v5228
        %v5230 = vand.u32 %v5229, 4294901760
        %5231 = vmatpush1.msra.mxu0 %v5230
        %v5232 = vand.u32 %v1551, 4294901760
        %v5233 = vsub.f32 %v1551, %v5232
        %v5234 = vand.u32 %v5233, 4294901760
        %v5235 = vsub.f32 %v5233, %v5234
        %v5236 = vand.u32 %v5235, 4294901760
        %5237 = vmatprep.subr.mxu0 %v5236
        %v5238 = vand.u32 %v1550, 4294901760
        %v5239 = vsub.f32 %v1550, %v5238
        %v5240 = vand.u32 %v5239, 4294901760
        %v5241 = vsub.f32 %v5239, %v5240
        %v5242 = vand.u32 %v5241, 4294901760
        %5243 = vmatpush1.msra.mxu0 %v5242
        %v5244 = vand.u32 %v1547, 4294901760
        %v5245 = vsub.f32 %v1547, %v5244
        %v5246 = vand.u32 %v5245, 4294901760
        %v5247 = vsub.f32 %v5245, %v5246
        %v5248 = vand.u32 %v5247, 4294901760
        %5249 = vmatprep.subr.mxu0 %v5248
        %v5250 = vand.u32 %v1546, 4294901760
        %v5251 = vsub.f32 %v1546, %v5250
        %v5252 = vand.u32 %v5251, 4294901760
        %v5253 = vsub.f32 %v5251, %v5252
        %v5254 = vand.u32 %v5253, 4294901760
        %5255 = vmatpush1.msra.mxu0 %v5254
        %v5256 = vand.u32 %v1543, 4294901760
        %v5257 = vsub.f32 %v1543, %v5256
        %v5258 = vand.u32 %v5257, 4294901760
        %v5259 = vsub.f32 %v5257, %v5258
        %v5260 = vand.u32 %v5259, 4294901760
        %5261 = vmatprep.subr.mxu0 %v5260
        %v5262 = vand.u32 %v1542, 4294901760
        %v5263 = vsub.f32 %v1542, %v5262
        %v5264 = vand.u32 %v5263, 4294901760
        %v5265 = vsub.f32 %v5263, %v5264
        %v5266 = vand.u32 %v5265, 4294901760
        %5267 = vmatpush1.msra.mxu0 %v5266
        %v5268 = vand.u32 %v1539, 4294901760
        %v5269 = vsub.f32 %v1539, %v5268
        %v5270 = vand.u32 %v5269, 4294901760
        %v5271 = vsub.f32 %v5269, %v5270
        %v5272 = vand.u32 %v5271, 4294901760
        %5273 = vmatprep.subr.mxu0 %v5272
        %v5274 = vand.u32 %v1538, 4294901760
        %v5275 = vsub.f32 %v1538, %v5274
        %v5276 = vand.u32 %v5275, 4294901760
        %v5277 = vsub.f32 %v5275, %v5276
        %v5278 = vand.u32 %v5277, 4294901760
        %5279 = vmatpush1.msra.mxu0 %v5278
        %v5280 = vand.u32 %v1535, 4294901760
        %v5281 = vsub.f32 %v1535, %v5280
        %v5282 = vand.u32 %v5281, 4294901760
        %v5283 = vsub.f32 %v5281, %v5282
        %v5284 = vand.u32 %v5283, 4294901760
        %5285 = vmatprep.subr.mxu0 %v5284
        %v5286 = vand.u32 %v1534, 4294901760
        %v5287 = vsub.f32 %v1534, %v5286
        %v5288 = vand.u32 %v5287, 4294901760
        %v5289 = vsub.f32 %v5287, %v5288
        %v5290 = vand.u32 %v5289, 4294901760
        %5291 = vmatpush1.msra.mxu0 %v5290
        %v5292 = vand.u32 %v1531, 4294901760
        %v5293 = vsub.f32 %v1531, %v5292
        %v5294 = vand.u32 %v5293, 4294901760
        %v5295 = vsub.f32 %v5293, %v5294
        %v5296 = vand.u32 %v5295, 4294901760
        %5297 = vmatprep.subr.mxu0 %v5296
        %v5298 = vand.u32 %v1530, 4294901760
        %v5299 = vsub.f32 %v1530, %v5298
        %v5300 = vand.u32 %v5299, 4294901760
        %v5301 = vsub.f32 %v5299, %v5300
        %v5302 = vand.u32 %v5301, 4294901760
        %5303 = vmatpush1.msra.mxu0 %v5302
        %v5304 = vand.u32 %v1527, 4294901760
        %v5305 = vsub.f32 %v1527, %v5304
        %v5306 = vand.u32 %v5305, 4294901760
        %v5307 = vsub.f32 %v5305, %v5306
        %v5308 = vand.u32 %v5307, 4294901760
        %5309 = vmatprep.subr.mxu0 %v5308
        %v5310 = vand.u32 %v1526, 4294901760
        %v5311 = vsub.f32 %v1526, %v5310
        %v5312 = vand.u32 %v5311, 4294901760
        %v5313 = vsub.f32 %v5311, %v5312
        %v5314 = vand.u32 %v5313, 4294901760
        %5315 = vmatpush1.msra.mxu0 %v5314
        %v5316 = vand.u32 %v1523, 4294901760
        %v5317 = vsub.f32 %v1523, %v5316
        %v5318 = vand.u32 %v5317, 4294901760
        %v5319 = vsub.f32 %v5317, %v5318
        %v5320 = vand.u32 %v5319, 4294901760
        %5321 = vmatprep.subr.mxu0 %v5320
        %v5322 = vand.u32 %v1522, 4294901760
        %v5323 = vsub.f32 %v1522, %v5322
        %v5324 = vand.u32 %v5323, 4294901760
        %v5325 = vsub.f32 %v5323, %v5324
        %v5326 = vand.u32 %v5325, 4294901760
        %5327 = vmatpush1.msra.mxu0 %v5326
        %v5328 = vand.u32 %v1519, 4294901760
        %v5329 = vsub.f32 %v1519, %v5328
        %v5330 = vand.u32 %v5329, 4294901760
        %v5331 = vsub.f32 %v5329, %v5330
        %v5332 = vand.u32 %v5331, 4294901760
        %5333 = vmatprep.subr.mxu0 %v5332
        %v5334 = vand.u32 %v1518, 4294901760
        %v5335 = vsub.f32 %v1518, %v5334
        %v5336 = vand.u32 %v5335, 4294901760
        %v5337 = vsub.f32 %v5335, %v5336
        %v5338 = vand.u32 %v5337, 4294901760
        %5339 = vmatpush1.msra.mxu0 %v5338
        %v5340 = vand.u32 %v1515, 4294901760
        %v5341 = vsub.f32 %v1515, %v5340
        %v5342 = vand.u32 %v5341, 4294901760
        %v5343 = vsub.f32 %v5341, %v5342
        %v5344 = vand.u32 %v5343, 4294901760
        %5345 = vmatprep.subr.mxu0 %v5344
        %v5346 = vand.u32 %v1514, 4294901760
        %v5347 = vsub.f32 %v1514, %v5346
        %v5348 = vand.u32 %v5347, 4294901760
        %v5349 = vsub.f32 %v5347, %v5348
        %v5350 = vand.u32 %v5349, 4294901760
        %5351 = vmatpush1.msra.mxu0 %v5350
        %v5352 = vand.u32 %v1511, 4294901760
        %v5353 = vsub.f32 %v1511, %v5352
        %v5354 = vand.u32 %v5353, 4294901760
        %v5355 = vsub.f32 %v5353, %v5354
        %v5356 = vand.u32 %v5355, 4294901760
        %5357 = vmatprep.subr.mxu0 %v5356
        %v5358 = vand.u32 %v1510, 4294901760
        %v5359 = vsub.f32 %v1510, %v5358
        %v5360 = vand.u32 %v5359, 4294901760
        %v5361 = vsub.f32 %v5359, %v5360
        %v5362 = vand.u32 %v5361, 4294901760
        %5363 = vmatpush1.msra.mxu0 %v5362
        %5364 = vmatprep.subr.mxu0 0.0
        %5365 = vmatpush2.msra.mxu0 0.0
        %5366 = vmatprep.subr.mxu0 0.0
        %5367 = vmatpush2.msra.mxu0 0.0
        %5368 = vmatprep.subr.mxu0 0.0
        %5369 = vmatpush2.msra.mxu0 0.0
        %5370 = vmatprep.subr.mxu0 0.0
        %5371 = vmatpush2.msra.mxu0 0.0
        %5372 = vmatprep.subr.mxu0 0.0
        %5373 = vmatpush2.msra.mxu0 0.0
        %5374 = vmatprep.subr.mxu0 0.0
        %5375 = vmatpush2.msra.mxu0 0.0
        %5376 = vmatprep.subr.mxu0 0.0
        %5377 = vmatpush2.msra.mxu0 0.0
        %5378 = vmatprep.subr.mxu0 0.0
        %5379 = vmatpush2.msra.mxu0 0.0
        %5380 = vmatprep.subr.mxu0 0.0
        %5381 = vmatpush2.msra.mxu0 0.0
        %5382 = vmatprep.subr.mxu0 0.0
        %5383 = vmatpush2.msra.mxu0 0.0
        %5384 = vmatprep.subr.mxu0 0.0
        %5385 = vmatpush2.msra.mxu0 0.0
        %5386 = vmatprep.subr.mxu0 0.0
        %5387 = vmatpush2.msra.mxu0 0.0
        %5388 = vmatprep.subr.mxu0 0.0
        %5389 = vmatpush2.msra.mxu0 0.0
        %5390 = vmatprep.subr.mxu0 0.0
        %5391 = vmatpush2.msra.mxu0 0.0
        %5392 = vmatprep.subr.mxu0 0.0
        %5393 = vmatpush2.msra.mxu0 0.0
        %5394 = vmatprep.subr.mxu0 0.0
        %5395 = vmatpush2.msra.mxu0 0.0
        %5396 = vmatprep.mubr.f32.mxu0 0.0
        %v5397 = vand.u32 %v5056, 4294901760
        %5398 = vmatmul.mubr.f32.gmra.mxu0 %v5397
        %v5399 = vpop.f32.mrf.mxu0
        %v5400 = vadd.f32 %v5168, %v5399
        %v5401 = vpop.f32.mrf.mxu0
        %v5402 = vadd.f32 %v5170, %v5401
        %5403 = vdwg.mxu0
        %v5404 = vand.u32 %v1571, 4294901760
        %v5405 = vsub.f32 %v1571, %v5404
        %5406 = vmatprep.subr.mxu0 %v5405
        %v5407 = vand.u32 %v1570, 4294901760
        %v5408 = vsub.f32 %v1570, %v5407
        %5409 = vmatpush1.msra.mxu0 %v5408
        %v5410 = vand.u32 %v1567, 4294901760
        %v5411 = vsub.f32 %v1567, %v5410
        %5412 = vmatprep.subr.mxu0 %v5411
        %v5413 = vand.u32 %v1566, 4294901760
        %v5414 = vsub.f32 %v1566, %v5413
        %5415 = vmatpush1.msra.mxu0 %v5414
        %v5416 = vand.u32 %v1563, 4294901760
        %v5417 = vsub.f32 %v1563, %v5416
        %5418 = vmatprep.subr.mxu0 %v5417
        %v5419 = vand.u32 %v1562, 4294901760
        %v5420 = vsub.f32 %v1562, %v5419
        %5421 = vmatpush1.msra.mxu0 %v5420
        %v5422 = vand.u32 %v1559, 4294901760
        %v5423 = vsub.f32 %v1559, %v5422
        %5424 = vmatprep.subr.mxu0 %v5423
        %v5425 = vand.u32 %v1558, 4294901760
        %v5426 = vsub.f32 %v1558, %v5425
        %5427 = vmatpush1.msra.mxu0 %v5426
        %v5428 = vand.u32 %v1555, 4294901760
        %v5429 = vsub.f32 %v1555, %v5428
        %5430 = vmatprep.subr.mxu0 %v5429
        %v5431 = vand.u32 %v1554, 4294901760
        %v5432 = vsub.f32 %v1554, %v5431
        %5433 = vmatpush1.msra.mxu0 %v5432
        %v5434 = vand.u32 %v1551, 4294901760
        %v5435 = vsub.f32 %v1551, %v5434
        %5436 = vmatprep.subr.mxu0 %v5435
        %v5437 = vand.u32 %v1550, 4294901760
        %v5438 = vsub.f32 %v1550, %v5437
        %5439 = vmatpush1.msra.mxu0 %v5438
        %v5440 = vand.u32 %v1547, 4294901760
        %v5441 = vsub.f32 %v1547, %v5440
        %5442 = vmatprep.subr.mxu0 %v5441
        %v5443 = vand.u32 %v1546, 4294901760
        %v5444 = vsub.f32 %v1546, %v5443
        %5445 = vmatpush1.msra.mxu0 %v5444
        %v5446 = vand.u32 %v1543, 4294901760
        %v5447 = vsub.f32 %v1543, %v5446
        %5448 = vmatprep.subr.mxu0 %v5447
        %v5449 = vand.u32 %v1542, 4294901760
        %v5450 = vsub.f32 %v1542, %v5449
        %5451 = vmatpush1.msra.mxu0 %v5450
        %v5452 = vand.u32 %v1539, 4294901760
        %v5453 = vsub.f32 %v1539, %v5452
        %5454 = vmatprep.subr.mxu0 %v5453
        %v5455 = vand.u32 %v1538, 4294901760
        %v5456 = vsub.f32 %v1538, %v5455
        %5457 = vmatpush1.msra.mxu0 %v5456
        %v5458 = vand.u32 %v1535, 4294901760
        %v5459 = vsub.f32 %v1535, %v5458
        %5460 = vmatprep.subr.mxu0 %v5459
        %v5461 = vand.u32 %v1534, 4294901760
        %v5462 = vsub.f32 %v1534, %v5461
        %5463 = vmatpush1.msra.mxu0 %v5462
        %v5464 = vand.u32 %v1531, 4294901760
        %v5465 = vsub.f32 %v1531, %v5464
        %5466 = vmatprep.subr.mxu0 %v5465
        %v5467 = vand.u32 %v1530, 4294901760
        %v5468 = vsub.f32 %v1530, %v5467
        %5469 = vmatpush1.msra.mxu0 %v5468
        %v5470 = vand.u32 %v1527, 4294901760
        %v5471 = vsub.f32 %v1527, %v5470
        %5472 = vmatprep.subr.mxu0 %v5471
        %v5473 = vand.u32 %v1526, 4294901760
        %v5474 = vsub.f32 %v1526, %v5473
        %5475 = vmatpush1.msra.mxu0 %v5474
        %v5476 = vand.u32 %v1523, 4294901760
        %v5477 = vsub.f32 %v1523, %v5476
        %5478 = vmatprep.subr.mxu0 %v5477
        %v5479 = vand.u32 %v1522, 4294901760
        %v5480 = vsub.f32 %v1522, %v5479
        %5481 = vmatpush1.msra.mxu0 %v5480
        %v5482 = vand.u32 %v1519, 4294901760
        %v5483 = vsub.f32 %v1519, %v5482
        %5484 = vmatprep.subr.mxu0 %v5483
        %v5485 = vand.u32 %v1518, 4294901760
        %v5486 = vsub.f32 %v1518, %v5485
        %5487 = vmatpush1.msra.mxu0 %v5486
        %v5488 = vand.u32 %v1515, 4294901760
        %v5489 = vsub.f32 %v1515, %v5488
        %5490 = vmatprep.subr.mxu0 %v5489
        %v5491 = vand.u32 %v1514, 4294901760
        %v5492 = vsub.f32 %v1514, %v5491
        %5493 = vmatpush1.msra.mxu0 %v5492
        %v5494 = vand.u32 %v1511, 4294901760
        %v5495 = vsub.f32 %v1511, %v5494
        %5496 = vmatprep.subr.mxu0 %v5495
        %v5497 = vand.u32 %v1510, 4294901760
        %v5498 = vsub.f32 %v1510, %v5497
        %5499 = vmatpush1.msra.mxu0 %v5498
        %5500 = vmatprep.subr.mxu0 0.0
        %5501 = vmatpush2.msra.mxu0 0.0
        %5502 = vmatprep.subr.mxu0 0.0
        %5503 = vmatpush2.msra.mxu0 0.0
        %5504 = vmatprep.subr.mxu0 0.0
        %5505 = vmatpush2.msra.mxu0 0.0
        %5506 = vmatprep.subr.mxu0 0.0
        %5507 = vmatpush2.msra.mxu0 0.0
        %5508 = vmatprep.subr.mxu0 0.0
        %5509 = vmatpush2.msra.mxu0 0.0
        %5510 = vmatprep.subr.mxu0 0.0
        %5511 = vmatpush2.msra.mxu0 0.0
        %5512 = vmatprep.subr.mxu0 0.0
        %5513 = vmatpush2.msra.mxu0 0.0
        %5514 = vmatprep.subr.mxu0 0.0
        %5515 = vmatpush2.msra.mxu0 0.0
        %5516 = vmatprep.subr.mxu0 0.0
        %5517 = vmatpush2.msra.mxu0 0.0
        %5518 = vmatprep.subr.mxu0 0.0
        %5519 = vmatpush2.msra.mxu0 0.0
        %5520 = vmatprep.subr.mxu0 0.0
        %5521 = vmatpush2.msra.mxu0 0.0
        %5522 = vmatprep.subr.mxu0 0.0
        %5523 = vmatpush2.msra.mxu0 0.0
        %5524 = vmatprep.subr.mxu0 0.0
        %5525 = vmatpush2.msra.mxu0 0.0
        %5526 = vmatprep.subr.mxu0 0.0
        %5527 = vmatpush2.msra.mxu0 0.0
        %5528 = vmatprep.subr.mxu0 0.0
        %5529 = vmatpush2.msra.mxu0 0.0
        %5530 = vmatprep.subr.mxu0 0.0
        %5531 = vmatpush2.msra.mxu0 0.0
        %5532 = vmatprep.mubr.f32.mxu0 0.0
        %v5533 = vand.u32 %v5056, 4294901760
        %v5534 = vsub.f32 %v5056, %v5533
        %5535 = vmatmul.mubr.f32.gmra.mxu0 %v5534
        %v5536 = vpop.f32.mrf.mxu0
        %v5537 = vadd.f32 %v5400, %v5536
        %v5538 = vpop.f32.mrf.mxu0
        %v5539 = vadd.f32 %v5402, %v5538
        %5540 = vdwg.mxu0
        %v5541 = vand.u32 %v1571, 4294901760
        %5542 = vmatprep.subr.mxu0 %v5541
        %v5543 = vand.u32 %v1570, 4294901760
        %5544 = vmatpush1.msra.mxu0 %v5543
        %v5545 = vand.u32 %v1567, 4294901760
        %5546 = vmatprep.subr.mxu0 %v5545
        %v5547 = vand.u32 %v1566, 4294901760
        %5548 = vmatpush1.msra.mxu0 %v5547
        %v5549 = vand.u32 %v1563, 4294901760
        %5550 = vmatprep.subr.mxu0 %v5549
        %v5551 = vand.u32 %v1562, 4294901760
        %5552 = vmatpush1.msra.mxu0 %v5551
        %v5553 = vand.u32 %v1559, 4294901760
        %5554 = vmatprep.subr.mxu0 %v5553
        %v5555 = vand.u32 %v1558, 4294901760
        %5556 = vmatpush1.msra.mxu0 %v5555
        %v5557 = vand.u32 %v1555, 4294901760
        %5558 = vmatprep.subr.mxu0 %v5557
        %v5559 = vand.u32 %v1554, 4294901760
        %5560 = vmatpush1.msra.mxu0 %v5559
        %v5561 = vand.u32 %v1551, 4294901760
        %5562 = vmatprep.subr.mxu0 %v5561
        %v5563 = vand.u32 %v1550, 4294901760
        %5564 = vmatpush1.msra.mxu0 %v5563
        %v5565 = vand.u32 %v1547, 4294901760
        %5566 = vmatprep.subr.mxu0 %v5565
        %v5567 = vand.u32 %v1546, 4294901760
        %5568 = vmatpush1.msra.mxu0 %v5567
        %v5569 = vand.u32 %v1543, 4294901760
        %5570 = vmatprep.subr.mxu0 %v5569
        %v5571 = vand.u32 %v1542, 4294901760
        %5572 = vmatpush1.msra.mxu0 %v5571
        %v5573 = vand.u32 %v1539, 4294901760
        %5574 = vmatprep.subr.mxu0 %v5573
        %v5575 = vand.u32 %v1538, 4294901760
        %5576 = vmatpush1.msra.mxu0 %v5575
        %v5577 = vand.u32 %v1535, 4294901760
        %5578 = vmatprep.subr.mxu0 %v5577
        %v5579 = vand.u32 %v1534, 4294901760
        %5580 = vmatpush1.msra.mxu0 %v5579
        %v5581 = vand.u32 %v1531, 4294901760
        %5582 = vmatprep.subr.mxu0 %v5581
        %v5583 = vand.u32 %v1530, 4294901760
        %5584 = vmatpush1.msra.mxu0 %v5583
        %v5585 = vand.u32 %v1527, 4294901760
        %5586 = vmatprep.subr.mxu0 %v5585
        %v5587 = vand.u32 %v1526, 4294901760
        %5588 = vmatpush1.msra.mxu0 %v5587
        %v5589 = vand.u32 %v1523, 4294901760
        %5590 = vmatprep.subr.mxu0 %v5589
        %v5591 = vand.u32 %v1522, 4294901760
        %5592 = vmatpush1.msra.mxu0 %v5591
        %v5593 = vand.u32 %v1519, 4294901760
        %5594 = vmatprep.subr.mxu0 %v5593
        %v5595 = vand.u32 %v1518, 4294901760
        %5596 = vmatpush1.msra.mxu0 %v5595
        %v5597 = vand.u32 %v1515, 4294901760
        %5598 = vmatprep.subr.mxu0 %v5597
        %v5599 = vand.u32 %v1514, 4294901760
        %5600 = vmatpush1.msra.mxu0 %v5599
        %v5601 = vand.u32 %v1511, 4294901760
        %5602 = vmatprep.subr.mxu0 %v5601
        %v5603 = vand.u32 %v1510, 4294901760
        %5604 = vmatpush1.msra.mxu0 %v5603
        %5605 = vmatprep.subr.mxu0 0.0
        %5606 = vmatpush2.msra.mxu0 0.0
        %5607 = vmatprep.subr.mxu0 0.0
        %5608 = vmatpush2.msra.mxu0 0.0
        %5609 = vmatprep.subr.mxu0 0.0
        %5610 = vmatpush2.msra.mxu0 0.0
        %5611 = vmatprep.subr.mxu0 0.0
        %5612 = vmatpush2.msra.mxu0 0.0
        %5613 = vmatprep.subr.mxu0 0.0
        %5614 = vmatpush2.msra.mxu0 0.0
        %5615 = vmatprep.subr.mxu0 0.0
        %5616 = vmatpush2.msra.mxu0 0.0
        %5617 = vmatprep.subr.mxu0 0.0
        %5618 = vmatpush2.msra.mxu0 0.0
        %5619 = vmatprep.subr.mxu0 0.0
        %5620 = vmatpush2.msra.mxu0 0.0
        %5621 = vmatprep.subr.mxu0 0.0
        %5622 = vmatpush2.msra.mxu0 0.0
        %5623 = vmatprep.subr.mxu0 0.0
        %5624 = vmatpush2.msra.mxu0 0.0
        %5625 = vmatprep.subr.mxu0 0.0
        %5626 = vmatpush2.msra.mxu0 0.0
        %5627 = vmatprep.subr.mxu0 0.0
        %5628 = vmatpush2.msra.mxu0 0.0
        %5629 = vmatprep.subr.mxu0 0.0
        %5630 = vmatpush2.msra.mxu0 0.0
        %5631 = vmatprep.subr.mxu0 0.0
        %5632 = vmatpush2.msra.mxu0 0.0
        %5633 = vmatprep.subr.mxu0 0.0
        %5634 = vmatpush2.msra.mxu0 0.0
        %5635 = vmatprep.subr.mxu0 0.0
        %5636 = vmatpush2.msra.mxu0 0.0
        %5637 = vmatprep.mubr.f32.mxu0 0.0
        %v5638 = vand.u32 %v5056, 4294901760
        %v5639 = vsub.f32 %v5056, %v5638
        %v5640 = vand.u32 %v5639, 4294901760
        %5641 = vmatmul.mubr.f32.gmra.mxu0 %v5640
        %v5642 = vpop.f32.mrf.mxu0
        %v5643 = vadd.f32 %v5537, %v5642
        %v5644 = vpop.f32.mrf.mxu0
        %v5645 = vadd.f32 %v5539, %v5644
        %5646 = vdwg.mxu0
        %v5647 = vand.u32 %v1571, 4294901760
        %v5648 = vsub.f32 %v1571, %v5647
        %v5649 = vand.u32 %v5648, 4294901760
        %5650 = vmatprep.subr.mxu0 %v5649
        %v5651 = vand.u32 %v1570, 4294901760
        %v5652 = vsub.f32 %v1570, %v5651
        %v5653 = vand.u32 %v5652, 4294901760
        %5654 = vmatpush1.msra.mxu0 %v5653
        %v5655 = vand.u32 %v1567, 4294901760
        %v5656 = vsub.f32 %v1567, %v5655
        %v5657 = vand.u32 %v5656, 4294901760
        %5658 = vmatprep.subr.mxu0 %v5657
        %v5659 = vand.u32 %v1566, 4294901760
        %v5660 = vsub.f32 %v1566, %v5659
        %v5661 = vand.u32 %v5660, 4294901760
        %5662 = vmatpush1.msra.mxu0 %v5661
        %v5663 = vand.u32 %v1563, 4294901760
        %v5664 = vsub.f32 %v1563, %v5663
        %v5665 = vand.u32 %v5664, 4294901760
        %5666 = vmatprep.subr.mxu0 %v5665
        %v5667 = vand.u32 %v1562, 4294901760
        %v5668 = vsub.f32 %v1562, %v5667
        %v5669 = vand.u32 %v5668, 4294901760
        %5670 = vmatpush1.msra.mxu0 %v5669
        %v5671 = vand.u32 %v1559, 4294901760
        %v5672 = vsub.f32 %v1559, %v5671
        %v5673 = vand.u32 %v5672, 4294901760
        %5674 = vmatprep.subr.mxu0 %v5673
        %v5675 = vand.u32 %v1558, 4294901760
        %v5676 = vsub.f32 %v1558, %v5675
        %v5677 = vand.u32 %v5676, 4294901760
        %5678 = vmatpush1.msra.mxu0 %v5677
        %v5679 = vand.u32 %v1555, 4294901760
        %v5680 = vsub.f32 %v1555, %v5679
        %v5681 = vand.u32 %v5680, 4294901760
        %5682 = vmatprep.subr.mxu0 %v5681
        %v5683 = vand.u32 %v1554, 4294901760
        %v5684 = vsub.f32 %v1554, %v5683
        %v5685 = vand.u32 %v5684, 4294901760
        %5686 = vmatpush1.msra.mxu0 %v5685
        %v5687 = vand.u32 %v1551, 4294901760
        %v5688 = vsub.f32 %v1551, %v5687
        %v5689 = vand.u32 %v5688, 4294901760
        %5690 = vmatprep.subr.mxu0 %v5689
        %v5691 = vand.u32 %v1550, 4294901760
        %v5692 = vsub.f32 %v1550, %v5691
        %v5693 = vand.u32 %v5692, 4294901760
        %5694 = vmatpush1.msra.mxu0 %v5693
        %v5695 = vand.u32 %v1547, 4294901760
        %v5696 = vsub.f32 %v1547, %v5695
        %v5697 = vand.u32 %v5696, 4294901760
        %5698 = vmatprep.subr.mxu0 %v5697
        %v5699 = vand.u32 %v1546, 4294901760
        %v5700 = vsub.f32 %v1546, %v5699
        %v5701 = vand.u32 %v5700, 4294901760
        %5702 = vmatpush1.msra.mxu0 %v5701
        %v5703 = vand.u32 %v1543, 4294901760
        %v5704 = vsub.f32 %v1543, %v5703
        %v5705 = vand.u32 %v5704, 4294901760
        %5706 = vmatprep.subr.mxu0 %v5705
        %v5707 = vand.u32 %v1542, 4294901760
        %v5708 = vsub.f32 %v1542, %v5707
        %v5709 = vand.u32 %v5708, 4294901760
        %5710 = vmatpush1.msra.mxu0 %v5709
        %v5711 = vand.u32 %v1539, 4294901760
        %v5712 = vsub.f32 %v1539, %v5711
        %v5713 = vand.u32 %v5712, 4294901760
        %5714 = vmatprep.subr.mxu0 %v5713
        %v5715 = vand.u32 %v1538, 4294901760
        %v5716 = vsub.f32 %v1538, %v5715
        %v5717 = vand.u32 %v5716, 4294901760
        %5718 = vmatpush1.msra.mxu0 %v5717
        %v5719 = vand.u32 %v1535, 4294901760
        %v5720 = vsub.f32 %v1535, %v5719
        %v5721 = vand.u32 %v5720, 4294901760
        %5722 = vmatprep.subr.mxu0 %v5721
        %v5723 = vand.u32 %v1534, 4294901760
        %v5724 = vsub.f32 %v1534, %v5723
        %v5725 = vand.u32 %v5724, 4294901760
        %5726 = vmatpush1.msra.mxu0 %v5725
        %v5727 = vand.u32 %v1531, 4294901760
        %v5728 = vsub.f32 %v1531, %v5727
        %v5729 = vand.u32 %v5728, 4294901760
        %5730 = vmatprep.subr.mxu0 %v5729
        %v5731 = vand.u32 %v1530, 4294901760
        %v5732 = vsub.f32 %v1530, %v5731
        %v5733 = vand.u32 %v5732, 4294901760
        %5734 = vmatpush1.msra.mxu0 %v5733
        %v5735 = vand.u32 %v1527, 4294901760
        %v5736 = vsub.f32 %v1527, %v5735
        %v5737 = vand.u32 %v5736, 4294901760
        %5738 = vmatprep.subr.mxu0 %v5737
        %v5739 = vand.u32 %v1526, 4294901760
        %v5740 = vsub.f32 %v1526, %v5739
        %v5741 = vand.u32 %v5740, 4294901760
        %5742 = vmatpush1.msra.mxu0 %v5741
        %v5743 = vand.u32 %v1523, 4294901760
        %v5744 = vsub.f32 %v1523, %v5743
        %v5745 = vand.u32 %v5744, 4294901760
        %5746 = vmatprep.subr.mxu0 %v5745
        %v5747 = vand.u32 %v1522, 4294901760
        %v5748 = vsub.f32 %v1522, %v5747
        %v5749 = vand.u32 %v5748, 4294901760
        %5750 = vmatpush1.msra.mxu0 %v5749
        %v5751 = vand.u32 %v1519, 4294901760
        %v5752 = vsub.f32 %v1519, %v5751
        %v5753 = vand.u32 %v5752, 4294901760
        %5754 = vmatprep.subr.mxu0 %v5753
        %v5755 = vand.u32 %v1518, 4294901760
        %v5756 = vsub.f32 %v1518, %v5755
        %v5757 = vand.u32 %v5756, 4294901760
        %5758 = vmatpush1.msra.mxu0 %v5757
        %v5759 = vand.u32 %v1515, 4294901760
        %v5760 = vsub.f32 %v1515, %v5759
        %v5761 = vand.u32 %v5760, 4294901760
        %5762 = vmatprep.subr.mxu0 %v5761
        %v5763 = vand.u32 %v1514, 4294901760
        %v5764 = vsub.f32 %v1514, %v5763
        %v5765 = vand.u32 %v5764, 4294901760
        %5766 = vmatpush1.msra.mxu0 %v5765
        %v5767 = vand.u32 %v1511, 4294901760
        %v5768 = vsub.f32 %v1511, %v5767
        %v5769 = vand.u32 %v5768, 4294901760
        %5770 = vmatprep.subr.mxu0 %v5769
        %v5771 = vand.u32 %v1510, 4294901760
        %v5772 = vsub.f32 %v1510, %v5771
        %v5773 = vand.u32 %v5772, 4294901760
        %5774 = vmatpush1.msra.mxu0 %v5773
        %5775 = vmatprep.subr.mxu0 0.0
        %5776 = vmatpush2.msra.mxu0 0.0
        %5777 = vmatprep.subr.mxu0 0.0
        %5778 = vmatpush2.msra.mxu0 0.0
        %5779 = vmatprep.subr.mxu0 0.0
        %5780 = vmatpush2.msra.mxu0 0.0
        %5781 = vmatprep.subr.mxu0 0.0
        %5782 = vmatpush2.msra.mxu0 0.0
        %5783 = vmatprep.subr.mxu0 0.0
        %5784 = vmatpush2.msra.mxu0 0.0
        %5785 = vmatprep.subr.mxu0 0.0
        %5786 = vmatpush2.msra.mxu0 0.0
        %5787 = vmatprep.subr.mxu0 0.0
        %5788 = vmatpush2.msra.mxu0 0.0
        %5789 = vmatprep.subr.mxu0 0.0
        %5790 = vmatpush2.msra.mxu0 0.0
        %5791 = vmatprep.subr.mxu0 0.0
        %5792 = vmatpush2.msra.mxu0 0.0
        %5793 = vmatprep.subr.mxu0 0.0
        %5794 = vmatpush2.msra.mxu0 0.0
        %5795 = vmatprep.subr.mxu0 0.0
        %5796 = vmatpush2.msra.mxu0 0.0
        %5797 = vmatprep.subr.mxu0 0.0
        %5798 = vmatpush2.msra.mxu0 0.0
        %5799 = vmatprep.subr.mxu0 0.0
        %5800 = vmatpush2.msra.mxu0 0.0
        %5801 = vmatprep.subr.mxu0 0.0
        %5802 = vmatpush2.msra.mxu0 0.0
        %5803 = vmatprep.subr.mxu0 0.0
        %5804 = vmatpush2.msra.mxu0 0.0
        %5805 = vmatprep.subr.mxu0 0.0
        %5806 = vmatpush2.msra.mxu0 0.0
        %5807 = vmatprep.mubr.f32.mxu0 0.0
        %v5808 = vand.u32 %v5056, 4294901760
        %5809 = vmatmul.mubr.f32.gmra.mxu0 %v5808
        %v5810 = vpop.f32.mrf.mxu0
        %v5811 = vadd.f32 %v5643, %v5810
        %v5812 = vpop.f32.mrf.mxu0
        %v5813 = vadd.f32 %v5645, %v5812
        %5814 = vdwg.mxu0
        %v5815 = vand.u32 %v1571, 4294901760
        %5816 = vmatprep.subr.mxu0 %v5815
        %v5817 = vand.u32 %v1570, 4294901760
        %5818 = vmatpush1.msra.mxu0 %v5817
        %v5819 = vand.u32 %v1567, 4294901760
        %5820 = vmatprep.subr.mxu0 %v5819
        %v5821 = vand.u32 %v1566, 4294901760
        %5822 = vmatpush1.msra.mxu0 %v5821
        %v5823 = vand.u32 %v1563, 4294901760
        %5824 = vmatprep.subr.mxu0 %v5823
        %v5825 = vand.u32 %v1562, 4294901760
        %5826 = vmatpush1.msra.mxu0 %v5825
        %v5827 = vand.u32 %v1559, 4294901760
        %5828 = vmatprep.subr.mxu0 %v5827
        %v5829 = vand.u32 %v1558, 4294901760
        %5830 = vmatpush1.msra.mxu0 %v5829
        %v5831 = vand.u32 %v1555, 4294901760
        %5832 = vmatprep.subr.mxu0 %v5831
        %v5833 = vand.u32 %v1554, 4294901760
        %5834 = vmatpush1.msra.mxu0 %v5833
        %v5835 = vand.u32 %v1551, 4294901760
        %5836 = vmatprep.subr.mxu0 %v5835
        %v5837 = vand.u32 %v1550, 4294901760
        %5838 = vmatpush1.msra.mxu0 %v5837
        %v5839 = vand.u32 %v1547, 4294901760
        %5840 = vmatprep.subr.mxu0 %v5839
        %v5841 = vand.u32 %v1546, 4294901760
        %5842 = vmatpush1.msra.mxu0 %v5841
        %v5843 = vand.u32 %v1543, 4294901760
        %5844 = vmatprep.subr.mxu0 %v5843
        %v5845 = vand.u32 %v1542, 4294901760
        %5846 = vmatpush1.msra.mxu0 %v5845
        %v5847 = vand.u32 %v1539, 4294901760
        %5848 = vmatprep.subr.mxu0 %v5847
        %v5849 = vand.u32 %v1538, 4294901760
        %5850 = vmatpush1.msra.mxu0 %v5849
        %v5851 = vand.u32 %v1535, 4294901760
        %5852 = vmatprep.subr.mxu0 %v5851
        %v5853 = vand.u32 %v1534, 4294901760
        %5854 = vmatpush1.msra.mxu0 %v5853
        %v5855 = vand.u32 %v1531, 4294901760
        %5856 = vmatprep.subr.mxu0 %v5855
        %v5857 = vand.u32 %v1530, 4294901760
        %5858 = vmatpush1.msra.mxu0 %v5857
        %v5859 = vand.u32 %v1527, 4294901760
        %5860 = vmatprep.subr.mxu0 %v5859
        %v5861 = vand.u32 %v1526, 4294901760
        %5862 = vmatpush1.msra.mxu0 %v5861
        %v5863 = vand.u32 %v1523, 4294901760
        %5864 = vmatprep.subr.mxu0 %v5863
        %v5865 = vand.u32 %v1522, 4294901760
        %5866 = vmatpush1.msra.mxu0 %v5865
        %v5867 = vand.u32 %v1519, 4294901760
        %5868 = vmatprep.subr.mxu0 %v5867
        %v5869 = vand.u32 %v1518, 4294901760
        %5870 = vmatpush1.msra.mxu0 %v5869
        %v5871 = vand.u32 %v1515, 4294901760
        %5872 = vmatprep.subr.mxu0 %v5871
        %v5873 = vand.u32 %v1514, 4294901760
        %5874 = vmatpush1.msra.mxu0 %v5873
        %v5875 = vand.u32 %v1511, 4294901760
        %5876 = vmatprep.subr.mxu0 %v5875
        %v5877 = vand.u32 %v1510, 4294901760
        %5878 = vmatpush1.msra.mxu0 %v5877
        %5879 = vmatprep.subr.mxu0 0.0
        %5880 = vmatpush2.msra.mxu0 0.0
        %5881 = vmatprep.subr.mxu0 0.0
        %5882 = vmatpush2.msra.mxu0 0.0
        %5883 = vmatprep.subr.mxu0 0.0
        %5884 = vmatpush2.msra.mxu0 0.0
        %5885 = vmatprep.subr.mxu0 0.0
        %5886 = vmatpush2.msra.mxu0 0.0
        %5887 = vmatprep.subr.mxu0 0.0
        %5888 = vmatpush2.msra.mxu0 0.0
        %5889 = vmatprep.subr.mxu0 0.0
        %5890 = vmatpush2.msra.mxu0 0.0
        %5891 = vmatprep.subr.mxu0 0.0
        %5892 = vmatpush2.msra.mxu0 0.0
        %5893 = vmatprep.subr.mxu0 0.0
        %5894 = vmatpush2.msra.mxu0 0.0
        %5895 = vmatprep.subr.mxu0 0.0
        %5896 = vmatpush2.msra.mxu0 0.0
        %5897 = vmatprep.subr.mxu0 0.0
        %5898 = vmatpush2.msra.mxu0 0.0
        %5899 = vmatprep.subr.mxu0 0.0
        %5900 = vmatpush2.msra.mxu0 0.0
        %5901 = vmatprep.subr.mxu0 0.0
        %5902 = vmatpush2.msra.mxu0 0.0
        %5903 = vmatprep.subr.mxu0 0.0
        %5904 = vmatpush2.msra.mxu0 0.0
        %5905 = vmatprep.subr.mxu0 0.0
        %5906 = vmatpush2.msra.mxu0 0.0
        %5907 = vmatprep.subr.mxu0 0.0
        %5908 = vmatpush2.msra.mxu0 0.0
        %5909 = vmatprep.subr.mxu0 0.0
        %5910 = vmatpush2.msra.mxu0 0.0
        %5911 = vmatprep.mubr.f32.mxu0 0.0
        %v5912 = vand.u32 %v5056, 4294901760
        %5913 = vmatmul.mubr.f32.gmra.mxu0 %v5912
        %v5914 = vpop.f32.mrf.mxu0
        %v5915 = vadd.f32 %v5811, %v5914
        %v5916 = vpop.f32.mrf.mxu0
        %v5917 = vadd.f32 %v5813, %v5916
        %5918 = vdwg.mxu0
        %v5919 = vand.u32 %v1573, 4294901760
        %5920 = vmatprep.subr.mxu0 %v5919
        %v5921 = vand.u32 %v1572, 4294901760
        %5922 = vmatpush1.msra.mxu0 %v5921
        %v5923 = vand.u32 %v1569, 4294901760
        %5924 = vmatprep.subr.mxu0 %v5923
        %v5925 = vand.u32 %v1568, 4294901760
        %5926 = vmatpush1.msra.mxu0 %v5925
        %v5927 = vand.u32 %v1565, 4294901760
        %5928 = vmatprep.subr.mxu0 %v5927
        %v5929 = vand.u32 %v1564, 4294901760
        %5930 = vmatpush1.msra.mxu0 %v5929
        %v5931 = vand.u32 %v1561, 4294901760
        %5932 = vmatprep.subr.mxu0 %v5931
        %v5933 = vand.u32 %v1560, 4294901760
        %5934 = vmatpush1.msra.mxu0 %v5933
        %v5935 = vand.u32 %v1557, 4294901760
        %5936 = vmatprep.subr.mxu0 %v5935
        %v5937 = vand.u32 %v1556, 4294901760
        %5938 = vmatpush1.msra.mxu0 %v5937
        %v5939 = vand.u32 %v1553, 4294901760
        %5940 = vmatprep.subr.mxu0 %v5939
        %v5941 = vand.u32 %v1552, 4294901760
        %5942 = vmatpush1.msra.mxu0 %v5941
        %v5943 = vand.u32 %v1549, 4294901760
        %5944 = vmatprep.subr.mxu0 %v5943
        %v5945 = vand.u32 %v1548, 4294901760
        %5946 = vmatpush1.msra.mxu0 %v5945
        %v5947 = vand.u32 %v1545, 4294901760
        %5948 = vmatprep.subr.mxu0 %v5947
        %v5949 = vand.u32 %v1544, 4294901760
        %5950 = vmatpush1.msra.mxu0 %v5949
        %v5951 = vand.u32 %v1541, 4294901760
        %5952 = vmatprep.subr.mxu0 %v5951
        %v5953 = vand.u32 %v1540, 4294901760
        %5954 = vmatpush1.msra.mxu0 %v5953
        %v5955 = vand.u32 %v1537, 4294901760
        %5956 = vmatprep.subr.mxu0 %v5955
        %v5957 = vand.u32 %v1536, 4294901760
        %5958 = vmatpush1.msra.mxu0 %v5957
        %v5959 = vand.u32 %v1533, 4294901760
        %5960 = vmatprep.subr.mxu0 %v5959
        %v5961 = vand.u32 %v1532, 4294901760
        %5962 = vmatpush1.msra.mxu0 %v5961
        %v5963 = vand.u32 %v1529, 4294901760
        %5964 = vmatprep.subr.mxu0 %v5963
        %v5965 = vand.u32 %v1528, 4294901760
        %5966 = vmatpush1.msra.mxu0 %v5965
        %v5967 = vand.u32 %v1525, 4294901760
        %5968 = vmatprep.subr.mxu0 %v5967
        %v5969 = vand.u32 %v1524, 4294901760
        %5970 = vmatpush1.msra.mxu0 %v5969
        %v5971 = vand.u32 %v1521, 4294901760
        %5972 = vmatprep.subr.mxu0 %v5971
        %v5973 = vand.u32 %v1520, 4294901760
        %5974 = vmatpush1.msra.mxu0 %v5973
        %v5975 = vand.u32 %v1517, 4294901760
        %5976 = vmatprep.subr.mxu0 %v5975
        %v5977 = vand.u32 %v1516, 4294901760
        %5978 = vmatpush1.msra.mxu0 %v5977
        %v5979 = vand.u32 %v1513, 4294901760
        %5980 = vmatprep.subr.mxu0 %v5979
        %v5981 = vand.u32 %v1512, 4294901760
        %5982 = vmatpush1.msra.mxu0 %v5981
        %5983 = vmatprep.subr.mxu0 0.0
        %5984 = vmatpush2.msra.mxu0 0.0
        %5985 = vmatprep.subr.mxu0 0.0
        %5986 = vmatpush2.msra.mxu0 0.0
        %5987 = vmatprep.subr.mxu0 0.0
        %5988 = vmatpush2.msra.mxu0 0.0
        %5989 = vmatprep.subr.mxu0 0.0
        %5990 = vmatpush2.msra.mxu0 0.0
        %5991 = vmatprep.subr.mxu0 0.0
        %5992 = vmatpush2.msra.mxu0 0.0
        %5993 = vmatprep.subr.mxu0 0.0
        %5994 = vmatpush2.msra.mxu0 0.0
        %5995 = vmatprep.subr.mxu0 0.0
        %5996 = vmatpush2.msra.mxu0 0.0
        %5997 = vmatprep.subr.mxu0 0.0
        %5998 = vmatpush2.msra.mxu0 0.0
        %5999 = vmatprep.subr.mxu0 0.0
        %6000 = vmatpush2.msra.mxu0 0.0
        %6001 = vmatprep.subr.mxu0 0.0
        %6002 = vmatpush2.msra.mxu0 0.0
        %6003 = vmatprep.subr.mxu0 0.0
        %6004 = vmatpush2.msra.mxu0 0.0
        %6005 = vmatprep.subr.mxu0 0.0
        %6006 = vmatpush2.msra.mxu0 0.0
        %6007 = vmatprep.subr.mxu0 0.0
        %6008 = vmatpush2.msra.mxu0 0.0
        %6009 = vmatprep.subr.mxu0 0.0
        %6010 = vmatpush2.msra.mxu0 0.0
        %6011 = vmatprep.subr.mxu0 0.0
        %6012 = vmatpush2.msra.mxu0 0.0
        %6013 = vmatprep.subr.mxu0 0.0
        %6014 = vmatpush2.msra.mxu0 0.0
        %6015 = vmatprep.mubr.f32.mxu0 0.0
        %v6016 = vand.u32 %v5056, 4294901760
        %v6017 = vsub.f32 %v5056, %v6016
        %v6018 = vand.u32 %v6017, 4294901760
        %v6019 = vsub.f32 %v6017, %v6018
        %v6020 = vand.u32 %v6019, 4294901760
        %6021 = vmatmul.mubr.f32.gmra.mxu0 %v6020
        %v6022 = vpop.f32.mrf.mxu0
        %v6023 = vadd.f32 0.0, %v6022
        %v6024 = vpop.f32.mrf.mxu0
        %v6025 = vadd.f32 0.0, %v6024
        %6026 = vdwg.mxu0
        %v6027 = vand.u32 %v1573, 4294901760
        %v6028 = vsub.f32 %v1573, %v6027
        %v6029 = vand.u32 %v6028, 4294901760
        %v6030 = vsub.f32 %v6028, %v6029
        %v6031 = vand.u32 %v6030, 4294901760
        %6032 = vmatprep.subr.mxu0 %v6031
        %v6033 = vand.u32 %v1572, 4294901760
        %v6034 = vsub.f32 %v1572, %v6033
        %v6035 = vand.u32 %v6034, 4294901760
        %v6036 = vsub.f32 %v6034, %v6035
        %v6037 = vand.u32 %v6036, 4294901760
        %6038 = vmatpush1.msra.mxu0 %v6037
        %v6039 = vand.u32 %v1569, 4294901760
        %v6040 = vsub.f32 %v1569, %v6039
        %v6041 = vand.u32 %v6040, 4294901760
        %v6042 = vsub.f32 %v6040, %v6041
        %v6043 = vand.u32 %v6042, 4294901760
        %6044 = vmatprep.subr.mxu0 %v6043
        %v6045 = vand.u32 %v1568, 4294901760
        %v6046 = vsub.f32 %v1568, %v6045
        %v6047 = vand.u32 %v6046, 4294901760
        %v6048 = vsub.f32 %v6046, %v6047
        %v6049 = vand.u32 %v6048, 4294901760
        %6050 = vmatpush1.msra.mxu0 %v6049
        %v6051 = vand.u32 %v1565, 4294901760
        %v6052 = vsub.f32 %v1565, %v6051
        %v6053 = vand.u32 %v6052, 4294901760
        %v6054 = vsub.f32 %v6052, %v6053
        %v6055 = vand.u32 %v6054, 4294901760
        %6056 = vmatprep.subr.mxu0 %v6055
        %v6057 = vand.u32 %v1564, 4294901760
        %v6058 = vsub.f32 %v1564, %v6057
        %v6059 = vand.u32 %v6058, 4294901760
        %v6060 = vsub.f32 %v6058, %v6059
        %v6061 = vand.u32 %v6060, 4294901760
        %6062 = vmatpush1.msra.mxu0 %v6061
        %v6063 = vand.u32 %v1561, 4294901760
        %v6064 = vsub.f32 %v1561, %v6063
        %v6065 = vand.u32 %v6064, 4294901760
        %v6066 = vsub.f32 %v6064, %v6065
        %v6067 = vand.u32 %v6066, 4294901760
        %6068 = vmatprep.subr.mxu0 %v6067
        %v6069 = vand.u32 %v1560, 4294901760
        %v6070 = vsub.f32 %v1560, %v6069
        %v6071 = vand.u32 %v6070, 4294901760
        %v6072 = vsub.f32 %v6070, %v6071
        %v6073 = vand.u32 %v6072, 4294901760
        %6074 = vmatpush1.msra.mxu0 %v6073
        %v6075 = vand.u32 %v1557, 4294901760
        %v6076 = vsub.f32 %v1557, %v6075
        %v6077 = vand.u32 %v6076, 4294901760
        %v6078 = vsub.f32 %v6076, %v6077
        %v6079 = vand.u32 %v6078, 4294901760
        %6080 = vmatprep.subr.mxu0 %v6079
        %v6081 = vand.u32 %v1556, 4294901760
        %v6082 = vsub.f32 %v1556, %v6081
        %v6083 = vand.u32 %v6082, 4294901760
        %v6084 = vsub.f32 %v6082, %v6083
        %v6085 = vand.u32 %v6084, 4294901760
        %6086 = vmatpush1.msra.mxu0 %v6085
        %v6087 = vand.u32 %v1553, 4294901760
        %v6088 = vsub.f32 %v1553, %v6087
        %v6089 = vand.u32 %v6088, 4294901760
        %v6090 = vsub.f32 %v6088, %v6089
        %v6091 = vand.u32 %v6090, 4294901760
        %6092 = vmatprep.subr.mxu0 %v6091
        %v6093 = vand.u32 %v1552, 4294901760
        %v6094 = vsub.f32 %v1552, %v6093
        %v6095 = vand.u32 %v6094, 4294901760
        %v6096 = vsub.f32 %v6094, %v6095
        %v6097 = vand.u32 %v6096, 4294901760
        %6098 = vmatpush1.msra.mxu0 %v6097
        %v6099 = vand.u32 %v1549, 4294901760
        %v6100 = vsub.f32 %v1549, %v6099
        %v6101 = vand.u32 %v6100, 4294901760
        %v6102 = vsub.f32 %v6100, %v6101
        %v6103 = vand.u32 %v6102, 4294901760
        %6104 = vmatprep.subr.mxu0 %v6103
        %v6105 = vand.u32 %v1548, 4294901760
        %v6106 = vsub.f32 %v1548, %v6105
        %v6107 = vand.u32 %v6106, 4294901760
        %v6108 = vsub.f32 %v6106, %v6107
        %v6109 = vand.u32 %v6108, 4294901760
        %6110 = vmatpush1.msra.mxu0 %v6109
        %v6111 = vand.u32 %v1545, 4294901760
        %v6112 = vsub.f32 %v1545, %v6111
        %v6113 = vand.u32 %v6112, 4294901760
        %v6114 = vsub.f32 %v6112, %v6113
        %v6115 = vand.u32 %v6114, 4294901760
        %6116 = vmatprep.subr.mxu0 %v6115
        %v6117 = vand.u32 %v1544, 4294901760
        %v6118 = vsub.f32 %v1544, %v6117
        %v6119 = vand.u32 %v6118, 4294901760
        %v6120 = vsub.f32 %v6118, %v6119
        %v6121 = vand.u32 %v6120, 4294901760
        %6122 = vmatpush1.msra.mxu0 %v6121
        %v6123 = vand.u32 %v1541, 4294901760
        %v6124 = vsub.f32 %v1541, %v6123
        %v6125 = vand.u32 %v6124, 4294901760
        %v6126 = vsub.f32 %v6124, %v6125
        %v6127 = vand.u32 %v6126, 4294901760
        %6128 = vmatprep.subr.mxu0 %v6127
        %v6129 = vand.u32 %v1540, 4294901760
        %v6130 = vsub.f32 %v1540, %v6129
        %v6131 = vand.u32 %v6130, 4294901760
        %v6132 = vsub.f32 %v6130, %v6131
        %v6133 = vand.u32 %v6132, 4294901760
        %6134 = vmatpush1.msra.mxu0 %v6133
        %v6135 = vand.u32 %v1537, 4294901760
        %v6136 = vsub.f32 %v1537, %v6135
        %v6137 = vand.u32 %v6136, 4294901760
        %v6138 = vsub.f32 %v6136, %v6137
        %v6139 = vand.u32 %v6138, 4294901760
        %6140 = vmatprep.subr.mxu0 %v6139
        %v6141 = vand.u32 %v1536, 4294901760
        %v6142 = vsub.f32 %v1536, %v6141
        %v6143 = vand.u32 %v6142, 4294901760
        %v6144 = vsub.f32 %v6142, %v6143
        %v6145 = vand.u32 %v6144, 4294901760
        %6146 = vmatpush1.msra.mxu0 %v6145
        %v6147 = vand.u32 %v1533, 4294901760
        %v6148 = vsub.f32 %v1533, %v6147
        %v6149 = vand.u32 %v6148, 4294901760
        %v6150 = vsub.f32 %v6148, %v6149
        %v6151 = vand.u32 %v6150, 4294901760
        %6152 = vmatprep.subr.mxu0 %v6151
        %v6153 = vand.u32 %v1532, 4294901760
        %v6154 = vsub.f32 %v1532, %v6153
        %v6155 = vand.u32 %v6154, 4294901760
        %v6156 = vsub.f32 %v6154, %v6155
        %v6157 = vand.u32 %v6156, 4294901760
        %6158 = vmatpush1.msra.mxu0 %v6157
        %v6159 = vand.u32 %v1529, 4294901760
        %v6160 = vsub.f32 %v1529, %v6159
        %v6161 = vand.u32 %v6160, 4294901760
        %v6162 = vsub.f32 %v6160, %v6161
        %v6163 = vand.u32 %v6162, 4294901760
        %6164 = vmatprep.subr.mxu0 %v6163
        %v6165 = vand.u32 %v1528, 4294901760
        %v6166 = vsub.f32 %v1528, %v6165
        %v6167 = vand.u32 %v6166, 4294901760
        %v6168 = vsub.f32 %v6166, %v6167
        %v6169 = vand.u32 %v6168, 4294901760
        %6170 = vmatpush1.msra.mxu0 %v6169
        %v6171 = vand.u32 %v1525, 4294901760
        %v6172 = vsub.f32 %v1525, %v6171
        %v6173 = vand.u32 %v6172, 4294901760
        %v6174 = vsub.f32 %v6172, %v6173
        %v6175 = vand.u32 %v6174, 4294901760
        %6176 = vmatprep.subr.mxu0 %v6175
        %v6177 = vand.u32 %v1524, 4294901760
        %v6178 = vsub.f32 %v1524, %v6177
        %v6179 = vand.u32 %v6178, 4294901760
        %v6180 = vsub.f32 %v6178, %v6179
        %v6181 = vand.u32 %v6180, 4294901760
        %6182 = vmatpush1.msra.mxu0 %v6181
        %v6183 = vand.u32 %v1521, 4294901760
        %v6184 = vsub.f32 %v1521, %v6183
        %v6185 = vand.u32 %v6184, 4294901760
        %v6186 = vsub.f32 %v6184, %v6185
        %v6187 = vand.u32 %v6186, 4294901760
        %6188 = vmatprep.subr.mxu0 %v6187
        %v6189 = vand.u32 %v1520, 4294901760
        %v6190 = vsub.f32 %v1520, %v6189
        %v6191 = vand.u32 %v6190, 4294901760
        %v6192 = vsub.f32 %v6190, %v6191
        %v6193 = vand.u32 %v6192, 4294901760
        %6194 = vmatpush1.msra.mxu0 %v6193
        %v6195 = vand.u32 %v1517, 4294901760
        %v6196 = vsub.f32 %v1517, %v6195
        %v6197 = vand.u32 %v6196, 4294901760
        %v6198 = vsub.f32 %v6196, %v6197
        %v6199 = vand.u32 %v6198, 4294901760
        %6200 = vmatprep.subr.mxu0 %v6199
        %v6201 = vand.u32 %v1516, 4294901760
        %v6202 = vsub.f32 %v1516, %v6201
        %v6203 = vand.u32 %v6202, 4294901760
        %v6204 = vsub.f32 %v6202, %v6203
        %v6205 = vand.u32 %v6204, 4294901760
        %6206 = vmatpush1.msra.mxu0 %v6205
        %v6207 = vand.u32 %v1513, 4294901760
        %v6208 = vsub.f32 %v1513, %v6207
        %v6209 = vand.u32 %v6208, 4294901760
        %v6210 = vsub.f32 %v6208, %v6209
        %v6211 = vand.u32 %v6210, 4294901760
        %6212 = vmatprep.subr.mxu0 %v6211
        %v6213 = vand.u32 %v1512, 4294901760
        %v6214 = vsub.f32 %v1512, %v6213
        %v6215 = vand.u32 %v6214, 4294901760
        %v6216 = vsub.f32 %v6214, %v6215
        %v6217 = vand.u32 %v6216, 4294901760
        %6218 = vmatpush1.msra.mxu0 %v6217
        %6219 = vmatprep.subr.mxu0 0.0
        %6220 = vmatpush2.msra.mxu0 0.0
        %6221 = vmatprep.subr.mxu0 0.0
        %6222 = vmatpush2.msra.mxu0 0.0
        %6223 = vmatprep.subr.mxu0 0.0
        %6224 = vmatpush2.msra.mxu0 0.0
        %6225 = vmatprep.subr.mxu0 0.0
        %6226 = vmatpush2.msra.mxu0 0.0
        %6227 = vmatprep.subr.mxu0 0.0
        %6228 = vmatpush2.msra.mxu0 0.0
        %6229 = vmatprep.subr.mxu0 0.0
        %6230 = vmatpush2.msra.mxu0 0.0
        %6231 = vmatprep.subr.mxu0 0.0
        %6232 = vmatpush2.msra.mxu0 0.0
        %6233 = vmatprep.subr.mxu0 0.0
        %6234 = vmatpush2.msra.mxu0 0.0
        %6235 = vmatprep.subr.mxu0 0.0
        %6236 = vmatpush2.msra.mxu0 0.0
        %6237 = vmatprep.subr.mxu0 0.0
        %6238 = vmatpush2.msra.mxu0 0.0
        %6239 = vmatprep.subr.mxu0 0.0
        %6240 = vmatpush2.msra.mxu0 0.0
        %6241 = vmatprep.subr.mxu0 0.0
        %6242 = vmatpush2.msra.mxu0 0.0
        %6243 = vmatprep.subr.mxu0 0.0
        %6244 = vmatpush2.msra.mxu0 0.0
        %6245 = vmatprep.subr.mxu0 0.0
        %6246 = vmatpush2.msra.mxu0 0.0
        %6247 = vmatprep.subr.mxu0 0.0
        %6248 = vmatpush2.msra.mxu0 0.0
        %6249 = vmatprep.subr.mxu0 0.0
        %6250 = vmatpush2.msra.mxu0 0.0
        %6251 = vmatprep.mubr.f32.mxu0 0.0
        %v6252 = vand.u32 %v5056, 4294901760
        %6253 = vmatmul.mubr.f32.gmra.mxu0 %v6252
        %v6254 = vpop.f32.mrf.mxu0
        %v6255 = vadd.f32 %v6023, %v6254
        %v6256 = vpop.f32.mrf.mxu0
        %v6257 = vadd.f32 %v6025, %v6256
        %6258 = vdwg.mxu0
        %v6259 = vand.u32 %v1573, 4294901760
        %v6260 = vsub.f32 %v1573, %v6259
        %6261 = vmatprep.subr.mxu0 %v6260
        %v6262 = vand.u32 %v1572, 4294901760
        %v6263 = vsub.f32 %v1572, %v6262
        %6264 = vmatpush1.msra.mxu0 %v6263
        %v6265 = vand.u32 %v1569, 4294901760
        %v6266 = vsub.f32 %v1569, %v6265
        %6267 = vmatprep.subr.mxu0 %v6266
        %v6268 = vand.u32 %v1568, 4294901760
        %v6269 = vsub.f32 %v1568, %v6268
        %6270 = vmatpush1.msra.mxu0 %v6269
        %v6271 = vand.u32 %v1565, 4294901760
        %v6272 = vsub.f32 %v1565, %v6271
        %6273 = vmatprep.subr.mxu0 %v6272
        %v6274 = vand.u32 %v1564, 4294901760
        %v6275 = vsub.f32 %v1564, %v6274
        %6276 = vmatpush1.msra.mxu0 %v6275
        %v6277 = vand.u32 %v1561, 4294901760
        %v6278 = vsub.f32 %v1561, %v6277
        %6279 = vmatprep.subr.mxu0 %v6278
        %v6280 = vand.u32 %v1560, 4294901760
        %v6281 = vsub.f32 %v1560, %v6280
        %6282 = vmatpush1.msra.mxu0 %v6281
        %v6283 = vand.u32 %v1557, 4294901760
        %v6284 = vsub.f32 %v1557, %v6283
        %6285 = vmatprep.subr.mxu0 %v6284
        %v6286 = vand.u32 %v1556, 4294901760
        %v6287 = vsub.f32 %v1556, %v6286
        %6288 = vmatpush1.msra.mxu0 %v6287
        %v6289 = vand.u32 %v1553, 4294901760
        %v6290 = vsub.f32 %v1553, %v6289
        %6291 = vmatprep.subr.mxu0 %v6290
        %v6292 = vand.u32 %v1552, 4294901760
        %v6293 = vsub.f32 %v1552, %v6292
        %6294 = vmatpush1.msra.mxu0 %v6293
        %v6295 = vand.u32 %v1549, 4294901760
        %v6296 = vsub.f32 %v1549, %v6295
        %6297 = vmatprep.subr.mxu0 %v6296
        %v6298 = vand.u32 %v1548, 4294901760
        %v6299 = vsub.f32 %v1548, %v6298
        %6300 = vmatpush1.msra.mxu0 %v6299
        %v6301 = vand.u32 %v1545, 4294901760
        %v6302 = vsub.f32 %v1545, %v6301
        %6303 = vmatprep.subr.mxu0 %v6302
        %v6304 = vand.u32 %v1544, 4294901760
        %v6305 = vsub.f32 %v1544, %v6304
        %6306 = vmatpush1.msra.mxu0 %v6305
        %v6307 = vand.u32 %v1541, 4294901760
        %v6308 = vsub.f32 %v1541, %v6307
        %6309 = vmatprep.subr.mxu0 %v6308
        %v6310 = vand.u32 %v1540, 4294901760
        %v6311 = vsub.f32 %v1540, %v6310
        %6312 = vmatpush1.msra.mxu0 %v6311
        %v6313 = vand.u32 %v1537, 4294901760
        %v6314 = vsub.f32 %v1537, %v6313
        %6315 = vmatprep.subr.mxu0 %v6314
        %v6316 = vand.u32 %v1536, 4294901760
        %v6317 = vsub.f32 %v1536, %v6316
        %6318 = vmatpush1.msra.mxu0 %v6317
        %v6319 = vand.u32 %v1533, 4294901760
        %v6320 = vsub.f32 %v1533, %v6319
        %6321 = vmatprep.subr.mxu0 %v6320
        %v6322 = vand.u32 %v1532, 4294901760
        %v6323 = vsub.f32 %v1532, %v6322
        %6324 = vmatpush1.msra.mxu0 %v6323
        %v6325 = vand.u32 %v1529, 4294901760
        %v6326 = vsub.f32 %v1529, %v6325
        %6327 = vmatprep.subr.mxu0 %v6326
        %v6328 = vand.u32 %v1528, 4294901760
        %v6329 = vsub.f32 %v1528, %v6328
        %6330 = vmatpush1.msra.mxu0 %v6329
        %v6331 = vand.u32 %v1525, 4294901760
        %v6332 = vsub.f32 %v1525, %v6331
        %6333 = vmatprep.subr.mxu0 %v6332
        %v6334 = vand.u32 %v1524, 4294901760
        %v6335 = vsub.f32 %v1524, %v6334
        %6336 = vmatpush1.msra.mxu0 %v6335
        %v6337 = vand.u32 %v1521, 4294901760
        %v6338 = vsub.f32 %v1521, %v6337
        %6339 = vmatprep.subr.mxu0 %v6338
        %v6340 = vand.u32 %v1520, 4294901760
        %v6341 = vsub.f32 %v1520, %v6340
        %6342 = vmatpush1.msra.mxu0 %v6341
        %v6343 = vand.u32 %v1517, 4294901760
        %v6344 = vsub.f32 %v1517, %v6343
        %6345 = vmatprep.subr.mxu0 %v6344
        %v6346 = vand.u32 %v1516, 4294901760
        %v6347 = vsub.f32 %v1516, %v6346
        %6348 = vmatpush1.msra.mxu0 %v6347
        %v6349 = vand.u32 %v1513, 4294901760
        %v6350 = vsub.f32 %v1513, %v6349
        %6351 = vmatprep.subr.mxu0 %v6350
        %v6352 = vand.u32 %v1512, 4294901760
        %v6353 = vsub.f32 %v1512, %v6352
        %6354 = vmatpush1.msra.mxu0 %v6353
        %6355 = vmatprep.subr.mxu0 0.0
        %6356 = vmatpush2.msra.mxu0 0.0
        %6357 = vmatprep.subr.mxu0 0.0
        %6358 = vmatpush2.msra.mxu0 0.0
        %6359 = vmatprep.subr.mxu0 0.0
        %6360 = vmatpush2.msra.mxu0 0.0
        %6361 = vmatprep.subr.mxu0 0.0
        %6362 = vmatpush2.msra.mxu0 0.0
        %6363 = vmatprep.subr.mxu0 0.0
        %6364 = vmatpush2.msra.mxu0 0.0
        %6365 = vmatprep.subr.mxu0 0.0
        %6366 = vmatpush2.msra.mxu0 0.0
        %6367 = vmatprep.subr.mxu0 0.0
        %6368 = vmatpush2.msra.mxu0 0.0
        %6369 = vmatprep.subr.mxu0 0.0
        %6370 = vmatpush2.msra.mxu0 0.0
        %6371 = vmatprep.subr.mxu0 0.0
        %6372 = vmatpush2.msra.mxu0 0.0
        %6373 = vmatprep.subr.mxu0 0.0
        %6374 = vmatpush2.msra.mxu0 0.0
        %6375 = vmatprep.subr.mxu0 0.0
        %6376 = vmatpush2.msra.mxu0 0.0
        %6377 = vmatprep.subr.mxu0 0.0
        %6378 = vmatpush2.msra.mxu0 0.0
        %6379 = vmatprep.subr.mxu0 0.0
        %6380 = vmatpush2.msra.mxu0 0.0
        %6381 = vmatprep.subr.mxu0 0.0
        %6382 = vmatpush2.msra.mxu0 0.0
        %6383 = vmatprep.subr.mxu0 0.0
        %6384 = vmatpush2.msra.mxu0 0.0
        %6385 = vmatprep.subr.mxu0 0.0
        %6386 = vmatpush2.msra.mxu0 0.0
        %6387 = vmatprep.mubr.f32.mxu0 0.0
        %v6388 = vand.u32 %v5056, 4294901760
        %v6389 = vsub.f32 %v5056, %v6388
        %6390 = vmatmul.mubr.f32.gmra.mxu0 %v6389
        %v6391 = vpop.f32.mrf.mxu0
        %v6392 = vadd.f32 %v6255, %v6391
        %v6393 = vpop.f32.mrf.mxu0
        %v6394 = vadd.f32 %v6257, %v6393
        %6395 = vdwg.mxu0
        %v6396 = vand.u32 %v1573, 4294901760
        %6397 = vmatprep.subr.mxu0 %v6396
        %v6398 = vand.u32 %v1572, 4294901760
        %6399 = vmatpush1.msra.mxu0 %v6398
        %v6400 = vand.u32 %v1569, 4294901760
        %6401 = vmatprep.subr.mxu0 %v6400
        %v6402 = vand.u32 %v1568, 4294901760
        %6403 = vmatpush1.msra.mxu0 %v6402
        %v6404 = vand.u32 %v1565, 4294901760
        %6405 = vmatprep.subr.mxu0 %v6404
        %v6406 = vand.u32 %v1564, 4294901760
        %6407 = vmatpush1.msra.mxu0 %v6406
        %v6408 = vand.u32 %v1561, 4294901760
        %6409 = vmatprep.subr.mxu0 %v6408
        %v6410 = vand.u32 %v1560, 4294901760
        %6411 = vmatpush1.msra.mxu0 %v6410
        %v6412 = vand.u32 %v1557, 4294901760
        %6413 = vmatprep.subr.mxu0 %v6412
        %v6414 = vand.u32 %v1556, 4294901760
        %6415 = vmatpush1.msra.mxu0 %v6414
        %v6416 = vand.u32 %v1553, 4294901760
        %6417 = vmatprep.subr.mxu0 %v6416
        %v6418 = vand.u32 %v1552, 4294901760
        %6419 = vmatpush1.msra.mxu0 %v6418
        %v6420 = vand.u32 %v1549, 4294901760
        %6421 = vmatprep.subr.mxu0 %v6420
        %v6422 = vand.u32 %v1548, 4294901760
        %6423 = vmatpush1.msra.mxu0 %v6422
        %v6424 = vand.u32 %v1545, 4294901760
        %6425 = vmatprep.subr.mxu0 %v6424
        %v6426 = vand.u32 %v1544, 4294901760
        %6427 = vmatpush1.msra.mxu0 %v6426
        %v6428 = vand.u32 %v1541, 4294901760
        %6429 = vmatprep.subr.mxu0 %v6428
        %v6430 = vand.u32 %v1540, 4294901760
        %6431 = vmatpush1.msra.mxu0 %v6430
        %v6432 = vand.u32 %v1537, 4294901760
        %6433 = vmatprep.subr.mxu0 %v6432
        %v6434 = vand.u32 %v1536, 4294901760
        %6435 = vmatpush1.msra.mxu0 %v6434
        %v6436 = vand.u32 %v1533, 4294901760
        %6437 = vmatprep.subr.mxu0 %v6436
        %v6438 = vand.u32 %v1532, 4294901760
        %6439 = vmatpush1.msra.mxu0 %v6438
        %v6440 = vand.u32 %v1529, 4294901760
        %6441 = vmatprep.subr.mxu0 %v6440
        %v6442 = vand.u32 %v1528, 4294901760
        %6443 = vmatpush1.msra.mxu0 %v6442
        %v6444 = vand.u32 %v1525, 4294901760
        %6445 = vmatprep.subr.mxu0 %v6444
        %v6446 = vand.u32 %v1524, 4294901760
        %6447 = vmatpush1.msra.mxu0 %v6446
        %v6448 = vand.u32 %v1521, 4294901760
        %6449 = vmatprep.subr.mxu0 %v6448
        %v6450 = vand.u32 %v1520, 4294901760
        %6451 = vmatpush1.msra.mxu0 %v6450
        %v6452 = vand.u32 %v1517, 4294901760
        %6453 = vmatprep.subr.mxu0 %v6452
        %v6454 = vand.u32 %v1516, 4294901760
        %6455 = vmatpush1.msra.mxu0 %v6454
        %v6456 = vand.u32 %v1513, 4294901760
        %6457 = vmatprep.subr.mxu0 %v6456
        %v6458 = vand.u32 %v1512, 4294901760
        %6459 = vmatpush1.msra.mxu0 %v6458
        %6460 = vmatprep.subr.mxu0 0.0
        %6461 = vmatpush2.msra.mxu0 0.0
        %6462 = vmatprep.subr.mxu0 0.0
        %6463 = vmatpush2.msra.mxu0 0.0
        %6464 = vmatprep.subr.mxu0 0.0
        %6465 = vmatpush2.msra.mxu0 0.0
        %6466 = vmatprep.subr.mxu0 0.0
        %6467 = vmatpush2.msra.mxu0 0.0
        %6468 = vmatprep.subr.mxu0 0.0
        %6469 = vmatpush2.msra.mxu0 0.0
        %6470 = vmatprep.subr.mxu0 0.0
        %6471 = vmatpush2.msra.mxu0 0.0
        %6472 = vmatprep.subr.mxu0 0.0
        %6473 = vmatpush2.msra.mxu0 0.0
        %6474 = vmatprep.subr.mxu0 0.0
        %6475 = vmatpush2.msra.mxu0 0.0
        %6476 = vmatprep.subr.mxu0 0.0
        %6477 = vmatpush2.msra.mxu0 0.0
        %6478 = vmatprep.subr.mxu0 0.0
        %6479 = vmatpush2.msra.mxu0 0.0
        %6480 = vmatprep.subr.mxu0 0.0
        %6481 = vmatpush2.msra.mxu0 0.0
        %6482 = vmatprep.subr.mxu0 0.0
        %6483 = vmatpush2.msra.mxu0 0.0
        %6484 = vmatprep.subr.mxu0 0.0
        %6485 = vmatpush2.msra.mxu0 0.0
        %6486 = vmatprep.subr.mxu0 0.0
        %6487 = vmatpush2.msra.mxu0 0.0
        %6488 = vmatprep.subr.mxu0 0.0
        %6489 = vmatpush2.msra.mxu0 0.0
        %6490 = vmatprep.subr.mxu0 0.0
        %6491 = vmatpush2.msra.mxu0 0.0
        %6492 = vmatprep.mubr.f32.mxu0 0.0
        %v6493 = vand.u32 %v5056, 4294901760
        %v6494 = vsub.f32 %v5056, %v6493
        %v6495 = vand.u32 %v6494, 4294901760
        %6496 = vmatmul.mubr.f32.gmra.mxu0 %v6495
        %v6497 = vpop.f32.mrf.mxu0
        %v6498 = vadd.f32 %v6392, %v6497
        %v6499 = vpop.f32.mrf.mxu0
        %v6500 = vadd.f32 %v6394, %v6499
        %6501 = vdwg.mxu0
        %v6502 = vand.u32 %v1573, 4294901760
        %v6503 = vsub.f32 %v1573, %v6502
        %v6504 = vand.u32 %v6503, 4294901760
        %6505 = vmatprep.subr.mxu0 %v6504
        %v6506 = vand.u32 %v1572, 4294901760
        %v6507 = vsub.f32 %v1572, %v6506
        %v6508 = vand.u32 %v6507, 4294901760
        %6509 = vmatpush1.msra.mxu0 %v6508
        %v6510 = vand.u32 %v1569, 4294901760
        %v6511 = vsub.f32 %v1569, %v6510
        %v6512 = vand.u32 %v6511, 4294901760
        %6513 = vmatprep.subr.mxu0 %v6512
        %v6514 = vand.u32 %v1568, 4294901760
        %v6515 = vsub.f32 %v1568, %v6514
        %v6516 = vand.u32 %v6515, 4294901760
        %6517 = vmatpush1.msra.mxu0 %v6516
        %v6518 = vand.u32 %v1565, 4294901760
        %v6519 = vsub.f32 %v1565, %v6518
        %v6520 = vand.u32 %v6519, 4294901760
        %6521 = vmatprep.subr.mxu0 %v6520
        %v6522 = vand.u32 %v1564, 4294901760
        %v6523 = vsub.f32 %v1564, %v6522
        %v6524 = vand.u32 %v6523, 4294901760
        %6525 = vmatpush1.msra.mxu0 %v6524
        %v6526 = vand.u32 %v1561, 4294901760
        %v6527 = vsub.f32 %v1561, %v6526
        %v6528 = vand.u32 %v6527, 4294901760
        %6529 = vmatprep.subr.mxu0 %v6528
        %v6530 = vand.u32 %v1560, 4294901760
        %v6531 = vsub.f32 %v1560, %v6530
        %v6532 = vand.u32 %v6531, 4294901760
        %6533 = vmatpush1.msra.mxu0 %v6532
        %v6534 = vand.u32 %v1557, 4294901760
        %v6535 = vsub.f32 %v1557, %v6534
        %v6536 = vand.u32 %v6535, 4294901760
        %6537 = vmatprep.subr.mxu0 %v6536
        %v6538 = vand.u32 %v1556, 4294901760
        %v6539 = vsub.f32 %v1556, %v6538
        %v6540 = vand.u32 %v6539, 4294901760
        %6541 = vmatpush1.msra.mxu0 %v6540
        %v6542 = vand.u32 %v1553, 4294901760
        %v6543 = vsub.f32 %v1553, %v6542
        %v6544 = vand.u32 %v6543, 4294901760
        %6545 = vmatprep.subr.mxu0 %v6544
        %v6546 = vand.u32 %v1552, 4294901760
        %v6547 = vsub.f32 %v1552, %v6546
        %v6548 = vand.u32 %v6547, 4294901760
        %6549 = vmatpush1.msra.mxu0 %v6548
        %v6550 = vand.u32 %v1549, 4294901760
        %v6551 = vsub.f32 %v1549, %v6550
        %v6552 = vand.u32 %v6551, 4294901760
        %6553 = vmatprep.subr.mxu0 %v6552
        %v6554 = vand.u32 %v1548, 4294901760
        %v6555 = vsub.f32 %v1548, %v6554
        %v6556 = vand.u32 %v6555, 4294901760
        %6557 = vmatpush1.msra.mxu0 %v6556
        %v6558 = vand.u32 %v1545, 4294901760
        %v6559 = vsub.f32 %v1545, %v6558
        %v6560 = vand.u32 %v6559, 4294901760
        %6561 = vmatprep.subr.mxu0 %v6560
        %v6562 = vand.u32 %v1544, 4294901760
        %v6563 = vsub.f32 %v1544, %v6562
        %v6564 = vand.u32 %v6563, 4294901760
        %6565 = vmatpush1.msra.mxu0 %v6564
        %v6566 = vand.u32 %v1541, 4294901760
        %v6567 = vsub.f32 %v1541, %v6566
        %v6568 = vand.u32 %v6567, 4294901760
        %6569 = vmatprep.subr.mxu0 %v6568
        %v6570 = vand.u32 %v1540, 4294901760
        %v6571 = vsub.f32 %v1540, %v6570
        %v6572 = vand.u32 %v6571, 4294901760
        %6573 = vmatpush1.msra.mxu0 %v6572
        %v6574 = vand.u32 %v1537, 4294901760
        %v6575 = vsub.f32 %v1537, %v6574
        %v6576 = vand.u32 %v6575, 4294901760
        %6577 = vmatprep.subr.mxu0 %v6576
        %v6578 = vand.u32 %v1536, 4294901760
        %v6579 = vsub.f32 %v1536, %v6578
        %v6580 = vand.u32 %v6579, 4294901760
        %6581 = vmatpush1.msra.mxu0 %v6580
        %v6582 = vand.u32 %v1533, 4294901760
        %v6583 = vsub.f32 %v1533, %v6582
        %v6584 = vand.u32 %v6583, 4294901760
        %6585 = vmatprep.subr.mxu0 %v6584
        %v6586 = vand.u32 %v1532, 4294901760
        %v6587 = vsub.f32 %v1532, %v6586
        %v6588 = vand.u32 %v6587, 4294901760
        %6589 = vmatpush1.msra.mxu0 %v6588
        %v6590 = vand.u32 %v1529, 4294901760
        %v6591 = vsub.f32 %v1529, %v6590
        %v6592 = vand.u32 %v6591, 4294901760
        %6593 = vmatprep.subr.mxu0 %v6592
        %v6594 = vand.u32 %v1528, 4294901760
        %v6595 = vsub.f32 %v1528, %v6594
        %v6596 = vand.u32 %v6595, 4294901760
        %6597 = vmatpush1.msra.mxu0 %v6596
        %v6598 = vand.u32 %v1525, 4294901760
        %v6599 = vsub.f32 %v1525, %v6598
        %v6600 = vand.u32 %v6599, 4294901760
        %6601 = vmatprep.subr.mxu0 %v6600
        %v6602 = vand.u32 %v1524, 4294901760
        %v6603 = vsub.f32 %v1524, %v6602
        %v6604 = vand.u32 %v6603, 4294901760
        %6605 = vmatpush1.msra.mxu0 %v6604
        %v6606 = vand.u32 %v1521, 4294901760
        %v6607 = vsub.f32 %v1521, %v6606
        %v6608 = vand.u32 %v6607, 4294901760
        %6609 = vmatprep.subr.mxu0 %v6608
        %v6610 = vand.u32 %v1520, 4294901760
        %v6611 = vsub.f32 %v1520, %v6610
        %v6612 = vand.u32 %v6611, 4294901760
        %6613 = vmatpush1.msra.mxu0 %v6612
        %v6614 = vand.u32 %v1517, 4294901760
        %v6615 = vsub.f32 %v1517, %v6614
        %v6616 = vand.u32 %v6615, 4294901760
        %6617 = vmatprep.subr.mxu0 %v6616
        %v6618 = vand.u32 %v1516, 4294901760
        %v6619 = vsub.f32 %v1516, %v6618
        %v6620 = vand.u32 %v6619, 4294901760
        %6621 = vmatpush1.msra.mxu0 %v6620
        %v6622 = vand.u32 %v1513, 4294901760
        %v6623 = vsub.f32 %v1513, %v6622
        %v6624 = vand.u32 %v6623, 4294901760
        %6625 = vmatprep.subr.mxu0 %v6624
        %v6626 = vand.u32 %v1512, 4294901760
        %v6627 = vsub.f32 %v1512, %v6626
        %v6628 = vand.u32 %v6627, 4294901760
        %6629 = vmatpush1.msra.mxu0 %v6628
        %6630 = vmatprep.subr.mxu0 0.0
        %6631 = vmatpush2.msra.mxu0 0.0
        %6632 = vmatprep.subr.mxu0 0.0
        %6633 = vmatpush2.msra.mxu0 0.0
        %6634 = vmatprep.subr.mxu0 0.0
        %6635 = vmatpush2.msra.mxu0 0.0
        %6636 = vmatprep.subr.mxu0 0.0
        %6637 = vmatpush2.msra.mxu0 0.0
        %6638 = vmatprep.subr.mxu0 0.0
        %6639 = vmatpush2.msra.mxu0 0.0
        %6640 = vmatprep.subr.mxu0 0.0
        %6641 = vmatpush2.msra.mxu0 0.0
        %6642 = vmatprep.subr.mxu0 0.0
        %6643 = vmatpush2.msra.mxu0 0.0
        %6644 = vmatprep.subr.mxu0 0.0
        %6645 = vmatpush2.msra.mxu0 0.0
        %6646 = vmatprep.subr.mxu0 0.0
        %6647 = vmatpush2.msra.mxu0 0.0
        %6648 = vmatprep.subr.mxu0 0.0
        %6649 = vmatpush2.msra.mxu0 0.0
        %6650 = vmatprep.subr.mxu0 0.0
        %6651 = vmatpush2.msra.mxu0 0.0
        %6652 = vmatprep.subr.mxu0 0.0
        %6653 = vmatpush2.msra.mxu0 0.0
        %6654 = vmatprep.subr.mxu0 0.0
        %6655 = vmatpush2.msra.mxu0 0.0
        %6656 = vmatprep.subr.mxu0 0.0
        %6657 = vmatpush2.msra.mxu0 0.0
        %6658 = vmatprep.subr.mxu0 0.0
        %6659 = vmatpush2.msra.mxu0 0.0
        %6660 = vmatprep.subr.mxu0 0.0
        %6661 = vmatpush2.msra.mxu0 0.0
        %6662 = vmatprep.mubr.f32.mxu0 0.0
        %v6663 = vand.u32 %v5056, 4294901760
        %6664 = vmatmul.mubr.f32.gmra.mxu0 %v6663
        %v6665 = vpop.f32.mrf.mxu0
        %v6666 = vadd.f32 %v6498, %v6665
        %v6667 = vpop.f32.mrf.mxu0
        %v6668 = vadd.f32 %v6500, %v6667
        %6669 = vdwg.mxu0
        %v6670 = vand.u32 %v1573, 4294901760
        %6671 = vmatprep.subr.mxu0 %v6670
        %v6672 = vand.u32 %v1572, 4294901760
        %6673 = vmatpush1.msra.mxu0 %v6672
        %v6674 = vand.u32 %v1569, 4294901760
        %6675 = vmatprep.subr.mxu0 %v6674
        %v6676 = vand.u32 %v1568, 4294901760
        %6677 = vmatpush1.msra.mxu0 %v6676
        %v6678 = vand.u32 %v1565, 4294901760
        %6679 = vmatprep.subr.mxu0 %v6678
        %v6680 = vand.u32 %v1564, 4294901760
        %6681 = vmatpush1.msra.mxu0 %v6680
        %v6682 = vand.u32 %v1561, 4294901760
        %6683 = vmatprep.subr.mxu0 %v6682
        %v6684 = vand.u32 %v1560, 4294901760
        %6685 = vmatpush1.msra.mxu0 %v6684
        %v6686 = vand.u32 %v1557, 4294901760
        %6687 = vmatprep.subr.mxu0 %v6686
        %v6688 = vand.u32 %v1556, 4294901760
        %6689 = vmatpush1.msra.mxu0 %v6688
        %v6690 = vand.u32 %v1553, 4294901760
        %6691 = vmatprep.subr.mxu0 %v6690
        %v6692 = vand.u32 %v1552, 4294901760
        %6693 = vmatpush1.msra.mxu0 %v6692
        %v6694 = vand.u32 %v1549, 4294901760
        %6695 = vmatprep.subr.mxu0 %v6694
        %v6696 = vand.u32 %v1548, 4294901760
        %6697 = vmatpush1.msra.mxu0 %v6696
        %v6698 = vand.u32 %v1545, 4294901760
        %6699 = vmatprep.subr.mxu0 %v6698
        %v6700 = vand.u32 %v1544, 4294901760
        %6701 = vmatpush1.msra.mxu0 %v6700
        %v6702 = vand.u32 %v1541, 4294901760
        %6703 = vmatprep.subr.mxu0 %v6702
        %v6704 = vand.u32 %v1540, 4294901760
        %6705 = vmatpush1.msra.mxu0 %v6704
        %v6706 = vand.u32 %v1537, 4294901760
        %6707 = vmatprep.subr.mxu0 %v6706
        %v6708 = vand.u32 %v1536, 4294901760
        %6709 = vmatpush1.msra.mxu0 %v6708
        %v6710 = vand.u32 %v1533, 4294901760
        %6711 = vmatprep.subr.mxu0 %v6710
        %v6712 = vand.u32 %v1532, 4294901760
        %6713 = vmatpush1.msra.mxu0 %v6712
        %v6714 = vand.u32 %v1529, 4294901760
        %6715 = vmatprep.subr.mxu0 %v6714
        %v6716 = vand.u32 %v1528, 4294901760
        %6717 = vmatpush1.msra.mxu0 %v6716
        %v6718 = vand.u32 %v1525, 4294901760
        %6719 = vmatprep.subr.mxu0 %v6718
        %v6720 = vand.u32 %v1524, 4294901760
        %6721 = vmatpush1.msra.mxu0 %v6720
        %v6722 = vand.u32 %v1521, 4294901760
        %6723 = vmatprep.subr.mxu0 %v6722
        %v6724 = vand.u32 %v1520, 4294901760
        %6725 = vmatpush1.msra.mxu0 %v6724
        %v6726 = vand.u32 %v1517, 4294901760
        %6727 = vmatprep.subr.mxu0 %v6726
        %v6728 = vand.u32 %v1516, 4294901760
        %6729 = vmatpush1.msra.mxu0 %v6728
        %v6730 = vand.u32 %v1513, 4294901760
        %6731 = vmatprep.subr.mxu0 %v6730
        %v6732 = vand.u32 %v1512, 4294901760
        %6733 = vmatpush1.msra.mxu0 %v6732
        %6734 = vmatprep.subr.mxu0 0.0
        %6735 = vmatpush2.msra.mxu0 0.0
        %6736 = vmatprep.subr.mxu0 0.0
        %6737 = vmatpush2.msra.mxu0 0.0
        %6738 = vmatprep.subr.mxu0 0.0
        %6739 = vmatpush2.msra.mxu0 0.0
        %6740 = vmatprep.subr.mxu0 0.0
        %6741 = vmatpush2.msra.mxu0 0.0
        %6742 = vmatprep.subr.mxu0 0.0
        %6743 = vmatpush2.msra.mxu0 0.0
        %6744 = vmatprep.subr.mxu0 0.0
        %6745 = vmatpush2.msra.mxu0 0.0
        %6746 = vmatprep.subr.mxu0 0.0
        %6747 = vmatpush2.msra.mxu0 0.0
        %6748 = vmatprep.subr.mxu0 0.0
        %6749 = vmatpush2.msra.mxu0 0.0
        %6750 = vmatprep.subr.mxu0 0.0
        %6751 = vmatpush2.msra.mxu0 0.0
        %6752 = vmatprep.subr.mxu0 0.0
        %6753 = vmatpush2.msra.mxu0 0.0
        %6754 = vmatprep.subr.mxu0 0.0
        %6755 = vmatpush2.msra.mxu0 0.0
        %6756 = vmatprep.subr.mxu0 0.0
        %6757 = vmatpush2.msra.mxu0 0.0
        %6758 = vmatprep.subr.mxu0 0.0
        %6759 = vmatpush2.msra.mxu0 0.0
        %6760 = vmatprep.subr.mxu0 0.0
        %6761 = vmatpush2.msra.mxu0 0.0
        %6762 = vmatprep.subr.mxu0 0.0
        %6763 = vmatpush2.msra.mxu0 0.0
        %6764 = vmatprep.subr.mxu0 0.0
        %6765 = vmatpush2.msra.mxu0 0.0
        %6766 = vmatprep.mubr.f32.mxu0 0.0
        %v6767 = vand.u32 %v5056, 4294901760
        %6768 = vmatmul.mubr.f32.gmra.mxu0 %v6767
        %v6769 = vpop.f32.mrf.mxu0
        %v6770 = vadd.f32 %v6666, %v6769
        %v6771 = vpop.f32.mrf.mxu0
        %v6772 = vadd.f32 %v6668, %v6771
        %6773 = vdwg.mxu0
        %v6774 = vadd.f32 %v5060, %v5915
        %v6775 = vadd.f32 %v5061, %v5917
        %v6776 = vadd.f32 %v5062, %v6770
        %v6777 = vadd.f32 %v5063, %v6772
        %v6778 = vxor.u32 %v6774, 2147483648
        %v6779 = vmul.f32 %v6778, 1.442695
        %v6780 = vpow.pop %v6779
        %v6781 = vadd.f32 %v6780, 1.0
        %v6782 = vrcp.pop %v6781
        %v6783 = vmul.f32 1.0, %v6782
        %v6784 = vxor.u32 %v6775, 2147483648
        %v6785 = vmul.f32 %v6784, 1.442695
        %v6786 = vpow.pop %v6785
        %v6787 = vadd.f32 %v6786, 1.0
        %v6788 = vrcp.pop %v6787
        %v6789 = vmul.f32 1.0, %v6788
        %v6790 = vtanh.pop %v6776
        %v6791 = vxor.u32 %v6777, 2147483648
        %v6792 = vmul.f32 %v6791, 1.442695
        %v6793 = vpow.pop %v6792
        %v6794 = vadd.f32 %v6793, 1.0
        %v6795 = vrcp.pop %v6794
        %v6796 = vmul.f32 1.0, %v6795
        %v6797 = vmul.f32 %v6789, %v5054
        %v6798 = vmul.f32 %v6783, %v6790
        %v6799 = vadd.f32 %v6797, %v6798
        %v6800 = vtanh.pop %v6799
        %v6801 = vmul.f32 %v6796, %v6800
        %s6802 = smul.u32 3, 4
        %s6803 = smul.addr %s6802, 8
        %s6804 = scalar_lea.vmem [#allocation4], %s6803
        %v6805 = vld [vmem:[%s6804] sm:$0xff]
        %v6806 = vld [vmem:[%s6804 + $0x8] sm:$0xff]
        %v6807 = vld [vmem:[%s6804 + $0x10] sm:$0xff]
        %v6808 = vld [vmem:[%s6804 + $0x18] sm:$0xff]
        %v6809 = vand.u32 %v1571, 4294901760
        %6810 = vmatprep.subr.mxu0 %v6809
        %v6811 = vand.u32 %v1570, 4294901760
        %6812 = vmatpush1.msra.mxu0 %v6811
        %v6813 = vand.u32 %v1567, 4294901760
        %6814 = vmatprep.subr.mxu0 %v6813
        %v6815 = vand.u32 %v1566, 4294901760
        %6816 = vmatpush1.msra.mxu0 %v6815
        %v6817 = vand.u32 %v1563, 4294901760
        %6818 = vmatprep.subr.mxu0 %v6817
        %v6819 = vand.u32 %v1562, 4294901760
        %6820 = vmatpush1.msra.mxu0 %v6819
        %v6821 = vand.u32 %v1559, 4294901760
        %6822 = vmatprep.subr.mxu0 %v6821
        %v6823 = vand.u32 %v1558, 4294901760
        %6824 = vmatpush1.msra.mxu0 %v6823
        %v6825 = vand.u32 %v1555, 4294901760
        %6826 = vmatprep.subr.mxu0 %v6825
        %v6827 = vand.u32 %v1554, 4294901760
        %6828 = vmatpush1.msra.mxu0 %v6827
        %v6829 = vand.u32 %v1551, 4294901760
        %6830 = vmatprep.subr.mxu0 %v6829
        %v6831 = vand.u32 %v1550, 4294901760
        %6832 = vmatpush1.msra.mxu0 %v6831
        %v6833 = vand.u32 %v1547, 4294901760
        %6834 = vmatprep.subr.mxu0 %v6833
        %v6835 = vand.u32 %v1546, 4294901760
        %6836 = vmatpush1.msra.mxu0 %v6835
        %v6837 = vand.u32 %v1543, 4294901760
        %6838 = vmatprep.subr.mxu0 %v6837
        %v6839 = vand.u32 %v1542, 4294901760
        %6840 = vmatpush1.msra.mxu0 %v6839
        %v6841 = vand.u32 %v1539, 4294901760
        %6842 = vmatprep.subr.mxu0 %v6841
        %v6843 = vand.u32 %v1538, 4294901760
        %6844 = vmatpush1.msra.mxu0 %v6843
        %v6845 = vand.u32 %v1535, 4294901760
        %6846 = vmatprep.subr.mxu0 %v6845
        %v6847 = vand.u32 %v1534, 4294901760
        %6848 = vmatpush1.msra.mxu0 %v6847
        %v6849 = vand.u32 %v1531, 4294901760
        %6850 = vmatprep.subr.mxu0 %v6849
        %v6851 = vand.u32 %v1530, 4294901760
        %6852 = vmatpush1.msra.mxu0 %v6851
        %v6853 = vand.u32 %v1527, 4294901760
        %6854 = vmatprep.subr.mxu0 %v6853
        %v6855 = vand.u32 %v1526, 4294901760
        %6856 = vmatpush1.msra.mxu0 %v6855
        %v6857 = vand.u32 %v1523, 4294901760
        %6858 = vmatprep.subr.mxu0 %v6857
        %v6859 = vand.u32 %v1522, 4294901760
        %6860 = vmatpush1.msra.mxu0 %v6859
        %v6861 = vand.u32 %v1519, 4294901760
        %6862 = vmatprep.subr.mxu0 %v6861
        %v6863 = vand.u32 %v1518, 4294901760
        %6864 = vmatpush1.msra.mxu0 %v6863
        %v6865 = vand.u32 %v1515, 4294901760
        %6866 = vmatprep.subr.mxu0 %v6865
        %v6867 = vand.u32 %v1514, 4294901760
        %6868 = vmatpush1.msra.mxu0 %v6867
        %v6869 = vand.u32 %v1511, 4294901760
        %6870 = vmatprep.subr.mxu0 %v6869
        %v6871 = vand.u32 %v1510, 4294901760
        %6872 = vmatpush1.msra.mxu0 %v6871
        %6873 = vmatprep.subr.mxu0 0.0
        %6874 = vmatpush2.msra.mxu0 0.0
        %6875 = vmatprep.subr.mxu0 0.0
        %6876 = vmatpush2.msra.mxu0 0.0
        %6877 = vmatprep.subr.mxu0 0.0
        %6878 = vmatpush2.msra.mxu0 0.0
        %6879 = vmatprep.subr.mxu0 0.0
        %6880 = vmatpush2.msra.mxu0 0.0
        %6881 = vmatprep.subr.mxu0 0.0
        %6882 = vmatpush2.msra.mxu0 0.0
        %6883 = vmatprep.subr.mxu0 0.0
        %6884 = vmatpush2.msra.mxu0 0.0
        %6885 = vmatprep.subr.mxu0 0.0
        %6886 = vmatpush2.msra.mxu0 0.0
        %6887 = vmatprep.subr.mxu0 0.0
        %6888 = vmatpush2.msra.mxu0 0.0
        %6889 = vmatprep.subr.mxu0 0.0
        %6890 = vmatpush2.msra.mxu0 0.0
        %6891 = vmatprep.subr.mxu0 0.0
        %6892 = vmatpush2.msra.mxu0 0.0
        %6893 = vmatprep.subr.mxu0 0.0
        %6894 = vmatpush2.msra.mxu0 0.0
        %6895 = vmatprep.subr.mxu0 0.0
        %6896 = vmatpush2.msra.mxu0 0.0
        %6897 = vmatprep.subr.mxu0 0.0
        %6898 = vmatpush2.msra.mxu0 0.0
        %6899 = vmatprep.subr.mxu0 0.0
        %6900 = vmatpush2.msra.mxu0 0.0
        %6901 = vmatprep.subr.mxu0 0.0
        %6902 = vmatpush2.msra.mxu0 0.0
        %6903 = vmatprep.subr.mxu0 0.0
        %6904 = vmatpush2.msra.mxu0 0.0
        %6905 = vmatprep.mubr.f32.mxu0 0.0
        %v6906 = vand.u32 %v6801, 4294901760
        %v6907 = vsub.f32 %v6801, %v6906
        %v6908 = vand.u32 %v6907, 4294901760
        %v6909 = vsub.f32 %v6907, %v6908
        %v6910 = vand.u32 %v6909, 4294901760
        %6911 = vmatmul.mubr.f32.gmra.mxu0 %v6910
        %v6912 = vpop.f32.mrf.mxu0
        %v6913 = vadd.f32 0.0, %v6912
        %v6914 = vpop.f32.mrf.mxu0
        %v6915 = vadd.f32 0.0, %v6914
        %6916 = vdwg.mxu0
        %v6917 = vand.u32 %v1571, 4294901760
        %v6918 = vsub.f32 %v1571, %v6917
        %v6919 = vand.u32 %v6918, 4294901760
        %v6920 = vsub.f32 %v6918, %v6919
        %v6921 = vand.u32 %v6920, 4294901760
        %6922 = vmatprep.subr.mxu0 %v6921
        %v6923 = vand.u32 %v1570, 4294901760
        %v6924 = vsub.f32 %v1570, %v6923
        %v6925 = vand.u32 %v6924, 4294901760
        %v6926 = vsub.f32 %v6924, %v6925
        %v6927 = vand.u32 %v6926, 4294901760
        %6928 = vmatpush1.msra.mxu0 %v6927
        %v6929 = vand.u32 %v1567, 4294901760
        %v6930 = vsub.f32 %v1567, %v6929
        %v6931 = vand.u32 %v6930, 4294901760
        %v6932 = vsub.f32 %v6930, %v6931
        %v6933 = vand.u32 %v6932, 4294901760
        %6934 = vmatprep.subr.mxu0 %v6933
        %v6935 = vand.u32 %v1566, 4294901760
        %v6936 = vsub.f32 %v1566, %v6935
        %v6937 = vand.u32 %v6936, 4294901760
        %v6938 = vsub.f32 %v6936, %v6937
        %v6939 = vand.u32 %v6938, 4294901760
        %6940 = vmatpush1.msra.mxu0 %v6939
        %v6941 = vand.u32 %v1563, 4294901760
        %v6942 = vsub.f32 %v1563, %v6941
        %v6943 = vand.u32 %v6942, 4294901760
        %v6944 = vsub.f32 %v6942, %v6943
        %v6945 = vand.u32 %v6944, 4294901760
        %6946 = vmatprep.subr.mxu0 %v6945
        %v6947 = vand.u32 %v1562, 4294901760
        %v6948 = vsub.f32 %v1562, %v6947
        %v6949 = vand.u32 %v6948, 4294901760
        %v6950 = vsub.f32 %v6948, %v6949
        %v6951 = vand.u32 %v6950, 4294901760
        %6952 = vmatpush1.msra.mxu0 %v6951
        %v6953 = vand.u32 %v1559, 4294901760
        %v6954 = vsub.f32 %v1559, %v6953
        %v6955 = vand.u32 %v6954, 4294901760
        %v6956 = vsub.f32 %v6954, %v6955
        %v6957 = vand.u32 %v6956, 4294901760
        %6958 = vmatprep.subr.mxu0 %v6957
        %v6959 = vand.u32 %v1558, 4294901760
        %v6960 = vsub.f32 %v1558, %v6959
        %v6961 = vand.u32 %v6960, 4294901760
        %v6962 = vsub.f32 %v6960, %v6961
        %v6963 = vand.u32 %v6962, 4294901760
        %6964 = vmatpush1.msra.mxu0 %v6963
        %v6965 = vand.u32 %v1555, 4294901760
        %v6966 = vsub.f32 %v1555, %v6965
        %v6967 = vand.u32 %v6966, 4294901760
        %v6968 = vsub.f32 %v6966, %v6967
        %v6969 = vand.u32 %v6968, 4294901760
        %6970 = vmatprep.subr.mxu0 %v6969
        %v6971 = vand.u32 %v1554, 4294901760
        %v6972 = vsub.f32 %v1554, %v6971
        %v6973 = vand.u32 %v6972, 4294901760
        %v6974 = vsub.f32 %v6972, %v6973
        %v6975 = vand.u32 %v6974, 4294901760
        %6976 = vmatpush1.msra.mxu0 %v6975
        %v6977 = vand.u32 %v1551, 4294901760
        %v6978 = vsub.f32 %v1551, %v6977
        %v6979 = vand.u32 %v6978, 4294901760
        %v6980 = vsub.f32 %v6978, %v6979
        %v6981 = vand.u32 %v6980, 4294901760
        %6982 = vmatprep.subr.mxu0 %v6981
        %v6983 = vand.u32 %v1550, 4294901760
        %v6984 = vsub.f32 %v1550, %v6983
        %v6985 = vand.u32 %v6984, 4294901760
        %v6986 = vsub.f32 %v6984, %v6985
        %v6987 = vand.u32 %v6986, 4294901760
        %6988 = vmatpush1.msra.mxu0 %v6987
        %v6989 = vand.u32 %v1547, 4294901760
        %v6990 = vsub.f32 %v1547, %v6989
        %v6991 = vand.u32 %v6990, 4294901760
        %v6992 = vsub.f32 %v6990, %v6991
        %v6993 = vand.u32 %v6992, 4294901760
        %6994 = vmatprep.subr.mxu0 %v6993
        %v6995 = vand.u32 %v1546, 4294901760
        %v6996 = vsub.f32 %v1546, %v6995
        %v6997 = vand.u32 %v6996, 4294901760
        %v6998 = vsub.f32 %v6996, %v6997
        %v6999 = vand.u32 %v6998, 4294901760
        %7000 = vmatpush1.msra.mxu0 %v6999
        %v7001 = vand.u32 %v1543, 4294901760
        %v7002 = vsub.f32 %v1543, %v7001
        %v7003 = vand.u32 %v7002, 4294901760
        %v7004 = vsub.f32 %v7002, %v7003
        %v7005 = vand.u32 %v7004, 4294901760
        %7006 = vmatprep.subr.mxu0 %v7005
        %v7007 = vand.u32 %v1542, 4294901760
        %v7008 = vsub.f32 %v1542, %v7007
        %v7009 = vand.u32 %v7008, 4294901760
        %v7010 = vsub.f32 %v7008, %v7009
        %v7011 = vand.u32 %v7010, 4294901760
        %7012 = vmatpush1.msra.mxu0 %v7011
        %v7013 = vand.u32 %v1539, 4294901760
        %v7014 = vsub.f32 %v1539, %v7013
        %v7015 = vand.u32 %v7014, 4294901760
        %v7016 = vsub.f32 %v7014, %v7015
        %v7017 = vand.u32 %v7016, 4294901760
        %7018 = vmatprep.subr.mxu0 %v7017
        %v7019 = vand.u32 %v1538, 4294901760
        %v7020 = vsub.f32 %v1538, %v7019
        %v7021 = vand.u32 %v7020, 4294901760
        %v7022 = vsub.f32 %v7020, %v7021
        %v7023 = vand.u32 %v7022, 4294901760
        %7024 = vmatpush1.msra.mxu0 %v7023
        %v7025 = vand.u32 %v1535, 4294901760
        %v7026 = vsub.f32 %v1535, %v7025
        %v7027 = vand.u32 %v7026, 4294901760
        %v7028 = vsub.f32 %v7026, %v7027
        %v7029 = vand.u32 %v7028, 4294901760
        %7030 = vmatprep.subr.mxu0 %v7029
        %v7031 = vand.u32 %v1534, 4294901760
        %v7032 = vsub.f32 %v1534, %v7031
        %v7033 = vand.u32 %v7032, 4294901760
        %v7034 = vsub.f32 %v7032, %v7033
        %v7035 = vand.u32 %v7034, 4294901760
        %7036 = vmatpush1.msra.mxu0 %v7035
        %v7037 = vand.u32 %v1531, 4294901760
        %v7038 = vsub.f32 %v1531, %v7037
        %v7039 = vand.u32 %v7038, 4294901760
        %v7040 = vsub.f32 %v7038, %v7039
        %v7041 = vand.u32 %v7040, 4294901760
        %7042 = vmatprep.subr.mxu0 %v7041
        %v7043 = vand.u32 %v1530, 4294901760
        %v7044 = vsub.f32 %v1530, %v7043
        %v7045 = vand.u32 %v7044, 4294901760
        %v7046 = vsub.f32 %v7044, %v7045
        %v7047 = vand.u32 %v7046, 4294901760
        %7048 = vmatpush1.msra.mxu0 %v7047
        %v7049 = vand.u32 %v1527, 4294901760
        %v7050 = vsub.f32 %v1527, %v7049
        %v7051 = vand.u32 %v7050, 4294901760
        %v7052 = vsub.f32 %v7050, %v7051
        %v7053 = vand.u32 %v7052, 4294901760
        %7054 = vmatprep.subr.mxu0 %v7053
        %v7055 = vand.u32 %v1526, 4294901760
        %v7056 = vsub.f32 %v1526, %v7055
        %v7057 = vand.u32 %v7056, 4294901760
        %v7058 = vsub.f32 %v7056, %v7057
        %v7059 = vand.u32 %v7058, 4294901760
        %7060 = vmatpush1.msra.mxu0 %v7059
        %v7061 = vand.u32 %v1523, 4294901760
        %v7062 = vsub.f32 %v1523, %v7061
        %v7063 = vand.u32 %v7062, 4294901760
        %v7064 = vsub.f32 %v7062, %v7063
        %v7065 = vand.u32 %v7064, 4294901760
        %7066 = vmatprep.subr.mxu0 %v7065
        %v7067 = vand.u32 %v1522, 4294901760
        %v7068 = vsub.f32 %v1522, %v7067
        %v7069 = vand.u32 %v7068, 4294901760
        %v7070 = vsub.f32 %v7068, %v7069
        %v7071 = vand.u32 %v7070, 4294901760
        %7072 = vmatpush1.msra.mxu0 %v7071
        %v7073 = vand.u32 %v1519, 4294901760
        %v7074 = vsub.f32 %v1519, %v7073
        %v7075 = vand.u32 %v7074, 4294901760
        %v7076 = vsub.f32 %v7074, %v7075
        %v7077 = vand.u32 %v7076, 4294901760
        %7078 = vmatprep.subr.mxu0 %v7077
        %v7079 = vand.u32 %v1518, 4294901760
        %v7080 = vsub.f32 %v1518, %v7079
        %v7081 = vand.u32 %v7080, 4294901760
        %v7082 = vsub.f32 %v7080, %v7081
        %v7083 = vand.u32 %v7082, 4294901760
        %7084 = vmatpush1.msra.mxu0 %v7083
        %v7085 = vand.u32 %v1515, 4294901760
        %v7086 = vsub.f32 %v1515, %v7085
        %v7087 = vand.u32 %v7086, 4294901760
        %v7088 = vsub.f32 %v7086, %v7087
        %v7089 = vand.u32 %v7088, 4294901760
        %7090 = vmatprep.subr.mxu0 %v7089
        %v7091 = vand.u32 %v1514, 4294901760
        %v7092 = vsub.f32 %v1514, %v7091
        %v7093 = vand.u32 %v7092, 4294901760
        %v7094 = vsub.f32 %v7092, %v7093
        %v7095 = vand.u32 %v7094, 4294901760
        %7096 = vmatpush1.msra.mxu0 %v7095
        %v7097 = vand.u32 %v1511, 4294901760
        %v7098 = vsub.f32 %v1511, %v7097
        %v7099 = vand.u32 %v7098, 4294901760
        %v7100 = vsub.f32 %v7098, %v7099
        %v7101 = vand.u32 %v7100, 4294901760
        %7102 = vmatprep.subr.mxu0 %v7101
        %v7103 = vand.u32 %v1510, 4294901760
        %v7104 = vsub.f32 %v1510, %v7103
        %v7105 = vand.u32 %v7104, 4294901760
        %v7106 = vsub.f32 %v7104, %v7105
        %v7107 = vand.u32 %v7106, 4294901760
        %7108 = vmatpush1.msra.mxu0 %v7107
        %7109 = vmatprep.subr.mxu0 0.0
        %7110 = vmatpush2.msra.mxu0 0.0
        %7111 = vmatprep.subr.mxu0 0.0
        %7112 = vmatpush2.msra.mxu0 0.0
        %7113 = vmatprep.subr.mxu0 0.0
        %7114 = vmatpush2.msra.mxu0 0.0
        %7115 = vmatprep.subr.mxu0 0.0
        %7116 = vmatpush2.msra.mxu0 0.0
        %7117 = vmatprep.subr.mxu0 0.0
        %7118 = vmatpush2.msra.mxu0 0.0
        %7119 = vmatprep.subr.mxu0 0.0
        %7120 = vmatpush2.msra.mxu0 0.0
        %7121 = vmatprep.subr.mxu0 0.0
        %7122 = vmatpush2.msra.mxu0 0.0
        %7123 = vmatprep.subr.mxu0 0.0
        %7124 = vmatpush2.msra.mxu0 0.0
        %7125 = vmatprep.subr.mxu0 0.0
        %7126 = vmatpush2.msra.mxu0 0.0
        %7127 = vmatprep.subr.mxu0 0.0
        %7128 = vmatpush2.msra.mxu0 0.0
        %7129 = vmatprep.subr.mxu0 0.0
        %7130 = vmatpush2.msra.mxu0 0.0
        %7131 = vmatprep.subr.mxu0 0.0
        %7132 = vmatpush2.msra.mxu0 0.0
        %7133 = vmatprep.subr.mxu0 0.0
        %7134 = vmatpush2.msra.mxu0 0.0
        %7135 = vmatprep.subr.mxu0 0.0
        %7136 = vmatpush2.msra.mxu0 0.0
        %7137 = vmatprep.subr.mxu0 0.0
        %7138 = vmatpush2.msra.mxu0 0.0
        %7139 = vmatprep.subr.mxu0 0.0
        %7140 = vmatpush2.msra.mxu0 0.0
        %7141 = vmatprep.mubr.f32.mxu0 0.0
        %v7142 = vand.u32 %v6801, 4294901760
        %7143 = vmatmul.mubr.f32.gmra.mxu0 %v7142
        %v7144 = vpop.f32.mrf.mxu0
        %v7145 = vadd.f32 %v6913, %v7144
        %v7146 = vpop.f32.mrf.mxu0
        %v7147 = vadd.f32 %v6915, %v7146
        %7148 = vdwg.mxu0
        %v7149 = vand.u32 %v1571, 4294901760
        %v7150 = vsub.f32 %v1571, %v7149
        %7151 = vmatprep.subr.mxu0 %v7150
        %v7152 = vand.u32 %v1570, 4294901760
        %v7153 = vsub.f32 %v1570, %v7152
        %7154 = vmatpush1.msra.mxu0 %v7153
        %v7155 = vand.u32 %v1567, 4294901760
        %v7156 = vsub.f32 %v1567, %v7155
        %7157 = vmatprep.subr.mxu0 %v7156
        %v7158 = vand.u32 %v1566, 4294901760
        %v7159 = vsub.f32 %v1566, %v7158
        %7160 = vmatpush1.msra.mxu0 %v7159
        %v7161 = vand.u32 %v1563, 4294901760
        %v7162 = vsub.f32 %v1563, %v7161
        %7163 = vmatprep.subr.mxu0 %v7162
        %v7164 = vand.u32 %v1562, 4294901760
        %v7165 = vsub.f32 %v1562, %v7164
        %7166 = vmatpush1.msra.mxu0 %v7165
        %v7167 = vand.u32 %v1559, 4294901760
        %v7168 = vsub.f32 %v1559, %v7167
        %7169 = vmatprep.subr.mxu0 %v7168
        %v7170 = vand.u32 %v1558, 4294901760
        %v7171 = vsub.f32 %v1558, %v7170
        %7172 = vmatpush1.msra.mxu0 %v7171
        %v7173 = vand.u32 %v1555, 4294901760
        %v7174 = vsub.f32 %v1555, %v7173
        %7175 = vmatprep.subr.mxu0 %v7174
        %v7176 = vand.u32 %v1554, 4294901760
        %v7177 = vsub.f32 %v1554, %v7176
        %7178 = vmatpush1.msra.mxu0 %v7177
        %v7179 = vand.u32 %v1551, 4294901760
        %v7180 = vsub.f32 %v1551, %v7179
        %7181 = vmatprep.subr.mxu0 %v7180
        %v7182 = vand.u32 %v1550, 4294901760
        %v7183 = vsub.f32 %v1550, %v7182
        %7184 = vmatpush1.msra.mxu0 %v7183
        %v7185 = vand.u32 %v1547, 4294901760
        %v7186 = vsub.f32 %v1547, %v7185
        %7187 = vmatprep.subr.mxu0 %v7186
        %v7188 = vand.u32 %v1546, 4294901760
        %v7189 = vsub.f32 %v1546, %v7188
        %7190 = vmatpush1.msra.mxu0 %v7189
        %v7191 = vand.u32 %v1543, 4294901760
        %v7192 = vsub.f32 %v1543, %v7191
        %7193 = vmatprep.subr.mxu0 %v7192
        %v7194 = vand.u32 %v1542, 4294901760
        %v7195 = vsub.f32 %v1542, %v7194
        %7196 = vmatpush1.msra.mxu0 %v7195
        %v7197 = vand.u32 %v1539, 4294901760
        %v7198 = vsub.f32 %v1539, %v7197
        %7199 = vmatprep.subr.mxu0 %v7198
        %v7200 = vand.u32 %v1538, 4294901760
        %v7201 = vsub.f32 %v1538, %v7200
        %7202 = vmatpush1.msra.mxu0 %v7201
        %v7203 = vand.u32 %v1535, 4294901760
        %v7204 = vsub.f32 %v1535, %v7203
        %7205 = vmatprep.subr.mxu0 %v7204
        %v7206 = vand.u32 %v1534, 4294901760
        %v7207 = vsub.f32 %v1534, %v7206
        %7208 = vmatpush1.msra.mxu0 %v7207
        %v7209 = vand.u32 %v1531, 4294901760
        %v7210 = vsub.f32 %v1531, %v7209
        %7211 = vmatprep.subr.mxu0 %v7210
        %v7212 = vand.u32 %v1530, 4294901760
        %v7213 = vsub.f32 %v1530, %v7212
        %7214 = vmatpush1.msra.mxu0 %v7213
        %v7215 = vand.u32 %v1527, 4294901760
        %v7216 = vsub.f32 %v1527, %v7215
        %7217 = vmatprep.subr.mxu0 %v7216
        %v7218 = vand.u32 %v1526, 4294901760
        %v7219 = vsub.f32 %v1526, %v7218
        %7220 = vmatpush1.msra.mxu0 %v7219
        %v7221 = vand.u32 %v1523, 4294901760
        %v7222 = vsub.f32 %v1523, %v7221
        %7223 = vmatprep.subr.mxu0 %v7222
        %v7224 = vand.u32 %v1522, 4294901760
        %v7225 = vsub.f32 %v1522, %v7224
        %7226 = vmatpush1.msra.mxu0 %v7225
        %v7227 = vand.u32 %v1519, 4294901760
        %v7228 = vsub.f32 %v1519, %v7227
        %7229 = vmatprep.subr.mxu0 %v7228
        %v7230 = vand.u32 %v1518, 4294901760
        %v7231 = vsub.f32 %v1518, %v7230
        %7232 = vmatpush1.msra.mxu0 %v7231
        %v7233 = vand.u32 %v1515, 4294901760
        %v7234 = vsub.f32 %v1515, %v7233
        %7235 = vmatprep.subr.mxu0 %v7234
        %v7236 = vand.u32 %v1514, 4294901760
        %v7237 = vsub.f32 %v1514, %v7236
        %7238 = vmatpush1.msra.mxu0 %v7237
        %v7239 = vand.u32 %v1511, 4294901760
        %v7240 = vsub.f32 %v1511, %v7239
        %7241 = vmatprep.subr.mxu0 %v7240
        %v7242 = vand.u32 %v1510, 4294901760
        %v7243 = vsub.f32 %v1510, %v7242
        %7244 = vmatpush1.msra.mxu0 %v7243
        %7245 = vmatprep.subr.mxu0 0.0
        %7246 = vmatpush2.msra.mxu0 0.0
        %7247 = vmatprep.subr.mxu0 0.0
        %7248 = vmatpush2.msra.mxu0 0.0
        %7249 = vmatprep.subr.mxu0 0.0
        %7250 = vmatpush2.msra.mxu0 0.0
        %7251 = vmatprep.subr.mxu0 0.0
        %7252 = vmatpush2.msra.mxu0 0.0
        %7253 = vmatprep.subr.mxu0 0.0
        %7254 = vmatpush2.msra.mxu0 0.0
        %7255 = vmatprep.subr.mxu0 0.0
        %7256 = vmatpush2.msra.mxu0 0.0
        %7257 = vmatprep.subr.mxu0 0.0
        %7258 = vmatpush2.msra.mxu0 0.0
        %7259 = vmatprep.subr.mxu0 0.0
        %7260 = vmatpush2.msra.mxu0 0.0
        %7261 = vmatprep.subr.mxu0 0.0
        %7262 = vmatpush2.msra.mxu0 0.0
        %7263 = vmatprep.subr.mxu0 0.0
        %7264 = vmatpush2.msra.mxu0 0.0
        %7265 = vmatprep.subr.mxu0 0.0
        %7266 = vmatpush2.msra.mxu0 0.0
        %7267 = vmatprep.subr.mxu0 0.0
        %7268 = vmatpush2.msra.mxu0 0.0
        %7269 = vmatprep.subr.mxu0 0.0
        %7270 = vmatpush2.msra.mxu0 0.0
        %7271 = vmatprep.subr.mxu0 0.0
        %7272 = vmatpush2.msra.mxu0 0.0
        %7273 = vmatprep.subr.mxu0 0.0
        %7274 = vmatpush2.msra.mxu0 0.0
        %7275 = vmatprep.subr.mxu0 0.0
        %7276 = vmatpush2.msra.mxu0 0.0
        %7277 = vmatprep.mubr.f32.mxu0 0.0
        %v7278 = vand.u32 %v6801, 4294901760
        %v7279 = vsub.f32 %v6801, %v7278
        %7280 = vmatmul.mubr.f32.gmra.mxu0 %v7279
        %v7281 = vpop.f32.mrf.mxu0
        %v7282 = vadd.f32 %v7145, %v7281
        %v7283 = vpop.f32.mrf.mxu0
        %v7284 = vadd.f32 %v7147, %v7283
        %7285 = vdwg.mxu0
        %v7286 = vand.u32 %v1571, 4294901760
        %7287 = vmatprep.subr.mxu0 %v7286
        %v7288 = vand.u32 %v1570, 4294901760
        %7289 = vmatpush1.msra.mxu0 %v7288
        %v7290 = vand.u32 %v1567, 4294901760
        %7291 = vmatprep.subr.mxu0 %v7290
        %v7292 = vand.u32 %v1566, 4294901760
        %7293 = vmatpush1.msra.mxu0 %v7292
        %v7294 = vand.u32 %v1563, 4294901760
        %7295 = vmatprep.subr.mxu0 %v7294
        %v7296 = vand.u32 %v1562, 4294901760
        %7297 = vmatpush1.msra.mxu0 %v7296
        %v7298 = vand.u32 %v1559, 4294901760
        %7299 = vmatprep.subr.mxu0 %v7298
        %v7300 = vand.u32 %v1558, 4294901760
        %7301 = vmatpush1.msra.mxu0 %v7300
        %v7302 = vand.u32 %v1555, 4294901760
        %7303 = vmatprep.subr.mxu0 %v7302
        %v7304 = vand.u32 %v1554, 4294901760
        %7305 = vmatpush1.msra.mxu0 %v7304
        %v7306 = vand.u32 %v1551, 4294901760
        %7307 = vmatprep.subr.mxu0 %v7306
        %v7308 = vand.u32 %v1550, 4294901760
        %7309 = vmatpush1.msra.mxu0 %v7308
        %v7310 = vand.u32 %v1547, 4294901760
        %7311 = vmatprep.subr.mxu0 %v7310
        %v7312 = vand.u32 %v1546, 4294901760
        %7313 = vmatpush1.msra.mxu0 %v7312
        %v7314 = vand.u32 %v1543, 4294901760
        %7315 = vmatprep.subr.mxu0 %v7314
        %v7316 = vand.u32 %v1542, 4294901760
        %7317 = vmatpush1.msra.mxu0 %v7316
        %v7318 = vand.u32 %v1539, 4294901760
        %7319 = vmatprep.subr.mxu0 %v7318
        %v7320 = vand.u32 %v1538, 4294901760
        %7321 = vmatpush1.msra.mxu0 %v7320
        %v7322 = vand.u32 %v1535, 4294901760
        %7323 = vmatprep.subr.mxu0 %v7322
        %v7324 = vand.u32 %v1534, 4294901760
        %7325 = vmatpush1.msra.mxu0 %v7324
        %v7326 = vand.u32 %v1531, 4294901760
        %7327 = vmatprep.subr.mxu0 %v7326
        %v7328 = vand.u32 %v1530, 4294901760
        %7329 = vmatpush1.msra.mxu0 %v7328
        %v7330 = vand.u32 %v1527, 4294901760
        %7331 = vmatprep.subr.mxu0 %v7330
        %v7332 = vand.u32 %v1526, 4294901760
        %7333 = vmatpush1.msra.mxu0 %v7332
        %v7334 = vand.u32 %v1523, 4294901760
        %7335 = vmatprep.subr.mxu0 %v7334
        %v7336 = vand.u32 %v1522, 4294901760
        %7337 = vmatpush1.msra.mxu0 %v7336
        %v7338 = vand.u32 %v1519, 4294901760
        %7339 = vmatprep.subr.mxu0 %v7338
        %v7340 = vand.u32 %v1518, 4294901760
        %7341 = vmatpush1.msra.mxu0 %v7340
        %v7342 = vand.u32 %v1515, 4294901760
        %7343 = vmatprep.subr.mxu0 %v7342
        %v7344 = vand.u32 %v1514, 4294901760
        %7345 = vmatpush1.msra.mxu0 %v7344
        %v7346 = vand.u32 %v1511, 4294901760
        %7347 = vmatprep.subr.mxu0 %v7346
        %v7348 = vand.u32 %v1510, 4294901760
        %7349 = vmatpush1.msra.mxu0 %v7348
        %7350 = vmatprep.subr.mxu0 0.0
        %7351 = vmatpush2.msra.mxu0 0.0
        %7352 = vmatprep.subr.mxu0 0.0
        %7353 = vmatpush2.msra.mxu0 0.0
        %7354 = vmatprep.subr.mxu0 0.0
        %7355 = vmatpush2.msra.mxu0 0.0
        %7356 = vmatprep.subr.mxu0 0.0
        %7357 = vmatpush2.msra.mxu0 0.0
        %7358 = vmatprep.subr.mxu0 0.0
        %7359 = vmatpush2.msra.mxu0 0.0
        %7360 = vmatprep.subr.mxu0 0.0
        %7361 = vmatpush2.msra.mxu0 0.0
        %7362 = vmatprep.subr.mxu0 0.0
        %7363 = vmatpush2.msra.mxu0 0.0
        %7364 = vmatprep.subr.mxu0 0.0
        %7365 = vmatpush2.msra.mxu0 0.0
        %7366 = vmatprep.subr.mxu0 0.0
        %7367 = vmatpush2.msra.mxu0 0.0
        %7368 = vmatprep.subr.mxu0 0.0
        %7369 = vmatpush2.msra.mxu0 0.0
        %7370 = vmatprep.subr.mxu0 0.0
        %7371 = vmatpush2.msra.mxu0 0.0
        %7372 = vmatprep.subr.mxu0 0.0
        %7373 = vmatpush2.msra.mxu0 0.0
        %7374 = vmatprep.subr.mxu0 0.0
        %7375 = vmatpush2.msra.mxu0 0.0
        %7376 = vmatprep.subr.mxu0 0.0
        %7377 = vmatpush2.msra.mxu0 0.0
        %7378 = vmatprep.subr.mxu0 0.0
        %7379 = vmatpush2.msra.mxu0 0.0
        %7380 = vmatprep.subr.mxu0 0.0
        %7381 = vmatpush2.msra.mxu0 0.0
        %7382 = vmatprep.mubr.f32.mxu0 0.0
        %v7383 = vand.u32 %v6801, 4294901760
        %v7384 = vsub.f32 %v6801, %v7383
        %v7385 = vand.u32 %v7384, 4294901760
        %7386 = vmatmul.mubr.f32.gmra.mxu0 %v7385
        %v7387 = vpop.f32.mrf.mxu0
        %v7388 = vadd.f32 %v7282, %v7387
        %v7389 = vpop.f32.mrf.mxu0
        %v7390 = vadd.f32 %v7284, %v7389
        %7391 = vdwg.mxu0
        %v7392 = vand.u32 %v1571, 4294901760
        %v7393 = vsub.f32 %v1571, %v7392
        %v7394 = vand.u32 %v7393, 4294901760
        %7395 = vmatprep.subr.mxu0 %v7394
        %v7396 = vand.u32 %v1570, 4294901760
        %v7397 = vsub.f32 %v1570, %v7396
        %v7398 = vand.u32 %v7397, 4294901760
        %7399 = vmatpush1.msra.mxu0 %v7398
        %v7400 = vand.u32 %v1567, 4294901760
        %v7401 = vsub.f32 %v1567, %v7400
        %v7402 = vand.u32 %v7401, 4294901760
        %7403 = vmatprep.subr.mxu0 %v7402
        %v7404 = vand.u32 %v1566, 4294901760
        %v7405 = vsub.f32 %v1566, %v7404
        %v7406 = vand.u32 %v7405, 4294901760
        %7407 = vmatpush1.msra.mxu0 %v7406
        %v7408 = vand.u32 %v1563, 4294901760
        %v7409 = vsub.f32 %v1563, %v7408
        %v7410 = vand.u32 %v7409, 4294901760
        %7411 = vmatprep.subr.mxu0 %v7410
        %v7412 = vand.u32 %v1562, 4294901760
        %v7413 = vsub.f32 %v1562, %v7412
        %v7414 = vand.u32 %v7413, 4294901760
        %7415 = vmatpush1.msra.mxu0 %v7414
        %v7416 = vand.u32 %v1559, 4294901760
        %v7417 = vsub.f32 %v1559, %v7416
        %v7418 = vand.u32 %v7417, 4294901760
        %7419 = vmatprep.subr.mxu0 %v7418
        %v7420 = vand.u32 %v1558, 4294901760
        %v7421 = vsub.f32 %v1558, %v7420
        %v7422 = vand.u32 %v7421, 4294901760
        %7423 = vmatpush1.msra.mxu0 %v7422
        %v7424 = vand.u32 %v1555, 4294901760
        %v7425 = vsub.f32 %v1555, %v7424
        %v7426 = vand.u32 %v7425, 4294901760
        %7427 = vmatprep.subr.mxu0 %v7426
        %v7428 = vand.u32 %v1554, 4294901760
        %v7429 = vsub.f32 %v1554, %v7428
        %v7430 = vand.u32 %v7429, 4294901760
        %7431 = vmatpush1.msra.mxu0 %v7430
        %v7432 = vand.u32 %v1551, 4294901760
        %v7433 = vsub.f32 %v1551, %v7432
        %v7434 = vand.u32 %v7433, 4294901760
        %7435 = vmatprep.subr.mxu0 %v7434
        %v7436 = vand.u32 %v1550, 4294901760
        %v7437 = vsub.f32 %v1550, %v7436
        %v7438 = vand.u32 %v7437, 4294901760
        %7439 = vmatpush1.msra.mxu0 %v7438
        %v7440 = vand.u32 %v1547, 4294901760
        %v7441 = vsub.f32 %v1547, %v7440
        %v7442 = vand.u32 %v7441, 4294901760
        %7443 = vmatprep.subr.mxu0 %v7442
        %v7444 = vand.u32 %v1546, 4294901760
        %v7445 = vsub.f32 %v1546, %v7444
        %v7446 = vand.u32 %v7445, 4294901760
        %7447 = vmatpush1.msra.mxu0 %v7446
        %v7448 = vand.u32 %v1543, 4294901760
        %v7449 = vsub.f32 %v1543, %v7448
        %v7450 = vand.u32 %v7449, 4294901760
        %7451 = vmatprep.subr.mxu0 %v7450
        %v7452 = vand.u32 %v1542, 4294901760
        %v7453 = vsub.f32 %v1542, %v7452
        %v7454 = vand.u32 %v7453, 4294901760
        %7455 = vmatpush1.msra.mxu0 %v7454
        %v7456 = vand.u32 %v1539, 4294901760
        %v7457 = vsub.f32 %v1539, %v7456
        %v7458 = vand.u32 %v7457, 4294901760
        %7459 = vmatprep.subr.mxu0 %v7458
        %v7460 = vand.u32 %v1538, 4294901760
        %v7461 = vsub.f32 %v1538, %v7460
        %v7462 = vand.u32 %v7461, 4294901760
        %7463 = vmatpush1.msra.mxu0 %v7462
        %v7464 = vand.u32 %v1535, 4294901760
        %v7465 = vsub.f32 %v1535, %v7464
        %v7466 = vand.u32 %v7465, 4294901760
        %7467 = vmatprep.subr.mxu0 %v7466
        %v7468 = vand.u32 %v1534, 4294901760
        %v7469 = vsub.f32 %v1534, %v7468
        %v7470 = vand.u32 %v7469, 4294901760
        %7471 = vmatpush1.msra.mxu0 %v7470
        %v7472 = vand.u32 %v1531, 4294901760
        %v7473 = vsub.f32 %v1531, %v7472
        %v7474 = vand.u32 %v7473, 4294901760
        %7475 = vmatprep.subr.mxu0 %v7474
        %v7476 = vand.u32 %v1530, 4294901760
        %v7477 = vsub.f32 %v1530, %v7476
        %v7478 = vand.u32 %v7477, 4294901760
        %7479 = vmatpush1.msra.mxu0 %v7478
        %v7480 = vand.u32 %v1527, 4294901760
        %v7481 = vsub.f32 %v1527, %v7480
        %v7482 = vand.u32 %v7481, 4294901760
        %7483 = vmatprep.subr.mxu0 %v7482
        %v7484 = vand.u32 %v1526, 4294901760
        %v7485 = vsub.f32 %v1526, %v7484
        %v7486 = vand.u32 %v7485, 4294901760
        %7487 = vmatpush1.msra.mxu0 %v7486
        %v7488 = vand.u32 %v1523, 4294901760
        %v7489 = vsub.f32 %v1523, %v7488
        %v7490 = vand.u32 %v7489, 4294901760
        %7491 = vmatprep.subr.mxu0 %v7490
        %v7492 = vand.u32 %v1522, 4294901760
        %v7493 = vsub.f32 %v1522, %v7492
        %v7494 = vand.u32 %v7493, 4294901760
        %7495 = vmatpush1.msra.mxu0 %v7494
        %v7496 = vand.u32 %v1519, 4294901760
        %v7497 = vsub.f32 %v1519, %v7496
        %v7498 = vand.u32 %v7497, 4294901760
        %7499 = vmatprep.subr.mxu0 %v7498
        %v7500 = vand.u32 %v1518, 4294901760
        %v7501 = vsub.f32 %v1518, %v7500
        %v7502 = vand.u32 %v7501, 4294901760
        %7503 = vmatpush1.msra.mxu0 %v7502
        %v7504 = vand.u32 %v1515, 4294901760
        %v7505 = vsub.f32 %v1515, %v7504
        %v7506 = vand.u32 %v7505, 4294901760
        %7507 = vmatprep.subr.mxu0 %v7506
        %v7508 = vand.u32 %v1514, 4294901760
        %v7509 = vsub.f32 %v1514, %v7508
        %v7510 = vand.u32 %v7509, 4294901760
        %7511 = vmatpush1.msra.mxu0 %v7510
        %v7512 = vand.u32 %v1511, 4294901760
        %v7513 = vsub.f32 %v1511, %v7512
        %v7514 = vand.u32 %v7513, 4294901760
        %7515 = vmatprep.subr.mxu0 %v7514
        %v7516 = vand.u32 %v1510, 4294901760
        %v7517 = vsub.f32 %v1510, %v7516
        %v7518 = vand.u32 %v7517, 4294901760
        %7519 = vmatpush1.msra.mxu0 %v7518
        %7520 = vmatprep.subr.mxu0 0.0
        %7521 = vmatpush2.msra.mxu0 0.0
        %7522 = vmatprep.subr.mxu0 0.0
        %7523 = vmatpush2.msra.mxu0 0.0
        %7524 = vmatprep.subr.mxu0 0.0
        %7525 = vmatpush2.msra.mxu0 0.0
        %7526 = vmatprep.subr.mxu0 0.0
        %7527 = vmatpush2.msra.mxu0 0.0
        %7528 = vmatprep.subr.mxu0 0.0
        %7529 = vmatpush2.msra.mxu0 0.0
        %7530 = vmatprep.subr.mxu0 0.0
        %7531 = vmatpush2.msra.mxu0 0.0
        %7532 = vmatprep.subr.mxu0 0.0
        %7533 = vmatpush2.msra.mxu0 0.0
        %7534 = vmatprep.subr.mxu0 0.0
        %7535 = vmatpush2.msra.mxu0 0.0
        %7536 = vmatprep.subr.mxu0 0.0
        %7537 = vmatpush2.msra.mxu0 0.0
        %7538 = vmatprep.subr.mxu0 0.0
        %7539 = vmatpush2.msra.mxu0 0.0
        %7540 = vmatprep.subr.mxu0 0.0
        %7541 = vmatpush2.msra.mxu0 0.0
        %7542 = vmatprep.subr.mxu0 0.0
        %7543 = vmatpush2.msra.mxu0 0.0
        %7544 = vmatprep.subr.mxu0 0.0
        %7545 = vmatpush2.msra.mxu0 0.0
        %7546 = vmatprep.subr.mxu0 0.0
        %7547 = vmatpush2.msra.mxu0 0.0
        %7548 = vmatprep.subr.mxu0 0.0
        %7549 = vmatpush2.msra.mxu0 0.0
        %7550 = vmatprep.subr.mxu0 0.0
        %7551 = vmatpush2.msra.mxu0 0.0
        %7552 = vmatprep.mubr.f32.mxu0 0.0
        %v7553 = vand.u32 %v6801, 4294901760
        %7554 = vmatmul.mubr.f32.gmra.mxu0 %v7553
        %v7555 = vpop.f32.mrf.mxu0
        %v7556 = vadd.f32 %v7388, %v7555
        %v7557 = vpop.f32.mrf.mxu0
        %v7558 = vadd.f32 %v7390, %v7557
        %7559 = vdwg.mxu0
        %v7560 = vand.u32 %v1571, 4294901760
        %7561 = vmatprep.subr.mxu0 %v7560
        %v7562 = vand.u32 %v1570, 4294901760
        %7563 = vmatpush1.msra.mxu0 %v7562
        %v7564 = vand.u32 %v1567, 4294901760
        %7565 = vmatprep.subr.mxu0 %v7564
        %v7566 = vand.u32 %v1566, 4294901760
        %7567 = vmatpush1.msra.mxu0 %v7566
        %v7568 = vand.u32 %v1563, 4294901760
        %7569 = vmatprep.subr.mxu0 %v7568
        %v7570 = vand.u32 %v1562, 4294901760
        %7571 = vmatpush1.msra.mxu0 %v7570
        %v7572 = vand.u32 %v1559, 4294901760
        %7573 = vmatprep.subr.mxu0 %v7572
        %v7574 = vand.u32 %v1558, 4294901760
        %7575 = vmatpush1.msra.mxu0 %v7574
        %v7576 = vand.u32 %v1555, 4294901760
        %7577 = vmatprep.subr.mxu0 %v7576
        %v7578 = vand.u32 %v1554, 4294901760
        %7579 = vmatpush1.msra.mxu0 %v7578
        %v7580 = vand.u32 %v1551, 4294901760
        %7581 = vmatprep.subr.mxu0 %v7580
        %v7582 = vand.u32 %v1550, 4294901760
        %7583 = vmatpush1.msra.mxu0 %v7582
        %v7584 = vand.u32 %v1547, 4294901760
        %7585 = vmatprep.subr.mxu0 %v7584
        %v7586 = vand.u32 %v1546, 4294901760
        %7587 = vmatpush1.msra.mxu0 %v7586
        %v7588 = vand.u32 %v1543, 4294901760
        %7589 = vmatprep.subr.mxu0 %v7588
        %v7590 = vand.u32 %v1542, 4294901760
        %7591 = vmatpush1.msra.mxu0 %v7590
        %v7592 = vand.u32 %v1539, 4294901760
        %7593 = vmatprep.subr.mxu0 %v7592
        %v7594 = vand.u32 %v1538, 4294901760
        %7595 = vmatpush1.msra.mxu0 %v7594
        %v7596 = vand.u32 %v1535, 4294901760
        %7597 = vmatprep.subr.mxu0 %v7596
        %v7598 = vand.u32 %v1534, 4294901760
        %7599 = vmatpush1.msra.mxu0 %v7598
        %v7600 = vand.u32 %v1531, 4294901760
        %7601 = vmatprep.subr.mxu0 %v7600
        %v7602 = vand.u32 %v1530, 4294901760
        %7603 = vmatpush1.msra.mxu0 %v7602
        %v7604 = vand.u32 %v1527, 4294901760
        %7605 = vmatprep.subr.mxu0 %v7604
        %v7606 = vand.u32 %v1526, 4294901760
        %7607 = vmatpush1.msra.mxu0 %v7606
        %v7608 = vand.u32 %v1523, 4294901760
        %7609 = vmatprep.subr.mxu0 %v7608
        %v7610 = vand.u32 %v1522, 4294901760
        %7611 = vmatpush1.msra.mxu0 %v7610
        %v7612 = vand.u32 %v1519, 4294901760
        %7613 = vmatprep.subr.mxu0 %v7612
        %v7614 = vand.u32 %v1518, 4294901760
        %7615 = vmatpush1.msra.mxu0 %v7614
        %v7616 = vand.u32 %v1515, 4294901760
        %7617 = vmatprep.subr.mxu0 %v7616
        %v7618 = vand.u32 %v1514, 4294901760
        %7619 = vmatpush1.msra.mxu0 %v7618
        %v7620 = vand.u32 %v1511, 4294901760
        %7621 = vmatprep.subr.mxu0 %v7620
        %v7622 = vand.u32 %v1510, 4294901760
        %7623 = vmatpush1.msra.mxu0 %v7622
        %7624 = vmatprep.subr.mxu0 0.0
        %7625 = vmatpush2.msra.mxu0 0.0
        %7626 = vmatprep.subr.mxu0 0.0
        %7627 = vmatpush2.msra.mxu0 0.0
        %7628 = vmatprep.subr.mxu0 0.0
        %7629 = vmatpush2.msra.mxu0 0.0
        %7630 = vmatprep.subr.mxu0 0.0
        %7631 = vmatpush2.msra.mxu0 0.0
        %7632 = vmatprep.subr.mxu0 0.0
        %7633 = vmatpush2.msra.mxu0 0.0
        %7634 = vmatprep.subr.mxu0 0.0
        %7635 = vmatpush2.msra.mxu0 0.0
        %7636 = vmatprep.subr.mxu0 0.0
        %7637 = vmatpush2.msra.mxu0 0.0
        %7638 = vmatprep.subr.mxu0 0.0
        %7639 = vmatpush2.msra.mxu0 0.0
        %7640 = vmatprep.subr.mxu0 0.0
        %7641 = vmatpush2.msra.mxu0 0.0
        %7642 = vmatprep.subr.mxu0 0.0
        %7643 = vmatpush2.msra.mxu0 0.0
        %7644 = vmatprep.subr.mxu0 0.0
        %7645 = vmatpush2.msra.mxu0 0.0
        %7646 = vmatprep.subr.mxu0 0.0
        %7647 = vmatpush2.msra.mxu0 0.0
        %7648 = vmatprep.subr.mxu0 0.0
        %7649 = vmatpush2.msra.mxu0 0.0
        %7650 = vmatprep.subr.mxu0 0.0
        %7651 = vmatpush2.msra.mxu0 0.0
        %7652 = vmatprep.subr.mxu0 0.0
        %7653 = vmatpush2.msra.mxu0 0.0
        %7654 = vmatprep.subr.mxu0 0.0
        %7655 = vmatpush2.msra.mxu0 0.0
        %7656 = vmatprep.mubr.f32.mxu0 0.0
        %v7657 = vand.u32 %v6801, 4294901760
        %7658 = vmatmul.mubr.f32.gmra.mxu0 %v7657
        %v7659 = vpop.f32.mrf.mxu0
        %v7660 = vadd.f32 %v7556, %v7659
        %v7661 = vpop.f32.mrf.mxu0
        %v7662 = vadd.f32 %v7558, %v7661
        %7663 = vdwg.mxu0
        %v7664 = vand.u32 %v1573, 4294901760
        %7665 = vmatprep.subr.mxu0 %v7664
        %v7666 = vand.u32 %v1572, 4294901760
        %7667 = vmatpush1.msra.mxu0 %v7666
        %v7668 = vand.u32 %v1569, 4294901760
        %7669 = vmatprep.subr.mxu0 %v7668
        %v7670 = vand.u32 %v1568, 4294901760
        %7671 = vmatpush1.msra.mxu0 %v7670
        %v7672 = vand.u32 %v1565, 4294901760
        %7673 = vmatprep.subr.mxu0 %v7672
        %v7674 = vand.u32 %v1564, 4294901760
        %7675 = vmatpush1.msra.mxu0 %v7674
        %v7676 = vand.u32 %v1561, 4294901760
        %7677 = vmatprep.subr.mxu0 %v7676
        %v7678 = vand.u32 %v1560, 4294901760
        %7679 = vmatpush1.msra.mxu0 %v7678
        %v7680 = vand.u32 %v1557, 4294901760
        %7681 = vmatprep.subr.mxu0 %v7680
        %v7682 = vand.u32 %v1556, 4294901760
        %7683 = vmatpush1.msra.mxu0 %v7682
        %v7684 = vand.u32 %v1553, 4294901760
        %7685 = vmatprep.subr.mxu0 %v7684
        %v7686 = vand.u32 %v1552, 4294901760
        %7687 = vmatpush1.msra.mxu0 %v7686
        %v7688 = vand.u32 %v1549, 4294901760
        %7689 = vmatprep.subr.mxu0 %v7688
        %v7690 = vand.u32 %v1548, 4294901760
        %7691 = vmatpush1.msra.mxu0 %v7690
        %v7692 = vand.u32 %v1545, 4294901760
        %7693 = vmatprep.subr.mxu0 %v7692
        %v7694 = vand.u32 %v1544, 4294901760
        %7695 = vmatpush1.msra.mxu0 %v7694
        %v7696 = vand.u32 %v1541, 4294901760
        %7697 = vmatprep.subr.mxu0 %v7696
        %v7698 = vand.u32 %v1540, 4294901760
        %7699 = vmatpush1.msra.mxu0 %v7698
        %v7700 = vand.u32 %v1537, 4294901760
        %7701 = vmatprep.subr.mxu0 %v7700
        %v7702 = vand.u32 %v1536, 4294901760
        %7703 = vmatpush1.msra.mxu0 %v7702
        %v7704 = vand.u32 %v1533, 4294901760
        %7705 = vmatprep.subr.mxu0 %v7704
        %v7706 = vand.u32 %v1532, 4294901760
        %7707 = vmatpush1.msra.mxu0 %v7706
        %v7708 = vand.u32 %v1529, 4294901760
        %7709 = vmatprep.subr.mxu0 %v7708
        %v7710 = vand.u32 %v1528, 4294901760
        %7711 = vmatpush1.msra.mxu0 %v7710
        %v7712 = vand.u32 %v1525, 4294901760
        %7713 = vmatprep.subr.mxu0 %v7712
        %v7714 = vand.u32 %v1524, 4294901760
        %7715 = vmatpush1.msra.mxu0 %v7714
        %v7716 = vand.u32 %v1521, 4294901760
        %7717 = vmatprep.subr.mxu0 %v7716
        %v7718 = vand.u32 %v1520, 4294901760
        %7719 = vmatpush1.msra.mxu0 %v7718
        %v7720 = vand.u32 %v1517, 4294901760
        %7721 = vmatprep.subr.mxu0 %v7720
        %v7722 = vand.u32 %v1516, 4294901760
        %7723 = vmatpush1.msra.mxu0 %v7722
        %v7724 = vand.u32 %v1513, 4294901760
        %7725 = vmatprep.subr.mxu0 %v7724
        %v7726 = vand.u32 %v1512, 4294901760
        %7727 = vmatpush1.msra.mxu0 %v7726
        %7728 = vmatprep.subr.mxu0 0.0
        %7729 = vmatpush2.msra.mxu0 0.0
        %7730 = vmatprep.subr.mxu0 0.0
        %7731 = vmatpush2.msra.mxu0 0.0
        %7732 = vmatprep.subr.mxu0 0.0
        %7733 = vmatpush2.msra.mxu0 0.0
        %7734 = vmatprep.subr.mxu0 0.0
        %7735 = vmatpush2.msra.mxu0 0.0
        %7736 = vmatprep.subr.mxu0 0.0
        %7737 = vmatpush2.msra.mxu0 0.0
        %7738 = vmatprep.subr.mxu0 0.0
        %7739 = vmatpush2.msra.mxu0 0.0
        %7740 = vmatprep.subr.mxu0 0.0
        %7741 = vmatpush2.msra.mxu0 0.0
        %7742 = vmatprep.subr.mxu0 0.0
        %7743 = vmatpush2.msra.mxu0 0.0
        %7744 = vmatprep.subr.mxu0 0.0
        %7745 = vmatpush2.msra.mxu0 0.0
        %7746 = vmatprep.subr.mxu0 0.0
        %7747 = vmatpush2.msra.mxu0 0.0
        %7748 = vmatprep.subr.mxu0 0.0
        %7749 = vmatpush2.msra.mxu0 0.0
        %7750 = vmatprep.subr.mxu0 0.0
        %7751 = vmatpush2.msra.mxu0 0.0
        %7752 = vmatprep.subr.mxu0 0.0
        %7753 = vmatpush2.msra.mxu0 0.0
        %7754 = vmatprep.subr.mxu0 0.0
        %7755 = vmatpush2.msra.mxu0 0.0
        %7756 = vmatprep.subr.mxu0 0.0
        %7757 = vmatpush2.msra.mxu0 0.0
        %7758 = vmatprep.subr.mxu0 0.0
        %7759 = vmatpush2.msra.mxu0 0.0
        %7760 = vmatprep.mubr.f32.mxu0 0.0
        %v7761 = vand.u32 %v6801, 4294901760
        %v7762 = vsub.f32 %v6801, %v7761
        %v7763 = vand.u32 %v7762, 4294901760
        %v7764 = vsub.f32 %v7762, %v7763
        %v7765 = vand.u32 %v7764, 4294901760
        %7766 = vmatmul.mubr.f32.gmra.mxu0 %v7765
        %v7767 = vpop.f32.mrf.mxu0
        %v7768 = vadd.f32 0.0, %v7767
        %v7769 = vpop.f32.mrf.mxu0
        %v7770 = vadd.f32 0.0, %v7769
        %7771 = vdwg.mxu0
        %v7772 = vand.u32 %v1573, 4294901760
        %v7773 = vsub.f32 %v1573, %v7772
        %v7774 = vand.u32 %v7773, 4294901760
        %v7775 = vsub.f32 %v7773, %v7774
        %v7776 = vand.u32 %v7775, 4294901760
        %7777 = vmatprep.subr.mxu0 %v7776
        %v7778 = vand.u32 %v1572, 4294901760
        %v7779 = vsub.f32 %v1572, %v7778
        %v7780 = vand.u32 %v7779, 4294901760
        %v7781 = vsub.f32 %v7779, %v7780
        %v7782 = vand.u32 %v7781, 4294901760
        %7783 = vmatpush1.msra.mxu0 %v7782
        %v7784 = vand.u32 %v1569, 4294901760
        %v7785 = vsub.f32 %v1569, %v7784
        %v7786 = vand.u32 %v7785, 4294901760
        %v7787 = vsub.f32 %v7785, %v7786
        %v7788 = vand.u32 %v7787, 4294901760
        %7789 = vmatprep.subr.mxu0 %v7788
        %v7790 = vand.u32 %v1568, 4294901760
        %v7791 = vsub.f32 %v1568, %v7790
        %v7792 = vand.u32 %v7791, 4294901760
        %v7793 = vsub.f32 %v7791, %v7792
        %v7794 = vand.u32 %v7793, 4294901760
        %7795 = vmatpush1.msra.mxu0 %v7794
        %v7796 = vand.u32 %v1565, 4294901760
        %v7797 = vsub.f32 %v1565, %v7796
        %v7798 = vand.u32 %v7797, 4294901760
        %v7799 = vsub.f32 %v7797, %v7798
        %v7800 = vand.u32 %v7799, 4294901760
        %7801 = vmatprep.subr.mxu0 %v7800
        %v7802 = vand.u32 %v1564, 4294901760
        %v7803 = vsub.f32 %v1564, %v7802
        %v7804 = vand.u32 %v7803, 4294901760
        %v7805 = vsub.f32 %v7803, %v7804
        %v7806 = vand.u32 %v7805, 4294901760
        %7807 = vmatpush1.msra.mxu0 %v7806
        %v7808 = vand.u32 %v1561, 4294901760
        %v7809 = vsub.f32 %v1561, %v7808
        %v7810 = vand.u32 %v7809, 4294901760
        %v7811 = vsub.f32 %v7809, %v7810
        %v7812 = vand.u32 %v7811, 4294901760
        %7813 = vmatprep.subr.mxu0 %v7812
        %v7814 = vand.u32 %v1560, 4294901760
        %v7815 = vsub.f32 %v1560, %v7814
        %v7816 = vand.u32 %v7815, 4294901760
        %v7817 = vsub.f32 %v7815, %v7816
        %v7818 = vand.u32 %v7817, 4294901760
        %7819 = vmatpush1.msra.mxu0 %v7818
        %v7820 = vand.u32 %v1557, 4294901760
        %v7821 = vsub.f32 %v1557, %v7820
        %v7822 = vand.u32 %v7821, 4294901760
        %v7823 = vsub.f32 %v7821, %v7822
        %v7824 = vand.u32 %v7823, 4294901760
        %7825 = vmatprep.subr.mxu0 %v7824
        %v7826 = vand.u32 %v1556, 4294901760
        %v7827 = vsub.f32 %v1556, %v7826
        %v7828 = vand.u32 %v7827, 4294901760
        %v7829 = vsub.f32 %v7827, %v7828
        %v7830 = vand.u32 %v7829, 4294901760
        %7831 = vmatpush1.msra.mxu0 %v7830
        %v7832 = vand.u32 %v1553, 4294901760
        %v7833 = vsub.f32 %v1553, %v7832
        %v7834 = vand.u32 %v7833, 4294901760
        %v7835 = vsub.f32 %v7833, %v7834
        %v7836 = vand.u32 %v7835, 4294901760
        %7837 = vmatprep.subr.mxu0 %v7836
        %v7838 = vand.u32 %v1552, 4294901760
        %v7839 = vsub.f32 %v1552, %v7838
        %v7840 = vand.u32 %v7839, 4294901760
        %v7841 = vsub.f32 %v7839, %v7840
        %v7842 = vand.u32 %v7841, 4294901760
        %7843 = vmatpush1.msra.mxu0 %v7842
        %v7844 = vand.u32 %v1549, 4294901760
        %v7845 = vsub.f32 %v1549, %v7844
        %v7846 = vand.u32 %v7845, 4294901760
        %v7847 = vsub.f32 %v7845, %v7846
        %v7848 = vand.u32 %v7847, 4294901760
        %7849 = vmatprep.subr.mxu0 %v7848
        %v7850 = vand.u32 %v1548, 4294901760
        %v7851 = vsub.f32 %v1548, %v7850
        %v7852 = vand.u32 %v7851, 4294901760
        %v7853 = vsub.f32 %v7851, %v7852
        %v7854 = vand.u32 %v7853, 4294901760
        %7855 = vmatpush1.msra.mxu0 %v7854
        %v7856 = vand.u32 %v1545, 4294901760
        %v7857 = vsub.f32 %v1545, %v7856
        %v7858 = vand.u32 %v7857, 4294901760
        %v7859 = vsub.f32 %v7857, %v7858
        %v7860 = vand.u32 %v7859, 4294901760
        %7861 = vmatprep.subr.mxu0 %v7860
        %v7862 = vand.u32 %v1544, 4294901760
        %v7863 = vsub.f32 %v1544, %v7862
        %v7864 = vand.u32 %v7863, 4294901760
        %v7865 = vsub.f32 %v7863, %v7864
        %v7866 = vand.u32 %v7865, 4294901760
        %7867 = vmatpush1.msra.mxu0 %v7866
        %v7868 = vand.u32 %v1541, 4294901760
        %v7869 = vsub.f32 %v1541, %v7868
        %v7870 = vand.u32 %v7869, 4294901760
        %v7871 = vsub.f32 %v7869, %v7870
        %v7872 = vand.u32 %v7871, 4294901760
        %7873 = vmatprep.subr.mxu0 %v7872
        %v7874 = vand.u32 %v1540, 4294901760
        %v7875 = vsub.f32 %v1540, %v7874
        %v7876 = vand.u32 %v7875, 4294901760
        %v7877 = vsub.f32 %v7875, %v7876
        %v7878 = vand.u32 %v7877, 4294901760
        %7879 = vmatpush1.msra.mxu0 %v7878
        %v7880 = vand.u32 %v1537, 4294901760
        %v7881 = vsub.f32 %v1537, %v7880
        %v7882 = vand.u32 %v7881, 4294901760
        %v7883 = vsub.f32 %v7881, %v7882
        %v7884 = vand.u32 %v7883, 4294901760
        %7885 = vmatprep.subr.mxu0 %v7884
        %v7886 = vand.u32 %v1536, 4294901760
        %v7887 = vsub.f32 %v1536, %v7886
        %v7888 = vand.u32 %v7887, 4294901760
        %v7889 = vsub.f32 %v7887, %v7888
        %v7890 = vand.u32 %v7889, 4294901760
        %7891 = vmatpush1.msra.mxu0 %v7890
        %v7892 = vand.u32 %v1533, 4294901760
        %v7893 = vsub.f32 %v1533, %v7892
        %v7894 = vand.u32 %v7893, 4294901760
        %v7895 = vsub.f32 %v7893, %v7894
        %v7896 = vand.u32 %v7895, 4294901760
        %7897 = vmatprep.subr.mxu0 %v7896
        %v7898 = vand.u32 %v1532, 4294901760
        %v7899 = vsub.f32 %v1532, %v7898
        %v7900 = vand.u32 %v7899, 4294901760
        %v7901 = vsub.f32 %v7899, %v7900
        %v7902 = vand.u32 %v7901, 4294901760
        %7903 = vmatpush1.msra.mxu0 %v7902
        %v7904 = vand.u32 %v1529, 4294901760
        %v7905 = vsub.f32 %v1529, %v7904
        %v7906 = vand.u32 %v7905, 4294901760
        %v7907 = vsub.f32 %v7905, %v7906
        %v7908 = vand.u32 %v7907, 4294901760
        %7909 = vmatprep.subr.mxu0 %v7908
        %v7910 = vand.u32 %v1528, 4294901760
        %v7911 = vsub.f32 %v1528, %v7910
        %v7912 = vand.u32 %v7911, 4294901760
        %v7913 = vsub.f32 %v7911, %v7912
        %v7914 = vand.u32 %v7913, 4294901760
        %7915 = vmatpush1.msra.mxu0 %v7914
        %v7916 = vand.u32 %v1525, 4294901760
        %v7917 = vsub.f32 %v1525, %v7916
        %v7918 = vand.u32 %v7917, 4294901760
        %v7919 = vsub.f32 %v7917, %v7918
        %v7920 = vand.u32 %v7919, 4294901760
        %7921 = vmatprep.subr.mxu0 %v7920
        %v7922 = vand.u32 %v1524, 4294901760
        %v7923 = vsub.f32 %v1524, %v7922
        %v7924 = vand.u32 %v7923, 4294901760
        %v7925 = vsub.f32 %v7923, %v7924
        %v7926 = vand.u32 %v7925, 4294901760
        %7927 = vmatpush1.msra.mxu0 %v7926
        %v7928 = vand.u32 %v1521, 4294901760
        %v7929 = vsub.f32 %v1521, %v7928
        %v7930 = vand.u32 %v7929, 4294901760
        %v7931 = vsub.f32 %v7929, %v7930
        %v7932 = vand.u32 %v7931, 4294901760
        %7933 = vmatprep.subr.mxu0 %v7932
        %v7934 = vand.u32 %v1520, 4294901760
        %v7935 = vsub.f32 %v1520, %v7934
        %v7936 = vand.u32 %v7935, 4294901760
        %v7937 = vsub.f32 %v7935, %v7936
        %v7938 = vand.u32 %v7937, 4294901760
        %7939 = vmatpush1.msra.mxu0 %v7938
        %v7940 = vand.u32 %v1517, 4294901760
        %v7941 = vsub.f32 %v1517, %v7940
        %v7942 = vand.u32 %v7941, 4294901760
        %v7943 = vsub.f32 %v7941, %v7942
        %v7944 = vand.u32 %v7943, 4294901760
        %7945 = vmatprep.subr.mxu0 %v7944
        %v7946 = vand.u32 %v1516, 4294901760
        %v7947 = vsub.f32 %v1516, %v7946
        %v7948 = vand.u32 %v7947, 4294901760
        %v7949 = vsub.f32 %v7947, %v7948
        %v7950 = vand.u32 %v7949, 4294901760
        %7951 = vmatpush1.msra.mxu0 %v7950
        %v7952 = vand.u32 %v1513, 4294901760
        %v7953 = vsub.f32 %v1513, %v7952
        %v7954 = vand.u32 %v7953, 4294901760
        %v7955 = vsub.f32 %v7953, %v7954
        %v7956 = vand.u32 %v7955, 4294901760
        %7957 = vmatprep.subr.mxu0 %v7956
        %v7958 = vand.u32 %v1512, 4294901760
        %v7959 = vsub.f32 %v1512, %v7958
        %v7960 = vand.u32 %v7959, 4294901760
        %v7961 = vsub.f32 %v7959, %v7960
        %v7962 = vand.u32 %v7961, 4294901760
        %7963 = vmatpush1.msra.mxu0 %v7962
        %7964 = vmatprep.subr.mxu0 0.0
        %7965 = vmatpush2.msra.mxu0 0.0
        %7966 = vmatprep.subr.mxu0 0.0
        %7967 = vmatpush2.msra.mxu0 0.0
        %7968 = vmatprep.subr.mxu0 0.0
        %7969 = vmatpush2.msra.mxu0 0.0
        %7970 = vmatprep.subr.mxu0 0.0
        %7971 = vmatpush2.msra.mxu0 0.0
        %7972 = vmatprep.subr.mxu0 0.0
        %7973 = vmatpush2.msra.mxu0 0.0
        %7974 = vmatprep.subr.mxu0 0.0
        %7975 = vmatpush2.msra.mxu0 0.0
        %7976 = vmatprep.subr.mxu0 0.0
        %7977 = vmatpush2.msra.mxu0 0.0
        %7978 = vmatprep.subr.mxu0 0.0
        %7979 = vmatpush2.msra.mxu0 0.0
        %7980 = vmatprep.subr.mxu0 0.0
        %7981 = vmatpush2.msra.mxu0 0.0
        %7982 = vmatprep.subr.mxu0 0.0
        %7983 = vmatpush2.msra.mxu0 0.0
        %7984 = vmatprep.subr.mxu0 0.0
        %7985 = vmatpush2.msra.mxu0 0.0
        %7986 = vmatprep.subr.mxu0 0.0
        %7987 = vmatpush2.msra.mxu0 0.0
        %7988 = vmatprep.subr.mxu0 0.0
        %7989 = vmatpush2.msra.mxu0 0.0
        %7990 = vmatprep.subr.mxu0 0.0
        %7991 = vmatpush2.msra.mxu0 0.0
        %7992 = vmatprep.subr.mxu0 0.0
        %7993 = vmatpush2.msra.mxu0 0.0
        %7994 = vmatprep.subr.mxu0 0.0
        %7995 = vmatpush2.msra.mxu0 0.0
        %7996 = vmatprep.mubr.f32.mxu0 0.0
        %v7997 = vand.u32 %v6801, 4294901760
        %7998 = vmatmul.mubr.f32.gmra.mxu0 %v7997
        %v7999 = vpop.f32.mrf.mxu0
        %v8000 = vadd.f32 %v7768, %v7999
        %v8001 = vpop.f32.mrf.mxu0
        %v8002 = vadd.f32 %v7770, %v8001
        %8003 = vdwg.mxu0
        %v8004 = vand.u32 %v1573, 4294901760
        %v8005 = vsub.f32 %v1573, %v8004
        %8006 = vmatprep.subr.mxu0 %v8005
        %v8007 = vand.u32 %v1572, 4294901760
        %v8008 = vsub.f32 %v1572, %v8007
        %8009 = vmatpush1.msra.mxu0 %v8008
        %v8010 = vand.u32 %v1569, 4294901760
        %v8011 = vsub.f32 %v1569, %v8010
        %8012 = vmatprep.subr.mxu0 %v8011
        %v8013 = vand.u32 %v1568, 4294901760
        %v8014 = vsub.f32 %v1568, %v8013
        %8015 = vmatpush1.msra.mxu0 %v8014
        %v8016 = vand.u32 %v1565, 4294901760
        %v8017 = vsub.f32 %v1565, %v8016
        %8018 = vmatprep.subr.mxu0 %v8017
        %v8019 = vand.u32 %v1564, 4294901760
        %v8020 = vsub.f32 %v1564, %v8019
        %8021 = vmatpush1.msra.mxu0 %v8020
        %v8022 = vand.u32 %v1561, 4294901760
        %v8023 = vsub.f32 %v1561, %v8022
        %8024 = vmatprep.subr.mxu0 %v8023
        %v8025 = vand.u32 %v1560, 4294901760
        %v8026 = vsub.f32 %v1560, %v8025
        %8027 = vmatpush1.msra.mxu0 %v8026
        %v8028 = vand.u32 %v1557, 4294901760
        %v8029 = vsub.f32 %v1557, %v8028
        %8030 = vmatprep.subr.mxu0 %v8029
        %v8031 = vand.u32 %v1556, 4294901760
        %v8032 = vsub.f32 %v1556, %v8031
        %8033 = vmatpush1.msra.mxu0 %v8032
        %v8034 = vand.u32 %v1553, 4294901760
        %v8035 = vsub.f32 %v1553, %v8034
        %8036 = vmatprep.subr.mxu0 %v8035
        %v8037 = vand.u32 %v1552, 4294901760
        %v8038 = vsub.f32 %v1552, %v8037
        %8039 = vmatpush1.msra.mxu0 %v8038
        %v8040 = vand.u32 %v1549, 4294901760
        %v8041 = vsub.f32 %v1549, %v8040
        %8042 = vmatprep.subr.mxu0 %v8041
        %v8043 = vand.u32 %v1548, 4294901760
        %v8044 = vsub.f32 %v1548, %v8043
        %8045 = vmatpush1.msra.mxu0 %v8044
        %v8046 = vand.u32 %v1545, 4294901760
        %v8047 = vsub.f32 %v1545, %v8046
        %8048 = vmatprep.subr.mxu0 %v8047
        %v8049 = vand.u32 %v1544, 4294901760
        %v8050 = vsub.f32 %v1544, %v8049
        %8051 = vmatpush1.msra.mxu0 %v8050
        %v8052 = vand.u32 %v1541, 4294901760
        %v8053 = vsub.f32 %v1541, %v8052
        %8054 = vmatprep.subr.mxu0 %v8053
        %v8055 = vand.u32 %v1540, 4294901760
        %v8056 = vsub.f32 %v1540, %v8055
        %8057 = vmatpush1.msra.mxu0 %v8056
        %v8058 = vand.u32 %v1537, 4294901760
        %v8059 = vsub.f32 %v1537, %v8058
        %8060 = vmatprep.subr.mxu0 %v8059
        %v8061 = vand.u32 %v1536, 4294901760
        %v8062 = vsub.f32 %v1536, %v8061
        %8063 = vmatpush1.msra.mxu0 %v8062
        %v8064 = vand.u32 %v1533, 4294901760
        %v8065 = vsub.f32 %v1533, %v8064
        %8066 = vmatprep.subr.mxu0 %v8065
        %v8067 = vand.u32 %v1532, 4294901760
        %v8068 = vsub.f32 %v1532, %v8067
        %8069 = vmatpush1.msra.mxu0 %v8068
        %v8070 = vand.u32 %v1529, 4294901760
        %v8071 = vsub.f32 %v1529, %v8070
        %8072 = vmatprep.subr.mxu0 %v8071
        %v8073 = vand.u32 %v1528, 4294901760
        %v8074 = vsub.f32 %v1528, %v8073
        %8075 = vmatpush1.msra.mxu0 %v8074
        %v8076 = vand.u32 %v1525, 4294901760
        %v8077 = vsub.f32 %v1525, %v8076
        %8078 = vmatprep.subr.mxu0 %v8077
        %v8079 = vand.u32 %v1524, 4294901760
        %v8080 = vsub.f32 %v1524, %v8079
        %8081 = vmatpush1.msra.mxu0 %v8080
        %v8082 = vand.u32 %v1521, 4294901760
        %v8083 = vsub.f32 %v1521, %v8082
        %8084 = vmatprep.subr.mxu0 %v8083
        %v8085 = vand.u32 %v1520, 4294901760
        %v8086 = vsub.f32 %v1520, %v8085
        %8087 = vmatpush1.msra.mxu0 %v8086
        %v8088 = vand.u32 %v1517, 4294901760
        %v8089 = vsub.f32 %v1517, %v8088
        %8090 = vmatprep.subr.mxu0 %v8089
        %v8091 = vand.u32 %v1516, 4294901760
        %v8092 = vsub.f32 %v1516, %v8091
        %8093 = vmatpush1.msra.mxu0 %v8092
        %v8094 = vand.u32 %v1513, 4294901760
        %v8095 = vsub.f32 %v1513, %v8094
        %8096 = vmatprep.subr.mxu0 %v8095
        %v8097 = vand.u32 %v1512, 4294901760
        %v8098 = vsub.f32 %v1512, %v8097
        %8099 = vmatpush1.msra.mxu0 %v8098
        %8100 = vmatprep.subr.mxu0 0.0
        %8101 = vmatpush2.msra.mxu0 0.0
        %8102 = vmatprep.subr.mxu0 0.0
        %8103 = vmatpush2.msra.mxu0 0.0
        %8104 = vmatprep.subr.mxu0 0.0
        %8105 = vmatpush2.msra.mxu0 0.0
        %8106 = vmatprep.subr.mxu0 0.0
        %8107 = vmatpush2.msra.mxu0 0.0
        %8108 = vmatprep.subr.mxu0 0.0
        %8109 = vmatpush2.msra.mxu0 0.0
        %8110 = vmatprep.subr.mxu0 0.0
        %8111 = vmatpush2.msra.mxu0 0.0
        %8112 = vmatprep.subr.mxu0 0.0
        %8113 = vmatpush2.msra.mxu0 0.0
        %8114 = vmatprep.subr.mxu0 0.0
        %8115 = vmatpush2.msra.mxu0 0.0
        %8116 = vmatprep.subr.mxu0 0.0
        %8117 = vmatpush2.msra.mxu0 0.0
        %8118 = vmatprep.subr.mxu0 0.0
        %8119 = vmatpush2.msra.mxu0 0.0
        %8120 = vmatprep.subr.mxu0 0.0
        %8121 = vmatpush2.msra.mxu0 0.0
        %8122 = vmatprep.subr.mxu0 0.0
        %8123 = vmatpush2.msra.mxu0 0.0
        %8124 = vmatprep.subr.mxu0 0.0
        %8125 = vmatpush2.msra.mxu0 0.0
        %8126 = vmatprep.subr.mxu0 0.0
        %8127 = vmatpush2.msra.mxu0 0.0
        %8128 = vmatprep.subr.mxu0 0.0
        %8129 = vmatpush2.msra.mxu0 0.0
        %8130 = vmatprep.subr.mxu0 0.0
        %8131 = vmatpush2.msra.mxu0 0.0
        %8132 = vmatprep.mubr.f32.mxu0 0.0
        %v8133 = vand.u32 %v6801, 4294901760
        %v8134 = vsub.f32 %v6801, %v8133
        %8135 = vmatmul.mubr.f32.gmra.mxu0 %v8134
        %v8136 = vpop.f32.mrf.mxu0
        %v8137 = vadd.f32 %v8000, %v8136
        %v8138 = vpop.f32.mrf.mxu0
        %v8139 = vadd.f32 %v8002, %v8138
        %8140 = vdwg.mxu0
        %v8141 = vand.u32 %v1573, 4294901760
        %8142 = vmatprep.subr.mxu0 %v8141
        %v8143 = vand.u32 %v1572, 4294901760
        %8144 = vmatpush1.msra.mxu0 %v8143
        %v8145 = vand.u32 %v1569, 4294901760
        %8146 = vmatprep.subr.mxu0 %v8145
        %v8147 = vand.u32 %v1568, 4294901760
        %8148 = vmatpush1.msra.mxu0 %v8147
        %v8149 = vand.u32 %v1565, 4294901760
        %8150 = vmatprep.subr.mxu0 %v8149
        %v8151 = vand.u32 %v1564, 4294901760
        %8152 = vmatpush1.msra.mxu0 %v8151
        %v8153 = vand.u32 %v1561, 4294901760
        %8154 = vmatprep.subr.mxu0 %v8153
        %v8155 = vand.u32 %v1560, 4294901760
        %8156 = vmatpush1.msra.mxu0 %v8155
        %v8157 = vand.u32 %v1557, 4294901760
        %8158 = vmatprep.subr.mxu0 %v8157
        %v8159 = vand.u32 %v1556, 4294901760
        %8160 = vmatpush1.msra.mxu0 %v8159
        %v8161 = vand.u32 %v1553, 4294901760
        %8162 = vmatprep.subr.mxu0 %v8161
        %v8163 = vand.u32 %v1552, 4294901760
        %8164 = vmatpush1.msra.mxu0 %v8163
        %v8165 = vand.u32 %v1549, 4294901760
        %8166 = vmatprep.subr.mxu0 %v8165
        %v8167 = vand.u32 %v1548, 4294901760
        %8168 = vmatpush1.msra.mxu0 %v8167
        %v8169 = vand.u32 %v1545, 4294901760
        %8170 = vmatprep.subr.mxu0 %v8169
        %v8171 = vand.u32 %v1544, 4294901760
        %8172 = vmatpush1.msra.mxu0 %v8171
        %v8173 = vand.u32 %v1541, 4294901760
        %8174 = vmatprep.subr.mxu0 %v8173
        %v8175 = vand.u32 %v1540, 4294901760
        %8176 = vmatpush1.msra.mxu0 %v8175
        %v8177 = vand.u32 %v1537, 4294901760
        %8178 = vmatprep.subr.mxu0 %v8177
        %v8179 = vand.u32 %v1536, 4294901760
        %8180 = vmatpush1.msra.mxu0 %v8179
        %v8181 = vand.u32 %v1533, 4294901760
        %8182 = vmatprep.subr.mxu0 %v8181
        %v8183 = vand.u32 %v1532, 4294901760
        %8184 = vmatpush1.msra.mxu0 %v8183
        %v8185 = vand.u32 %v1529, 4294901760
        %8186 = vmatprep.subr.mxu0 %v8185
        %v8187 = vand.u32 %v1528, 4294901760
        %8188 = vmatpush1.msra.mxu0 %v8187
        %v8189 = vand.u32 %v1525, 4294901760
        %8190 = vmatprep.subr.mxu0 %v8189
        %v8191 = vand.u32 %v1524, 4294901760
        %8192 = vmatpush1.msra.mxu0 %v8191
        %v8193 = vand.u32 %v1521, 4294901760
        %8194 = vmatprep.subr.mxu0 %v8193
        %v8195 = vand.u32 %v1520, 4294901760
        %8196 = vmatpush1.msra.mxu0 %v8195
        %v8197 = vand.u32 %v1517, 4294901760
        %8198 = vmatprep.subr.mxu0 %v8197
        %v8199 = vand.u32 %v1516, 4294901760
        %8200 = vmatpush1.msra.mxu0 %v8199
        %v8201 = vand.u32 %v1513, 4294901760
        %8202 = vmatprep.subr.mxu0 %v8201
        %v8203 = vand.u32 %v1512, 4294901760
        %8204 = vmatpush1.msra.mxu0 %v8203
        %8205 = vmatprep.subr.mxu0 0.0
        %8206 = vmatpush2.msra.mxu0 0.0
        %8207 = vmatprep.subr.mxu0 0.0
        %8208 = vmatpush2.msra.mxu0 0.0
        %8209 = vmatprep.subr.mxu0 0.0
        %8210 = vmatpush2.msra.mxu0 0.0
        %8211 = vmatprep.subr.mxu0 0.0
        %8212 = vmatpush2.msra.mxu0 0.0
        %8213 = vmatprep.subr.mxu0 0.0
        %8214 = vmatpush2.msra.mxu0 0.0
        %8215 = vmatprep.subr.mxu0 0.0
        %8216 = vmatpush2.msra.mxu0 0.0
        %8217 = vmatprep.subr.mxu0 0.0
        %8218 = vmatpush2.msra.mxu0 0.0
        %8219 = vmatprep.subr.mxu0 0.0
        %8220 = vmatpush2.msra.mxu0 0.0
        %8221 = vmatprep.subr.mxu0 0.0
        %8222 = vmatpush2.msra.mxu0 0.0
        %8223 = vmatprep.subr.mxu0 0.0
        %8224 = vmatpush2.msra.mxu0 0.0
        %8225 = vmatprep.subr.mxu0 0.0
        %8226 = vmatpush2.msra.mxu0 0.0
        %8227 = vmatprep.subr.mxu0 0.0
        %8228 = vmatpush2.msra.mxu0 0.0
        %8229 = vmatprep.subr.mxu0 0.0
        %8230 = vmatpush2.msra.mxu0 0.0
        %8231 = vmatprep.subr.mxu0 0.0
        %8232 = vmatpush2.msra.mxu0 0.0
        %8233 = vmatprep.subr.mxu0 0.0
        %8234 = vmatpush2.msra.mxu0 0.0
        %8235 = vmatprep.subr.mxu0 0.0
        %8236 = vmatpush2.msra.mxu0 0.0
        %8237 = vmatprep.mubr.f32.mxu0 0.0
        %v8238 = vand.u32 %v6801, 4294901760
        %v8239 = vsub.f32 %v6801, %v8238
        %v8240 = vand.u32 %v8239, 4294901760
        %8241 = vmatmul.mubr.f32.gmra.mxu0 %v8240
        %v8242 = vpop.f32.mrf.mxu0
        %v8243 = vadd.f32 %v8137, %v8242
        %v8244 = vpop.f32.mrf.mxu0
        %v8245 = vadd.f32 %v8139, %v8244
        %8246 = vdwg.mxu0
        %v8247 = vand.u32 %v1573, 4294901760
        %v8248 = vsub.f32 %v1573, %v8247
        %v8249 = vand.u32 %v8248, 4294901760
        %8250 = vmatprep.subr.mxu0 %v8249
        %v8251 = vand.u32 %v1572, 4294901760
        %v8252 = vsub.f32 %v1572, %v8251
        %v8253 = vand.u32 %v8252, 4294901760
        %8254 = vmatpush1.msra.mxu0 %v8253
        %v8255 = vand.u32 %v1569, 4294901760
        %v8256 = vsub.f32 %v1569, %v8255
        %v8257 = vand.u32 %v8256, 4294901760
        %8258 = vmatprep.subr.mxu0 %v8257
        %v8259 = vand.u32 %v1568, 4294901760
        %v8260 = vsub.f32 %v1568, %v8259
        %v8261 = vand.u32 %v8260, 4294901760
        %8262 = vmatpush1.msra.mxu0 %v8261
        %v8263 = vand.u32 %v1565, 4294901760
        %v8264 = vsub.f32 %v1565, %v8263
        %v8265 = vand.u32 %v8264, 4294901760
        %8266 = vmatprep.subr.mxu0 %v8265
        %v8267 = vand.u32 %v1564, 4294901760
        %v8268 = vsub.f32 %v1564, %v8267
        %v8269 = vand.u32 %v8268, 4294901760
        %8270 = vmatpush1.msra.mxu0 %v8269
        %v8271 = vand.u32 %v1561, 4294901760
        %v8272 = vsub.f32 %v1561, %v8271
        %v8273 = vand.u32 %v8272, 4294901760
        %8274 = vmatprep.subr.mxu0 %v8273
        %v8275 = vand.u32 %v1560, 4294901760
        %v8276 = vsub.f32 %v1560, %v8275
        %v8277 = vand.u32 %v8276, 4294901760
        %8278 = vmatpush1.msra.mxu0 %v8277
        %v8279 = vand.u32 %v1557, 4294901760
        %v8280 = vsub.f32 %v1557, %v8279
        %v8281 = vand.u32 %v8280, 4294901760
        %8282 = vmatprep.subr.mxu0 %v8281
        %v8283 = vand.u32 %v1556, 4294901760
        %v8284 = vsub.f32 %v1556, %v8283
        %v8285 = vand.u32 %v8284, 4294901760
        %8286 = vmatpush1.msra.mxu0 %v8285
        %v8287 = vand.u32 %v1553, 4294901760
        %v8288 = vsub.f32 %v1553, %v8287
        %v8289 = vand.u32 %v8288, 4294901760
        %8290 = vmatprep.subr.mxu0 %v8289
        %v8291 = vand.u32 %v1552, 4294901760
        %v8292 = vsub.f32 %v1552, %v8291
        %v8293 = vand.u32 %v8292, 4294901760
        %8294 = vmatpush1.msra.mxu0 %v8293
        %v8295 = vand.u32 %v1549, 4294901760
        %v8296 = vsub.f32 %v1549, %v8295
        %v8297 = vand.u32 %v8296, 4294901760
        %8298 = vmatprep.subr.mxu0 %v8297
        %v8299 = vand.u32 %v1548, 4294901760
        %v8300 = vsub.f32 %v1548, %v8299
        %v8301 = vand.u32 %v8300, 4294901760
        %8302 = vmatpush1.msra.mxu0 %v8301
        %v8303 = vand.u32 %v1545, 4294901760
        %v8304 = vsub.f32 %v1545, %v8303
        %v8305 = vand.u32 %v8304, 4294901760
        %8306 = vmatprep.subr.mxu0 %v8305
        %v8307 = vand.u32 %v1544, 4294901760
        %v8308 = vsub.f32 %v1544, %v8307
        %v8309 = vand.u32 %v8308, 4294901760
        %8310 = vmatpush1.msra.mxu0 %v8309
        %v8311 = vand.u32 %v1541, 4294901760
        %v8312 = vsub.f32 %v1541, %v8311
        %v8313 = vand.u32 %v8312, 4294901760
        %8314 = vmatprep.subr.mxu0 %v8313
        %v8315 = vand.u32 %v1540, 4294901760
        %v8316 = vsub.f32 %v1540, %v8315
        %v8317 = vand.u32 %v8316, 4294901760
        %8318 = vmatpush1.msra.mxu0 %v8317
        %v8319 = vand.u32 %v1537, 4294901760
        %v8320 = vsub.f32 %v1537, %v8319
        %v8321 = vand.u32 %v8320, 4294901760
        %8322 = vmatprep.subr.mxu0 %v8321
        %v8323 = vand.u32 %v1536, 4294901760
        %v8324 = vsub.f32 %v1536, %v8323
        %v8325 = vand.u32 %v8324, 4294901760
        %8326 = vmatpush1.msra.mxu0 %v8325
        %v8327 = vand.u32 %v1533, 4294901760
        %v8328 = vsub.f32 %v1533, %v8327
        %v8329 = vand.u32 %v8328, 4294901760
        %8330 = vmatprep.subr.mxu0 %v8329
        %v8331 = vand.u32 %v1532, 4294901760
        %v8332 = vsub.f32 %v1532, %v8331
        %v8333 = vand.u32 %v8332, 4294901760
        %8334 = vmatpush1.msra.mxu0 %v8333
        %v8335 = vand.u32 %v1529, 4294901760
        %v8336 = vsub.f32 %v1529, %v8335
        %v8337 = vand.u32 %v8336, 4294901760
        %8338 = vmatprep.subr.mxu0 %v8337
        %v8339 = vand.u32 %v1528, 4294901760
        %v8340 = vsub.f32 %v1528, %v8339
        %v8341 = vand.u32 %v8340, 4294901760
        %8342 = vmatpush1.msra.mxu0 %v8341
        %v8343 = vand.u32 %v1525, 4294901760
        %v8344 = vsub.f32 %v1525, %v8343
        %v8345 = vand.u32 %v8344, 4294901760
        %8346 = vmatprep.subr.mxu0 %v8345
        %v8347 = vand.u32 %v1524, 4294901760
        %v8348 = vsub.f32 %v1524, %v8347
        %v8349 = vand.u32 %v8348, 4294901760
        %8350 = vmatpush1.msra.mxu0 %v8349
        %v8351 = vand.u32 %v1521, 4294901760
        %v8352 = vsub.f32 %v1521, %v8351
        %v8353 = vand.u32 %v8352, 4294901760
        %8354 = vmatprep.subr.mxu0 %v8353
        %v8355 = vand.u32 %v1520, 4294901760
        %v8356 = vsub.f32 %v1520, %v8355
        %v8357 = vand.u32 %v8356, 4294901760
        %8358 = vmatpush1.msra.mxu0 %v8357
        %v8359 = vand.u32 %v1517, 4294901760
        %v8360 = vsub.f32 %v1517, %v8359
        %v8361 = vand.u32 %v8360, 4294901760
        %8362 = vmatprep.subr.mxu0 %v8361
        %v8363 = vand.u32 %v1516, 4294901760
        %v8364 = vsub.f32 %v1516, %v8363
        %v8365 = vand.u32 %v8364, 4294901760
        %8366 = vmatpush1.msra.mxu0 %v8365
        %v8367 = vand.u32 %v1513, 4294901760
        %v8368 = vsub.f32 %v1513, %v8367
        %v8369 = vand.u32 %v8368, 4294901760
        %8370 = vmatprep.subr.mxu0 %v8369
        %v8371 = vand.u32 %v1512, 4294901760
        %v8372 = vsub.f32 %v1512, %v8371
        %v8373 = vand.u32 %v8372, 4294901760
        %8374 = vmatpush1.msra.mxu0 %v8373
        %8375 = vmatprep.subr.mxu0 0.0
        %8376 = vmatpush2.msra.mxu0 0.0
        %8377 = vmatprep.subr.mxu0 0.0
        %8378 = vmatpush2.msra.mxu0 0.0
        %8379 = vmatprep.subr.mxu0 0.0
        %8380 = vmatpush2.msra.mxu0 0.0
        %8381 = vmatprep.subr.mxu0 0.0
        %8382 = vmatpush2.msra.mxu0 0.0
        %8383 = vmatprep.subr.mxu0 0.0
        %8384 = vmatpush2.msra.mxu0 0.0
        %8385 = vmatprep.subr.mxu0 0.0
        %8386 = vmatpush2.msra.mxu0 0.0
        %8387 = vmatprep.subr.mxu0 0.0
        %8388 = vmatpush2.msra.mxu0 0.0
        %8389 = vmatprep.subr.mxu0 0.0
        %8390 = vmatpush2.msra.mxu0 0.0
        %8391 = vmatprep.subr.mxu0 0.0
        %8392 = vmatpush2.msra.mxu0 0.0
        %8393 = vmatprep.subr.mxu0 0.0
        %8394 = vmatpush2.msra.mxu0 0.0
        %8395 = vmatprep.subr.mxu0 0.0
        %8396 = vmatpush2.msra.mxu0 0.0
        %8397 = vmatprep.subr.mxu0 0.0
        %8398 = vmatpush2.msra.mxu0 0.0
        %8399 = vmatprep.subr.mxu0 0.0
        %8400 = vmatpush2.msra.mxu0 0.0
        %8401 = vmatprep.subr.mxu0 0.0
        %8402 = vmatpush2.msra.mxu0 0.0
        %8403 = vmatprep.subr.mxu0 0.0
        %8404 = vmatpush2.msra.mxu0 0.0
        %8405 = vmatprep.subr.mxu0 0.0
        %8406 = vmatpush2.msra.mxu0 0.0
        %8407 = vmatprep.mubr.f32.mxu0 0.0
        %v8408 = vand.u32 %v6801, 4294901760
        %8409 = vmatmul.mubr.f32.gmra.mxu0 %v8408
        %v8410 = vpop.f32.mrf.mxu0
        %v8411 = vadd.f32 %v8243, %v8410
        %v8412 = vpop.f32.mrf.mxu0
        %v8413 = vadd.f32 %v8245, %v8412
        %8414 = vdwg.mxu0
        %v8415 = vand.u32 %v1573, 4294901760
        %8416 = vmatprep.subr.mxu0 %v8415
        %v8417 = vand.u32 %v1572, 4294901760
        %8418 = vmatpush1.msra.mxu0 %v8417
        %v8419 = vand.u32 %v1569, 4294901760
        %8420 = vmatprep.subr.mxu0 %v8419
        %v8421 = vand.u32 %v1568, 4294901760
        %8422 = vmatpush1.msra.mxu0 %v8421
        %v8423 = vand.u32 %v1565, 4294901760
        %8424 = vmatprep.subr.mxu0 %v8423
        %v8425 = vand.u32 %v1564, 4294901760
        %8426 = vmatpush1.msra.mxu0 %v8425
        %v8427 = vand.u32 %v1561, 4294901760
        %8428 = vmatprep.subr.mxu0 %v8427
        %v8429 = vand.u32 %v1560, 4294901760
        %8430 = vmatpush1.msra.mxu0 %v8429
        %v8431 = vand.u32 %v1557, 4294901760
        %8432 = vmatprep.subr.mxu0 %v8431
        %v8433 = vand.u32 %v1556, 4294901760
        %8434 = vmatpush1.msra.mxu0 %v8433
        %v8435 = vand.u32 %v1553, 4294901760
        %8436 = vmatprep.subr.mxu0 %v8435
        %v8437 = vand.u32 %v1552, 4294901760
        %8438 = vmatpush1.msra.mxu0 %v8437
        %v8439 = vand.u32 %v1549, 4294901760
        %8440 = vmatprep.subr.mxu0 %v8439
        %v8441 = vand.u32 %v1548, 4294901760
        %8442 = vmatpush1.msra.mxu0 %v8441
        %v8443 = vand.u32 %v1545, 4294901760
        %8444 = vmatprep.subr.mxu0 %v8443
        %v8445 = vand.u32 %v1544, 4294901760
        %8446 = vmatpush1.msra.mxu0 %v8445
        %v8447 = vand.u32 %v1541, 4294901760
        %8448 = vmatprep.subr.mxu0 %v8447
        %v8449 = vand.u32 %v1540, 4294901760
        %8450 = vmatpush1.msra.mxu0 %v8449
        %v8451 = vand.u32 %v1537, 4294901760
        %8452 = vmatprep.subr.mxu0 %v8451
        %v8453 = vand.u32 %v1536, 4294901760
        %8454 = vmatpush1.msra.mxu0 %v8453
        %v8455 = vand.u32 %v1533, 4294901760
        %8456 = vmatprep.subr.mxu0 %v8455
        %v8457 = vand.u32 %v1532, 4294901760
        %8458 = vmatpush1.msra.mxu0 %v8457
        %v8459 = vand.u32 %v1529, 4294901760
        %8460 = vmatprep.subr.mxu0 %v8459
        %v8461 = vand.u32 %v1528, 4294901760
        %8462 = vmatpush1.msra.mxu0 %v8461
        %v8463 = vand.u32 %v1525, 4294901760
        %8464 = vmatprep.subr.mxu0 %v8463
        %v8465 = vand.u32 %v1524, 4294901760
        %8466 = vmatpush1.msra.mxu0 %v8465
        %v8467 = vand.u32 %v1521, 4294901760
        %8468 = vmatprep.subr.mxu0 %v8467
        %v8469 = vand.u32 %v1520, 4294901760
        %8470 = vmatpush1.msra.mxu0 %v8469
        %v8471 = vand.u32 %v1517, 4294901760
        %8472 = vmatprep.subr.mxu0 %v8471
        %v8473 = vand.u32 %v1516, 4294901760
        %8474 = vmatpush1.msra.mxu0 %v8473
        %v8475 = vand.u32 %v1513, 4294901760
        %8476 = vmatprep.subr.mxu0 %v8475
        %v8477 = vand.u32 %v1512, 4294901760
        %8478 = vmatpush1.msra.mxu0 %v8477
        %8479 = vmatprep.subr.mxu0 0.0
        %8480 = vmatpush2.msra.mxu0 0.0
        %8481 = vmatprep.subr.mxu0 0.0
        %8482 = vmatpush2.msra.mxu0 0.0
        %8483 = vmatprep.subr.mxu0 0.0
        %8484 = vmatpush2.msra.mxu0 0.0
        %8485 = vmatprep.subr.mxu0 0.0
        %8486 = vmatpush2.msra.mxu0 0.0
        %8487 = vmatprep.subr.mxu0 0.0
        %8488 = vmatpush2.msra.mxu0 0.0
        %8489 = vmatprep.subr.mxu0 0.0
        %8490 = vmatpush2.msra.mxu0 0.0
        %8491 = vmatprep.subr.mxu0 0.0
        %8492 = vmatpush2.msra.mxu0 0.0
        %8493 = vmatprep.subr.mxu0 0.0
        %8494 = vmatpush2.msra.mxu0 0.0
        %8495 = vmatprep.subr.mxu0 0.0
        %8496 = vmatpush2.msra.mxu0 0.0
        %8497 = vmatprep.subr.mxu0 0.0
        %8498 = vmatpush2.msra.mxu0 0.0
        %8499 = vmatprep.subr.mxu0 0.0
        %8500 = vmatpush2.msra.mxu0 0.0
        %8501 = vmatprep.subr.mxu0 0.0
        %8502 = vmatpush2.msra.mxu0 0.0
        %8503 = vmatprep.subr.mxu0 0.0
        %8504 = vmatpush2.msra.mxu0 0.0
        %8505 = vmatprep.subr.mxu0 0.0
        %8506 = vmatpush2.msra.mxu0 0.0
        %8507 = vmatprep.subr.mxu0 0.0
        %8508 = vmatpush2.msra.mxu0 0.0
        %8509 = vmatprep.subr.mxu0 0.0
        %8510 = vmatpush2.msra.mxu0 0.0
        %8511 = vmatprep.mubr.f32.mxu0 0.0
        %v8512 = vand.u32 %v6801, 4294901760
        %8513 = vmatmul.mubr.f32.gmra.mxu0 %v8512
        %v8514 = vpop.f32.mrf.mxu0
        %v8515 = vadd.f32 %v8411, %v8514
        %v8516 = vpop.f32.mrf.mxu0
        %v8517 = vadd.f32 %v8413, %v8516
        %8518 = vdwg.mxu0
        %v8519 = vadd.f32 %v6805, %v7660
        %v8520 = vadd.f32 %v6806, %v7662
        %v8521 = vadd.f32 %v6807, %v8515
        %v8522 = vadd.f32 %v6808, %v8517
        %v8523 = vxor.u32 %v8519, 2147483648
        %v8524 = vmul.f32 %v8523, 1.442695
        %v8525 = vpow.pop %v8524
        %v8526 = vadd.f32 %v8525, 1.0
        %v8527 = vrcp.pop %v8526
        %v8528 = vmul.f32 1.0, %v8527
        %v8529 = vxor.u32 %v8520, 2147483648
        %v8530 = vmul.f32 %v8529, 1.442695
        %v8531 = vpow.pop %v8530
        %v8532 = vadd.f32 %v8531, 1.0
        %v8533 = vrcp.pop %v8532
        %v8534 = vmul.f32 1.0, %v8533
        %v8535 = vtanh.pop %v8521
        %v8536 = vxor.u32 %v8522, 2147483648
        %v8537 = vmul.f32 %v8536, 1.442695
        %v8538 = vpow.pop %v8537
        %v8539 = vadd.f32 %v8538, 1.0
        %v8540 = vrcp.pop %v8539
        %v8541 = vmul.f32 1.0, %v8540
        %v8542 = vmul.f32 %v8534, %v6799
        %v8543 = vmul.f32 %v8528, %v8535
        %v8544 = vadd.f32 %v8542, %v8543
        %v8545 = vtanh.pop %v8544
        %v8546 = vmul.f32 %v8541, %v8545
        %8547 = vst [vmem:[#allocation2] sm:$0xff] %v8546
        %8548 = vst [vmem:[#allocation3] sm:$0xff] %v8544
        %p8549 = scmp.eq.s32.totalorder %s17, 1
        // Predicated region
        $region45: #{tpu_custom_call.1} parent=35 // pred_check
          %p8550 = pneg %p8549
        $region46: #{tpu_custom_call.1} parent=35 // pred_check_branch
          %8552 = sbr.rel (%p8550) target = $region48
        $region47: #{tpu_custom_call.1} parent=35 // pred_region
          %8553 = vst [vmem:[#allocation8] sm:$0xff] %v8546
        $region48: #{tpu_custom_call.1} parent=35 // pred_fallthru
          _
        // Predicated region
        $region49: #{tpu_custom_call.1} parent=35 // pred_check
          %p8554 = pneg %p119
        $region50: #{tpu_custom_call.1} parent=35 // pred_check_branch
          %8556 = sbr.rel (%p8554) target = $region52
        $region51: #{tpu_custom_call.1} parent=35 // pred_region
          %s8558 = ssub.s32 128, 128
          %8559 = vsyncadd [#allocation7], %s8558
          %s8561 = sshll.u32 [#allocation8], 4
          %s8562 = int_to_ptr.vmem [resolvable:$true] %s8561
          %8564 = dma.vmem_to_hbm [thread:$0]  %s8562, 128, %s4, [#allocation7]
        $region52: #{tpu_custom_call.1} parent=35 // pred_fallthru
          _
        // Predicated region
        $region53: #{tpu_custom_call.1} parent=35 // pred_check
          %p8565 = pneg %p119
        $region54: #{tpu_custom_call.1} parent=35 // pred_check_branch
          %8567 = sbr.rel (%p8565) target = $region56
        $region55: #{tpu_custom_call.1} parent=35 // pred_region
          %8568 = dma.done [#allocation7], 128
        $region56: #{tpu_custom_call.1} parent=35 // pred_fallthru
          _
      $region36: #{tpu_custom_call.1} parent=5 // pred_fallthru
        _
      %p8569 = scmp.le.s32.totalorder 2, %s12
      // Predicated region
      $region57: #{tpu_custom_call.1} parent=5 // pred_check
        %p8570 = pneg %p8569
      $region58: #{tpu_custom_call.1} parent=5 // pred_check_branch
        %8572 = sbr.rel (%p8570) target = $region60
      $region59: #{tpu_custom_call.1} parent=5 // pred_region
        %s8573 = ssub.s32 %s12, 2
      $region60: #{tpu_custom_call.1} parent=5 // pred_fallthru
        _
    $region6: #{tpu_custom_call.1} parent=1 // loop_footer
      %s16 = sadd.s32 1, %s12
    $region7: #{tpu_custom_call.1} parent=1 // loop_footer_branch
      %11 = sbr.rel target = $region3
    $region8: #{tpu_custom_call.1} parent=1 // loop_exit
      _
    %8574 = vsyncpa [#allocation6], 1
    %s8575 = scalar_lea.sflag [#allocation6], 1
    %8576 = vsyncpa %s8575, 1
    %8577 = vsyncpa [#allocation7], 1
    %s8578 = scalar_lea.sflag [#allocation7], 1
    %8579 = vsyncpa %s8578, 1

</llo_original>
